<compile_context>
chip_gen: v5e
topology: v5e:2x2
jax: 0.10.0
libtpu: 0.0.40
codegen_flags: <defaults>
</compile_context>

<pallas_src>
import numpy as np

import jax
import jax.numpy as jnp
from jax.experimental import pallas as pl
from jax.experimental.pallas import tpu as pltpu


MXU_DTYPE = jnp.bfloat16


# ----------------------------------------------------------------------------
# The one fused Pallas kernel: 5 back-to-back MXU matmuls + f32 epilogues.
# ----------------------------------------------------------------------------
def _decoder_fused_kernel(x_ref, w1_ref, b1_ref, w2_ref, b2_ref,
                          m1_ref, s1_ref, m2_ref, s2_ref, m3_ref, s3_ref,
                          o_ref):
    # Linear(enc,128) + ReLU
    h = jnp.dot(x_ref[...], w1_ref[...], preferred_element_type=jnp.float32)
    h = jnp.maximum(h + b1_ref[...], 0.0)
    # Linear(128,288) + ReLU   (columns pre-permuted -> flat NHWC (3,3,32))
    h = jnp.dot(h.astype(w2_ref.dtype), w2_ref[...],
                preferred_element_type=jnp.float32)
    h = jnp.maximum(h + b2_ref[...], 0.0)
    # ConvTranspose2d(32,16,3,s=2) + BN(16) + ReLU  -> flat (7,7,16) = 784 lanes
    h = jnp.dot(h.astype(m1_ref.dtype), m1_ref[...],
                preferred_element_type=jnp.float32)
    h = jnp.maximum(h + s1_ref[...], 0.0)
    # ConvTranspose2d(16,8,3,s=2,p=1,op=1) + BN(8) + ReLU -> (14,14,8) = 1568 lanes
    h = jnp.dot(h.astype(m2_ref.dtype), m2_ref[...],
                preferred_element_type=jnp.float32)
    h = jnp.maximum(h + s2_ref[...], 0.0)
    # ConvTranspose2d(8,1,3,s=2,p=1,op=1) + Sigmoid -> (28,28,1) = 784 lanes
    h = jnp.dot(h.astype(m3_ref.dtype), m3_ref[...],
                preferred_element_type=jnp.float32)
    o_ref[...] = jax.nn.sigmoid(h + s3_ref[...]).astype(o_ref.dtype)


def decoder_forward(q, x, *, tm=256):
    """x: (B, encoded_space_dim) f32 -> (B, 1, 28, 28) f32."""
    b, enc = x.shape
    x = x.astype(MXU_DTYPE)

    tm = b if b <= tm else tm          # whole batch in one block when it is small
    b_pad = -(-b // tm) * tm
    if b_pad != b:
        x = jnp.pad(x, ((0, b_pad - b), (0, 0)))

    weights = (q["fc1_w"], q["fc1_b"], q["fc2_w"], q["fc2_b"],
               q["m1"], q["s1"], q["m2"], q["s2"], q["m3"], q["s3"])
    # Weights / shifts: whole-array VMEM blocks, constant across the M grid.
    w_specs = [pl.BlockSpec(wt.shape, lambda i: (0, 0)) for wt in weights]

    out = pl.pallas_call(
        _decoder_fused_kernel,
        out_shape=jax.ShapeDtypeStruct((b_pad, 28 * 28), jnp.float32),
        grid=(b_pad // tm,),
        in_specs=[pl.BlockSpec((tm, enc), lambda i: (i, 0))] + w_specs,
        out_specs=pl.BlockSpec((tm, 28 * 28), lambda i: (i, 0)),
        compiler_params=pltpu.CompilerParams(
            dimension_semantics=("parallel",),        # v7x: 2 TCs split the rows
            vmem_limit_bytes=32 * 1024 * 1024),
    )(x, *weights)

    # Flat output order is (H, W, C=1), so this reshape IS the NCHW result.
    return out[:b].reshape(b, 1, 28, 28)


# ----------------------------------------------------------------------------
# Parameters: PyTorch layouts, then a one-time prep that builds the dense
# ConvTranspose operators, folds eval-mode BatchNorm and casts MXU operands.
# ----------------------------------------------------------------------------
def make_params(key, encoded_space_dim):
    """Random parameters with the same shapes as the nn.Module."""
    ks = jax.random.split(key, 18)
    p = {}
    p["fc1_w"] = 0.1 * jax.random.normal(ks[0], (128, encoded_space_dim), jnp.float32)
    p["fc1_b"] = 0.1 * jax.random.normal(ks[1], (128,), jnp.float32)
    p["fc2_w"] = 0.1 * jax.random.normal(ks[2], (3 * 3 * 32, 128), jnp.float32)
    p["fc2_b"] = 0.1 * jax.random.normal(ks[3], (3 * 3 * 32,), jnp.float32)
    # ConvTranspose2d weights are (Cin, Cout, kh, kw) in PyTorch.
    p["ct1_w"] = 0.1 * jax.random.normal(ks[4], (32, 16, 3, 3), jnp.float32)
    p["ct1_b"] = 0.1 * jax.random.normal(ks[5], (16,), jnp.float32)
    p["bn1_gamma"] = 1.0 + 0.1 * jax.random.normal(ks[6], (16,), jnp.float32)
    p["bn1_beta"] = 0.1 * jax.random.normal(ks[7], (16,), jnp.float32)
    p["bn1_mean"] = 0.1 * jax.random.normal(ks[8], (16,), jnp.float32)
    p["bn1_var"] = jnp.abs(1.0 + 0.1 * jax.random.normal(ks[9], (16,), jnp.float32))
    p["ct2_w"] = 0.1 * jax.random.normal(ks[10], (16, 8, 3, 3), jnp.float32)
    p["ct2_b"] = 0.1 * jax.random.normal(ks[11], (8,), jnp.float32)
    p["bn2_gamma"] = 1.0 + 0.1 * jax.random.normal(ks[12], (8,), jnp.float32)
    p["bn2_beta"] = 0.1 * jax.random.normal(ks[13], (8,), jnp.float32)
    p["bn2_mean"] = 0.1 * jax.random.normal(ks[14], (8,), jnp.float32)
    p["bn2_var"] = jnp.abs(1.0 + 0.1 * jax.random.normal(ks[15], (8,), jnp.float32))
    p["ct3_w"] = 0.1 * jax.random.normal(ks[16], (8, 1, 3, 3), jnp.float32)
    p["ct3_b"] = 0.1 * jax.random.normal(ks[17], (1,), jnp.float32)
    return p


def _convT_operator(w_t, *, stride, padding, output_padding, h, w):
    """Dense (h*w*cin, ho*wo*cout) f32 matrix of ConvTranspose2d (no bias).

    PyTorch scatter semantics: out[oh, ow, co] += x[ih, iw, ci] * W[ci, co, kh, kw]
    with oh = ih*stride - padding + kh (and same for ow).  Flattening order on
    both sides is spatial-major / channel-fastest (NHWC flat)."""
    cin, cout, k, _ = w_t.shape
    ho = (h - 1) * stride - 2 * padding + k + output_padding
    wo = (w - 1) * stride - 2 * padding + k + output_padding
    sel = np.zeros((h * w, ho * wo, k * k), np.float32)
    for ih in range(h):
        for iw in range(w):
            for kh in range(k):
                oh = ih * stride - padding + kh
                if not (0 <= oh < ho):
                    continue
                for kw in range(k):
                    ow = iw * stride - padding + kw
                    if not (0 <= ow < wo):
                        continue
                    sel[ih * w + iw, oh * wo + ow, kh * k + kw] = 1.0
    m = jnp.einsum("pqt,iot->piqo", jnp.asarray(sel),
                   w_t.reshape(cin, cout, k * k))
    return m.reshape(h * w * cin, ho * wo * cout), ho, wo


def prepare_params(p, eps=1e-5):
    """One-time prep: transpose/permute Linear weights, lower each ConvTranspose2d
    to a dense operator, fold eval-mode BatchNorm (scale into columns, rest into a
    per-position shift row), cast MXU operands to bf16."""
    q = {}
    q["fc1_w"] = p["fc1_w"].T.astype(MXU_DTYPE)
    q["fc1_b"] = p["fc1_b"].reshape(1, -1).astype(jnp.float32)
    # Permute fc2 columns from PyTorch's flat (C,H,W) to flat (H,W,C) so the
    # Unflatten is already in the operator's NHWC-flat order (zero transposes).
    perm = np.arange(3 * 3 * 32).reshape(32, 3, 3).transpose(1, 2, 0).reshape(-1)
    q["fc2_w"] = p["fc2_w"].T[:, perm].astype(MXU_DTYPE)
    q["fc2_b"] = p["fc2_b"][perm].reshape(1, -1).astype(jnp.float32)

    # ConvT1 (3x3 -> 7x7, 32->16) + BatchNorm2d(16), eval mode.
    m1, ho1, wo1 = _convT_operator(p["ct1_w"], stride=2, padding=0,
                                   output_padding=0, h=3, w=3)
    s1 = p["bn1_gamma"] / jnp.sqrt(p["bn1_var"] + eps)
    q["m1"] = (m1 * jnp.tile(s1, ho1 * wo1)[None, :]).astype(MXU_DTYPE)
    q["s1"] = jnp.tile((p["ct1_b"] - p["bn1_mean"]) * s1 + p["bn1_beta"],
                       ho1 * wo1).reshape(1, -1).astype(jnp.float32)

    # ConvT2 (7x7 -> 14x14, 16->8) + BatchNorm2d(8), eval mode.
    m2, ho2, wo2 = _convT_operator(p["ct2_w"], stride=2, padding=1,
                                   output_padding=1, h=ho1, w=wo1)
    s2 = p["bn2_gamma"] / jnp.sqrt(p["bn2_var"] + eps)
    q["m2"] = (m2 * jnp.tile(s2, ho2 * wo2)[None, :]).astype(MXU_DTYPE)
    q["s2"] = jnp.tile((p["ct2_b"] - p["bn2_mean"]) * s2 + p["bn2_beta"],
                       ho2 * wo2).reshape(1, -1).astype(jnp.float32)

    # ConvT3 (14x14 -> 28x28, 8->1), no BatchNorm.
    m3, ho3, wo3 = _convT_operator(p["ct3_w"], stride=2, padding=1,
                                   output_padding=1, h=ho2, w=wo2)
    q["m3"] = m3.astype(MXU_DTYPE)
    q["s3"] = jnp.tile(p["ct3_b"], ho3 * wo3).reshape(1, -1).astype(jnp.float32)
    return q


# ----------------------------------------------------------------------------
# Pure-JAX f32 reference (eval-mode BatchNorm) for a tolerance check.
# ----------------------------------------------------------------------------
def _convT_ref(x, w_t, b, *, stride, padding, output_padding):
    k = w_t.shape[2]
    w_conv = jnp.flip(w_t, (2, 3)).transpose(1, 0, 2, 3)   # (Cout, Cin, kh, kw)
    lo = k - 1 - padding
    hi = k - 1 - padding + output_padding
    y = jax.lax.conv_general_dilated(
        x, w_conv, window_strides=(1, 1), padding=[(lo, hi), (lo, hi)],
        lhs_dilation=(stride, stride),
        dimension_numbers=("NCHW", "OIHW", "NCHW"))
    return y + b.reshape(1, -1, 1, 1)


def _bn_eval(x, gamma, beta, mean, var, eps):
    inv = gamma / jnp.sqrt(var + eps)
    return x * inv.reshape(1, -1, 1, 1) + (beta - mean * inv).reshape(1, -1, 1, 1)


def decoder_reference(p, x, eps=1e-5):
    h = jnp.maximum(x @ p["fc1_w"].T + p["fc1_b"], 0.0)
    h = jnp.maximum(h @ p["fc2_w"].T + p["fc2_b"], 0.0)
    h = h.reshape(-1, 32, 3, 3)
    h = _convT_ref(h, p["ct1_w"], p["ct1_b"], stride=2, padding=0, output_padding=0)
    h = jnp.maximum(_bn_eval(h, p["bn1_gamma"], p["bn1_beta"],
                             p["bn1_mean"], p["bn1_var"], eps), 0.0)
    h = _convT_ref(h, p["ct2_w"], p["ct2_b"], stride=2, padding=1, output_padding=1)
    h = jnp.maximum(_bn_eval(h, p["bn2_gamma"], p["bn2_beta"],
                             p["bn2_mean"], p["bn2_var"], eps), 0.0)
    h = _convT_ref(h, p["ct3_w"], p["ct3_b"], stride=2, padding=1, output_padding=1)
    return jax.nn.sigmoid(h)


if __name__ == "__main__":
    encoded_space_dim = 8
    fc2_input_dim = 128   # present in the nn.Module ctor, unused by forward()
    batch = 2

    key = jax.random.PRNGKey(0)
    k_params, k_x = jax.random.split(key)
    params = make_params(k_params, encoded_space_dim)
    prepared = prepare_params(params)

    # Decoder input is the latent code: (B, encoded_space_dim).
    x = jax.random.normal(k_x, (batch, encoded_space_dim), jnp.float32)

    fwd = jax.jit(decoder_forward)
    out = jax.block_until_ready(fwd(prepared, x))

    assert out.shape == (batch, 1, 28, 28)
    assert out.dtype == jnp.float32
    assert bool(jnp.all((out >= 0.0) & (out <= 1.0)))  # sigmoid output range

    # Tolerance check vs the f32 reference (bf16 MXU operands -> small drift).
    ref = jax.jit(decoder_reference)(params, x)
    max_err = float(jnp.max(jnp.abs(out - ref)))
    assert max_err < 5e-2, f"max abs error vs reference: {max_err}"

    print("KERNEL_OK")
</pallas_src>

<mosaic_0001>
module attributes {stable_mosaic.version = 11 : i64} {
  func.func @_decoder_fused_kernel(%arg0: i32, %arg1: memref<2x8xbf16, #tpu.memory_space<vmem>>, %arg2: memref<8x128xbf16, #tpu.memory_space<vmem>>, %arg3: memref<1x128xf32, #tpu.memory_space<vmem>>, %arg4: memref<128x288xbf16, #tpu.memory_space<vmem>>, %arg5: memref<1x288xf32, #tpu.memory_space<vmem>>, %arg6: memref<288x784xbf16, #tpu.memory_space<vmem>>, %arg7: memref<1x784xf32, #tpu.memory_space<vmem>>, %arg8: memref<784x1568xbf16, #tpu.memory_space<vmem>>, %arg9: memref<1x1568xf32, #tpu.memory_space<vmem>>, %arg10: memref<1568x784xbf16, #tpu.memory_space<vmem>>, %arg11: memref<1x784xf32, #tpu.memory_space<vmem>>, %arg12: memref<2x784xf32, #tpu.memory_space<vmem>>) attributes {dimension_semantics = [#tpu.dimension_semantics<parallel>], iteration_bounds = array<i64: 1>, scalar_prefetch = 0 : i64, scratch_operands = 0 : i64, tpu.core_type = #tpu.core_type<tc>, window_params = [{transform_indices = @transform_0, window_bounds = array<i64: 2, 8>}, {pipeline_mode = #tpu.pipeline_mode<synchronous>, transform_indices = @transform_1, window_bounds = array<i64: 8, 128>}, {pipeline_mode = #tpu.pipeline_mode<synchronous>, transform_indices = @transform_2, window_bounds = array<i64: 1, 128>}, {pipeline_mode = #tpu.pipeline_mode<synchronous>, transform_indices = @transform_3, window_bounds = array<i64: 128, 288>}, {pipeline_mode = #tpu.pipeline_mode<synchronous>, transform_indices = @transform_4, window_bounds = array<i64: 1, 288>}, {pipeline_mode = #tpu.pipeline_mode<synchronous>, transform_indices = @transform_5, window_bounds = array<i64: 288, 784>}, {pipeline_mode = #tpu.pipeline_mode<synchronous>, transform_indices = @transform_6, window_bounds = array<i64: 1, 784>}, {pipeline_mode = #tpu.pipeline_mode<synchronous>, transform_indices = @transform_7, window_bounds = array<i64: 784, 1568>}, {pipeline_mode = #tpu.pipeline_mode<synchronous>, transform_indices = @transform_8, window_bounds = array<i64: 1, 1568>}, {pipeline_mode = #tpu.pipeline_mode<synchronous>, transform_indices = @transform_9, window_bounds = array<i64: 1568, 784>}, {pipeline_mode = #tpu.pipeline_mode<synchronous>, transform_indices = @transform_10, window_bounds = array<i64: 1, 784>}, {transform_indices = @transform_11, window_bounds = array<i64: 2, 784>}]} {
    %c0 = arith.constant 0 : index
    %c0_0 = arith.constant 0 : index
    %0 = vector.load %arg1[%c0, %c0_0] : memref<2x8xbf16, #tpu.memory_space<vmem>>, vector<2x8xbf16>
    %c0_1 = arith.constant 0 : index
    %c0_2 = arith.constant 0 : index
    %1 = vector.load %arg2[%c0_1, %c0_2] : memref<8x128xbf16, #tpu.memory_space<vmem>>, vector<8x128xbf16>
    %cst = arith.constant dense<0.000000e+00> : vector<2x128xf32>
    %2 = tpu.matmul %0, %1, %cst {dimension_numbers = #tpu.dot_dimension_numbers<[1], [0], [0], [1], [0, 0, 1, 1], [], []>} : vector<2x8xbf16>, vector<8x128xbf16>, vector<2x128xf32> -> vector<2x128xf32>
    %c0_3 = arith.constant 0 : index
    %c0_4 = arith.constant 0 : index
    %3 = vector.load %arg3[%c0_3, %c0_4] : memref<1x128xf32, #tpu.memory_space<vmem>>, vector<1x128xf32>
    %4 = vector.broadcast %3 : vector<1x128xf32> to vector<2x128xf32>
    %5 = arith.addf %2, %4 : vector<2x128xf32>
    %cst_5 = arith.constant 0.000000e+00 : f32
    %6 = vector.broadcast %cst_5 : f32 to vector<2x128xf32>
    %7 = arith.maximumf %5, %6 : vector<2x128xf32>
    %8 = arith.truncf %7 : vector<2x128xf32> to vector<2x128xbf16>
    %c0_6 = arith.constant 0 : index
    %c0_7 = arith.constant 0 : index
    %9 = vector.load %arg4[%c0_6, %c0_7] : memref<128x288xbf16, #tpu.memory_space<vmem>>, vector<128x288xbf16>
    %cst_8 = arith.constant dense<0.000000e+00> : vector<2x288xf32>
    %10 = tpu.matmul %8, %9, %cst_8 {dimension_numbers = #tpu.dot_dimension_numbers<[1], [0], [0], [1], [0, 0, 1, 1], [], []>} : vector<2x128xbf16>, vector<128x288xbf16>, vector<2x288xf32> -> vector<2x288xf32>
    %c0_9 = arith.constant 0 : index
    %c0_10 = arith.constant 0 : index
    %11 = vector.load %arg5[%c0_9, %c0_10] : memref<1x288xf32, #tpu.memory_space<vmem>>, vector<1x288xf32>
    %12 = vector.broadcast %11 : vector<1x288xf32> to vector<2x288xf32>
    %13 = arith.addf %10, %12 : vector<2x288xf32>
    %cst_11 = arith.constant 0.000000e+00 : f32
    %14 = vector.broadcast %cst_11 : f32 to vector<2x288xf32>
    %15 = arith.maximumf %13, %14 : vector<2x288xf32>
    %16 = arith.truncf %15 : vector<2x288xf32> to vector<2x288xbf16>
    %c0_12 = arith.constant 0 : index
    %c0_13 = arith.constant 0 : index
    %17 = vector.load %arg6[%c0_12, %c0_13] : memref<288x784xbf16, #tpu.memory_space<vmem>>, vector<288x784xbf16>
    %cst_14 = arith.constant dense<0.000000e+00> : vector<2x784xf32>
    %18 = tpu.matmul %16, %17, %cst_14 {dimension_numbers = #tpu.dot_dimension_numbers<[1], [0], [0], [1], [0, 0, 1, 1], [], []>} : vector<2x288xbf16>, vector<288x784xbf16>, vector<2x784xf32> -> vector<2x784xf32>
    %c0_15 = arith.constant 0 : index
    %c0_16 = arith.constant 0 : index
    %19 = vector.load %arg7[%c0_15, %c0_16] : memref<1x784xf32, #tpu.memory_space<vmem>>, vector<1x784xf32>
    %20 = vector.broadcast %19 : vector<1x784xf32> to vector<2x784xf32>
    %21 = arith.addf %18, %20 : vector<2x784xf32>
    %cst_17 = arith.constant 0.000000e+00 : f32
    %22 = vector.broadcast %cst_17 : f32 to vector<2x784xf32>
    %23 = arith.maximumf %21, %22 : vector<2x784xf32>
    %24 = arith.truncf %23 : vector<2x784xf32> to vector<2x784xbf16>
    %c0_18 = arith.constant 0 : index
    %c0_19 = arith.constant 0 : index
    %25 = vector.load %arg8[%c0_18, %c0_19] : memref<784x1568xbf16, #tpu.memory_space<vmem>>, vector<784x1568xbf16>
    %cst_20 = arith.constant dense<0.000000e+00> : vector<2x1568xf32>
    %26 = tpu.matmul %24, %25, %cst_20 {dimension_numbers = #tpu.dot_dimension_numbers<[1], [0], [0], [1], [0, 0, 1, 1], [], []>} : vector<2x784xbf16>, vector<784x1568xbf16>, vector<2x1568xf32> -> vector<2x1568xf32>
    %c0_21 = arith.constant 0 : index
    %c0_22 = arith.constant 0 : index
    %27 = vector.load %arg9[%c0_21, %c0_22] : memref<1x1568xf32, #tpu.memory_space<vmem>>, vector<1x1568xf32>
    %28 = vector.broadcast %27 : vector<1x1568xf32> to vector<2x1568xf32>
    %29 = arith.addf %26, %28 : vector<2x1568xf32>
    %cst_23 = arith.constant 0.000000e+00 : f32
    %30 = vector.broadcast %cst_23 : f32 to vector<2x1568xf32>
    %31 = arith.maximumf %29, %30 : vector<2x1568xf32>
    %32 = arith.truncf %31 : vector<2x1568xf32> to vector<2x1568xbf16>
    %c0_24 = arith.constant 0 : index
    %c0_25 = arith.constant 0 : index
    %33 = vector.load %arg10[%c0_24, %c0_25] : memref<1568x784xbf16, #tpu.memory_space<vmem>>, vector<1568x784xbf16>
    %cst_26 = arith.constant dense<0.000000e+00> : vector<2x784xf32>
    %34 = tpu.matmul %32, %33, %cst_26 {dimension_numbers = #tpu.dot_dimension_numbers<[1], [0], [0], [1], [0, 0, 1, 1], [], []>} : vector<2x1568xbf16>, vector<1568x784xbf16>, vector<2x784xf32> -> vector<2x784xf32>
    %c0_27 = arith.constant 0 : index
    %c0_28 = arith.constant 0 : index
    %35 = vector.load %arg11[%c0_27, %c0_28] : memref<1x784xf32, #tpu.memory_space<vmem>>, vector<1x784xf32>
    %36 = vector.broadcast %35 : vector<1x784xf32> to vector<2x784xf32>
    %37 = arith.addf %34, %36 : vector<2x784xf32>
    %38 = arith.negf %37 : vector<2x784xf32>
    %39 = math.exp %38 : vector<2x784xf32>
    %cst_29 = arith.constant 1.000000e+00 : f32
    %40 = vector.broadcast %cst_29 : f32 to vector<2x784xf32>
    %41 = arith.addf %40, %39 : vector<2x784xf32>
    %42 = arith.divf %40, %41 : vector<2x784xf32>
    %c0_30 = arith.constant 0 : index
    %c0_31 = arith.constant 0 : index
    %43 = vector.load %arg12[%c0_30, %c0_31] : memref<2x784xf32, #tpu.memory_space<vmem>>, vector<2x784xf32>
    tpu.vector_store %arg12[%c0_30, %c0_31], %42 {strides = array<i32>} : memref<2x784xf32, #tpu.memory_space<vmem>>, vector<2x784xf32>,
    return
  }
  func.func @transform_0(%arg0: i32) -> (i32, i32) {
    %c0_i32 = arith.constant 0 : i32
    %c0_i32_0 = arith.constant 0 : i32
    return %arg0, %c0_i32 : i32, i32
  }
  func.func @transform_1(%arg0: i32) -> (i32, i32) {
    %c0_i32 = arith.constant 0 : i32
    %c0_i32_0 = arith.constant 0 : i32
    %c0_i32_1 = arith.constant 0 : i32
    return %c0_i32, %c0_i32_0 : i32, i32
  }
  func.func @transform_2(%arg0: i32) -> (i32, i32) {
    %c0_i32 = arith.constant 0 : i32
    %c0_i32_0 = arith.constant 0 : i32
    %c0_i32_1 = arith.constant 0 : i32
    return %c0_i32, %c0_i32_0 : i32, i32
  }
  func.func @transform_3(%arg0: i32) -> (i32, i32) {
    %c0_i32 = arith.constant 0 : i32
    %c0_i32_0 = arith.constant 0 : i32
    %c0_i32_1 = arith.constant 0 : i32
    return %c0_i32, %c0_i32_0 : i32, i32
  }
  func.func @transform_4(%arg0: i32) -> (i32, i32) {
    %c0_i32 = arith.constant 0 : i32
    %c0_i32_0 = arith.constant 0 : i32
    %c0_i32_1 = arith.constant 0 : i32
    return %c0_i32, %c0_i32_0 : i32, i32
  }
  func.func @transform_5(%arg0: i32) -> (i32, i32) {
    %c0_i32 = arith.constant 0 : i32
    %c0_i32_0 = arith.constant 0 : i32
    %c0_i32_1 = arith.constant 0 : i32
    return %c0_i32, %c0_i32_0 : i32, i32
  }
  func.func @transform_6(%arg0: i32) -> (i32, i32) {
    %c0_i32 = arith.constant 0 : i32
    %c0_i32_0 = arith.constant 0 : i32
    %c0_i32_1 = arith.constant 0 : i32
    return %c0_i32, %c0_i32_0 : i32, i32
  }
  func.func @transform_7(%arg0: i32) -> (i32, i32) {
    %c0_i32 = arith.constant 0 : i32
    %c0_i32_0 = arith.constant 0 : i32
    %c0_i32_1 = arith.constant 0 : i32
    return %c0_i32, %c0_i32_0 : i32, i32
  }
  func.func @transform_8(%arg0: i32) -> (i32, i32) {
    %c0_i32 = arith.constant 0 : i32
    %c0_i32_0 = arith.constant 0 : i32
    %c0_i32_1 = arith.constant 0 : i32
    return %c0_i32, %c0_i32_0 : i32, i32
  }
  func.func @transform_9(%arg0: i32) -> (i32, i32) {
    %c0_i32 = arith.constant 0 : i32
    %c0_i32_0 = arith.constant 0 : i32
    %c0_i32_1 = arith.constant 0 : i32
    return %c0_i32, %c0_i32_0 : i32, i32
  }
  func.func @transform_10(%arg0: i32) -> (i32, i32) {
    %c0_i32 = arith.constant 0 : i32
    %c0_i32_0 = arith.constant 0 : i32
    %c0_i32_1 = arith.constant 0 : i32
    return %c0_i32, %c0_i32_0 : i32, i32
  }
  func.func @transform_11(%arg0: i32) -> (i32, i32) {
    %c0_i32 = arith.constant 0 : i32
    %c0_i32_0 = arith.constant 0 : i32
    return %arg0, %c0_i32 : i32, i32
  }
}

</mosaic_0001>

<llo_original>
// kernel: decoder_forward.1
$region0: #{decoder_forward.1}
  #allocation0 [shape = 'u32[]', space=smem, size = 0x4, offset = 0x4, fixed_abs, tag = 'smem constant byte address 0x4 - core index']
  #allocation1 [shape = 'u32[72,128]{1,0:T(1,128)}', space=vmem, size = 0x9000, scoped, tag = 'internal scratch']
  %s0 = inlined_call_operand.vmem [shape: bf16[2,8], index: 0, kind: input, shape index: {}]
  %s1 = inlined_call_operand.vmem [shape: bf16[8,128], index: 1, kind: input, shape index: {}]
  %s2 = inlined_call_operand.vmem [shape: f32[1,128], index: 2, kind: input, shape index: {}]
  %s3 = inlined_call_operand.vmem [shape: bf16[128,288], index: 3, kind: input, shape index: {}]
  %s4 = inlined_call_operand.vmem [shape: f32[1,288], index: 4, kind: input, shape index: {}]
  %s5 = inlined_call_operand.vmem [shape: bf16[288,784], index: 5, kind: input, shape index: {}]
  %s6 = inlined_call_operand.vmem [shape: f32[1,784], index: 6, kind: input, shape index: {}]
  %s7 = inlined_call_operand.vmem [shape: bf16[784,1568], index: 7, kind: input, shape index: {}]
  %s8 = inlined_call_operand.vmem [shape: f32[1,1568], index: 8, kind: input, shape index: {}]
  %s9 = inlined_call_operand.vmem [shape: bf16[1568,784], index: 9, kind: input, shape index: {}]
  %s10 = inlined_call_operand.vmem [shape: f32[1,784], index: 10, kind: input, shape index: {}]
  %s11 = inlined_call_operand.vmem [shape: f32[2,784], index: 11, kind: output, shape index: {}]
  %s12 = sld [smem:[#allocation0]]
  $region54: #{decoder_forward.1} parent=0
    _
  %s14 = ssub.s32 1, %s12
  %s15 = scalar_select 0, %s14, %s12
  // Predicated region
  $region2: #{decoder_forward.1} parent=0 // pred_check
    _
  $region3: #{decoder_forward.1} parent=0 // pred_check_branch
    %17 = sbr.rel (0) target = $region5
  $region4: #{decoder_forward.1} parent=0 // pred_region
    _
  $region5: #{decoder_forward.1} parent=0 // pred_fallthru
    _
  // Predicated region
  $region6: #{decoder_forward.1} parent=0 // pred_check
    _
  $region7: #{decoder_forward.1} parent=0 // pred_check_branch
    %19 = sbr.rel (0) target = $region9
  $region8: #{decoder_forward.1} parent=0 // pred_region
    _
  $region9: #{decoder_forward.1} parent=0 // pred_fallthru
    _
  // Predicated region
  $region10: #{decoder_forward.1} parent=0 // pred_check
    _
  $region11: #{decoder_forward.1} parent=0 // pred_check_branch
    %21 = sbr.rel (0) target = $region13
  $region12: #{decoder_forward.1} parent=0 // pred_region
    _
  $region13: #{decoder_forward.1} parent=0 // pred_fallthru
    _
  // Predicated region
  $region14: #{decoder_forward.1} parent=0 // pred_check
    _
  $region15: #{decoder_forward.1} parent=0 // pred_check_branch
    %23 = sbr.rel (0) target = $region17
  $region16: #{decoder_forward.1} parent=0 // pred_region
    _
  $region17: #{decoder_forward.1} parent=0 // pred_fallthru
    _
  // Predicated region
  $region18: #{decoder_forward.1} parent=0 // pred_check
    _
  $region19: #{decoder_forward.1} parent=0 // pred_check_branch
    %25 = sbr.rel (0) target = $region21
  $region20: #{decoder_forward.1} parent=0 // pred_region
    _
  $region21: #{decoder_forward.1} parent=0 // pred_fallthru
    _
  // Predicated region
  $region22: #{decoder_forward.1} parent=0 // pred_check
    _
  $region23: #{decoder_forward.1} parent=0 // pred_check_branch
    %27 = sbr.rel (0) target = $region25
  $region24: #{decoder_forward.1} parent=0 // pred_region
    _
  $region25: #{decoder_forward.1} parent=0 // pred_fallthru
    _
  // Predicated region
  $region26: #{decoder_forward.1} parent=0 // pred_check
    _
  $region27: #{decoder_forward.1} parent=0 // pred_check_branch
    %29 = sbr.rel (0) target = $region29
  $region28: #{decoder_forward.1} parent=0 // pred_region
    _
  $region29: #{decoder_forward.1} parent=0 // pred_fallthru
    _
  // Predicated region
  $region30: #{decoder_forward.1} parent=0 // pred_check
    _
  $region31: #{decoder_forward.1} parent=0 // pred_check_branch
    %31 = sbr.rel (0) target = $region33
  $region32: #{decoder_forward.1} parent=0 // pred_region
    _
  $region33: #{decoder_forward.1} parent=0 // pred_fallthru
    _
  // Predicated region
  $region34: #{decoder_forward.1} parent=0 // pred_check
    _
  $region35: #{decoder_forward.1} parent=0 // pred_check_branch
    %33 = sbr.rel (0) target = $region37
  $region36: #{decoder_forward.1} parent=0 // pred_region
    _
  $region37: #{decoder_forward.1} parent=0 // pred_fallthru
    _
  // Predicated region
  $region38: #{decoder_forward.1} parent=0 // pred_check
    _
  $region39: #{decoder_forward.1} parent=0 // pred_check_branch
    %35 = sbr.rel (0) target = $region41
  $region40: #{decoder_forward.1} parent=0 // pred_region
    _
  $region41: #{decoder_forward.1} parent=0 // pred_fallthru
    _
  // Predicated region
  $region42: #{decoder_forward.1} parent=0 // pred_check
    _
  $region43: #{decoder_forward.1} parent=0 // pred_check_branch
    %37 = sbr.rel (0) target = $region45
  $region44: #{decoder_forward.1} parent=0 // pred_region
    _
  $region45: #{decoder_forward.1} parent=0 // pred_fallthru
    _
  %v39 = vld [vmem:[%s0] sm:$0x1]
  %v40 = vld [vmem:[%s1] sm:$0xf]
  %v41 = vld [vmem:[%s2] sm:$0x1]
  %v43 = vperm.slane %v41, 0
  %vm45 = vcmask 64512
  %v47 = vsel %vm45, %v39, 0
  %vm49 = vcmask 1043456
  %v51 = vsel %vm49, %v40, 0
  %53 = vmatpush.bf16.msra.mxu0 0
  %54 = vmatpush.bf16.msra.mxu0 0
  %55 = vmatpush.bf16.msra.mxu0 0
  %56 = vmatpush.bf16.msra.mxu0 0
  %57 = vmatpush.bf16.msra.mxu0 0
  %58 = vmatpush.bf16.msra.mxu0 0
  %59 = vmatpush.bf16.msra.mxu0 0
  %60 = vmatpush.bf16.msra.mxu0 %v51
  %61 = vmatmul.bf16.gmra.mxu0 %v47
  %v62 = vpop.f32.mrf.mxu0
  %v63 = vadd.f32 %v43, %v62
  %v64 = vpop.f32.mrf.mxu0
  %65 = vdwg.mxu0
  %v66 = vmax.f32 %v63, 0.0
  %v67 = vpack.c.bf16 %v66, %v66
  %v68 = vld [vmem:[%s3] sm:$0xff]
  %v69 = vld [vmem:[%s3 + $0x8] sm:$0xf]
  %v70 = vld [vmem:[%s3 + $0xc] sm:$0xff]
  %v71 = vld [vmem:[%s3 + $0x14] sm:$0xf]
  %v72 = vld [vmem:[%s3 + $0x18] sm:$0xff]
  %v73 = vld [vmem:[%s3 + $0x20] sm:$0xf]
  %v74 = vld [vmem:[%s3 + $0x24] sm:$0xff]
  %v75 = vld [vmem:[%s3 + $0x2c] sm:$0xf]
  %v76 = vld [vmem:[%s3 + $0x30] sm:$0xff]
  %v77 = vld [vmem:[%s3 + $0x38] sm:$0xf]
  %v78 = vld [vmem:[%s3 + $0x3c] sm:$0xff]
  %v79 = vld [vmem:[%s3 + $0x44] sm:$0xf]
  %v80 = vld [vmem:[%s3 + $0x48] sm:$0xff]
  %v81 = vld [vmem:[%s3 + $0x50] sm:$0xf]
  %v82 = vld [vmem:[%s3 + $0x54] sm:$0xff]
  %v83 = vld [vmem:[%s3 + $0x5c] sm:$0xf]
  %v84 = vld [vmem:[%s3 + $0x60] sm:$0xff]
  %v85 = vld [vmem:[%s3 + $0x68] sm:$0xf]
  %v86 = vld [vmem:[%s3 + $0x6c] sm:$0xff]
  %v87 = vld [vmem:[%s3 + $0x74] sm:$0xf]
  %v88 = vld [vmem:[%s3 + $0x78] sm:$0xff]
  %v89 = vld [vmem:[%s3 + $0x80] sm:$0xf]
  %v90 = vld [vmem:[%s3 + $0x84] sm:$0xff]
  %v91 = vld [vmem:[%s3 + $0x8c] sm:$0xf]
  %v92 = vld [vmem:[%s3 + $0x90] sm:$0xff]
  %v93 = vld [vmem:[%s3 + $0x98] sm:$0xf]
  %v94 = vld [vmem:[%s3 + $0x9c] sm:$0xff]
  %v95 = vld [vmem:[%s3 + $0xa4] sm:$0xf]
  %v96 = vld [vmem:[%s3 + $0xa8] sm:$0xff]
  %v97 = vld [vmem:[%s3 + $0xb0] sm:$0xf]
  %v98 = vld [vmem:[%s3 + $0xb4] sm:$0xff]
  %v99 = vld [vmem:[%s3 + $0xbc] sm:$0xf]
  %v100 = vld [vmem:[%s4] sm:$0x7]
  %v102 = vperm.slane %v100, 0
  %v103 = vperm.slane %v100, 1
  %v104 = vperm.slane %v100, 2
  %v140 = vunpack.c.l.b16 %v68
  %v141 = vunpack.c.h.b16 %v68
  %v142 = vunpack.c.l.b16 %v69
  %v143 = vunpack.c.l.b16 %v70
  %v144 = vunpack.c.h.b16 %v70
  %v145 = vunpack.c.l.b16 %v71
  %v146 = vunpack.c.l.b16 %v72
  %v147 = vunpack.c.h.b16 %v72
  %v148 = vunpack.c.l.b16 %v73
  %v149 = vunpack.c.l.b16 %v74
  %v150 = vunpack.c.h.b16 %v74
  %v151 = vunpack.c.l.b16 %v75
  %v152 = vunpack.c.l.b16 %v76
  %v153 = vunpack.c.h.b16 %v76
  %v154 = vunpack.c.l.b16 %v77
  %v155 = vunpack.c.l.b16 %v78
  %v156 = vunpack.c.h.b16 %v78
  %v157 = vunpack.c.l.b16 %v79
  %v158 = vunpack.c.l.b16 %v80
  %v159 = vunpack.c.h.b16 %v80
  %v160 = vunpack.c.l.b16 %v81
  %v161 = vunpack.c.l.b16 %v82
  %v162 = vunpack.c.h.b16 %v82
  %v163 = vunpack.c.l.b16 %v83
  %v164 = vunpack.c.l.b16 %v84
  %v165 = vunpack.c.h.b16 %v84
  %v166 = vunpack.c.l.b16 %v85
  %v167 = vunpack.c.l.b16 %v86
  %v168 = vunpack.c.h.b16 %v86
  %v169 = vunpack.c.l.b16 %v87
  %v170 = vunpack.c.l.b16 %v88
  %v171 = vunpack.c.h.b16 %v88
  %v172 = vunpack.c.l.b16 %v89
  %v173 = vunpack.c.l.b16 %v90
  %v174 = vunpack.c.h.b16 %v90
  %v175 = vunpack.c.l.b16 %v91
  %v176 = vunpack.c.l.b16 %v92
  %v177 = vunpack.c.h.b16 %v92
  %v178 = vunpack.c.l.b16 %v93
  %v179 = vunpack.c.l.b16 %v94
  %v180 = vunpack.c.h.b16 %v94
  %v181 = vunpack.c.l.b16 %v95
  %v182 = vunpack.c.l.b16 %v96
  %v183 = vunpack.c.h.b16 %v96
  %v184 = vunpack.c.l.b16 %v97
  %v185 = vunpack.c.l.b16 %v98
  %v186 = vunpack.c.h.b16 %v98
  %v187 = vunpack.c.l.b16 %v99
  %v188 = vpack.c.b16 %v143, %v140
  %v189 = vpack.c.b16 %v144, %v141
  %v190 = vpack.c.b16 %v145, %v142
  %v191 = vpack.c.b16 %v149, %v146
  %v192 = vpack.c.b16 %v150, %v147
  %v193 = vpack.c.b16 %v151, %v148
  %v194 = vpack.c.b16 %v155, %v152
  %v195 = vpack.c.b16 %v156, %v153
  %v196 = vpack.c.b16 %v157, %v154
  %v197 = vpack.c.b16 %v161, %v158
  %v198 = vpack.c.b16 %v162, %v159
  %v199 = vpack.c.b16 %v163, %v160
  %v200 = vpack.c.b16 %v167, %v164
  %v201 = vpack.c.b16 %v168, %v165
  %v202 = vpack.c.b16 %v169, %v166
  %v203 = vpack.c.b16 %v173, %v170
  %v204 = vpack.c.b16 %v174, %v171
  %v205 = vpack.c.b16 %v175, %v172
  %v206 = vpack.c.b16 %v179, %v176
  %v207 = vpack.c.b16 %v180, %v177
  %v208 = vpack.c.b16 %v181, %v178
  %v209 = vpack.c.b16 %v185, %v182
  %v210 = vpack.c.b16 %v186, %v183
  %v211 = vpack.c.b16 %v187, %v184
  %236 = vmatpush.bf16.msra.mxu0 %v209
  %237 = vmatpush.bf16.msra.mxu0 %v206
  %238 = vmatpush.bf16.msra.mxu0 %v203
  %239 = vmatpush.bf16.msra.mxu0 %v200
  %240 = vmatpush.bf16.msra.mxu0 %v197
  %241 = vmatpush.bf16.msra.mxu0 %v194
  %242 = vmatpush.bf16.msra.mxu0 %v191
  %243 = vmatpush.bf16.msra.mxu0 %v188
  %244 = vmatmul.bf16.gmra.mxu0 %v67
  %v245 = vpop.f32.mrf.mxu0
  %v246 = vadd.f32 %v102, %v245
  %v247 = vpop.f32.mrf.mxu0
  %248 = vdwg.mxu0
  %249 = vmatpush.bf16.msra.mxu0 %v210
  %250 = vmatpush.bf16.msra.mxu0 %v207
  %251 = vmatpush.bf16.msra.mxu0 %v204
  %252 = vmatpush.bf16.msra.mxu0 %v201
  %253 = vmatpush.bf16.msra.mxu0 %v198
  %254 = vmatpush.bf16.msra.mxu0 %v195
  %255 = vmatpush.bf16.msra.mxu0 %v192
  %256 = vmatpush.bf16.msra.mxu0 %v189
  %257 = vmatmul.bf16.gmra.mxu0 %v67
  %v258 = vpop.f32.mrf.mxu0
  %v259 = vadd.f32 %v103, %v258
  %v260 = vpop.f32.mrf.mxu0
  %261 = vdwg.mxu0
  %262 = vmatpush.bf16.msra.mxu0 %v211
  %263 = vmatpush.bf16.msra.mxu0 %v208
  %264 = vmatpush.bf16.msra.mxu0 %v205
  %265 = vmatpush.bf16.msra.mxu0 %v202
  %266 = vmatpush.bf16.msra.mxu0 %v199
  %267 = vmatpush.bf16.msra.mxu0 %v196
  %268 = vmatpush.bf16.msra.mxu0 %v193
  %269 = vmatpush.bf16.msra.mxu0 %v190
  %270 = vmatmul.bf16.gmra.mxu0 %v67
  %v271 = vpop.f32.mrf.mxu0
  %v272 = vadd.f32 %v104, %v271
  %v273 = vpop.f32.mrf.mxu0
  %274 = vdwg.mxu0
  %v275 = vmax.f32 %v246, 0.0
  %v276 = vmax.f32 %v259, 0.0
  %v277 = vmax.f32 %v272, 0.0
  %v278 = vpack.c.bf16 %v275, %v275
  %v279 = vpack.c.bf16 %v276, %v276
  %v280 = vpack.c.bf16 %v277, %v277
  %v281 = vld [vmem:[%s5] sm:$0xff]
  %v282 = vld [vmem:[%s5 + $0x8] sm:$0xff]
  %v283 = vld [vmem:[%s5 + $0x10] sm:$0xff]
  %v284 = vld [vmem:[%s5 + $0x18] sm:$0xf]
  %v285 = vld [vmem:[%s5 + $0x1c] sm:$0xff]
  %v286 = vld [vmem:[%s5 + $0x24] sm:$0xff]
  %v287 = vld [vmem:[%s5 + $0x2c] sm:$0xff]
  %v288 = vld [vmem:[%s5 + $0x34] sm:$0xf]
  %v289 = vld [vmem:[%s5 + $0x38] sm:$0xff]
  %v290 = vld [vmem:[%s5 + $0x40] sm:$0xff]
  %v291 = vld [vmem:[%s5 + $0x48] sm:$0xff]
  %v292 = vld [vmem:[%s5 + $0x50] sm:$0xf]
  %v293 = vld [vmem:[%s5 + $0x54] sm:$0xff]
  %v294 = vld [vmem:[%s5 + $0x5c] sm:$0xff]
  %v295 = vld [vmem:[%s5 + $0x64] sm:$0xff]
  %v296 = vld [vmem:[%s5 + $0x6c] sm:$0xf]
  %v297 = vld [vmem:[%s5 + $0x70] sm:$0xff]
  %v298 = vld [vmem:[%s5 + $0x78] sm:$0xff]
  %v299 = vld [vmem:[%s5 + $0x80] sm:$0xff]
  %v300 = vld [vmem:[%s5 + $0x88] sm:$0xf]
  %v301 = vld [vmem:[%s5 + $0x8c] sm:$0xff]
  %v302 = vld [vmem:[%s5 + $0x94] sm:$0xff]
  %v303 = vld [vmem:[%s5 + $0x9c] sm:$0xff]
  %v304 = vld [vmem:[%s5 + $0xa4] sm:$0xf]
  %v305 = vld [vmem:[%s5 + $0xa8] sm:$0xff]
  %v306 = vld [vmem:[%s5 + $0xb0] sm:$0xff]
  %v307 = vld [vmem:[%s5 + $0xb8] sm:$0xff]
  %v308 = vld [vmem:[%s5 + $0xc0] sm:$0xf]
  %v309 = vld [vmem:[%s5 + $0xc4] sm:$0xff]
  %v310 = vld [vmem:[%s5 + $0xcc] sm:$0xff]
  %v311 = vld [vmem:[%s5 + $0xd4] sm:$0xff]
  %v312 = vld [vmem:[%s5 + $0xdc] sm:$0xf]
  %v313 = vld [vmem:[%s5 + $0xe0] sm:$0xff]
  %v314 = vld [vmem:[%s5 + $0xe8] sm:$0xff]
  %v315 = vld [vmem:[%s5 + $0xf0] sm:$0xff]
  %v316 = vld [vmem:[%s5 + $0xf8] sm:$0xf]
  %v317 = vld [vmem:[%s5 + $0xfc] sm:$0xff]
  %v318 = vld [vmem:[%s5 + $0x104] sm:$0xff]
  %v319 = vld [vmem:[%s5 + $0x10c] sm:$0xff]
  %v320 = vld [vmem:[%s5 + $0x114] sm:$0xf]
  %v321 = vld [vmem:[%s5 + $0x118] sm:$0xff]
  %v322 = vld [vmem:[%s5 + $0x120] sm:$0xff]
  %v323 = vld [vmem:[%s5 + $0x128] sm:$0xff]
  %v324 = vld [vmem:[%s5 + $0x130] sm:$0xf]
  %v325 = vld [vmem:[%s5 + $0x134] sm:$0xff]
  %v326 = vld [vmem:[%s5 + $0x13c] sm:$0xff]
  %v327 = vld [vmem:[%s5 + $0x144] sm:$0xff]
  %v328 = vld [vmem:[%s5 + $0x14c] sm:$0xf]
  %v329 = vld [vmem:[%s5 + $0x150] sm:$0xff]
  %v330 = vld [vmem:[%s5 + $0x158] sm:$0xff]
  %v331 = vld [vmem:[%s5 + $0x160] sm:$0xff]
  %v332 = vld [vmem:[%s5 + $0x168] sm:$0xf]
  %v333 = vld [vmem:[%s5 + $0x16c] sm:$0xff]
  %v334 = vld [vmem:[%s5 + $0x174] sm:$0xff]
  %v335 = vld [vmem:[%s5 + $0x17c] sm:$0xff]
  %v336 = vld [vmem:[%s5 + $0x184] sm:$0xf]
  %v337 = vld [vmem:[%s5 + $0x188] sm:$0xff]
  %v338 = vld [vmem:[%s5 + $0x190] sm:$0xff]
  %v339 = vld [vmem:[%s5 + $0x198] sm:$0xff]
  %v340 = vld [vmem:[%s5 + $0x1a0] sm:$0xf]
  %v341 = vld [vmem:[%s5 + $0x1a4] sm:$0xff]
  %v342 = vld [vmem:[%s5 + $0x1ac] sm:$0xff]
  %v343 = vld [vmem:[%s5 + $0x1b4] sm:$0xff]
  %v344 = vld [vmem:[%s5 + $0x1bc] sm:$0xf]
  %v345 = vld [vmem:[%s5 + $0x1c0] sm:$0xff]
  %v346 = vld [vmem:[%s5 + $0x1c8] sm:$0xff]
  %v347 = vld [vmem:[%s5 + $0x1d0] sm:$0xff]
  %v348 = vld [vmem:[%s5 + $0x1d8] sm:$0xf]
  %v349 = vld [vmem:[%s5 + $0x1dc] sm:$0xff]
  %v350 = vld [vmem:[%s5 + $0x1e4] sm:$0xff]
  %v351 = vld [vmem:[%s5 + $0x1ec] sm:$0xff]
  %v352 = vld [vmem:[%s5 + $0x1f4] sm:$0xf]
  %v353 = vld [vmem:[%s5 + $0x1f8] sm:$0xff]
  %v354 = vld [vmem:[%s5 + $0x200] sm:$0xff]
  %v355 = vld [vmem:[%s5 + $0x208] sm:$0xff]
  %v356 = vld [vmem:[%s5 + $0x210] sm:$0xf]
  %v357 = vld [vmem:[%s5 + $0x214] sm:$0xff]
  %v358 = vld [vmem:[%s5 + $0x21c] sm:$0xff]
  %v359 = vld [vmem:[%s5 + $0x224] sm:$0xff]
  %v360 = vld [vmem:[%s5 + $0x22c] sm:$0xf]
  %v361 = vld [vmem:[%s5 + $0x230] sm:$0xff]
  %v362 = vld [vmem:[%s5 + $0x238] sm:$0xff]
  %v363 = vld [vmem:[%s5 + $0x240] sm:$0xff]
  %v364 = vld [vmem:[%s5 + $0x248] sm:$0xf]
  %v365 = vld [vmem:[%s5 + $0x24c] sm:$0xff]
  %v366 = vld [vmem:[%s5 + $0x254] sm:$0xff]
  %v367 = vld [vmem:[%s5 + $0x25c] sm:$0xff]
  %v368 = vld [vmem:[%s5 + $0x264] sm:$0xf]
  %v369 = vld [vmem:[%s5 + $0x268] sm:$0xff]
  %v370 = vld [vmem:[%s5 + $0x270] sm:$0xff]
  %v371 = vld [vmem:[%s5 + $0x278] sm:$0xff]
  %v372 = vld [vmem:[%s5 + $0x280] sm:$0xf]
  %v373 = vld [vmem:[%s5 + $0x284] sm:$0xff]
  %v374 = vld [vmem:[%s5 + $0x28c] sm:$0xff]
  %v375 = vld [vmem:[%s5 + $0x294] sm:$0xff]
  %v376 = vld [vmem:[%s5 + $0x29c] sm:$0xf]
  %v377 = vld [vmem:[%s5 + $0x2a0] sm:$0xff]
  %v378 = vld [vmem:[%s5 + $0x2a8] sm:$0xff]
  %v379 = vld [vmem:[%s5 + $0x2b0] sm:$0xff]
  %v380 = vld [vmem:[%s5 + $0x2b8] sm:$0xf]
  %v381 = vld [vmem:[%s5 + $0x2bc] sm:$0xff]
  %v382 = vld [vmem:[%s5 + $0x2c4] sm:$0xff]
  %v383 = vld [vmem:[%s5 + $0x2cc] sm:$0xff]
  %v384 = vld [vmem:[%s5 + $0x2d4] sm:$0xf]
  %v385 = vld [vmem:[%s5 + $0x2d8] sm:$0xff]
  %v386 = vld [vmem:[%s5 + $0x2e0] sm:$0xff]
  %v387 = vld [vmem:[%s5 + $0x2e8] sm:$0xff]
  %v388 = vld [vmem:[%s5 + $0x2f0] sm:$0xf]
  %v389 = vld [vmem:[%s5 + $0x2f4] sm:$0xff]
  %v390 = vld [vmem:[%s5 + $0x2fc] sm:$0xff]
  %v391 = vld [vmem:[%s5 + $0x304] sm:$0xff]
  %v392 = vld [vmem:[%s5 + $0x30c] sm:$0xf]
  %v393 = vld [vmem:[%s5 + $0x310] sm:$0xff]
  %v394 = vld [vmem:[%s5 + $0x318] sm:$0xff]
  %v395 = vld [vmem:[%s5 + $0x320] sm:$0xff]
  %v396 = vld [vmem:[%s5 + $0x328] sm:$0xf]
  %v397 = vld [vmem:[%s5 + $0x32c] sm:$0xff]
  %v398 = vld [vmem:[%s5 + $0x334] sm:$0xff]
  %v399 = vld [vmem:[%s5 + $0x33c] sm:$0xff]
  %v400 = vld [vmem:[%s5 + $0x344] sm:$0xf]
  %v401 = vld [vmem:[%s5 + $0x348] sm:$0xff]
  %v402 = vld [vmem:[%s5 + $0x350] sm:$0xff]
  %v403 = vld [vmem:[%s5 + $0x358] sm:$0xff]
  %v404 = vld [vmem:[%s5 + $0x360] sm:$0xf]
  %v405 = vld [vmem:[%s5 + $0x364] sm:$0xff]
  %v406 = vld [vmem:[%s5 + $0x36c] sm:$0xff]
  %v407 = vld [vmem:[%s5 + $0x374] sm:$0xff]
  %v408 = vld [vmem:[%s5 + $0x37c] sm:$0xf]
  %v409 = vld [vmem:[%s5 + $0x380] sm:$0xff]
  %v410 = vld [vmem:[%s5 + $0x388] sm:$0xff]
  %v411 = vld [vmem:[%s5 + $0x390] sm:$0xff]
  %v412 = vld [vmem:[%s5 + $0x398] sm:$0xf]
  %v413 = vld [vmem:[%s5 + $0x39c] sm:$0xff]
  %v414 = vld [vmem:[%s5 + $0x3a4] sm:$0xff]
  %v415 = vld [vmem:[%s5 + $0x3ac] sm:$0xff]
  %v416 = vld [vmem:[%s5 + $0x3b4] sm:$0xf]
  %v417 = vld [vmem:[%s5 + $0x3b8] sm:$0xff]
  %v418 = vld [vmem:[%s5 + $0x3c0] sm:$0xff]
  %v419 = vld [vmem:[%s5 + $0x3c8] sm:$0xff]
  %v420 = vld [vmem:[%s5 + $0x3d0] sm:$0xf]
  %v421 = vld [vmem:[%s5 + $0x3d4] sm:$0xff]
  %v422 = vld [vmem:[%s5 + $0x3dc] sm:$0xff]
  %v423 = vld [vmem:[%s5 + $0x3e4] sm:$0xff]
  %v424 = vld [vmem:[%s5 + $0x3ec] sm:$0xf]
  %v425 = vld [vmem:[%s6] sm:$0x7f]
  %v427 = vperm.slane %v425, 0
  %v428 = vperm.slane %v425, 1
  %v429 = vperm.slane %v425, 2
  %v430 = vperm.slane %v425, 3
  %v431 = vperm.slane %v425, 4
  %v432 = vperm.slane %v425, 5
  %v433 = vperm.slane %v425, 6
  %v585 = vunpack.c.l.b16 %v281
  %v586 = vunpack.c.h.b16 %v281
  %v587 = vunpack.c.l.b16 %v282
  %v588 = vunpack.c.h.b16 %v282
  %v589 = vunpack.c.l.b16 %v283
  %v590 = vunpack.c.h.b16 %v283
  %v591 = vunpack.c.l.b16 %v284
  %v592 = vunpack.c.l.b16 %v285
  %v593 = vunpack.c.h.b16 %v285
  %v594 = vunpack.c.l.b16 %v286
  %v595 = vunpack.c.h.b16 %v286
  %v596 = vunpack.c.l.b16 %v287
  %v597 = vunpack.c.h.b16 %v287
  %v598 = vunpack.c.l.b16 %v288
  %v599 = vunpack.c.l.b16 %v289
  %v600 = vunpack.c.h.b16 %v289
  %v601 = vunpack.c.l.b16 %v290
  %v602 = vunpack.c.h.b16 %v290
  %v603 = vunpack.c.l.b16 %v291
  %v604 = vunpack.c.h.b16 %v291
  %v605 = vunpack.c.l.b16 %v292
  %v606 = vunpack.c.l.b16 %v293
  %v607 = vunpack.c.h.b16 %v293
  %v608 = vunpack.c.l.b16 %v294
  %v609 = vunpack.c.h.b16 %v294
  %v610 = vunpack.c.l.b16 %v295
  %v611 = vunpack.c.h.b16 %v295
  %v612 = vunpack.c.l.b16 %v296
  %v613 = vunpack.c.l.b16 %v297
  %v614 = vunpack.c.h.b16 %v297
  %v615 = vunpack.c.l.b16 %v298
  %v616 = vunpack.c.h.b16 %v298
  %v617 = vunpack.c.l.b16 %v299
  %v618 = vunpack.c.h.b16 %v299
  %v619 = vunpack.c.l.b16 %v300
  %v620 = vunpack.c.l.b16 %v301
  %v621 = vunpack.c.h.b16 %v301
  %v622 = vunpack.c.l.b16 %v302
  %v623 = vunpack.c.h.b16 %v302
  %v624 = vunpack.c.l.b16 %v303
  %v625 = vunpack.c.h.b16 %v303
  %v626 = vunpack.c.l.b16 %v304
  %v627 = vunpack.c.l.b16 %v305
  %v628 = vunpack.c.h.b16 %v305
  %v629 = vunpack.c.l.b16 %v306
  %v630 = vunpack.c.h.b16 %v306
  %v631 = vunpack.c.l.b16 %v307
  %v632 = vunpack.c.h.b16 %v307
  %v633 = vunpack.c.l.b16 %v308
  %v634 = vunpack.c.l.b16 %v309
  %v635 = vunpack.c.h.b16 %v309
  %v636 = vunpack.c.l.b16 %v310
  %v637 = vunpack.c.h.b16 %v310
  %v638 = vunpack.c.l.b16 %v311
  %v639 = vunpack.c.h.b16 %v311
  %v640 = vunpack.c.l.b16 %v312
  %v641 = vunpack.c.l.b16 %v313
  %v642 = vunpack.c.h.b16 %v313
  %v643 = vunpack.c.l.b16 %v314
  %v644 = vunpack.c.h.b16 %v314
  %v645 = vunpack.c.l.b16 %v315
  %v646 = vunpack.c.h.b16 %v315
  %v647 = vunpack.c.l.b16 %v316
  %v648 = vunpack.c.l.b16 %v317
  %v649 = vunpack.c.h.b16 %v317
  %v650 = vunpack.c.l.b16 %v318
  %v651 = vunpack.c.h.b16 %v318
  %v652 = vunpack.c.l.b16 %v319
  %v653 = vunpack.c.h.b16 %v319
  %v654 = vunpack.c.l.b16 %v320
  %v655 = vunpack.c.l.b16 %v321
  %v656 = vunpack.c.h.b16 %v321
  %v657 = vunpack.c.l.b16 %v322
  %v658 = vunpack.c.h.b16 %v322
  %v659 = vunpack.c.l.b16 %v323
  %v660 = vunpack.c.h.b16 %v323
  %v661 = vunpack.c.l.b16 %v324
  %v662 = vunpack.c.l.b16 %v325
  %v663 = vunpack.c.h.b16 %v325
  %v664 = vunpack.c.l.b16 %v326
  %v665 = vunpack.c.h.b16 %v326
  %v666 = vunpack.c.l.b16 %v327
  %v667 = vunpack.c.h.b16 %v327
  %v668 = vunpack.c.l.b16 %v328
  %v669 = vunpack.c.l.b16 %v329
  %v670 = vunpack.c.h.b16 %v329
  %v671 = vunpack.c.l.b16 %v330
  %v672 = vunpack.c.h.b16 %v330
  %v673 = vunpack.c.l.b16 %v331
  %v674 = vunpack.c.h.b16 %v331
  %v675 = vunpack.c.l.b16 %v332
  %v676 = vunpack.c.l.b16 %v333
  %v677 = vunpack.c.h.b16 %v333
  %v678 = vunpack.c.l.b16 %v334
  %v679 = vunpack.c.h.b16 %v334
  %v680 = vunpack.c.l.b16 %v335
  %v681 = vunpack.c.h.b16 %v335
  %v682 = vunpack.c.l.b16 %v336
  %v683 = vunpack.c.l.b16 %v337
  %v684 = vunpack.c.h.b16 %v337
  %v685 = vunpack.c.l.b16 %v338
  %v686 = vunpack.c.h.b16 %v338
  %v687 = vunpack.c.l.b16 %v339
  %v688 = vunpack.c.h.b16 %v339
  %v689 = vunpack.c.l.b16 %v340
  %v690 = vunpack.c.l.b16 %v341
  %v691 = vunpack.c.h.b16 %v341
  %v692 = vunpack.c.l.b16 %v342
  %v693 = vunpack.c.h.b16 %v342
  %v694 = vunpack.c.l.b16 %v343
  %v695 = vunpack.c.h.b16 %v343
  %v696 = vunpack.c.l.b16 %v344
  %v697 = vunpack.c.l.b16 %v345
  %v698 = vunpack.c.h.b16 %v345
  %v699 = vunpack.c.l.b16 %v346
  %v700 = vunpack.c.h.b16 %v346
  %v701 = vunpack.c.l.b16 %v347
  %v702 = vunpack.c.h.b16 %v347
  %v703 = vunpack.c.l.b16 %v348
  %v704 = vunpack.c.l.b16 %v349
  %v705 = vunpack.c.h.b16 %v349
  %v706 = vunpack.c.l.b16 %v350
  %v707 = vunpack.c.h.b16 %v350
  %v708 = vunpack.c.l.b16 %v351
  %v709 = vunpack.c.h.b16 %v351
  %v710 = vunpack.c.l.b16 %v352
  %v711 = vunpack.c.l.b16 %v353
  %v712 = vunpack.c.h.b16 %v353
  %v713 = vunpack.c.l.b16 %v354
  %v714 = vunpack.c.h.b16 %v354
  %v715 = vunpack.c.l.b16 %v355
  %v716 = vunpack.c.h.b16 %v355
  %v717 = vunpack.c.l.b16 %v356
  %v718 = vunpack.c.l.b16 %v357
  %v719 = vunpack.c.h.b16 %v357
  %v720 = vunpack.c.l.b16 %v358
  %v721 = vunpack.c.h.b16 %v358
  %v722 = vunpack.c.l.b16 %v359
  %v723 = vunpack.c.h.b16 %v359
  %v724 = vunpack.c.l.b16 %v360
  %v725 = vunpack.c.l.b16 %v361
  %v726 = vunpack.c.h.b16 %v361
  %v727 = vunpack.c.l.b16 %v362
  %v728 = vunpack.c.h.b16 %v362
  %v729 = vunpack.c.l.b16 %v363
  %v730 = vunpack.c.h.b16 %v363
  %v731 = vunpack.c.l.b16 %v364
  %v732 = vunpack.c.l.b16 %v365
  %v733 = vunpack.c.h.b16 %v365
  %v734 = vunpack.c.l.b16 %v366
  %v735 = vunpack.c.h.b16 %v366
  %v736 = vunpack.c.l.b16 %v367
  %v737 = vunpack.c.h.b16 %v367
  %v738 = vunpack.c.l.b16 %v368
  %v739 = vunpack.c.l.b16 %v369
  %v740 = vunpack.c.h.b16 %v369
  %v741 = vunpack.c.l.b16 %v370
  %v742 = vunpack.c.h.b16 %v370
  %v743 = vunpack.c.l.b16 %v371
  %v744 = vunpack.c.h.b16 %v371
  %v745 = vunpack.c.l.b16 %v372
  %v746 = vunpack.c.l.b16 %v373
  %v747 = vunpack.c.h.b16 %v373
  %v748 = vunpack.c.l.b16 %v374
  %v749 = vunpack.c.h.b16 %v374
  %v750 = vunpack.c.l.b16 %v375
  %v751 = vunpack.c.h.b16 %v375
  %v752 = vunpack.c.l.b16 %v376
  %v753 = vunpack.c.l.b16 %v377
  %v754 = vunpack.c.h.b16 %v377
  %v755 = vunpack.c.l.b16 %v378
  %v756 = vunpack.c.h.b16 %v378
  %v757 = vunpack.c.l.b16 %v379
  %v758 = vunpack.c.h.b16 %v379
  %v759 = vunpack.c.l.b16 %v380
  %v760 = vunpack.c.l.b16 %v381
  %v761 = vunpack.c.h.b16 %v381
  %v762 = vunpack.c.l.b16 %v382
  %v763 = vunpack.c.h.b16 %v382
  %v764 = vunpack.c.l.b16 %v383
  %v765 = vunpack.c.h.b16 %v383
  %v766 = vunpack.c.l.b16 %v384
  %v767 = vunpack.c.l.b16 %v385
  %v768 = vunpack.c.h.b16 %v385
  %v769 = vunpack.c.l.b16 %v386
  %v770 = vunpack.c.h.b16 %v386
  %v771 = vunpack.c.l.b16 %v387
  %v772 = vunpack.c.h.b16 %v387
  %v773 = vunpack.c.l.b16 %v388
  %v774 = vunpack.c.l.b16 %v389
  %v775 = vunpack.c.h.b16 %v389
  %v776 = vunpack.c.l.b16 %v390
  %v777 = vunpack.c.h.b16 %v390
  %v778 = vunpack.c.l.b16 %v391
  %v779 = vunpack.c.h.b16 %v391
  %v780 = vunpack.c.l.b16 %v392
  %v781 = vunpack.c.l.b16 %v393
  %v782 = vunpack.c.h.b16 %v393
  %v783 = vunpack.c.l.b16 %v394
  %v784 = vunpack.c.h.b16 %v394
  %v785 = vunpack.c.l.b16 %v395
  %v786 = vunpack.c.h.b16 %v395
  %v787 = vunpack.c.l.b16 %v396
  %v788 = vunpack.c.l.b16 %v397
  %v789 = vunpack.c.h.b16 %v397
  %v790 = vunpack.c.l.b16 %v398
  %v791 = vunpack.c.h.b16 %v398
  %v792 = vunpack.c.l.b16 %v399
  %v793 = vunpack.c.h.b16 %v399
  %v794 = vunpack.c.l.b16 %v400
  %v795 = vunpack.c.l.b16 %v401
  %v796 = vunpack.c.h.b16 %v401
  %v797 = vunpack.c.l.b16 %v402
  %v798 = vunpack.c.h.b16 %v402
  %v799 = vunpack.c.l.b16 %v403
  %v800 = vunpack.c.h.b16 %v403
  %v801 = vunpack.c.l.b16 %v404
  %v802 = vunpack.c.l.b16 %v405
  %v803 = vunpack.c.h.b16 %v405
  %v804 = vunpack.c.l.b16 %v406
  %v805 = vunpack.c.h.b16 %v406
  %v806 = vunpack.c.l.b16 %v407
  %v807 = vunpack.c.h.b16 %v407
  %v808 = vunpack.c.l.b16 %v408
  %v809 = vunpack.c.l.b16 %v409
  %v810 = vunpack.c.h.b16 %v409
  %v811 = vunpack.c.l.b16 %v410
  %v812 = vunpack.c.h.b16 %v410
  %v813 = vunpack.c.l.b16 %v411
  %v814 = vunpack.c.h.b16 %v411
  %v815 = vunpack.c.l.b16 %v412
  %v816 = vunpack.c.l.b16 %v413
  %v817 = vunpack.c.h.b16 %v413
  %v818 = vunpack.c.l.b16 %v414
  %v819 = vunpack.c.h.b16 %v414
  %v820 = vunpack.c.l.b16 %v415
  %v821 = vunpack.c.h.b16 %v415
  %v822 = vunpack.c.l.b16 %v416
  %v823 = vunpack.c.l.b16 %v417
  %v824 = vunpack.c.h.b16 %v417
  %v825 = vunpack.c.l.b16 %v418
  %v826 = vunpack.c.h.b16 %v418
  %v827 = vunpack.c.l.b16 %v419
  %v828 = vunpack.c.h.b16 %v419
  %v829 = vunpack.c.l.b16 %v420
  %v830 = vunpack.c.l.b16 %v421
  %v831 = vunpack.c.h.b16 %v421
  %v832 = vunpack.c.l.b16 %v422
  %v833 = vunpack.c.h.b16 %v422
  %v834 = vunpack.c.l.b16 %v423
  %v835 = vunpack.c.h.b16 %v423
  %v836 = vunpack.c.l.b16 %v424
  %v837 = vpack.c.b16 %v592, %v585
  %v838 = vpack.c.b16 %v593, %v586
  %v839 = vpack.c.b16 %v594, %v587
  %v840 = vpack.c.b16 %v595, %v588
  %v841 = vpack.c.b16 %v596, %v589
  %v842 = vpack.c.b16 %v597, %v590
  %v843 = vpack.c.b16 %v598, %v591
  %v844 = vpack.c.b16 %v606, %v599
  %v845 = vpack.c.b16 %v607, %v600
  %v846 = vpack.c.b16 %v608, %v601
  %v847 = vpack.c.b16 %v609, %v602
  %v848 = vpack.c.b16 %v610, %v603
  %v849 = vpack.c.b16 %v611, %v604
  %v850 = vpack.c.b16 %v612, %v605
  %v851 = vpack.c.b16 %v620, %v613
  %v852 = vpack.c.b16 %v621, %v614
  %v853 = vpack.c.b16 %v622, %v615
  %v854 = vpack.c.b16 %v623, %v616
  %v855 = vpack.c.b16 %v624, %v617
  %v856 = vpack.c.b16 %v625, %v618
  %v857 = vpack.c.b16 %v626, %v619
  %v858 = vpack.c.b16 %v634, %v627
  %v859 = vpack.c.b16 %v635, %v628
  %v860 = vpack.c.b16 %v636, %v629
  %v861 = vpack.c.b16 %v637, %v630
  %v862 = vpack.c.b16 %v638, %v631
  %v863 = vpack.c.b16 %v639, %v632
  %v864 = vpack.c.b16 %v640, %v633
  %v865 = vpack.c.b16 %v648, %v641
  %v866 = vpack.c.b16 %v649, %v642
  %v867 = vpack.c.b16 %v650, %v643
  %v868 = vpack.c.b16 %v651, %v644
  %v869 = vpack.c.b16 %v652, %v645
  %v870 = vpack.c.b16 %v653, %v646
  %v871 = vpack.c.b16 %v654, %v647
  %v872 = vpack.c.b16 %v662, %v655
  %v873 = vpack.c.b16 %v663, %v656
  %v874 = vpack.c.b16 %v664, %v657
  %v875 = vpack.c.b16 %v665, %v658
  %v876 = vpack.c.b16 %v666, %v659
  %v877 = vpack.c.b16 %v667, %v660
  %v878 = vpack.c.b16 %v668, %v661
  %v879 = vpack.c.b16 %v676, %v669
  %v880 = vpack.c.b16 %v677, %v670
  %v881 = vpack.c.b16 %v678, %v671
  %v882 = vpack.c.b16 %v679, %v672
  %v883 = vpack.c.b16 %v680, %v673
  %v884 = vpack.c.b16 %v681, %v674
  %v885 = vpack.c.b16 %v682, %v675
  %v886 = vpack.c.b16 %v690, %v683
  %v887 = vpack.c.b16 %v691, %v684
  %v888 = vpack.c.b16 %v692, %v685
  %v889 = vpack.c.b16 %v693, %v686
  %v890 = vpack.c.b16 %v694, %v687
  %v891 = vpack.c.b16 %v695, %v688
  %v892 = vpack.c.b16 %v696, %v689
  %v893 = vpack.c.b16 %v704, %v697
  %v894 = vpack.c.b16 %v705, %v698
  %v895 = vpack.c.b16 %v706, %v699
  %v896 = vpack.c.b16 %v707, %v700
  %v897 = vpack.c.b16 %v708, %v701
  %v898 = vpack.c.b16 %v709, %v702
  %v899 = vpack.c.b16 %v710, %v703
  %v900 = vpack.c.b16 %v718, %v711
  %v901 = vpack.c.b16 %v719, %v712
  %v902 = vpack.c.b16 %v720, %v713
  %v903 = vpack.c.b16 %v721, %v714
  %v904 = vpack.c.b16 %v722, %v715
  %v905 = vpack.c.b16 %v723, %v716
  %v906 = vpack.c.b16 %v724, %v717
  %v907 = vpack.c.b16 %v732, %v725
  %v908 = vpack.c.b16 %v733, %v726
  %v909 = vpack.c.b16 %v734, %v727
  %v910 = vpack.c.b16 %v735, %v728
  %v911 = vpack.c.b16 %v736, %v729
  %v912 = vpack.c.b16 %v737, %v730
  %v913 = vpack.c.b16 %v738, %v731
  %v914 = vpack.c.b16 %v746, %v739
  %v915 = vpack.c.b16 %v747, %v740
  %v916 = vpack.c.b16 %v748, %v741
  %v917 = vpack.c.b16 %v749, %v742
  %v918 = vpack.c.b16 %v750, %v743
  %v919 = vpack.c.b16 %v751, %v744
  %v920 = vpack.c.b16 %v752, %v745
  %v921 = vpack.c.b16 %v760, %v753
  %v922 = vpack.c.b16 %v761, %v754
  %v923 = vpack.c.b16 %v762, %v755
  %v924 = vpack.c.b16 %v763, %v756
  %v925 = vpack.c.b16 %v764, %v757
  %v926 = vpack.c.b16 %v765, %v758
  %v927 = vpack.c.b16 %v766, %v759
  %v928 = vpack.c.b16 %v774, %v767
  %v929 = vpack.c.b16 %v775, %v768
  %v930 = vpack.c.b16 %v776, %v769
  %v931 = vpack.c.b16 %v777, %v770
  %v932 = vpack.c.b16 %v778, %v771
  %v933 = vpack.c.b16 %v779, %v772
  %v934 = vpack.c.b16 %v780, %v773
  %v935 = vpack.c.b16 %v788, %v781
  %v936 = vpack.c.b16 %v789, %v782
  %v937 = vpack.c.b16 %v790, %v783
  %v938 = vpack.c.b16 %v791, %v784
  %v939 = vpack.c.b16 %v792, %v785
  %v940 = vpack.c.b16 %v793, %v786
  %v941 = vpack.c.b16 %v794, %v787
  %v942 = vpack.c.b16 %v802, %v795
  %v943 = vpack.c.b16 %v803, %v796
  %v944 = vpack.c.b16 %v804, %v797
  %v945 = vpack.c.b16 %v805, %v798
  %v946 = vpack.c.b16 %v806, %v799
  %v947 = vpack.c.b16 %v807, %v800
  %v948 = vpack.c.b16 %v808, %v801
  %v949 = vpack.c.b16 %v816, %v809
  %v950 = vpack.c.b16 %v817, %v810
  %v951 = vpack.c.b16 %v818, %v811
  %v952 = vpack.c.b16 %v819, %v812
  %v953 = vpack.c.b16 %v820, %v813
  %v954 = vpack.c.b16 %v821, %v814
  %v955 = vpack.c.b16 %v822, %v815
  %v956 = vpack.c.b16 %v830, %v823
  %v957 = vpack.c.b16 %v831, %v824
  %v958 = vpack.c.b16 %v832, %v825
  %v959 = vpack.c.b16 %v833, %v826
  %v960 = vpack.c.b16 %v834, %v827
  %v961 = vpack.c.b16 %v835, %v828
  %v962 = vpack.c.b16 %v836, %v829
  %vm1089 = vcmask 261120
  %v1091 = vsel %vm1089, %v280, 0
  %1093 = vmatpush.bf16.msra.mxu0 %v886
  %1094 = vmatpush.bf16.msra.mxu0 %v879
  %1095 = vmatpush.bf16.msra.mxu0 %v872
  %1096 = vmatpush.bf16.msra.mxu0 %v865
  %1097 = vmatpush.bf16.msra.mxu0 %v858
  %1098 = vmatpush.bf16.msra.mxu0 %v851
  %1099 = vmatpush.bf16.msra.mxu0 %v844
  %1100 = vmatpush.bf16.msra.mxu0 %v837
  %1101 = vmatmul.bf16.gmra.mxu0 %v278
  %v1102 = vpop.f32.mrf.mxu0
  %v1103 = vadd.f32 %v427, %v1102
  %v1104 = vpop.f32.mrf.mxu0
  %1105 = vdwg.mxu0
  %1106 = vmatpush.bf16.msra.mxu0 %v942
  %1107 = vmatpush.bf16.msra.mxu0 %v935
  %1108 = vmatpush.bf16.msra.mxu0 %v928
  %1109 = vmatpush.bf16.msra.mxu0 %v921
  %1110 = vmatpush.bf16.msra.mxu0 %v914
  %1111 = vmatpush.bf16.msra.mxu0 %v907
  %1112 = vmatpush.bf16.msra.mxu0 %v900
  %1113 = vmatpush.bf16.msra.mxu0 %v893
  %1114 = vmatmul.bf16.gmra.mxu0 %v279
  %v1115 = vpop.f32.mrf.mxu0
  %v1116 = vadd.f32 %v1103, %v1115
  %v1117 = vpop.f32.mrf.mxu0
  %1118 = vdwg.mxu0
  %1119 = vmatpush.bf16.msra.mxu0 0
  %1120 = vmatpush.bf16.msra.mxu0 0
  %1121 = vmatpush.bf16.msra.mxu0 0
  %1122 = vmatpush.bf16.msra.mxu0 0
  %1123 = vmatpush.bf16.msra.mxu0 0
  %1124 = vmatpush.bf16.msra.mxu0 0
  %1125 = vmatpush.bf16.msra.mxu0 %v956
  %1126 = vmatpush.bf16.msra.mxu0 %v949
  %1127 = vmatmul.bf16.gmra.mxu0 %v1091
  %v1128 = vpop.f32.mrf.mxu0
  %v1129 = vadd.f32 %v1116, %v1128
  %v1130 = vpop.f32.mrf.mxu0
  %1131 = vdwg.mxu0
  %1132 = vmatpush.bf16.msra.mxu0 %v887
  %1133 = vmatpush.bf16.msra.mxu0 %v880
  %1134 = vmatpush.bf16.msra.mxu0 %v873
  %1135 = vmatpush.bf16.msra.mxu0 %v866
  %1136 = vmatpush.bf16.msra.mxu0 %v859
  %1137 = vmatpush.bf16.msra.mxu0 %v852
  %1138 = vmatpush.bf16.msra.mxu0 %v845
  %1139 = vmatpush.bf16.msra.mxu0 %v838
  %1140 = vmatmul.bf16.gmra.mxu0 %v278
  %v1141 = vpop.f32.mrf.mxu0
  %v1142 = vadd.f32 %v428, %v1141
  %v1143 = vpop.f32.mrf.mxu0
  %1144 = vdwg.mxu0
  %1145 = vmatpush.bf16.msra.mxu0 %v943
  %1146 = vmatpush.bf16.msra.mxu0 %v936
  %1147 = vmatpush.bf16.msra.mxu0 %v929
  %1148 = vmatpush.bf16.msra.mxu0 %v922
  %1149 = vmatpush.bf16.msra.mxu0 %v915
  %1150 = vmatpush.bf16.msra.mxu0 %v908
  %1151 = vmatpush.bf16.msra.mxu0 %v901
  %1152 = vmatpush.bf16.msra.mxu0 %v894
  %1153 = vmatmul.bf16.gmra.mxu0 %v279
  %v1154 = vpop.f32.mrf.mxu0
  %v1155 = vadd.f32 %v1142, %v1154
  %v1156 = vpop.f32.mrf.mxu0
  %1157 = vdwg.mxu0
  %1158 = vmatpush.bf16.msra.mxu0 0
  %1159 = vmatpush.bf16.msra.mxu0 0
  %1160 = vmatpush.bf16.msra.mxu0 0
  %1161 = vmatpush.bf16.msra.mxu0 0
  %1162 = vmatpush.bf16.msra.mxu0 0
  %1163 = vmatpush.bf16.msra.mxu0 0
  %1164 = vmatpush.bf16.msra.mxu0 %v957
  %1165 = vmatpush.bf16.msra.mxu0 %v950
  %1166 = vmatmul.bf16.gmra.mxu0 %v1091
  %v1167 = vpop.f32.mrf.mxu0
  %v1168 = vadd.f32 %v1155, %v1167
  %v1169 = vpop.f32.mrf.mxu0
  %1170 = vdwg.mxu0
  %1171 = vmatpush.bf16.msra.mxu0 %v888
  %1172 = vmatpush.bf16.msra.mxu0 %v881
  %1173 = vmatpush.bf16.msra.mxu0 %v874
  %1174 = vmatpush.bf16.msra.mxu0 %v867
  %1175 = vmatpush.bf16.msra.mxu0 %v860
  %1176 = vmatpush.bf16.msra.mxu0 %v853
  %1177 = vmatpush.bf16.msra.mxu0 %v846
  %1178 = vmatpush.bf16.msra.mxu0 %v839
  %1179 = vmatmul.bf16.gmra.mxu0 %v278
  %v1180 = vpop.f32.mrf.mxu0
  %v1181 = vadd.f32 %v429, %v1180
  %v1182 = vpop.f32.mrf.mxu0
  %1183 = vdwg.mxu0
  %1184 = vmatpush.bf16.msra.mxu0 %v944
  %1185 = vmatpush.bf16.msra.mxu0 %v937
  %1186 = vmatpush.bf16.msra.mxu0 %v930
  %1187 = vmatpush.bf16.msra.mxu0 %v923
  %1188 = vmatpush.bf16.msra.mxu0 %v916
  %1189 = vmatpush.bf16.msra.mxu0 %v909
  %1190 = vmatpush.bf16.msra.mxu0 %v902
  %1191 = vmatpush.bf16.msra.mxu0 %v895
  %1192 = vmatmul.bf16.gmra.mxu0 %v279
  %v1193 = vpop.f32.mrf.mxu0
  %v1194 = vadd.f32 %v1181, %v1193
  %v1195 = vpop.f32.mrf.mxu0
  %1196 = vdwg.mxu0
  %1197 = vmatpush.bf16.msra.mxu0 0
  %1198 = vmatpush.bf16.msra.mxu0 0
  %1199 = vmatpush.bf16.msra.mxu0 0
  %1200 = vmatpush.bf16.msra.mxu0 0
  %1201 = vmatpush.bf16.msra.mxu0 0
  %1202 = vmatpush.bf16.msra.mxu0 0
  %1203 = vmatpush.bf16.msra.mxu0 %v958
  %1204 = vmatpush.bf16.msra.mxu0 %v951
  %1205 = vmatmul.bf16.gmra.mxu0 %v1091
  %v1206 = vpop.f32.mrf.mxu0
  %v1207 = vadd.f32 %v1194, %v1206
  %v1208 = vpop.f32.mrf.mxu0
  %1209 = vdwg.mxu0
  %1210 = vmatpush.bf16.msra.mxu0 %v889
  %1211 = vmatpush.bf16.msra.mxu0 %v882
  %1212 = vmatpush.bf16.msra.mxu0 %v875
  %1213 = vmatpush.bf16.msra.mxu0 %v868
  %1214 = vmatpush.bf16.msra.mxu0 %v861
  %1215 = vmatpush.bf16.msra.mxu0 %v854
  %1216 = vmatpush.bf16.msra.mxu0 %v847
  %1217 = vmatpush.bf16.msra.mxu0 %v840
  %1218 = vmatmul.bf16.gmra.mxu0 %v278
  %v1219 = vpop.f32.mrf.mxu0
  %v1220 = vadd.f32 %v430, %v1219
  %v1221 = vpop.f32.mrf.mxu0
  %1222 = vdwg.mxu0
  %1223 = vmatpush.bf16.msra.mxu0 %v945
  %1224 = vmatpush.bf16.msra.mxu0 %v938
  %1225 = vmatpush.bf16.msra.mxu0 %v931
  %1226 = vmatpush.bf16.msra.mxu0 %v924
  %1227 = vmatpush.bf16.msra.mxu0 %v917
  %1228 = vmatpush.bf16.msra.mxu0 %v910
  %1229 = vmatpush.bf16.msra.mxu0 %v903
  %1230 = vmatpush.bf16.msra.mxu0 %v896
  %1231 = vmatmul.bf16.gmra.mxu0 %v279
  %v1232 = vpop.f32.mrf.mxu0
  %v1233 = vadd.f32 %v1220, %v1232
  %v1234 = vpop.f32.mrf.mxu0
  %1235 = vdwg.mxu0
  %1236 = vmatpush.bf16.msra.mxu0 0
  %1237 = vmatpush.bf16.msra.mxu0 0
  %1238 = vmatpush.bf16.msra.mxu0 0
  %1239 = vmatpush.bf16.msra.mxu0 0
  %1240 = vmatpush.bf16.msra.mxu0 0
  %1241 = vmatpush.bf16.msra.mxu0 0
  %1242 = vmatpush.bf16.msra.mxu0 %v959
  %1243 = vmatpush.bf16.msra.mxu0 %v952
  %1244 = vmatmul.bf16.gmra.mxu0 %v1091
  %v1245 = vpop.f32.mrf.mxu0
  %v1246 = vadd.f32 %v1233, %v1245
  %v1247 = vpop.f32.mrf.mxu0
  %1248 = vdwg.mxu0
  %1249 = vmatpush.bf16.msra.mxu0 %v890
  %1250 = vmatpush.bf16.msra.mxu0 %v883
  %1251 = vmatpush.bf16.msra.mxu0 %v876
  %1252 = vmatpush.bf16.msra.mxu0 %v869
  %1253 = vmatpush.bf16.msra.mxu0 %v862
  %1254 = vmatpush.bf16.msra.mxu0 %v855
  %1255 = vmatpush.bf16.msra.mxu0 %v848
  %1256 = vmatpush.bf16.msra.mxu0 %v841
  %1257 = vmatmul.bf16.gmra.mxu0 %v278
  %v1258 = vpop.f32.mrf.mxu0
  %v1259 = vadd.f32 %v431, %v1258
  %v1260 = vpop.f32.mrf.mxu0
  %1261 = vdwg.mxu0
  %1262 = vmatpush.bf16.msra.mxu0 %v946
  %1263 = vmatpush.bf16.msra.mxu0 %v939
  %1264 = vmatpush.bf16.msra.mxu0 %v932
  %1265 = vmatpush.bf16.msra.mxu0 %v925
  %1266 = vmatpush.bf16.msra.mxu0 %v918
  %1267 = vmatpush.bf16.msra.mxu0 %v911
  %1268 = vmatpush.bf16.msra.mxu0 %v904
  %1269 = vmatpush.bf16.msra.mxu0 %v897
  %1270 = vmatmul.bf16.gmra.mxu0 %v279
  %v1271 = vpop.f32.mrf.mxu0
  %v1272 = vadd.f32 %v1259, %v1271
  %v1273 = vpop.f32.mrf.mxu0
  %1274 = vdwg.mxu0
  %1275 = vmatpush.bf16.msra.mxu0 0
  %1276 = vmatpush.bf16.msra.mxu0 0
  %1277 = vmatpush.bf16.msra.mxu0 0
  %1278 = vmatpush.bf16.msra.mxu0 0
  %1279 = vmatpush.bf16.msra.mxu0 0
  %1280 = vmatpush.bf16.msra.mxu0 0
  %1281 = vmatpush.bf16.msra.mxu0 %v960
  %1282 = vmatpush.bf16.msra.mxu0 %v953
  %1283 = vmatmul.bf16.gmra.mxu0 %v1091
  %v1284 = vpop.f32.mrf.mxu0
  %v1285 = vadd.f32 %v1272, %v1284
  %v1286 = vpop.f32.mrf.mxu0
  %1287 = vdwg.mxu0
  %1288 = vmatpush.bf16.msra.mxu0 %v891
  %1289 = vmatpush.bf16.msra.mxu0 %v884
  %1290 = vmatpush.bf16.msra.mxu0 %v877
  %1291 = vmatpush.bf16.msra.mxu0 %v870
  %1292 = vmatpush.bf16.msra.mxu0 %v863
  %1293 = vmatpush.bf16.msra.mxu0 %v856
  %1294 = vmatpush.bf16.msra.mxu0 %v849
  %1295 = vmatpush.bf16.msra.mxu0 %v842
  %1296 = vmatmul.bf16.gmra.mxu0 %v278
  %v1297 = vpop.f32.mrf.mxu0
  %v1298 = vadd.f32 %v432, %v1297
  %v1299 = vpop.f32.mrf.mxu0
  %1300 = vdwg.mxu0
  %1301 = vmatpush.bf16.msra.mxu0 %v947
  %1302 = vmatpush.bf16.msra.mxu0 %v940
  %1303 = vmatpush.bf16.msra.mxu0 %v933
  %1304 = vmatpush.bf16.msra.mxu0 %v926
  %1305 = vmatpush.bf16.msra.mxu0 %v919
  %1306 = vmatpush.bf16.msra.mxu0 %v912
  %1307 = vmatpush.bf16.msra.mxu0 %v905
  %1308 = vmatpush.bf16.msra.mxu0 %v898
  %1309 = vmatmul.bf16.gmra.mxu0 %v279
  %v1310 = vpop.f32.mrf.mxu0
  %v1311 = vadd.f32 %v1298, %v1310
  %v1312 = vpop.f32.mrf.mxu0
  %1313 = vdwg.mxu0
  %1314 = vmatpush.bf16.msra.mxu0 0
  %1315 = vmatpush.bf16.msra.mxu0 0
  %1316 = vmatpush.bf16.msra.mxu0 0
  %1317 = vmatpush.bf16.msra.mxu0 0
  %1318 = vmatpush.bf16.msra.mxu0 0
  %1319 = vmatpush.bf16.msra.mxu0 0
  %1320 = vmatpush.bf16.msra.mxu0 %v961
  %1321 = vmatpush.bf16.msra.mxu0 %v954
  %1322 = vmatmul.bf16.gmra.mxu0 %v1091
  %v1323 = vpop.f32.mrf.mxu0
  %v1324 = vadd.f32 %v1311, %v1323
  %v1325 = vpop.f32.mrf.mxu0
  %1326 = vdwg.mxu0
  %1327 = vmatpush.bf16.msra.mxu0 %v892
  %1328 = vmatpush.bf16.msra.mxu0 %v885
  %1329 = vmatpush.bf16.msra.mxu0 %v878
  %1330 = vmatpush.bf16.msra.mxu0 %v871
  %1331 = vmatpush.bf16.msra.mxu0 %v864
  %1332 = vmatpush.bf16.msra.mxu0 %v857
  %1333 = vmatpush.bf16.msra.mxu0 %v850
  %1334 = vmatpush.bf16.msra.mxu0 %v843
  %1335 = vmatmul.bf16.gmra.mxu0 %v278
  %v1336 = vpop.f32.mrf.mxu0
  %v1337 = vadd.f32 %v433, %v1336
  %v1338 = vpop.f32.mrf.mxu0
  %1339 = vdwg.mxu0
  %1340 = vmatpush.bf16.msra.mxu0 %v948
  %1341 = vmatpush.bf16.msra.mxu0 %v941
  %1342 = vmatpush.bf16.msra.mxu0 %v934
  %1343 = vmatpush.bf16.msra.mxu0 %v927
  %1344 = vmatpush.bf16.msra.mxu0 %v920
  %1345 = vmatpush.bf16.msra.mxu0 %v913
  %1346 = vmatpush.bf16.msra.mxu0 %v906
  %1347 = vmatpush.bf16.msra.mxu0 %v899
  %1348 = vmatmul.bf16.gmra.mxu0 %v279
  %v1349 = vpop.f32.mrf.mxu0
  %v1350 = vadd.f32 %v1337, %v1349
  %v1351 = vpop.f32.mrf.mxu0
  %1352 = vdwg.mxu0
  %1353 = vmatpush.bf16.msra.mxu0 0
  %1354 = vmatpush.bf16.msra.mxu0 0
  %1355 = vmatpush.bf16.msra.mxu0 0
  %1356 = vmatpush.bf16.msra.mxu0 0
  %1357 = vmatpush.bf16.msra.mxu0 0
  %1358 = vmatpush.bf16.msra.mxu0 0
  %1359 = vmatpush.bf16.msra.mxu0 %v962
  %1360 = vmatpush.bf16.msra.mxu0 %v955
  %1361 = vmatmul.bf16.gmra.mxu0 %v1091
  %v1362 = vpop.f32.mrf.mxu0
  %v1363 = vadd.f32 %v1350, %v1362
  %v1364 = vpop.f32.mrf.mxu0
  %1365 = vdwg.mxu0
  %v1366 = vmax.f32 %v1129, 0.0
  %v1367 = vmax.f32 %v1168, 0.0
  %v1368 = vmax.f32 %v1207, 0.0
  %v1369 = vmax.f32 %v1246, 0.0
  %v1370 = vmax.f32 %v1285, 0.0
  %v1371 = vmax.f32 %v1324, 0.0
  %v1372 = vmax.f32 %v1363, 0.0
  %v1373 = vpack.c.bf16 %v1366, %v1366
  %v1374 = vpack.c.bf16 %v1367, %v1367
  %v1375 = vpack.c.bf16 %v1368, %v1368
  %v1376 = vpack.c.bf16 %v1369, %v1369
  %v1377 = vpack.c.bf16 %v1370, %v1370
  %v1378 = vpack.c.bf16 %v1371, %v1371
  %v1379 = vpack.c.bf16 %v1372, %v1372
  %v1380 = vld [vmem:[%s7] sm:$0xff]
  %v1381 = vld [vmem:[%s7 + $0x8] sm:$0xff]
  %v1382 = vld [vmem:[%s7 + $0x10] sm:$0xff]
  %v1383 = vld [vmem:[%s7 + $0x18] sm:$0xff]
  %v1384 = vld [vmem:[%s7 + $0x20] sm:$0xff]
  %v1385 = vld [vmem:[%s7 + $0x28] sm:$0xff]
  %v1386 = vld [vmem:[%s7 + $0x30] sm:$0xf]
  %v1387 = vld [vmem:[%s7 + $0x34] sm:$0xff]
  %v1388 = vld [vmem:[%s7 + $0x3c] sm:$0xff]
  %v1389 = vld [vmem:[%s7 + $0x44] sm:$0xff]
  %v1390 = vld [vmem:[%s7 + $0x4c] sm:$0xff]
  %v1391 = vld [vmem:[%s7 + $0x54] sm:$0xff]
  %v1392 = vld [vmem:[%s7 + $0x5c] sm:$0xff]
  %v1393 = vld [vmem:[%s7 + $0x64] sm:$0xf]
  %v1394 = vld [vmem:[%s7 + $0x68] sm:$0xff]
  %v1395 = vld [vmem:[%s7 + $0x70] sm:$0xff]
  %v1396 = vld [vmem:[%s7 + $0x78] sm:$0xff]
  %v1397 = vld [vmem:[%s7 + $0x80] sm:$0xff]
  %v1398 = vld [vmem:[%s7 + $0x88] sm:$0xff]
  %v1399 = vld [vmem:[%s7 + $0x90] sm:$0xff]
  %v1400 = vld [vmem:[%s7 + $0x98] sm:$0xf]
  %v1401 = vld [vmem:[%s7 + $0x9c] sm:$0xff]
  %v1402 = vld [vmem:[%s7 + $0xa4] sm:$0xff]
  %v1403 = vld [vmem:[%s7 + $0xac] sm:$0xff]
  %v1404 = vld [vmem:[%s7 + $0xb4] sm:$0xff]
  %v1405 = vld [vmem:[%s7 + $0xbc] sm:$0xff]
  %v1406 = vld [vmem:[%s7 + $0xc4] sm:$0xff]
  %v1407 = vld [vmem:[%s7 + $0xcc] sm:$0xf]
  %v1408 = vld [vmem:[%s7 + $0xd0] sm:$0xff]
  %v1409 = vld [vmem:[%s7 + $0xd8] sm:$0xff]
  %v1410 = vld [vmem:[%s7 + $0xe0] sm:$0xff]
  %v1411 = vld [vmem:[%s7 + $0xe8] sm:$0xff]
  %v1412 = vld [vmem:[%s7 + $0xf0] sm:$0xff]
  %v1413 = vld [vmem:[%s7 + $0xf8] sm:$0xff]
  %v1414 = vld [vmem:[%s7 + $0x100] sm:$0xf]
  %v1415 = vld [vmem:[%s7 + $0x104] sm:$0xff]
  %v1416 = vld [vmem:[%s7 + $0x10c] sm:$0xff]
  %v1417 = vld [vmem:[%s7 + $0x114] sm:$0xff]
  %v1418 = vld [vmem:[%s7 + $0x11c] sm:$0xff]
  %v1419 = vld [vmem:[%s7 + $0x124] sm:$0xff]
  %v1420 = vld [vmem:[%s7 + $0x12c] sm:$0xff]
  %v1421 = vld [vmem:[%s7 + $0x134] sm:$0xf]
  %v1422 = vld [vmem:[%s7 + $0x138] sm:$0xff]
  %v1423 = vld [vmem:[%s7 + $0x140] sm:$0xff]
  %v1424 = vld [vmem:[%s7 + $0x148] sm:$0xff]
  %v1425 = vld [vmem:[%s7 + $0x150] sm:$0xff]
  %v1426 = vld [vmem:[%s7 + $0x158] sm:$0xff]
  %v1427 = vld [vmem:[%s7 + $0x160] sm:$0xff]
  %v1428 = vld [vmem:[%s7 + $0x168] sm:$0xf]
  %v1429 = vld [vmem:[%s7 + $0x16c] sm:$0xff]
  %v1430 = vld [vmem:[%s7 + $0x174] sm:$0xff]
  %v1431 = vld [vmem:[%s7 + $0x17c] sm:$0xff]
  %v1432 = vld [vmem:[%s7 + $0x184] sm:$0xff]
  %v1433 = vld [vmem:[%s7 + $0x18c] sm:$0xff]
  %v1434 = vld [vmem:[%s7 + $0x194] sm:$0xff]
  %v1435 = vld [vmem:[%s7 + $0x19c] sm:$0xf]
  %v1436 = vld [vmem:[%s7 + $0x1a0] sm:$0xff]
  %v1437 = vld [vmem:[%s7 + $0x1a8] sm:$0xff]
  %v1438 = vld [vmem:[%s7 + $0x1b0] sm:$0xff]
  %v1439 = vld [vmem:[%s7 + $0x1b8] sm:$0xff]
  %v1440 = vld [vmem:[%s7 + $0x1c0] sm:$0xff]
  %v1441 = vld [vmem:[%s7 + $0x1c8] sm:$0xff]
  %v1442 = vld [vmem:[%s7 + $0x1d0] sm:$0xf]
  %v1443 = vld [vmem:[%s7 + $0x1d4] sm:$0xff]
  %v1444 = vld [vmem:[%s7 + $0x1dc] sm:$0xff]
  %v1445 = vld [vmem:[%s7 + $0x1e4] sm:$0xff]
  %v1446 = vld [vmem:[%s7 + $0x1ec] sm:$0xff]
  %v1447 = vld [vmem:[%s7 + $0x1f4] sm:$0xff]
  %v1448 = vld [vmem:[%s7 + $0x1fc] sm:$0xff]
  %v1449 = vld [vmem:[%s7 + $0x204] sm:$0xf]
  %v1450 = vld [vmem:[%s7 + $0x208] sm:$0xff]
  %v1451 = vld [vmem:[%s7 + $0x210] sm:$0xff]
  %v1452 = vld [vmem:[%s7 + $0x218] sm:$0xff]
  %v1453 = vld [vmem:[%s7 + $0x220] sm:$0xff]
  %v1454 = vld [vmem:[%s7 + $0x228] sm:$0xff]
  %v1455 = vld [vmem:[%s7 + $0x230] sm:$0xff]
  %v1456 = vld [vmem:[%s7 + $0x238] sm:$0xf]
  %v1457 = vld [vmem:[%s7 + $0x23c] sm:$0xff]
  %v1458 = vld [vmem:[%s7 + $0x244] sm:$0xff]
  %v1459 = vld [vmem:[%s7 + $0x24c] sm:$0xff]
  %v1460 = vld [vmem:[%s7 + $0x254] sm:$0xff]
  %v1461 = vld [vmem:[%s7 + $0x25c] sm:$0xff]
  %v1462 = vld [vmem:[%s7 + $0x264] sm:$0xff]
  %v1463 = vld [vmem:[%s7 + $0x26c] sm:$0xf]
  %v1464 = vld [vmem:[%s7 + $0x270] sm:$0xff]
  %v1465 = vld [vmem:[%s7 + $0x278] sm:$0xff]
  %v1466 = vld [vmem:[%s7 + $0x280] sm:$0xff]
  %v1467 = vld [vmem:[%s7 + $0x288] sm:$0xff]
  %v1468 = vld [vmem:[%s7 + $0x290] sm:$0xff]
  %v1469 = vld [vmem:[%s7 + $0x298] sm:$0xff]
  %v1470 = vld [vmem:[%s7 + $0x2a0] sm:$0xf]
  %v1471 = vld [vmem:[%s7 + $0x2a4] sm:$0xff]
  %v1472 = vld [vmem:[%s7 + $0x2ac] sm:$0xff]
  %v1473 = vld [vmem:[%s7 + $0x2b4] sm:$0xff]
  %v1474 = vld [vmem:[%s7 + $0x2bc] sm:$0xff]
  %v1475 = vld [vmem:[%s7 + $0x2c4] sm:$0xff]
  %v1476 = vld [vmem:[%s7 + $0x2cc] sm:$0xff]
  %v1477 = vld [vmem:[%s7 + $0x2d4] sm:$0xf]
  %v1478 = vld [vmem:[%s7 + $0x2d8] sm:$0xff]
  %v1479 = vld [vmem:[%s7 + $0x2e0] sm:$0xff]
  %v1480 = vld [vmem:[%s7 + $0x2e8] sm:$0xff]
  %v1481 = vld [vmem:[%s7 + $0x2f0] sm:$0xff]
  %v1482 = vld [vmem:[%s7 + $0x2f8] sm:$0xff]
  %v1483 = vld [vmem:[%s7 + $0x300] sm:$0xff]
  %v1484 = vld [vmem:[%s7 + $0x308] sm:$0xf]
  %v1485 = vld [vmem:[%s7 + $0x30c] sm:$0xff]
  %v1486 = vld [vmem:[%s7 + $0x314] sm:$0xff]
  %v1487 = vld [vmem:[%s7 + $0x31c] sm:$0xff]
  %v1488 = vld [vmem:[%s7 + $0x324] sm:$0xff]
  %v1489 = vld [vmem:[%s7 + $0x32c] sm:$0xff]
  %v1490 = vld [vmem:[%s7 + $0x334] sm:$0xff]
  %v1491 = vld [vmem:[%s7 + $0x33c] sm:$0xf]
  %v1492 = vld [vmem:[%s7 + $0x340] sm:$0xff]
  %v1493 = vld [vmem:[%s7 + $0x348] sm:$0xff]
  %v1494 = vld [vmem:[%s7 + $0x350] sm:$0xff]
  %v1495 = vld [vmem:[%s7 + $0x358] sm:$0xff]
  %v1496 = vld [vmem:[%s7 + $0x360] sm:$0xff]
  %v1497 = vld [vmem:[%s7 + $0x368] sm:$0xff]
  %v1498 = vld [vmem:[%s7 + $0x370] sm:$0xf]
  %v1499 = vld [vmem:[%s7 + $0x374] sm:$0xff]
  %v1500 = vld [vmem:[%s7 + $0x37c] sm:$0xff]
  %v1501 = vld [vmem:[%s7 + $0x384] sm:$0xff]
  %v1502 = vld [vmem:[%s7 + $0x38c] sm:$0xff]
  %v1503 = vld [vmem:[%s7 + $0x394] sm:$0xff]
  %v1504 = vld [vmem:[%s7 + $0x39c] sm:$0xff]
  %v1505 = vld [vmem:[%s7 + $0x3a4] sm:$0xf]
  %v1506 = vld [vmem:[%s7 + $0x3a8] sm:$0xff]
  %v1507 = vld [vmem:[%s7 + $0x3b0] sm:$0xff]
  %v1508 = vld [vmem:[%s7 + $0x3b8] sm:$0xff]
  %v1509 = vld [vmem:[%s7 + $0x3c0] sm:$0xff]
  %v1510 = vld [vmem:[%s7 + $0x3c8] sm:$0xff]
  %v1511 = vld [vmem:[%s7 + $0x3d0] sm:$0xff]
  %v1512 = vld [vmem:[%s7 + $0x3d8] sm:$0xf]
  %v1513 = vld [vmem:[%s7 + $0x3dc] sm:$0xff]
  %v1514 = vld [vmem:[%s7 + $0x3e4] sm:$0xff]
  %v1515 = vld [vmem:[%s7 + $0x3ec] sm:$0xff]
  %v1516 = vld [vmem:[%s7 + $0x3f4] sm:$0xff]
  %v1517 = vld [vmem:[%s7 + $0x3fc] sm:$0xff]
  %v1518 = vld [vmem:[%s7 + $0x404] sm:$0xff]
  %v1519 = vld [vmem:[%s7 + $0x40c] sm:$0xf]
  %v1520 = vld [vmem:[%s7 + $0x410] sm:$0xff]
  %v1521 = vld [vmem:[%s7 + $0x418] sm:$0xff]
  %v1522 = vld [vmem:[%s7 + $0x420] sm:$0xff]
  %v1523 = vld [vmem:[%s7 + $0x428] sm:$0xff]
  %v1524 = vld [vmem:[%s7 + $0x430] sm:$0xff]
  %v1525 = vld [vmem:[%s7 + $0x438] sm:$0xff]
  %v1526 = vld [vmem:[%s7 + $0x440] sm:$0xf]
  %v1527 = vld [vmem:[%s7 + $0x444] sm:$0xff]
  %v1528 = vld [vmem:[%s7 + $0x44c] sm:$0xff]
  %v1529 = vld [vmem:[%s7 + $0x454] sm:$0xff]
  %v1530 = vld [vmem:[%s7 + $0x45c] sm:$0xff]
  %v1531 = vld [vmem:[%s7 + $0x464] sm:$0xff]
  %v1532 = vld [vmem:[%s7 + $0x46c] sm:$0xff]
  %v1533 = vld [vmem:[%s7 + $0x474] sm:$0xf]
  %v1534 = vld [vmem:[%s7 + $0x478] sm:$0xff]
  %v1535 = vld [vmem:[%s7 + $0x480] sm:$0xff]
  %v1536 = vld [vmem:[%s7 + $0x488] sm:$0xff]
  %v1537 = vld [vmem:[%s7 + $0x490] sm:$0xff]
  %v1538 = vld [vmem:[%s7 + $0x498] sm:$0xff]
  %v1539 = vld [vmem:[%s7 + $0x4a0] sm:$0xff]
  %v1540 = vld [vmem:[%s7 + $0x4a8] sm:$0xf]
  %v1541 = vld [vmem:[%s7 + $0x4ac] sm:$0xff]
  %v1542 = vld [vmem:[%s7 + $0x4b4] sm:$0xff]
  %v1543 = vld [vmem:[%s7 + $0x4bc] sm:$0xff]
  %v1544 = vld [vmem:[%s7 + $0x4c4] sm:$0xff]
  %v1545 = vld [vmem:[%s7 + $0x4cc] sm:$0xff]
  %v1546 = vld [vmem:[%s7 + $0x4d4] sm:$0xff]
  %v1547 = vld [vmem:[%s7 + $0x4dc] sm:$0xf]
  %v1548 = vld [vmem:[%s7 + $0x4e0] sm:$0xff]
  %v1549 = vld [vmem:[%s7 + $0x4e8] sm:$0xff]
  %v1550 = vld [vmem:[%s7 + $0x4f0] sm:$0xff]
  %v1551 = vld [vmem:[%s7 + $0x4f8] sm:$0xff]
  %v1552 = vld [vmem:[%s7 + $0x500] sm:$0xff]
  %v1553 = vld [vmem:[%s7 + $0x508] sm:$0xff]
  %v1554 = vld [vmem:[%s7 + $0x510] sm:$0xf]
  %v1555 = vld [vmem:[%s7 + $0x514] sm:$0xff]
  %v1556 = vld [vmem:[%s7 + $0x51c] sm:$0xff]
  %v1557 = vld [vmem:[%s7 + $0x524] sm:$0xff]
  %v1558 = vld [vmem:[%s7 + $0x52c] sm:$0xff]
  %v1559 = vld [vmem:[%s7 + $0x534] sm:$0xff]
  %v1560 = vld [vmem:[%s7 + $0x53c] sm:$0xff]
  %v1561 = vld [vmem:[%s7 + $0x544] sm:$0xf]
  %v1562 = vld [vmem:[%s7 + $0x548] sm:$0xff]
  %v1563 = vld [vmem:[%s7 + $0x550] sm:$0xff]
  %v1564 = vld [vmem:[%s7 + $0x558] sm:$0xff]
  %v1565 = vld [vmem:[%s7 + $0x560] sm:$0xff]
  %v1566 = vld [vmem:[%s7 + $0x568] sm:$0xff]
  %v1567 = vld [vmem:[%s7 + $0x570] sm:$0xff]
  %v1568 = vld [vmem:[%s7 + $0x578] sm:$0xf]
  %v1569 = vld [vmem:[%s7 + $0x57c] sm:$0xff]
  %v1570 = vld [vmem:[%s7 + $0x584] sm:$0xff]
  %v1571 = vld [vmem:[%s7 + $0x58c] sm:$0xff]
  %v1572 = vld [vmem:[%s7 + $0x594] sm:$0xff]
  %v1573 = vld [vmem:[%s7 + $0x59c] sm:$0xff]
  %v1574 = vld [vmem:[%s7 + $0x5a4] sm:$0xff]
  %v1575 = vld [vmem:[%s7 + $0x5ac] sm:$0xf]
  %v1576 = vld [vmem:[%s7 + $0x5b0] sm:$0xff]
  %v1577 = vld [vmem:[%s7 + $0x5b8] sm:$0xff]
  %v1578 = vld [vmem:[%s7 + $0x5c0] sm:$0xff]
  %v1579 = vld [vmem:[%s7 + $0x5c8] sm:$0xff]
  %v1580 = vld [vmem:[%s7 + $0x5d0] sm:$0xff]
  %v1581 = vld [vmem:[%s7 + $0x5d8] sm:$0xff]
  %v1582 = vld [vmem:[%s7 + $0x5e0] sm:$0xf]
  %v1583 = vld [vmem:[%s7 + $0x5e4] sm:$0xff]
  %v1584 = vld [vmem:[%s7 + $0x5ec] sm:$0xff]
  %v1585 = vld [vmem:[%s7 + $0x5f4] sm:$0xff]
  %v1586 = vld [vmem:[%s7 + $0x5fc] sm:$0xff]
  %v1587 = vld [vmem:[%s7 + $0x604] sm:$0xff]
  %v1588 = vld [vmem:[%s7 + $0x60c] sm:$0xff]
  %v1589 = vld [vmem:[%s7 + $0x614] sm:$0xf]
  %v1590 = vld [vmem:[%s7 + $0x618] sm:$0xff]
  %v1591 = vld [vmem:[%s7 + $0x620] sm:$0xff]
  %v1592 = vld [vmem:[%s7 + $0x628] sm:$0xff]
  %v1593 = vld [vmem:[%s7 + $0x630] sm:$0xff]
  %v1594 = vld [vmem:[%s7 + $0x638] sm:$0xff]
  %v1595 = vld [vmem:[%s7 + $0x640] sm:$0xff]
  %v1596 = vld [vmem:[%s7 + $0x648] sm:$0xf]
  %v1597 = vld [vmem:[%s7 + $0x64c] sm:$0xff]
  %v1598 = vld [vmem:[%s7 + $0x654] sm:$0xff]
  %v1599 = vld [vmem:[%s7 + $0x65c] sm:$0xff]
  %v1600 = vld [vmem:[%s7 + $0x664] sm:$0xff]
  %v1601 = vld [vmem:[%s7 + $0x66c] sm:$0xff]
  %v1602 = vld [vmem:[%s7 + $0x674] sm:$0xff]
  %v1603 = vld [vmem:[%s7 + $0x67c] sm:$0xf]
  %v1604 = vld [vmem:[%s7 + $0x680] sm:$0xff]
  %v1605 = vld [vmem:[%s7 + $0x688] sm:$0xff]
  %v1606 = vld [vmem:[%s7 + $0x690] sm:$0xff]
  %v1607 = vld [vmem:[%s7 + $0x698] sm:$0xff]
  %v1608 = vld [vmem:[%s7 + $0x6a0] sm:$0xff]
  %v1609 = vld [vmem:[%s7 + $0x6a8] sm:$0xff]
  %v1610 = vld [vmem:[%s7 + $0x6b0] sm:$0xf]
  %v1611 = vld [vmem:[%s7 + $0x6b4] sm:$0xff]
  %v1612 = vld [vmem:[%s7 + $0x6bc] sm:$0xff]
  %v1613 = vld [vmem:[%s7 + $0x6c4] sm:$0xff]
  %v1614 = vld [vmem:[%s7 + $0x6cc] sm:$0xff]
  %v1615 = vld [vmem:[%s7 + $0x6d4] sm:$0xff]
  %v1616 = vld [vmem:[%s7 + $0x6dc] sm:$0xff]
  %v1617 = vld [vmem:[%s7 + $0x6e4] sm:$0xf]
  %v1618 = vld [vmem:[%s7 + $0x6e8] sm:$0xff]
  %v1619 = vld [vmem:[%s7 + $0x6f0] sm:$0xff]
  %v1620 = vld [vmem:[%s7 + $0x6f8] sm:$0xff]
  %v1621 = vld [vmem:[%s7 + $0x700] sm:$0xff]
  %v1622 = vld [vmem:[%s7 + $0x708] sm:$0xff]
  %v1623 = vld [vmem:[%s7 + $0x710] sm:$0xff]
  %v1624 = vld [vmem:[%s7 + $0x718] sm:$0xf]
  %v1625 = vld [vmem:[%s7 + $0x71c] sm:$0xff]
  %v1626 = vld [vmem:[%s7 + $0x724] sm:$0xff]
  %v1627 = vld [vmem:[%s7 + $0x72c] sm:$0xff]
  %v1628 = vld [vmem:[%s7 + $0x734] sm:$0xff]
  %v1629 = vld [vmem:[%s7 + $0x73c] sm:$0xff]
  %v1630 = vld [vmem:[%s7 + $0x744] sm:$0xff]
  %v1631 = vld [vmem:[%s7 + $0x74c] sm:$0xf]
  %v1632 = vld [vmem:[%s7 + $0x750] sm:$0xff]
  %v1633 = vld [vmem:[%s7 + $0x758] sm:$0xff]
  %v1634 = vld [vmem:[%s7 + $0x760] sm:$0xff]
  %v1635 = vld [vmem:[%s7 + $0x768] sm:$0xff]
  %v1636 = vld [vmem:[%s7 + $0x770] sm:$0xff]
  %v1637 = vld [vmem:[%s7 + $0x778] sm:$0xff]
  %v1638 = vld [vmem:[%s7 + $0x780] sm:$0xf]
  %v1639 = vld [vmem:[%s7 + $0x784] sm:$0xff]
  %v1640 = vld [vmem:[%s7 + $0x78c] sm:$0xff]
  %v1641 = vld [vmem:[%s7 + $0x794] sm:$0xff]
  %v1642 = vld [vmem:[%s7 + $0x79c] sm:$0xff]
  %v1643 = vld [vmem:[%s7 + $0x7a4] sm:$0xff]
  %v1644 = vld [vmem:[%s7 + $0x7ac] sm:$0xff]
  %v1645 = vld [vmem:[%s7 + $0x7b4] sm:$0xf]
  %v1646 = vld [vmem:[%s7 + $0x7b8] sm:$0xff]
  %v1647 = vld [vmem:[%s7 + $0x7c0] sm:$0xff]
  %v1648 = vld [vmem:[%s7 + $0x7c8] sm:$0xff]
  %v1649 = vld [vmem:[%s7 + $0x7d0] sm:$0xff]
  %v1650 = vld [vmem:[%s7 + $0x7d8] sm:$0xff]
  %v1651 = vld [vmem:[%s7 + $0x7e0] sm:$0xff]
  %v1652 = vld [vmem:[%s7 + $0x7e8] sm:$0xf]
  %v1653 = vld [vmem:[%s7 + $0x7ec] sm:$0xff]
  %v1654 = vld [vmem:[%s7 + $0x7f4] sm:$0xff]
  %v1655 = vld [vmem:[%s7 + $0x7fc] sm:$0xff]
  %v1656 = vld [vmem:[%s7 + $0x804] sm:$0xff]
  %v1657 = vld [vmem:[%s7 + $0x80c] sm:$0xff]
  %v1658 = vld [vmem:[%s7 + $0x814] sm:$0xff]
  %v1659 = vld [vmem:[%s7 + $0x81c] sm:$0xf]
  %v1660 = vld [vmem:[%s7 + $0x820] sm:$0xff]
  %v1661 = vld [vmem:[%s7 + $0x828] sm:$0xff]
  %v1662 = vld [vmem:[%s7 + $0x830] sm:$0xff]
  %v1663 = vld [vmem:[%s7 + $0x838] sm:$0xff]
  %v1664 = vld [vmem:[%s7 + $0x840] sm:$0xff]
  %v1665 = vld [vmem:[%s7 + $0x848] sm:$0xff]
  %v1666 = vld [vmem:[%s7 + $0x850] sm:$0xf]
  %v1667 = vld [vmem:[%s7 + $0x854] sm:$0xff]
  %v1668 = vld [vmem:[%s7 + $0x85c] sm:$0xff]
  %v1669 = vld [vmem:[%s7 + $0x864] sm:$0xff]
  %v1670 = vld [vmem:[%s7 + $0x86c] sm:$0xff]
  %v1671 = vld [vmem:[%s7 + $0x874] sm:$0xff]
  %v1672 = vld [vmem:[%s7 + $0x87c] sm:$0xff]
  %v1673 = vld [vmem:[%s7 + $0x884] sm:$0xf]
  %v1674 = vld [vmem:[%s7 + $0x888] sm:$0xff]
  %v1675 = vld [vmem:[%s7 + $0x890] sm:$0xff]
  %v1676 = vld [vmem:[%s7 + $0x898] sm:$0xff]
  %v1677 = vld [vmem:[%s7 + $0x8a0] sm:$0xff]
  %v1678 = vld [vmem:[%s7 + $0x8a8] sm:$0xff]
  %v1679 = vld [vmem:[%s7 + $0x8b0] sm:$0xff]
  %v1680 = vld [vmem:[%s7 + $0x8b8] sm:$0xf]
  %v1681 = vld [vmem:[%s7 + $0x8bc] sm:$0xff]
  %v1682 = vld [vmem:[%s7 + $0x8c4] sm:$0xff]
  %v1683 = vld [vmem:[%s7 + $0x8cc] sm:$0xff]
  %v1684 = vld [vmem:[%s7 + $0x8d4] sm:$0xff]
  %v1685 = vld [vmem:[%s7 + $0x8dc] sm:$0xff]
  %v1686 = vld [vmem:[%s7 + $0x8e4] sm:$0xff]
  %v1687 = vld [vmem:[%s7 + $0x8ec] sm:$0xf]
  %v1688 = vld [vmem:[%s7 + $0x8f0] sm:$0xff]
  %v1689 = vld [vmem:[%s7 + $0x8f8] sm:$0xff]
  %v1690 = vld [vmem:[%s7 + $0x900] sm:$0xff]
  %v1691 = vld [vmem:[%s7 + $0x908] sm:$0xff]
  %v1692 = vld [vmem:[%s7 + $0x910] sm:$0xff]
  %v1693 = vld [vmem:[%s7 + $0x918] sm:$0xff]
  %v1694 = vld [vmem:[%s7 + $0x920] sm:$0xf]
  %v1695 = vld [vmem:[%s7 + $0x924] sm:$0xff]
  %v1696 = vld [vmem:[%s7 + $0x92c] sm:$0xff]
  %v1697 = vld [vmem:[%s7 + $0x934] sm:$0xff]
  %v1698 = vld [vmem:[%s7 + $0x93c] sm:$0xff]
  %v1699 = vld [vmem:[%s7 + $0x944] sm:$0xff]
  %v1700 = vld [vmem:[%s7 + $0x94c] sm:$0xff]
  %v1701 = vld [vmem:[%s7 + $0x954] sm:$0xf]
  %v1702 = vld [vmem:[%s7 + $0x958] sm:$0xff]
  %v1703 = vld [vmem:[%s7 + $0x960] sm:$0xff]
  %v1704 = vld [vmem:[%s7 + $0x968] sm:$0xff]
  %v1705 = vld [vmem:[%s7 + $0x970] sm:$0xff]
  %v1706 = vld [vmem:[%s7 + $0x978] sm:$0xff]
  %v1707 = vld [vmem:[%s7 + $0x980] sm:$0xff]
  %v1708 = vld [vmem:[%s7 + $0x988] sm:$0xf]
  %v1709 = vld [vmem:[%s7 + $0x98c] sm:$0xff]
  %v1710 = vld [vmem:[%s7 + $0x994] sm:$0xff]
  %v1711 = vld [vmem:[%s7 + $0x99c] sm:$0xff]
  %v1712 = vld [vmem:[%s7 + $0x9a4] sm:$0xff]
  %v1713 = vld [vmem:[%s7 + $0x9ac] sm:$0xff]
  %v1714 = vld [vmem:[%s7 + $0x9b4] sm:$0xff]
  %v1715 = vld [vmem:[%s7 + $0x9bc] sm:$0xf]
  %v1716 = vld [vmem:[%s7 + $0x9c0] sm:$0xff]
  %v1717 = vld [vmem:[%s7 + $0x9c8] sm:$0xff]
  %v1718 = vld [vmem:[%s7 + $0x9d0] sm:$0xff]
  %v1719 = vld [vmem:[%s7 + $0x9d8] sm:$0xff]
  %v1720 = vld [vmem:[%s7 + $0x9e0] sm:$0xff]
  %v1721 = vld [vmem:[%s7 + $0x9e8] sm:$0xff]
  %v1722 = vld [vmem:[%s7 + $0x9f0] sm:$0xf]
  %v1723 = vld [vmem:[%s7 + $0x9f4] sm:$0xff]
  %v1724 = vld [vmem:[%s7 + $0x9fc] sm:$0xff]
  %v1725 = vld [vmem:[%s7 + $0xa04] sm:$0xff]
  %v1726 = vld [vmem:[%s7 + $0xa0c] sm:$0xff]
  %v1727 = vld [vmem:[%s7 + $0xa14] sm:$0xff]
  %v1728 = vld [vmem:[%s7 + $0xa1c] sm:$0xff]
  %v1729 = vld [vmem:[%s7 + $0xa24] sm:$0xf]
  %v1730 = vld [vmem:[%s7 + $0xa28] sm:$0xff]
  %v1731 = vld [vmem:[%s7 + $0xa30] sm:$0xff]
  %v1732 = vld [vmem:[%s7 + $0xa38] sm:$0xff]
  %v1733 = vld [vmem:[%s7 + $0xa40] sm:$0xff]
  %v1734 = vld [vmem:[%s7 + $0xa48] sm:$0xff]
  %v1735 = vld [vmem:[%s7 + $0xa50] sm:$0xff]
  %v1736 = vld [vmem:[%s7 + $0xa58] sm:$0xf]
  %v1737 = vld [vmem:[%s7 + $0xa5c] sm:$0xff]
  %v1738 = vld [vmem:[%s7 + $0xa64] sm:$0xff]
  %v1739 = vld [vmem:[%s7 + $0xa6c] sm:$0xff]
  %v1740 = vld [vmem:[%s7 + $0xa74] sm:$0xff]
  %v1741 = vld [vmem:[%s7 + $0xa7c] sm:$0xff]
  %v1742 = vld [vmem:[%s7 + $0xa84] sm:$0xff]
  %v1743 = vld [vmem:[%s7 + $0xa8c] sm:$0xf]
  %v1744 = vld [vmem:[%s7 + $0xa90] sm:$0xff]
  %v1745 = vld [vmem:[%s7 + $0xa98] sm:$0xff]
  %v1746 = vld [vmem:[%s7 + $0xaa0] sm:$0xff]
  %v1747 = vld [vmem:[%s7 + $0xaa8] sm:$0xff]
  %v1748 = vld [vmem:[%s7 + $0xab0] sm:$0xff]
  %v1749 = vld [vmem:[%s7 + $0xab8] sm:$0xff]
  %v1750 = vld [vmem:[%s7 + $0xac0] sm:$0xf]
  %v1751 = vld [vmem:[%s7 + $0xac4] sm:$0xff]
  %v1752 = vld [vmem:[%s7 + $0xacc] sm:$0xff]
  %v1753 = vld [vmem:[%s7 + $0xad4] sm:$0xff]
  %v1754 = vld [vmem:[%s7 + $0xadc] sm:$0xff]
  %v1755 = vld [vmem:[%s7 + $0xae4] sm:$0xff]
  %v1756 = vld [vmem:[%s7 + $0xaec] sm:$0xff]
  %v1757 = vld [vmem:[%s7 + $0xaf4] sm:$0xf]
  %v1758 = vld [vmem:[%s7 + $0xaf8] sm:$0xff]
  %v1759 = vld [vmem:[%s7 + $0xb00] sm:$0xff]
  %v1760 = vld [vmem:[%s7 + $0xb08] sm:$0xff]
  %v1761 = vld [vmem:[%s7 + $0xb10] sm:$0xff]
  %v1762 = vld [vmem:[%s7 + $0xb18] sm:$0xff]
  %v1763 = vld [vmem:[%s7 + $0xb20] sm:$0xff]
  %v1764 = vld [vmem:[%s7 + $0xb28] sm:$0xf]
  %v1765 = vld [vmem:[%s7 + $0xb2c] sm:$0xff]
  %v1766 = vld [vmem:[%s7 + $0xb34] sm:$0xff]
  %v1767 = vld [vmem:[%s7 + $0xb3c] sm:$0xff]
  %v1768 = vld [vmem:[%s7 + $0xb44] sm:$0xff]
  %v1769 = vld [vmem:[%s7 + $0xb4c] sm:$0xff]
  %v1770 = vld [vmem:[%s7 + $0xb54] sm:$0xff]
  %v1771 = vld [vmem:[%s7 + $0xb5c] sm:$0xf]
  %v1772 = vld [vmem:[%s7 + $0xb60] sm:$0xff]
  %v1773 = vld [vmem:[%s7 + $0xb68] sm:$0xff]
  %v1774 = vld [vmem:[%s7 + $0xb70] sm:$0xff]
  %v1775 = vld [vmem:[%s7 + $0xb78] sm:$0xff]
  %v1776 = vld [vmem:[%s7 + $0xb80] sm:$0xff]
  %v1777 = vld [vmem:[%s7 + $0xb88] sm:$0xff]
  %v1778 = vld [vmem:[%s7 + $0xb90] sm:$0xf]
  %v1779 = vld [vmem:[%s7 + $0xb94] sm:$0xff]
  %v1780 = vld [vmem:[%s7 + $0xb9c] sm:$0xff]
  %v1781 = vld [vmem:[%s7 + $0xba4] sm:$0xff]
  %v1782 = vld [vmem:[%s7 + $0xbac] sm:$0xff]
  %v1783 = vld [vmem:[%s7 + $0xbb4] sm:$0xff]
  %v1784 = vld [vmem:[%s7 + $0xbbc] sm:$0xff]
  %v1785 = vld [vmem:[%s7 + $0xbc4] sm:$0xf]
  %v1786 = vld [vmem:[%s7 + $0xbc8] sm:$0xff]
  %v1787 = vld [vmem:[%s7 + $0xbd0] sm:$0xff]
  %v1788 = vld [vmem:[%s7 + $0xbd8] sm:$0xff]
  %v1789 = vld [vmem:[%s7 + $0xbe0] sm:$0xff]
  %v1790 = vld [vmem:[%s7 + $0xbe8] sm:$0xff]
  %v1791 = vld [vmem:[%s7 + $0xbf0] sm:$0xff]
  %v1792 = vld [vmem:[%s7 + $0xbf8] sm:$0xf]
  %v1793 = vld [vmem:[%s7 + $0xbfc] sm:$0xff]
  %v1794 = vld [vmem:[%s7 + $0xc04] sm:$0xff]
  %v1795 = vld [vmem:[%s7 + $0xc0c] sm:$0xff]
  %v1796 = vld [vmem:[%s7 + $0xc14] sm:$0xff]
  %v1797 = vld [vmem:[%s7 + $0xc1c] sm:$0xff]
  %v1798 = vld [vmem:[%s7 + $0xc24] sm:$0xff]
  %v1799 = vld [vmem:[%s7 + $0xc2c] sm:$0xf]
  %v1800 = vld [vmem:[%s7 + $0xc30] sm:$0xff]
  %v1801 = vld [vmem:[%s7 + $0xc38] sm:$0xff]
  %v1802 = vld [vmem:[%s7 + $0xc40] sm:$0xff]
  %v1803 = vld [vmem:[%s7 + $0xc48] sm:$0xff]
  %v1804 = vld [vmem:[%s7 + $0xc50] sm:$0xff]
  %v1805 = vld [vmem:[%s7 + $0xc58] sm:$0xff]
  %v1806 = vld [vmem:[%s7 + $0xc60] sm:$0xf]
  %v1807 = vld [vmem:[%s7 + $0xc64] sm:$0xff]
  %v1808 = vld [vmem:[%s7 + $0xc6c] sm:$0xff]
  %v1809 = vld [vmem:[%s7 + $0xc74] sm:$0xff]
  %v1810 = vld [vmem:[%s7 + $0xc7c] sm:$0xff]
  %v1811 = vld [vmem:[%s7 + $0xc84] sm:$0xff]
  %v1812 = vld [vmem:[%s7 + $0xc8c] sm:$0xff]
  %v1813 = vld [vmem:[%s7 + $0xc94] sm:$0xf]
  %v1814 = vld [vmem:[%s7 + $0xc98] sm:$0xff]
  %v1815 = vld [vmem:[%s7 + $0xca0] sm:$0xff]
  %v1816 = vld [vmem:[%s7 + $0xca8] sm:$0xff]
  %v1817 = vld [vmem:[%s7 + $0xcb0] sm:$0xff]
  %v1818 = vld [vmem:[%s7 + $0xcb8] sm:$0xff]
  %v1819 = vld [vmem:[%s7 + $0xcc0] sm:$0xff]
  %v1820 = vld [vmem:[%s7 + $0xcc8] sm:$0xf]
  %v1821 = vld [vmem:[%s7 + $0xccc] sm:$0xff]
  %v1822 = vld [vmem:[%s7 + $0xcd4] sm:$0xff]
  %v1823 = vld [vmem:[%s7 + $0xcdc] sm:$0xff]
  %v1824 = vld [vmem:[%s7 + $0xce4] sm:$0xff]
  %v1825 = vld [vmem:[%s7 + $0xcec] sm:$0xff]
  %v1826 = vld [vmem:[%s7 + $0xcf4] sm:$0xff]
  %v1827 = vld [vmem:[%s7 + $0xcfc] sm:$0xf]
  %v1828 = vld [vmem:[%s7 + $0xd00] sm:$0xff]
  %v1829 = vld [vmem:[%s7 + $0xd08] sm:$0xff]
  %v1830 = vld [vmem:[%s7 + $0xd10] sm:$0xff]
  %v1831 = vld [vmem:[%s7 + $0xd18] sm:$0xff]
  %v1832 = vld [vmem:[%s7 + $0xd20] sm:$0xff]
  %v1833 = vld [vmem:[%s7 + $0xd28] sm:$0xff]
  %v1834 = vld [vmem:[%s7 + $0xd30] sm:$0xf]
  %v1835 = vld [vmem:[%s7 + $0xd34] sm:$0xff]
  %v1836 = vld [vmem:[%s7 + $0xd3c] sm:$0xff]
  %v1837 = vld [vmem:[%s7 + $0xd44] sm:$0xff]
  %v1838 = vld [vmem:[%s7 + $0xd4c] sm:$0xff]
  %v1839 = vld [vmem:[%s7 + $0xd54] sm:$0xff]
  %v1840 = vld [vmem:[%s7 + $0xd5c] sm:$0xff]
  %v1841 = vld [vmem:[%s7 + $0xd64] sm:$0xf]
  %v1842 = vld [vmem:[%s7 + $0xd68] sm:$0xff]
  %v1843 = vld [vmem:[%s7 + $0xd70] sm:$0xff]
  %v1844 = vld [vmem:[%s7 + $0xd78] sm:$0xff]
  %v1845 = vld [vmem:[%s7 + $0xd80] sm:$0xff]
  %v1846 = vld [vmem:[%s7 + $0xd88] sm:$0xff]
  %v1847 = vld [vmem:[%s7 + $0xd90] sm:$0xff]
  %v1848 = vld [vmem:[%s7 + $0xd98] sm:$0xf]
  %v1849 = vld [vmem:[%s7 + $0xd9c] sm:$0xff]
  %v1850 = vld [vmem:[%s7 + $0xda4] sm:$0xff]
  %v1851 = vld [vmem:[%s7 + $0xdac] sm:$0xff]
  %v1852 = vld [vmem:[%s7 + $0xdb4] sm:$0xff]
  %v1853 = vld [vmem:[%s7 + $0xdbc] sm:$0xff]
  %v1854 = vld [vmem:[%s7 + $0xdc4] sm:$0xff]
  %v1855 = vld [vmem:[%s7 + $0xdcc] sm:$0xf]
  %v1856 = vld [vmem:[%s7 + $0xdd0] sm:$0xff]
  %v1857 = vld [vmem:[%s7 + $0xdd8] sm:$0xff]
  %v1858 = vld [vmem:[%s7 + $0xde0] sm:$0xff]
  %v1859 = vld [vmem:[%s7 + $0xde8] sm:$0xff]
  %v1860 = vld [vmem:[%s7 + $0xdf0] sm:$0xff]
  %v1861 = vld [vmem:[%s7 + $0xdf8] sm:$0xff]
  %v1862 = vld [vmem:[%s7 + $0xe00] sm:$0xf]
  %v1863 = vld [vmem:[%s7 + $0xe04] sm:$0xff]
  %v1864 = vld [vmem:[%s7 + $0xe0c] sm:$0xff]
  %v1865 = vld [vmem:[%s7 + $0xe14] sm:$0xff]
  %v1866 = vld [vmem:[%s7 + $0xe1c] sm:$0xff]
  %v1867 = vld [vmem:[%s7 + $0xe24] sm:$0xff]
  %v1868 = vld [vmem:[%s7 + $0xe2c] sm:$0xff]
  %v1869 = vld [vmem:[%s7 + $0xe34] sm:$0xf]
  %v1870 = vld [vmem:[%s7 + $0xe38] sm:$0xff]
  %v1871 = vld [vmem:[%s7 + $0xe40] sm:$0xff]
  %v1872 = vld [vmem:[%s7 + $0xe48] sm:$0xff]
  %v1873 = vld [vmem:[%s7 + $0xe50] sm:$0xff]
  %v1874 = vld [vmem:[%s7 + $0xe58] sm:$0xff]
  %v1875 = vld [vmem:[%s7 + $0xe60] sm:$0xff]
  %v1876 = vld [vmem:[%s7 + $0xe68] sm:$0xf]
  %v1877 = vld [vmem:[%s7 + $0xe6c] sm:$0xff]
  %v1878 = vld [vmem:[%s7 + $0xe74] sm:$0xff]
  %v1879 = vld [vmem:[%s7 + $0xe7c] sm:$0xff]
  %v1880 = vld [vmem:[%s7 + $0xe84] sm:$0xff]
  %v1881 = vld [vmem:[%s7 + $0xe8c] sm:$0xff]
  %v1882 = vld [vmem:[%s7 + $0xe94] sm:$0xff]
  %v1883 = vld [vmem:[%s7 + $0xe9c] sm:$0xf]
  %v1884 = vld [vmem:[%s7 + $0xea0] sm:$0xff]
  %v1885 = vld [vmem:[%s7 + $0xea8] sm:$0xff]
  %v1886 = vld [vmem:[%s7 + $0xeb0] sm:$0xff]
  %v1887 = vld [vmem:[%s7 + $0xeb8] sm:$0xff]
  %v1888 = vld [vmem:[%s7 + $0xec0] sm:$0xff]
  %v1889 = vld [vmem:[%s7 + $0xec8] sm:$0xff]
  %v1890 = vld [vmem:[%s7 + $0xed0] sm:$0xf]
  %v1891 = vld [vmem:[%s7 + $0xed4] sm:$0xff]
  %v1892 = vld [vmem:[%s7 + $0xedc] sm:$0xff]
  %v1893 = vld [vmem:[%s7 + $0xee4] sm:$0xff]
  %v1894 = vld [vmem:[%s7 + $0xeec] sm:$0xff]
  %v1895 = vld [vmem:[%s7 + $0xef4] sm:$0xff]
  %v1896 = vld [vmem:[%s7 + $0xefc] sm:$0xff]
  %v1897 = vld [vmem:[%s7 + $0xf04] sm:$0xf]
  %v1898 = vld [vmem:[%s7 + $0xf08] sm:$0xff]
  %v1899 = vld [vmem:[%s7 + $0xf10] sm:$0xff]
  %v1900 = vld [vmem:[%s7 + $0xf18] sm:$0xff]
  %v1901 = vld [vmem:[%s7 + $0xf20] sm:$0xff]
  %v1902 = vld [vmem:[%s7 + $0xf28] sm:$0xff]
  %v1903 = vld [vmem:[%s7 + $0xf30] sm:$0xff]
  %v1904 = vld [vmem:[%s7 + $0xf38] sm:$0xf]
  %v1905 = vld [vmem:[%s7 + $0xf3c] sm:$0xff]
  %v1906 = vld [vmem:[%s7 + $0xf44] sm:$0xff]
  %v1907 = vld [vmem:[%s7 + $0xf4c] sm:$0xff]
  %v1908 = vld [vmem:[%s7 + $0xf54] sm:$0xff]
  %v1909 = vld [vmem:[%s7 + $0xf5c] sm:$0xff]
  %v1910 = vld [vmem:[%s7 + $0xf64] sm:$0xff]
  %v1911 = vld [vmem:[%s7 + $0xf6c] sm:$0xf]
  %v1912 = vld [vmem:[%s7 + $0xf70] sm:$0xff]
  %v1913 = vld [vmem:[%s7 + $0xf78] sm:$0xff]
  %v1914 = vld [vmem:[%s7 + $0xf80] sm:$0xff]
  %v1915 = vld [vmem:[%s7 + $0xf88] sm:$0xff]
  %v1916 = vld [vmem:[%s7 + $0xf90] sm:$0xff]
  %v1917 = vld [vmem:[%s7 + $0xf98] sm:$0xff]
  %v1918 = vld [vmem:[%s7 + $0xfa0] sm:$0xf]
  %v1919 = vld [vmem:[%s7 + $0xfa4] sm:$0xff]
  %v1920 = vld [vmem:[%s7 + $0xfac] sm:$0xff]
  %v1921 = vld [vmem:[%s7 + $0xfb4] sm:$0xff]
  %v1922 = vld [vmem:[%s7 + $0xfbc] sm:$0xff]
  %v1923 = vld [vmem:[%s7 + $0xfc4] sm:$0xff]
  %v1924 = vld [vmem:[%s7 + $0xfcc] sm:$0xff]
  %v1925 = vld [vmem:[%s7 + $0xfd4] sm:$0xf]
  %v1926 = vld [vmem:[%s7 + $0xfd8] sm:$0xff]
  %v1927 = vld [vmem:[%s7 + $0xfe0] sm:$0xff]
  %v1928 = vld [vmem:[%s7 + $0xfe8] sm:$0xff]
  %v1929 = vld [vmem:[%s7 + $0xff0] sm:$0xff]
  %v1930 = vld [vmem:[%s7 + $0xff8] sm:$0xff]
  %v1931 = vld [vmem:[%s7 + $0x1000] sm:$0xff]
  %v1932 = vld [vmem:[%s7 + $0x1008] sm:$0xf]
  %v1933 = vld [vmem:[%s7 + $0x100c] sm:$0xff]
  %v1934 = vld [vmem:[%s7 + $0x1014] sm:$0xff]
  %v1935 = vld [vmem:[%s7 + $0x101c] sm:$0xff]
  %v1936 = vld [vmem:[%s7 + $0x1024] sm:$0xff]
  %v1937 = vld [vmem:[%s7 + $0x102c] sm:$0xff]
  %v1938 = vld [vmem:[%s7 + $0x1034] sm:$0xff]
  %v1939 = vld [vmem:[%s7 + $0x103c] sm:$0xf]
  %v1940 = vld [vmem:[%s7 + $0x1040] sm:$0xff]
  %v1941 = vld [vmem:[%s7 + $0x1048] sm:$0xff]
  %v1942 = vld [vmem:[%s7 + $0x1050] sm:$0xff]
  %v1943 = vld [vmem:[%s7 + $0x1058] sm:$0xff]
  %v1944 = vld [vmem:[%s7 + $0x1060] sm:$0xff]
  %v1945 = vld [vmem:[%s7 + $0x1068] sm:$0xff]
  %v1946 = vld [vmem:[%s7 + $0x1070] sm:$0xf]
  %v1947 = vld [vmem:[%s7 + $0x1074] sm:$0xff]
  %v1948 = vld [vmem:[%s7 + $0x107c] sm:$0xff]
  %v1949 = vld [vmem:[%s7 + $0x1084] sm:$0xff]
  %v1950 = vld [vmem:[%s7 + $0x108c] sm:$0xff]
  %v1951 = vld [vmem:[%s7 + $0x1094] sm:$0xff]
  %v1952 = vld [vmem:[%s7 + $0x109c] sm:$0xff]
  %v1953 = vld [vmem:[%s7 + $0x10a4] sm:$0xf]
  %v1954 = vld [vmem:[%s7 + $0x10a8] sm:$0xff]
  %v1955 = vld [vmem:[%s7 + $0x10b0] sm:$0xff]
  %v1956 = vld [vmem:[%s7 + $0x10b8] sm:$0xff]
  %v1957 = vld [vmem:[%s7 + $0x10c0] sm:$0xff]
  %v1958 = vld [vmem:[%s7 + $0x10c8] sm:$0xff]
  %v1959 = vld [vmem:[%s7 + $0x10d0] sm:$0xff]
  %v1960 = vld [vmem:[%s7 + $0x10d8] sm:$0xf]
  %v1961 = vld [vmem:[%s7 + $0x10dc] sm:$0xff]
  %v1962 = vld [vmem:[%s7 + $0x10e4] sm:$0xff]
  %v1963 = vld [vmem:[%s7 + $0x10ec] sm:$0xff]
  %v1964 = vld [vmem:[%s7 + $0x10f4] sm:$0xff]
  %v1965 = vld [vmem:[%s7 + $0x10fc] sm:$0xff]
  %v1966 = vld [vmem:[%s7 + $0x1104] sm:$0xff]
  %v1967 = vld [vmem:[%s7 + $0x110c] sm:$0xf]
  %v1968 = vld [vmem:[%s7 + $0x1110] sm:$0xff]
  %v1969 = vld [vmem:[%s7 + $0x1118] sm:$0xff]
  %v1970 = vld [vmem:[%s7 + $0x1120] sm:$0xff]
  %v1971 = vld [vmem:[%s7 + $0x1128] sm:$0xff]
  %v1972 = vld [vmem:[%s7 + $0x1130] sm:$0xff]
  %v1973 = vld [vmem:[%s7 + $0x1138] sm:$0xff]
  %v1974 = vld [vmem:[%s7 + $0x1140] sm:$0xf]
  %v1975 = vld [vmem:[%s7 + $0x1144] sm:$0xff]
  %v1976 = vld [vmem:[%s7 + $0x114c] sm:$0xff]
  %v1977 = vld [vmem:[%s7 + $0x1154] sm:$0xff]
  %v1978 = vld [vmem:[%s7 + $0x115c] sm:$0xff]
  %v1979 = vld [vmem:[%s7 + $0x1164] sm:$0xff]
  %v1980 = vld [vmem:[%s7 + $0x116c] sm:$0xff]
  %v1981 = vld [vmem:[%s7 + $0x1174] sm:$0xf]
  %v1982 = vld [vmem:[%s7 + $0x1178] sm:$0xff]
  %v1983 = vld [vmem:[%s7 + $0x1180] sm:$0xff]
  %v1984 = vld [vmem:[%s7 + $0x1188] sm:$0xff]
  %v1985 = vld [vmem:[%s7 + $0x1190] sm:$0xff]
  %v1986 = vld [vmem:[%s7 + $0x1198] sm:$0xff]
  %v1987 = vld [vmem:[%s7 + $0x11a0] sm:$0xff]
  %v1988 = vld [vmem:[%s7 + $0x11a8] sm:$0xf]
  %v1989 = vld [vmem:[%s7 + $0x11ac] sm:$0xff]
  %v1990 = vld [vmem:[%s7 + $0x11b4] sm:$0xff]
  %v1991 = vld [vmem:[%s7 + $0x11bc] sm:$0xff]
  %v1992 = vld [vmem:[%s7 + $0x11c4] sm:$0xff]
  %v1993 = vld [vmem:[%s7 + $0x11cc] sm:$0xff]
  %v1994 = vld [vmem:[%s7 + $0x11d4] sm:$0xff]
  %v1995 = vld [vmem:[%s7 + $0x11dc] sm:$0xf]
  %v1996 = vld [vmem:[%s7 + $0x11e0] sm:$0xff]
  %v1997 = vld [vmem:[%s7 + $0x11e8] sm:$0xff]
  %v1998 = vld [vmem:[%s7 + $0x11f0] sm:$0xff]
  %v1999 = vld [vmem:[%s7 + $0x11f8] sm:$0xff]
  %v2000 = vld [vmem:[%s7 + $0x1200] sm:$0xff]
  %v2001 = vld [vmem:[%s7 + $0x1208] sm:$0xff]
  %v2002 = vld [vmem:[%s7 + $0x1210] sm:$0xf]
  %v2003 = vld [vmem:[%s7 + $0x1214] sm:$0xff]
  %v2004 = vld [vmem:[%s7 + $0x121c] sm:$0xff]
  %v2005 = vld [vmem:[%s7 + $0x1224] sm:$0xff]
  %v2006 = vld [vmem:[%s7 + $0x122c] sm:$0xff]
  %v2007 = vld [vmem:[%s7 + $0x1234] sm:$0xff]
  %v2008 = vld [vmem:[%s7 + $0x123c] sm:$0xff]
  %v2009 = vld [vmem:[%s7 + $0x1244] sm:$0xf]
  %v2010 = vld [vmem:[%s7 + $0x1248] sm:$0xff]
  %v2011 = vld [vmem:[%s7 + $0x1250] sm:$0xff]
  %v2012 = vld [vmem:[%s7 + $0x1258] sm:$0xff]
  %v2013 = vld [vmem:[%s7 + $0x1260] sm:$0xff]
  %v2014 = vld [vmem:[%s7 + $0x1268] sm:$0xff]
  %v2015 = vld [vmem:[%s7 + $0x1270] sm:$0xff]
  %v2016 = vld [vmem:[%s7 + $0x1278] sm:$0xf]
  %v2017 = vld [vmem:[%s7 + $0x127c] sm:$0xff]
  %v2018 = vld [vmem:[%s7 + $0x1284] sm:$0xff]
  %v2019 = vld [vmem:[%s7 + $0x128c] sm:$0xff]
  %v2020 = vld [vmem:[%s7 + $0x1294] sm:$0xff]
  %v2021 = vld [vmem:[%s7 + $0x129c] sm:$0xff]
  %v2022 = vld [vmem:[%s7 + $0x12a4] sm:$0xff]
  %v2023 = vld [vmem:[%s7 + $0x12ac] sm:$0xf]
  %v2024 = vld [vmem:[%s7 + $0x12b0] sm:$0xff]
  %v2025 = vld [vmem:[%s7 + $0x12b8] sm:$0xff]
  %v2026 = vld [vmem:[%s7 + $0x12c0] sm:$0xff]
  %v2027 = vld [vmem:[%s7 + $0x12c8] sm:$0xff]
  %v2028 = vld [vmem:[%s7 + $0x12d0] sm:$0xff]
  %v2029 = vld [vmem:[%s7 + $0x12d8] sm:$0xff]
  %v2030 = vld [vmem:[%s7 + $0x12e0] sm:$0xf]
  %v2031 = vld [vmem:[%s7 + $0x12e4] sm:$0xff]
  %v2032 = vld [vmem:[%s7 + $0x12ec] sm:$0xff]
  %v2033 = vld [vmem:[%s7 + $0x12f4] sm:$0xff]
  %v2034 = vld [vmem:[%s7 + $0x12fc] sm:$0xff]
  %v2035 = vld [vmem:[%s7 + $0x1304] sm:$0xff]
  %v2036 = vld [vmem:[%s7 + $0x130c] sm:$0xff]
  %v2037 = vld [vmem:[%s7 + $0x1314] sm:$0xf]
  %v2038 = vld [vmem:[%s7 + $0x1318] sm:$0xff]
  %v2039 = vld [vmem:[%s7 + $0x1320] sm:$0xff]
  %v2040 = vld [vmem:[%s7 + $0x1328] sm:$0xff]
  %v2041 = vld [vmem:[%s7 + $0x1330] sm:$0xff]
  %v2042 = vld [vmem:[%s7 + $0x1338] sm:$0xff]
  %v2043 = vld [vmem:[%s7 + $0x1340] sm:$0xff]
  %v2044 = vld [vmem:[%s7 + $0x1348] sm:$0xf]
  %v2045 = vld [vmem:[%s7 + $0x134c] sm:$0xff]
  %v2046 = vld [vmem:[%s7 + $0x1354] sm:$0xff]
  %v2047 = vld [vmem:[%s7 + $0x135c] sm:$0xff]
  %v2048 = vld [vmem:[%s7 + $0x1364] sm:$0xff]
  %v2049 = vld [vmem:[%s7 + $0x136c] sm:$0xff]
  %v2050 = vld [vmem:[%s7 + $0x1374] sm:$0xff]
  %v2051 = vld [vmem:[%s7 + $0x137c] sm:$0xf]
  %v2052 = vld [vmem:[%s7 + $0x1380] sm:$0xff]
  %v2053 = vld [vmem:[%s7 + $0x1388] sm:$0xff]
  %v2054 = vld [vmem:[%s7 + $0x1390] sm:$0xff]
  %v2055 = vld [vmem:[%s7 + $0x1398] sm:$0xff]
  %v2056 = vld [vmem:[%s7 + $0x13a0] sm:$0xff]
  %v2057 = vld [vmem:[%s7 + $0x13a8] sm:$0xff]
  %v2058 = vld [vmem:[%s7 + $0x13b0] sm:$0xf]
  %v2059 = vld [vmem:[%s7 + $0x13b4] sm:$0xff]
  %v2060 = vld [vmem:[%s7 + $0x13bc] sm:$0xff]
  %v2061 = vld [vmem:[%s7 + $0x13c4] sm:$0xff]
  %v2062 = vld [vmem:[%s7 + $0x13cc] sm:$0xff]
  %v2063 = vld [vmem:[%s7 + $0x13d4] sm:$0xff]
  %v2064 = vld [vmem:[%s7 + $0x13dc] sm:$0xff]
  %v2065 = vld [vmem:[%s7 + $0x13e4] sm:$0xf]
  %v2066 = vld [vmem:[%s8] sm:$0xff]
  %v2067 = vld [vmem:[%s8 + $0x8] sm:$0x1f]
  %v2070 = vperm.slane %v2066, 0
  %v2071 = vperm.slane %v2066, 1
  %v2072 = vperm.slane %v2066, 2
  %v2073 = vperm.slane %v2066, 3
  %v2074 = vperm.slane %v2066, 4
  %v2075 = vperm.slane %v2066, 5
  %v2076 = vperm.slane %v2066, 6
  %v2077 = vperm.slane %v2066, 7
  %v2078 = vperm.slane %v2067, 0
  %v2079 = vperm.slane %v2067, 1
  %v2080 = vperm.slane %v2067, 2
  %v2081 = vperm.slane %v2067, 3
  %v2082 = vperm.slane %v2067, 4
  %v2782 = vunpack.c.l.b16 %v1380
  %v2783 = vunpack.c.h.b16 %v1380
  %v2784 = vunpack.c.l.b16 %v1381
  %v2785 = vunpack.c.h.b16 %v1381
  %v2786 = vunpack.c.l.b16 %v1382
  %v2787 = vunpack.c.h.b16 %v1382
  %v2788 = vunpack.c.l.b16 %v1383
  %v2789 = vunpack.c.h.b16 %v1383
  %v2790 = vunpack.c.l.b16 %v1384
  %v2791 = vunpack.c.h.b16 %v1384
  %v2792 = vunpack.c.l.b16 %v1385
  %v2793 = vunpack.c.h.b16 %v1385
  %v2794 = vunpack.c.l.b16 %v1386
  %v2795 = vunpack.c.l.b16 %v1387
  %v2796 = vunpack.c.h.b16 %v1387
  %v2797 = vunpack.c.l.b16 %v1388
  %v2798 = vunpack.c.h.b16 %v1388
  %v2799 = vunpack.c.l.b16 %v1389
  %v2800 = vunpack.c.h.b16 %v1389
  %v2801 = vunpack.c.l.b16 %v1390
  %v2802 = vunpack.c.h.b16 %v1390
  %v2803 = vunpack.c.l.b16 %v1391
  %v2804 = vunpack.c.h.b16 %v1391
  %v2805 = vunpack.c.l.b16 %v1392
  %v2806 = vunpack.c.h.b16 %v1392
  %v2807 = vunpack.c.l.b16 %v1393
  %v2808 = vunpack.c.l.b16 %v1394
  %v2809 = vunpack.c.h.b16 %v1394
  %v2810 = vunpack.c.l.b16 %v1395
  %v2811 = vunpack.c.h.b16 %v1395
  %v2812 = vunpack.c.l.b16 %v1396
  %v2813 = vunpack.c.h.b16 %v1396
  %v2814 = vunpack.c.l.b16 %v1397
  %v2815 = vunpack.c.h.b16 %v1397
  %v2816 = vunpack.c.l.b16 %v1398
  %v2817 = vunpack.c.h.b16 %v1398
  %v2818 = vunpack.c.l.b16 %v1399
  %v2819 = vunpack.c.h.b16 %v1399
  %v2820 = vunpack.c.l.b16 %v1400
  %v2821 = vunpack.c.l.b16 %v1401
  %v2822 = vunpack.c.h.b16 %v1401
  %v2823 = vunpack.c.l.b16 %v1402
  %v2824 = vunpack.c.h.b16 %v1402
  %v2825 = vunpack.c.l.b16 %v1403
  %v2826 = vunpack.c.h.b16 %v1403
  %v2827 = vunpack.c.l.b16 %v1404
  %v2828 = vunpack.c.h.b16 %v1404
  %v2829 = vunpack.c.l.b16 %v1405
  %v2830 = vunpack.c.h.b16 %v1405
  %v2831 = vunpack.c.l.b16 %v1406
  %v2832 = vunpack.c.h.b16 %v1406
  %v2833 = vunpack.c.l.b16 %v1407
  %v2834 = vunpack.c.l.b16 %v1408
  %v2835 = vunpack.c.h.b16 %v1408
  %v2836 = vunpack.c.l.b16 %v1409
  %v2837 = vunpack.c.h.b16 %v1409
  %v2838 = vunpack.c.l.b16 %v1410
  %v2839 = vunpack.c.h.b16 %v1410
  %v2840 = vunpack.c.l.b16 %v1411
  %v2841 = vunpack.c.h.b16 %v1411
  %v2842 = vunpack.c.l.b16 %v1412
  %v2843 = vunpack.c.h.b16 %v1412
  %v2844 = vunpack.c.l.b16 %v1413
  %v2845 = vunpack.c.h.b16 %v1413
  %v2846 = vunpack.c.l.b16 %v1414
  %v2847 = vunpack.c.l.b16 %v1415
  %v2848 = vunpack.c.h.b16 %v1415
  %v2849 = vunpack.c.l.b16 %v1416
  %v2850 = vunpack.c.h.b16 %v1416
  %v2851 = vunpack.c.l.b16 %v1417
  %v2852 = vunpack.c.h.b16 %v1417
  %v2853 = vunpack.c.l.b16 %v1418
  %v2854 = vunpack.c.h.b16 %v1418
  %v2855 = vunpack.c.l.b16 %v1419
  %v2856 = vunpack.c.h.b16 %v1419
  %v2857 = vunpack.c.l.b16 %v1420
  %v2858 = vunpack.c.h.b16 %v1420
  %v2859 = vunpack.c.l.b16 %v1421
  %v2860 = vunpack.c.l.b16 %v1422
  %v2861 = vunpack.c.h.b16 %v1422
  %v2862 = vunpack.c.l.b16 %v1423
  %v2863 = vunpack.c.h.b16 %v1423
  %v2864 = vunpack.c.l.b16 %v1424
  %v2865 = vunpack.c.h.b16 %v1424
  %v2866 = vunpack.c.l.b16 %v1425
  %v2867 = vunpack.c.h.b16 %v1425
  %v2868 = vunpack.c.l.b16 %v1426
  %v2869 = vunpack.c.h.b16 %v1426
  %v2870 = vunpack.c.l.b16 %v1427
  %v2871 = vunpack.c.h.b16 %v1427
  %v2872 = vunpack.c.l.b16 %v1428
  %v2873 = vunpack.c.l.b16 %v1429
  %v2874 = vunpack.c.h.b16 %v1429
  %v2875 = vunpack.c.l.b16 %v1430
  %v2876 = vunpack.c.h.b16 %v1430
  %v2877 = vunpack.c.l.b16 %v1431
  %v2878 = vunpack.c.h.b16 %v1431
  %v2879 = vunpack.c.l.b16 %v1432
  %v2880 = vunpack.c.h.b16 %v1432
  %v2881 = vunpack.c.l.b16 %v1433
  %v2882 = vunpack.c.h.b16 %v1433
  %v2883 = vunpack.c.l.b16 %v1434
  %v2884 = vunpack.c.h.b16 %v1434
  %v2885 = vunpack.c.l.b16 %v1435
  %v2886 = vunpack.c.l.b16 %v1436
  %v2887 = vunpack.c.h.b16 %v1436
  %v2888 = vunpack.c.l.b16 %v1437
  %v2889 = vunpack.c.h.b16 %v1437
  %v2890 = vunpack.c.l.b16 %v1438
  %v2891 = vunpack.c.h.b16 %v1438
  %v2892 = vunpack.c.l.b16 %v1439
  %v2893 = vunpack.c.h.b16 %v1439
  %v2894 = vunpack.c.l.b16 %v1440
  %v2895 = vunpack.c.h.b16 %v1440
  %v2896 = vunpack.c.l.b16 %v1441
  %v2897 = vunpack.c.h.b16 %v1441
  %v2898 = vunpack.c.l.b16 %v1442
  %v2899 = vunpack.c.l.b16 %v1443
  %v2900 = vunpack.c.h.b16 %v1443
  %v2901 = vunpack.c.l.b16 %v1444
  %v2902 = vunpack.c.h.b16 %v1444
  %v2903 = vunpack.c.l.b16 %v1445
  %v2904 = vunpack.c.h.b16 %v1445
  %v2905 = vunpack.c.l.b16 %v1446
  %v2906 = vunpack.c.h.b16 %v1446
  %v2907 = vunpack.c.l.b16 %v1447
  %v2908 = vunpack.c.h.b16 %v1447
  %v2909 = vunpack.c.l.b16 %v1448
  %v2910 = vunpack.c.h.b16 %v1448
  %v2911 = vunpack.c.l.b16 %v1449
  %v2912 = vunpack.c.l.b16 %v1450
  %v2913 = vunpack.c.h.b16 %v1450
  %v2914 = vunpack.c.l.b16 %v1451
  %v2915 = vunpack.c.h.b16 %v1451
  %v2916 = vunpack.c.l.b16 %v1452
  %v2917 = vunpack.c.h.b16 %v1452
  %v2918 = vunpack.c.l.b16 %v1453
  %v2919 = vunpack.c.h.b16 %v1453
  %v2920 = vunpack.c.l.b16 %v1454
  %v2921 = vunpack.c.h.b16 %v1454
  %v2922 = vunpack.c.l.b16 %v1455
  %v2923 = vunpack.c.h.b16 %v1455
  %v2924 = vunpack.c.l.b16 %v1456
  %v2925 = vunpack.c.l.b16 %v1457
  %v2926 = vunpack.c.h.b16 %v1457
  %v2927 = vunpack.c.l.b16 %v1458
  %v2928 = vunpack.c.h.b16 %v1458
  %v2929 = vunpack.c.l.b16 %v1459
  %v2930 = vunpack.c.h.b16 %v1459
  %v2931 = vunpack.c.l.b16 %v1460
  %v2932 = vunpack.c.h.b16 %v1460
  %v2933 = vunpack.c.l.b16 %v1461
  %v2934 = vunpack.c.h.b16 %v1461
  %v2935 = vunpack.c.l.b16 %v1462
  %v2936 = vunpack.c.h.b16 %v1462
  %v2937 = vunpack.c.l.b16 %v1463
  %v2938 = vunpack.c.l.b16 %v1464
  %v2939 = vunpack.c.h.b16 %v1464
  %v2940 = vunpack.c.l.b16 %v1465
  %v2941 = vunpack.c.h.b16 %v1465
  %v2942 = vunpack.c.l.b16 %v1466
  %v2943 = vunpack.c.h.b16 %v1466
  %v2944 = vunpack.c.l.b16 %v1467
  %v2945 = vunpack.c.h.b16 %v1467
  %v2946 = vunpack.c.l.b16 %v1468
  %v2947 = vunpack.c.h.b16 %v1468
  %v2948 = vunpack.c.l.b16 %v1469
  %v2949 = vunpack.c.h.b16 %v1469
  %v2950 = vunpack.c.l.b16 %v1470
  %v2951 = vunpack.c.l.b16 %v1471
  %v2952 = vunpack.c.h.b16 %v1471
  %v2953 = vunpack.c.l.b16 %v1472
  %v2954 = vunpack.c.h.b16 %v1472
  %v2955 = vunpack.c.l.b16 %v1473
  %v2956 = vunpack.c.h.b16 %v1473
  %v2957 = vunpack.c.l.b16 %v1474
  %v2958 = vunpack.c.h.b16 %v1474
  %v2959 = vunpack.c.l.b16 %v1475
  %v2960 = vunpack.c.h.b16 %v1475
  %v2961 = vunpack.c.l.b16 %v1476
  %v2962 = vunpack.c.h.b16 %v1476
  %v2963 = vunpack.c.l.b16 %v1477
  %v2964 = vunpack.c.l.b16 %v1478
  %v2965 = vunpack.c.h.b16 %v1478
  %v2966 = vunpack.c.l.b16 %v1479
  %v2967 = vunpack.c.h.b16 %v1479
  %v2968 = vunpack.c.l.b16 %v1480
  %v2969 = vunpack.c.h.b16 %v1480
  %v2970 = vunpack.c.l.b16 %v1481
  %v2971 = vunpack.c.h.b16 %v1481
  %v2972 = vunpack.c.l.b16 %v1482
  %v2973 = vunpack.c.h.b16 %v1482
  %v2974 = vunpack.c.l.b16 %v1483
  %v2975 = vunpack.c.h.b16 %v1483
  %v2976 = vunpack.c.l.b16 %v1484
  %v2977 = vunpack.c.l.b16 %v1485
  %v2978 = vunpack.c.h.b16 %v1485
  %v2979 = vunpack.c.l.b16 %v1486
  %v2980 = vunpack.c.h.b16 %v1486
  %v2981 = vunpack.c.l.b16 %v1487
  %v2982 = vunpack.c.h.b16 %v1487
  %v2983 = vunpack.c.l.b16 %v1488
  %v2984 = vunpack.c.h.b16 %v1488
  %v2985 = vunpack.c.l.b16 %v1489
  %v2986 = vunpack.c.h.b16 %v1489
  %v2987 = vunpack.c.l.b16 %v1490
  %v2988 = vunpack.c.h.b16 %v1490
  %v2989 = vunpack.c.l.b16 %v1491
  %v2990 = vunpack.c.l.b16 %v1492
  %v2991 = vunpack.c.h.b16 %v1492
  %v2992 = vunpack.c.l.b16 %v1493
  %v2993 = vunpack.c.h.b16 %v1493
  %v2994 = vunpack.c.l.b16 %v1494
  %v2995 = vunpack.c.h.b16 %v1494
  %v2996 = vunpack.c.l.b16 %v1495
  %v2997 = vunpack.c.h.b16 %v1495
  %v2998 = vunpack.c.l.b16 %v1496
  %v2999 = vunpack.c.h.b16 %v1496
  %v3000 = vunpack.c.l.b16 %v1497
  %v3001 = vunpack.c.h.b16 %v1497
  %v3002 = vunpack.c.l.b16 %v1498
  %v3003 = vunpack.c.l.b16 %v1499
  %v3004 = vunpack.c.h.b16 %v1499
  %v3005 = vunpack.c.l.b16 %v1500
  %v3006 = vunpack.c.h.b16 %v1500
  %v3007 = vunpack.c.l.b16 %v1501
  %v3008 = vunpack.c.h.b16 %v1501
  %v3009 = vunpack.c.l.b16 %v1502
  %v3010 = vunpack.c.h.b16 %v1502
  %v3011 = vunpack.c.l.b16 %v1503
  %v3012 = vunpack.c.h.b16 %v1503
  %v3013 = vunpack.c.l.b16 %v1504
  %v3014 = vunpack.c.h.b16 %v1504
  %v3015 = vunpack.c.l.b16 %v1505
  %v3016 = vunpack.c.l.b16 %v1506
  %v3017 = vunpack.c.h.b16 %v1506
  %v3018 = vunpack.c.l.b16 %v1507
  %v3019 = vunpack.c.h.b16 %v1507
  %v3020 = vunpack.c.l.b16 %v1508
  %v3021 = vunpack.c.h.b16 %v1508
  %v3022 = vunpack.c.l.b16 %v1509
  %v3023 = vunpack.c.h.b16 %v1509
  %v3024 = vunpack.c.l.b16 %v1510
  %v3025 = vunpack.c.h.b16 %v1510
  %v3026 = vunpack.c.l.b16 %v1511
  %v3027 = vunpack.c.h.b16 %v1511
  %v3028 = vunpack.c.l.b16 %v1512
  %v3029 = vunpack.c.l.b16 %v1513
  %v3030 = vunpack.c.h.b16 %v1513
  %v3031 = vunpack.c.l.b16 %v1514
  %v3032 = vunpack.c.h.b16 %v1514
  %v3033 = vunpack.c.l.b16 %v1515
  %v3034 = vunpack.c.h.b16 %v1515
  %v3035 = vunpack.c.l.b16 %v1516
  %v3036 = vunpack.c.h.b16 %v1516
  %v3037 = vunpack.c.l.b16 %v1517
  %v3038 = vunpack.c.h.b16 %v1517
  %v3039 = vunpack.c.l.b16 %v1518
  %v3040 = vunpack.c.h.b16 %v1518
  %v3041 = vunpack.c.l.b16 %v1519
  %v3042 = vunpack.c.l.b16 %v1520
  %v3043 = vunpack.c.h.b16 %v1520
  %v3044 = vunpack.c.l.b16 %v1521
  %v3045 = vunpack.c.h.b16 %v1521
  %v3046 = vunpack.c.l.b16 %v1522
  %v3047 = vunpack.c.h.b16 %v1522
  %v3048 = vunpack.c.l.b16 %v1523
  %v3049 = vunpack.c.h.b16 %v1523
  %v3050 = vunpack.c.l.b16 %v1524
  %v3051 = vunpack.c.h.b16 %v1524
  %v3052 = vunpack.c.l.b16 %v1525
  %v3053 = vunpack.c.h.b16 %v1525
  %v3054 = vunpack.c.l.b16 %v1526
  %v3055 = vunpack.c.l.b16 %v1527
  %v3056 = vunpack.c.h.b16 %v1527
  %v3057 = vunpack.c.l.b16 %v1528
  %v3058 = vunpack.c.h.b16 %v1528
  %v3059 = vunpack.c.l.b16 %v1529
  %v3060 = vunpack.c.h.b16 %v1529
  %v3061 = vunpack.c.l.b16 %v1530
  %v3062 = vunpack.c.h.b16 %v1530
  %v3063 = vunpack.c.l.b16 %v1531
  %v3064 = vunpack.c.h.b16 %v1531
  %v3065 = vunpack.c.l.b16 %v1532
  %v3066 = vunpack.c.h.b16 %v1532
  %v3067 = vunpack.c.l.b16 %v1533
  %v3068 = vunpack.c.l.b16 %v1534
  %v3069 = vunpack.c.h.b16 %v1534
  %v3070 = vunpack.c.l.b16 %v1535
  %v3071 = vunpack.c.h.b16 %v1535
  %v3072 = vunpack.c.l.b16 %v1536
  %v3073 = vunpack.c.h.b16 %v1536
  %v3074 = vunpack.c.l.b16 %v1537
  %v3075 = vunpack.c.h.b16 %v1537
  %v3076 = vunpack.c.l.b16 %v1538
  %v3077 = vunpack.c.h.b16 %v1538
  %v3078 = vunpack.c.l.b16 %v1539
  %v3079 = vunpack.c.h.b16 %v1539
  %v3080 = vunpack.c.l.b16 %v1540
  %v3081 = vunpack.c.l.b16 %v1541
  %v3082 = vunpack.c.h.b16 %v1541
  %v3083 = vunpack.c.l.b16 %v1542
  %v3084 = vunpack.c.h.b16 %v1542
  %v3085 = vunpack.c.l.b16 %v1543
  %v3086 = vunpack.c.h.b16 %v1543
  %v3087 = vunpack.c.l.b16 %v1544
  %v3088 = vunpack.c.h.b16 %v1544
  %v3089 = vunpack.c.l.b16 %v1545
  %v3090 = vunpack.c.h.b16 %v1545
  %v3091 = vunpack.c.l.b16 %v1546
  %v3092 = vunpack.c.h.b16 %v1546
  %v3093 = vunpack.c.l.b16 %v1547
  %v3094 = vunpack.c.l.b16 %v1548
  %v3095 = vunpack.c.h.b16 %v1548
  %v3096 = vunpack.c.l.b16 %v1549
  %v3097 = vunpack.c.h.b16 %v1549
  %v3098 = vunpack.c.l.b16 %v1550
  %v3099 = vunpack.c.h.b16 %v1550
  %v3100 = vunpack.c.l.b16 %v1551
  %v3101 = vunpack.c.h.b16 %v1551
  %v3102 = vunpack.c.l.b16 %v1552
  %v3103 = vunpack.c.h.b16 %v1552
  %v3104 = vunpack.c.l.b16 %v1553
  %v3105 = vunpack.c.h.b16 %v1553
  %v3106 = vunpack.c.l.b16 %v1554
  %v3107 = vunpack.c.l.b16 %v1555
  %v3108 = vunpack.c.h.b16 %v1555
  %v3109 = vunpack.c.l.b16 %v1556
  %v3110 = vunpack.c.h.b16 %v1556
  %v3111 = vunpack.c.l.b16 %v1557
  %v3112 = vunpack.c.h.b16 %v1557
  %v3113 = vunpack.c.l.b16 %v1558
  %v3114 = vunpack.c.h.b16 %v1558
  %v3115 = vunpack.c.l.b16 %v1559
  %v3116 = vunpack.c.h.b16 %v1559
  %v3117 = vunpack.c.l.b16 %v1560
  %v3118 = vunpack.c.h.b16 %v1560
  %v3119 = vunpack.c.l.b16 %v1561
  %v3120 = vunpack.c.l.b16 %v1562
  %v3121 = vunpack.c.h.b16 %v1562
  %v3122 = vunpack.c.l.b16 %v1563
  %v3123 = vunpack.c.h.b16 %v1563
  %v3124 = vunpack.c.l.b16 %v1564
  %v3125 = vunpack.c.h.b16 %v1564
  %v3126 = vunpack.c.l.b16 %v1565
  %v3127 = vunpack.c.h.b16 %v1565
  %v3128 = vunpack.c.l.b16 %v1566
  %v3129 = vunpack.c.h.b16 %v1566
  %v3130 = vunpack.c.l.b16 %v1567
  %v3131 = vunpack.c.h.b16 %v1567
  %v3132 = vunpack.c.l.b16 %v1568
  %v3133 = vunpack.c.l.b16 %v1569
  %v3134 = vunpack.c.h.b16 %v1569
  %v3135 = vunpack.c.l.b16 %v1570
  %v3136 = vunpack.c.h.b16 %v1570
  %v3137 = vunpack.c.l.b16 %v1571
  %v3138 = vunpack.c.h.b16 %v1571
  %v3139 = vunpack.c.l.b16 %v1572
  %v3140 = vunpack.c.h.b16 %v1572
  %v3141 = vunpack.c.l.b16 %v1573
  %v3142 = vunpack.c.h.b16 %v1573
  %v3143 = vunpack.c.l.b16 %v1574
  %v3144 = vunpack.c.h.b16 %v1574
  %v3145 = vunpack.c.l.b16 %v1575
  %v3146 = vunpack.c.l.b16 %v1576
  %v3147 = vunpack.c.h.b16 %v1576
  %v3148 = vunpack.c.l.b16 %v1577
  %v3149 = vunpack.c.h.b16 %v1577
  %v3150 = vunpack.c.l.b16 %v1578
  %v3151 = vunpack.c.h.b16 %v1578
  %v3152 = vunpack.c.l.b16 %v1579
  %v3153 = vunpack.c.h.b16 %v1579
  %v3154 = vunpack.c.l.b16 %v1580
  %v3155 = vunpack.c.h.b16 %v1580
  %v3156 = vunpack.c.l.b16 %v1581
  %v3157 = vunpack.c.h.b16 %v1581
  %v3158 = vunpack.c.l.b16 %v1582
  %v3159 = vunpack.c.l.b16 %v1583
  %v3160 = vunpack.c.h.b16 %v1583
  %v3161 = vunpack.c.l.b16 %v1584
  %v3162 = vunpack.c.h.b16 %v1584
  %v3163 = vunpack.c.l.b16 %v1585
  %v3164 = vunpack.c.h.b16 %v1585
  %v3165 = vunpack.c.l.b16 %v1586
  %v3166 = vunpack.c.h.b16 %v1586
  %v3167 = vunpack.c.l.b16 %v1587
  %v3168 = vunpack.c.h.b16 %v1587
  %v3169 = vunpack.c.l.b16 %v1588
  %v3170 = vunpack.c.h.b16 %v1588
  %v3171 = vunpack.c.l.b16 %v1589
  %v3172 = vunpack.c.l.b16 %v1590
  %v3173 = vunpack.c.h.b16 %v1590
  %v3174 = vunpack.c.l.b16 %v1591
  %v3175 = vunpack.c.h.b16 %v1591
  %v3176 = vunpack.c.l.b16 %v1592
  %v3177 = vunpack.c.h.b16 %v1592
  %v3178 = vunpack.c.l.b16 %v1593
  %v3179 = vunpack.c.h.b16 %v1593
  %v3180 = vunpack.c.l.b16 %v1594
  %v3181 = vunpack.c.h.b16 %v1594
  %v3182 = vunpack.c.l.b16 %v1595
  %v3183 = vunpack.c.h.b16 %v1595
  %v3184 = vunpack.c.l.b16 %v1596
  %v3185 = vunpack.c.l.b16 %v1597
  %v3186 = vunpack.c.h.b16 %v1597
  %v3187 = vunpack.c.l.b16 %v1598
  %v3188 = vunpack.c.h.b16 %v1598
  %v3189 = vunpack.c.l.b16 %v1599
  %v3190 = vunpack.c.h.b16 %v1599
  %v3191 = vunpack.c.l.b16 %v1600
  %v3192 = vunpack.c.h.b16 %v1600
  %v3193 = vunpack.c.l.b16 %v1601
  %v3194 = vunpack.c.h.b16 %v1601
  %v3195 = vunpack.c.l.b16 %v1602
  %v3196 = vunpack.c.h.b16 %v1602
  %v3197 = vunpack.c.l.b16 %v1603
  %v3198 = vunpack.c.l.b16 %v1604
  %v3199 = vunpack.c.h.b16 %v1604
  %v3200 = vunpack.c.l.b16 %v1605
  %v3201 = vunpack.c.h.b16 %v1605
  %v3202 = vunpack.c.l.b16 %v1606
  %v3203 = vunpack.c.h.b16 %v1606
  %v3204 = vunpack.c.l.b16 %v1607
  %v3205 = vunpack.c.h.b16 %v1607
  %v3206 = vunpack.c.l.b16 %v1608
  %v3207 = vunpack.c.h.b16 %v1608
  %v3208 = vunpack.c.l.b16 %v1609
  %v3209 = vunpack.c.h.b16 %v1609
  %v3210 = vunpack.c.l.b16 %v1610
  %v3211 = vunpack.c.l.b16 %v1611
  %v3212 = vunpack.c.h.b16 %v1611
  %v3213 = vunpack.c.l.b16 %v1612
  %v3214 = vunpack.c.h.b16 %v1612
  %v3215 = vunpack.c.l.b16 %v1613
  %v3216 = vunpack.c.h.b16 %v1613
  %v3217 = vunpack.c.l.b16 %v1614
  %v3218 = vunpack.c.h.b16 %v1614
  %v3219 = vunpack.c.l.b16 %v1615
  %v3220 = vunpack.c.h.b16 %v1615
  %v3221 = vunpack.c.l.b16 %v1616
  %v3222 = vunpack.c.h.b16 %v1616
  %v3223 = vunpack.c.l.b16 %v1617
  %v3224 = vunpack.c.l.b16 %v1618
  %v3225 = vunpack.c.h.b16 %v1618
  %v3226 = vunpack.c.l.b16 %v1619
  %v3227 = vunpack.c.h.b16 %v1619
  %v3228 = vunpack.c.l.b16 %v1620
  %v3229 = vunpack.c.h.b16 %v1620
  %v3230 = vunpack.c.l.b16 %v1621
  %v3231 = vunpack.c.h.b16 %v1621
  %v3232 = vunpack.c.l.b16 %v1622
  %v3233 = vunpack.c.h.b16 %v1622
  %v3234 = vunpack.c.l.b16 %v1623
  %v3235 = vunpack.c.h.b16 %v1623
  %v3236 = vunpack.c.l.b16 %v1624
  %v3237 = vunpack.c.l.b16 %v1625
  %v3238 = vunpack.c.h.b16 %v1625
  %v3239 = vunpack.c.l.b16 %v1626
  %v3240 = vunpack.c.h.b16 %v1626
  %v3241 = vunpack.c.l.b16 %v1627
  %v3242 = vunpack.c.h.b16 %v1627
  %v3243 = vunpack.c.l.b16 %v1628
  %v3244 = vunpack.c.h.b16 %v1628
  %v3245 = vunpack.c.l.b16 %v1629
  %v3246 = vunpack.c.h.b16 %v1629
  %v3247 = vunpack.c.l.b16 %v1630
  %v3248 = vunpack.c.h.b16 %v1630
  %v3249 = vunpack.c.l.b16 %v1631
  %v3250 = vunpack.c.l.b16 %v1632
  %v3251 = vunpack.c.h.b16 %v1632
  %v3252 = vunpack.c.l.b16 %v1633
  %v3253 = vunpack.c.h.b16 %v1633
  %v3254 = vunpack.c.l.b16 %v1634
  %v3255 = vunpack.c.h.b16 %v1634
  %v3256 = vunpack.c.l.b16 %v1635
  %v3257 = vunpack.c.h.b16 %v1635
  %v3258 = vunpack.c.l.b16 %v1636
  %v3259 = vunpack.c.h.b16 %v1636
  %v3260 = vunpack.c.l.b16 %v1637
  %v3261 = vunpack.c.h.b16 %v1637
  %v3262 = vunpack.c.l.b16 %v1638
  %v3263 = vunpack.c.l.b16 %v1639
  %v3264 = vunpack.c.h.b16 %v1639
  %v3265 = vunpack.c.l.b16 %v1640
  %v3266 = vunpack.c.h.b16 %v1640
  %v3267 = vunpack.c.l.b16 %v1641
  %v3268 = vunpack.c.h.b16 %v1641
  %v3269 = vunpack.c.l.b16 %v1642
  %v3270 = vunpack.c.h.b16 %v1642
  %v3271 = vunpack.c.l.b16 %v1643
  %v3272 = vunpack.c.h.b16 %v1643
  %v3273 = vunpack.c.l.b16 %v1644
  %v3274 = vunpack.c.h.b16 %v1644
  %v3275 = vunpack.c.l.b16 %v1645
  %v3276 = vunpack.c.l.b16 %v1646
  %v3277 = vunpack.c.h.b16 %v1646
  %v3278 = vunpack.c.l.b16 %v1647
  %v3279 = vunpack.c.h.b16 %v1647
  %v3280 = vunpack.c.l.b16 %v1648
  %v3281 = vunpack.c.h.b16 %v1648
  %v3282 = vunpack.c.l.b16 %v1649
  %v3283 = vunpack.c.h.b16 %v1649
  %v3284 = vunpack.c.l.b16 %v1650
  %v3285 = vunpack.c.h.b16 %v1650
  %v3286 = vunpack.c.l.b16 %v1651
  %v3287 = vunpack.c.h.b16 %v1651
  %v3288 = vunpack.c.l.b16 %v1652
  %v3289 = vunpack.c.l.b16 %v1653
  %v3290 = vunpack.c.h.b16 %v1653
  %v3291 = vunpack.c.l.b16 %v1654
  %v3292 = vunpack.c.h.b16 %v1654
  %v3293 = vunpack.c.l.b16 %v1655
  %v3294 = vunpack.c.h.b16 %v1655
  %v3295 = vunpack.c.l.b16 %v1656
  %v3296 = vunpack.c.h.b16 %v1656
  %v3297 = vunpack.c.l.b16 %v1657
  %v3298 = vunpack.c.h.b16 %v1657
  %v3299 = vunpack.c.l.b16 %v1658
  %v3300 = vunpack.c.h.b16 %v1658
  %v3301 = vunpack.c.l.b16 %v1659
  %v3302 = vunpack.c.l.b16 %v1660
  %v3303 = vunpack.c.h.b16 %v1660
  %v3304 = vunpack.c.l.b16 %v1661
  %v3305 = vunpack.c.h.b16 %v1661
  %v3306 = vunpack.c.l.b16 %v1662
  %v3307 = vunpack.c.h.b16 %v1662
  %v3308 = vunpack.c.l.b16 %v1663
  %v3309 = vunpack.c.h.b16 %v1663
  %v3310 = vunpack.c.l.b16 %v1664
  %v3311 = vunpack.c.h.b16 %v1664
  %v3312 = vunpack.c.l.b16 %v1665
  %v3313 = vunpack.c.h.b16 %v1665
  %v3314 = vunpack.c.l.b16 %v1666
  %v3315 = vunpack.c.l.b16 %v1667
  %v3316 = vunpack.c.h.b16 %v1667
  %v3317 = vunpack.c.l.b16 %v1668
  %v3318 = vunpack.c.h.b16 %v1668
  %v3319 = vunpack.c.l.b16 %v1669
  %v3320 = vunpack.c.h.b16 %v1669
  %v3321 = vunpack.c.l.b16 %v1670
  %v3322 = vunpack.c.h.b16 %v1670
  %v3323 = vunpack.c.l.b16 %v1671
  %v3324 = vunpack.c.h.b16 %v1671
  %v3325 = vunpack.c.l.b16 %v1672
  %v3326 = vunpack.c.h.b16 %v1672
  %v3327 = vunpack.c.l.b16 %v1673
  %v3328 = vunpack.c.l.b16 %v1674
  %v3329 = vunpack.c.h.b16 %v1674
  %v3330 = vunpack.c.l.b16 %v1675
  %v3331 = vunpack.c.h.b16 %v1675
  %v3332 = vunpack.c.l.b16 %v1676
  %v3333 = vunpack.c.h.b16 %v1676
  %v3334 = vunpack.c.l.b16 %v1677
  %v3335 = vunpack.c.h.b16 %v1677
  %v3336 = vunpack.c.l.b16 %v1678
  %v3337 = vunpack.c.h.b16 %v1678
  %v3338 = vunpack.c.l.b16 %v1679
  %v3339 = vunpack.c.h.b16 %v1679
  %v3340 = vunpack.c.l.b16 %v1680
  %v3341 = vunpack.c.l.b16 %v1681
  %v3342 = vunpack.c.h.b16 %v1681
  %v3343 = vunpack.c.l.b16 %v1682
  %v3344 = vunpack.c.h.b16 %v1682
  %v3345 = vunpack.c.l.b16 %v1683
  %v3346 = vunpack.c.h.b16 %v1683
  %v3347 = vunpack.c.l.b16 %v1684
  %v3348 = vunpack.c.h.b16 %v1684
  %v3349 = vunpack.c.l.b16 %v1685
  %v3350 = vunpack.c.h.b16 %v1685
  %v3351 = vunpack.c.l.b16 %v1686
  %v3352 = vunpack.c.h.b16 %v1686
  %v3353 = vunpack.c.l.b16 %v1687
  %v3354 = vunpack.c.l.b16 %v1688
  %v3355 = vunpack.c.h.b16 %v1688
  %v3356 = vunpack.c.l.b16 %v1689
  %v3357 = vunpack.c.h.b16 %v1689
  %v3358 = vunpack.c.l.b16 %v1690
  %v3359 = vunpack.c.h.b16 %v1690
  %v3360 = vunpack.c.l.b16 %v1691
  %v3361 = vunpack.c.h.b16 %v1691
  %v3362 = vunpack.c.l.b16 %v1692
  %v3363 = vunpack.c.h.b16 %v1692
  %v3364 = vunpack.c.l.b16 %v1693
  %v3365 = vunpack.c.h.b16 %v1693
  %v3366 = vunpack.c.l.b16 %v1694
  %v3367 = vunpack.c.l.b16 %v1695
  %v3368 = vunpack.c.h.b16 %v1695
  %v3369 = vunpack.c.l.b16 %v1696
  %v3370 = vunpack.c.h.b16 %v1696
  %v3371 = vunpack.c.l.b16 %v1697
  %v3372 = vunpack.c.h.b16 %v1697
  %v3373 = vunpack.c.l.b16 %v1698
  %v3374 = vunpack.c.h.b16 %v1698
  %v3375 = vunpack.c.l.b16 %v1699
  %v3376 = vunpack.c.h.b16 %v1699
  %v3377 = vunpack.c.l.b16 %v1700
  %v3378 = vunpack.c.h.b16 %v1700
  %v3379 = vunpack.c.l.b16 %v1701
  %v3380 = vunpack.c.l.b16 %v1702
  %v3381 = vunpack.c.h.b16 %v1702
  %v3382 = vunpack.c.l.b16 %v1703
  %v3383 = vunpack.c.h.b16 %v1703
  %v3384 = vunpack.c.l.b16 %v1704
  %v3385 = vunpack.c.h.b16 %v1704
  %v3386 = vunpack.c.l.b16 %v1705
  %v3387 = vunpack.c.h.b16 %v1705
  %v3388 = vunpack.c.l.b16 %v1706
  %v3389 = vunpack.c.h.b16 %v1706
  %v3390 = vunpack.c.l.b16 %v1707
  %v3391 = vunpack.c.h.b16 %v1707
  %v3392 = vunpack.c.l.b16 %v1708
  %v3393 = vunpack.c.l.b16 %v1709
  %v3394 = vunpack.c.h.b16 %v1709
  %v3395 = vunpack.c.l.b16 %v1710
  %v3396 = vunpack.c.h.b16 %v1710
  %v3397 = vunpack.c.l.b16 %v1711
  %v3398 = vunpack.c.h.b16 %v1711
  %v3399 = vunpack.c.l.b16 %v1712
  %v3400 = vunpack.c.h.b16 %v1712
  %v3401 = vunpack.c.l.b16 %v1713
  %v3402 = vunpack.c.h.b16 %v1713
  %v3403 = vunpack.c.l.b16 %v1714
  %v3404 = vunpack.c.h.b16 %v1714
  %v3405 = vunpack.c.l.b16 %v1715
  %v3406 = vunpack.c.l.b16 %v1716
  %v3407 = vunpack.c.h.b16 %v1716
  %v3408 = vunpack.c.l.b16 %v1717
  %v3409 = vunpack.c.h.b16 %v1717
  %v3410 = vunpack.c.l.b16 %v1718
  %v3411 = vunpack.c.h.b16 %v1718
  %v3412 = vunpack.c.l.b16 %v1719
  %v3413 = vunpack.c.h.b16 %v1719
  %v3414 = vunpack.c.l.b16 %v1720
  %v3415 = vunpack.c.h.b16 %v1720
  %v3416 = vunpack.c.l.b16 %v1721
  %v3417 = vunpack.c.h.b16 %v1721
  %v3418 = vunpack.c.l.b16 %v1722
  %v3419 = vunpack.c.l.b16 %v1723
  %v3420 = vunpack.c.h.b16 %v1723
  %v3421 = vunpack.c.l.b16 %v1724
  %v3422 = vunpack.c.h.b16 %v1724
  %v3423 = vunpack.c.l.b16 %v1725
  %v3424 = vunpack.c.h.b16 %v1725
  %v3425 = vunpack.c.l.b16 %v1726
  %v3426 = vunpack.c.h.b16 %v1726
  %v3427 = vunpack.c.l.b16 %v1727
  %v3428 = vunpack.c.h.b16 %v1727
  %v3429 = vunpack.c.l.b16 %v1728
  %v3430 = vunpack.c.h.b16 %v1728
  %v3431 = vunpack.c.l.b16 %v1729
  %v3432 = vunpack.c.l.b16 %v1730
  %v3433 = vunpack.c.h.b16 %v1730
  %v3434 = vunpack.c.l.b16 %v1731
  %v3435 = vunpack.c.h.b16 %v1731
  %v3436 = vunpack.c.l.b16 %v1732
  %v3437 = vunpack.c.h.b16 %v1732
  %v3438 = vunpack.c.l.b16 %v1733
  %v3439 = vunpack.c.h.b16 %v1733
  %v3440 = vunpack.c.l.b16 %v1734
  %v3441 = vunpack.c.h.b16 %v1734
  %v3442 = vunpack.c.l.b16 %v1735
  %v3443 = vunpack.c.h.b16 %v1735
  %v3444 = vunpack.c.l.b16 %v1736
  %v3445 = vunpack.c.l.b16 %v1737
  %v3446 = vunpack.c.h.b16 %v1737
  %v3447 = vunpack.c.l.b16 %v1738
  %v3448 = vunpack.c.h.b16 %v1738
  %v3449 = vunpack.c.l.b16 %v1739
  %v3450 = vunpack.c.h.b16 %v1739
  %v3451 = vunpack.c.l.b16 %v1740
  %v3452 = vunpack.c.h.b16 %v1740
  %v3453 = vunpack.c.l.b16 %v1741
  %v3454 = vunpack.c.h.b16 %v1741
  %v3455 = vunpack.c.l.b16 %v1742
  %v3456 = vunpack.c.h.b16 %v1742
  %v3457 = vunpack.c.l.b16 %v1743
  %v3458 = vunpack.c.l.b16 %v1744
  %v3459 = vunpack.c.h.b16 %v1744
  %v3460 = vunpack.c.l.b16 %v1745
  %v3461 = vunpack.c.h.b16 %v1745
  %v3462 = vunpack.c.l.b16 %v1746
  %v3463 = vunpack.c.h.b16 %v1746
  %v3464 = vunpack.c.l.b16 %v1747
  %v3465 = vunpack.c.h.b16 %v1747
  %v3466 = vunpack.c.l.b16 %v1748
  %v3467 = vunpack.c.h.b16 %v1748
  %v3468 = vunpack.c.l.b16 %v1749
  %v3469 = vunpack.c.h.b16 %v1749
  %v3470 = vunpack.c.l.b16 %v1750
  %v3471 = vunpack.c.l.b16 %v1751
  %v3472 = vunpack.c.h.b16 %v1751
  %v3473 = vunpack.c.l.b16 %v1752
  %v3474 = vunpack.c.h.b16 %v1752
  %v3475 = vunpack.c.l.b16 %v1753
  %v3476 = vunpack.c.h.b16 %v1753
  %v3477 = vunpack.c.l.b16 %v1754
  %v3478 = vunpack.c.h.b16 %v1754
  %v3479 = vunpack.c.l.b16 %v1755
  %v3480 = vunpack.c.h.b16 %v1755
  %v3481 = vunpack.c.l.b16 %v1756
  %v3482 = vunpack.c.h.b16 %v1756
  %v3483 = vunpack.c.l.b16 %v1757
  %v3484 = vunpack.c.l.b16 %v1758
  %v3485 = vunpack.c.h.b16 %v1758
  %v3486 = vunpack.c.l.b16 %v1759
  %v3487 = vunpack.c.h.b16 %v1759
  %v3488 = vunpack.c.l.b16 %v1760
  %v3489 = vunpack.c.h.b16 %v1760
  %v3490 = vunpack.c.l.b16 %v1761
  %v3491 = vunpack.c.h.b16 %v1761
  %v3492 = vunpack.c.l.b16 %v1762
  %v3493 = vunpack.c.h.b16 %v1762
  %v3494 = vunpack.c.l.b16 %v1763
  %v3495 = vunpack.c.h.b16 %v1763
  %v3496 = vunpack.c.l.b16 %v1764
  %v3497 = vunpack.c.l.b16 %v1765
  %v3498 = vunpack.c.h.b16 %v1765
  %v3499 = vunpack.c.l.b16 %v1766
  %v3500 = vunpack.c.h.b16 %v1766
  %v3501 = vunpack.c.l.b16 %v1767
  %v3502 = vunpack.c.h.b16 %v1767
  %v3503 = vunpack.c.l.b16 %v1768
  %v3504 = vunpack.c.h.b16 %v1768
  %v3505 = vunpack.c.l.b16 %v1769
  %v3506 = vunpack.c.h.b16 %v1769
  %v3507 = vunpack.c.l.b16 %v1770
  %v3508 = vunpack.c.h.b16 %v1770
  %v3509 = vunpack.c.l.b16 %v1771
  %v3510 = vunpack.c.l.b16 %v1772
  %v3511 = vunpack.c.h.b16 %v1772
  %v3512 = vunpack.c.l.b16 %v1773
  %v3513 = vunpack.c.h.b16 %v1773
  %v3514 = vunpack.c.l.b16 %v1774
  %v3515 = vunpack.c.h.b16 %v1774
  %v3516 = vunpack.c.l.b16 %v1775
  %v3517 = vunpack.c.h.b16 %v1775
  %v3518 = vunpack.c.l.b16 %v1776
  %v3519 = vunpack.c.h.b16 %v1776
  %v3520 = vunpack.c.l.b16 %v1777
  %v3521 = vunpack.c.h.b16 %v1777
  %v3522 = vunpack.c.l.b16 %v1778
  %v3523 = vunpack.c.l.b16 %v1779
  %v3524 = vunpack.c.h.b16 %v1779
  %v3525 = vunpack.c.l.b16 %v1780
  %v3526 = vunpack.c.h.b16 %v1780
  %v3527 = vunpack.c.l.b16 %v1781
  %v3528 = vunpack.c.h.b16 %v1781
  %v3529 = vunpack.c.l.b16 %v1782
  %v3530 = vunpack.c.h.b16 %v1782
  %v3531 = vunpack.c.l.b16 %v1783
  %v3532 = vunpack.c.h.b16 %v1783
  %v3533 = vunpack.c.l.b16 %v1784
  %v3534 = vunpack.c.h.b16 %v1784
  %v3535 = vunpack.c.l.b16 %v1785
  %v3536 = vunpack.c.l.b16 %v1786
  %v3537 = vunpack.c.h.b16 %v1786
  %v3538 = vunpack.c.l.b16 %v1787
  %v3539 = vunpack.c.h.b16 %v1787
  %v3540 = vunpack.c.l.b16 %v1788
  %v3541 = vunpack.c.h.b16 %v1788
  %v3542 = vunpack.c.l.b16 %v1789
  %v3543 = vunpack.c.h.b16 %v1789
  %v3544 = vunpack.c.l.b16 %v1790
  %v3545 = vunpack.c.h.b16 %v1790
  %v3546 = vunpack.c.l.b16 %v1791
  %v3547 = vunpack.c.h.b16 %v1791
  %v3548 = vunpack.c.l.b16 %v1792
  %v3549 = vunpack.c.l.b16 %v1793
  %v3550 = vunpack.c.h.b16 %v1793
  %v3551 = vunpack.c.l.b16 %v1794
  %v3552 = vunpack.c.h.b16 %v1794
  %v3553 = vunpack.c.l.b16 %v1795
  %v3554 = vunpack.c.h.b16 %v1795
  %v3555 = vunpack.c.l.b16 %v1796
  %v3556 = vunpack.c.h.b16 %v1796
  %v3557 = vunpack.c.l.b16 %v1797
  %v3558 = vunpack.c.h.b16 %v1797
  %v3559 = vunpack.c.l.b16 %v1798
  %v3560 = vunpack.c.h.b16 %v1798
  %v3561 = vunpack.c.l.b16 %v1799
  %v3562 = vunpack.c.l.b16 %v1800
  %v3563 = vunpack.c.h.b16 %v1800
  %v3564 = vunpack.c.l.b16 %v1801
  %v3565 = vunpack.c.h.b16 %v1801
  %v3566 = vunpack.c.l.b16 %v1802
  %v3567 = vunpack.c.h.b16 %v1802
  %v3568 = vunpack.c.l.b16 %v1803
  %v3569 = vunpack.c.h.b16 %v1803
  %v3570 = vunpack.c.l.b16 %v1804
  %v3571 = vunpack.c.h.b16 %v1804
  %v3572 = vunpack.c.l.b16 %v1805
  %v3573 = vunpack.c.h.b16 %v1805
  %v3574 = vunpack.c.l.b16 %v1806
  %v3575 = vunpack.c.l.b16 %v1807
  %v3576 = vunpack.c.h.b16 %v1807
  %v3577 = vunpack.c.l.b16 %v1808
  %v3578 = vunpack.c.h.b16 %v1808
  %v3579 = vunpack.c.l.b16 %v1809
  %v3580 = vunpack.c.h.b16 %v1809
  %v3581 = vunpack.c.l.b16 %v1810
  %v3582 = vunpack.c.h.b16 %v1810
  %v3583 = vunpack.c.l.b16 %v1811
  %v3584 = vunpack.c.h.b16 %v1811
  %v3585 = vunpack.c.l.b16 %v1812
  %v3586 = vunpack.c.h.b16 %v1812
  %v3587 = vunpack.c.l.b16 %v1813
  %v3588 = vunpack.c.l.b16 %v1814
  %v3589 = vunpack.c.h.b16 %v1814
  %v3590 = vunpack.c.l.b16 %v1815
  %v3591 = vunpack.c.h.b16 %v1815
  %v3592 = vunpack.c.l.b16 %v1816
  %v3593 = vunpack.c.h.b16 %v1816
  %v3594 = vunpack.c.l.b16 %v1817
  %v3595 = vunpack.c.h.b16 %v1817
  %v3596 = vunpack.c.l.b16 %v1818
  %v3597 = vunpack.c.h.b16 %v1818
  %v3598 = vunpack.c.l.b16 %v1819
  %v3599 = vunpack.c.h.b16 %v1819
  %v3600 = vunpack.c.l.b16 %v1820
  %v3601 = vunpack.c.l.b16 %v1821
  %v3602 = vunpack.c.h.b16 %v1821
  %v3603 = vunpack.c.l.b16 %v1822
  %v3604 = vunpack.c.h.b16 %v1822
  %v3605 = vunpack.c.l.b16 %v1823
  %v3606 = vunpack.c.h.b16 %v1823
  %v3607 = vunpack.c.l.b16 %v1824
  %v3608 = vunpack.c.h.b16 %v1824
  %v3609 = vunpack.c.l.b16 %v1825
  %v3610 = vunpack.c.h.b16 %v1825
  %v3611 = vunpack.c.l.b16 %v1826
  %v3612 = vunpack.c.h.b16 %v1826
  %v3613 = vunpack.c.l.b16 %v1827
  %v3614 = vunpack.c.l.b16 %v1828
  %v3615 = vunpack.c.h.b16 %v1828
  %v3616 = vunpack.c.l.b16 %v1829
  %v3617 = vunpack.c.h.b16 %v1829
  %v3618 = vunpack.c.l.b16 %v1830
  %v3619 = vunpack.c.h.b16 %v1830
  %v3620 = vunpack.c.l.b16 %v1831
  %v3621 = vunpack.c.h.b16 %v1831
  %v3622 = vunpack.c.l.b16 %v1832
  %v3623 = vunpack.c.h.b16 %v1832
  %v3624 = vunpack.c.l.b16 %v1833
  %v3625 = vunpack.c.h.b16 %v1833
  %v3626 = vunpack.c.l.b16 %v1834
  %v3627 = vunpack.c.l.b16 %v1835
  %v3628 = vunpack.c.h.b16 %v1835
  %v3629 = vunpack.c.l.b16 %v1836
  %v3630 = vunpack.c.h.b16 %v1836
  %v3631 = vunpack.c.l.b16 %v1837
  %v3632 = vunpack.c.h.b16 %v1837
  %v3633 = vunpack.c.l.b16 %v1838
  %v3634 = vunpack.c.h.b16 %v1838
  %v3635 = vunpack.c.l.b16 %v1839
  %v3636 = vunpack.c.h.b16 %v1839
  %v3637 = vunpack.c.l.b16 %v1840
  %v3638 = vunpack.c.h.b16 %v1840
  %v3639 = vunpack.c.l.b16 %v1841
  %v3640 = vunpack.c.l.b16 %v1842
  %v3641 = vunpack.c.h.b16 %v1842
  %v3642 = vunpack.c.l.b16 %v1843
  %v3643 = vunpack.c.h.b16 %v1843
  %v3644 = vunpack.c.l.b16 %v1844
  %v3645 = vunpack.c.h.b16 %v1844
  %v3646 = vunpack.c.l.b16 %v1845
  %v3647 = vunpack.c.h.b16 %v1845
  %v3648 = vunpack.c.l.b16 %v1846
  %v3649 = vunpack.c.h.b16 %v1846
  %v3650 = vunpack.c.l.b16 %v1847
  %v3651 = vunpack.c.h.b16 %v1847
  %v3652 = vunpack.c.l.b16 %v1848
  %v3653 = vunpack.c.l.b16 %v1849
  %v3654 = vunpack.c.h.b16 %v1849
  %v3655 = vunpack.c.l.b16 %v1850
  %v3656 = vunpack.c.h.b16 %v1850
  %v3657 = vunpack.c.l.b16 %v1851
  %v3658 = vunpack.c.h.b16 %v1851
  %v3659 = vunpack.c.l.b16 %v1852
  %v3660 = vunpack.c.h.b16 %v1852
  %v3661 = vunpack.c.l.b16 %v1853
  %v3662 = vunpack.c.h.b16 %v1853
  %v3663 = vunpack.c.l.b16 %v1854
  %v3664 = vunpack.c.h.b16 %v1854
  %v3665 = vunpack.c.l.b16 %v1855
  %v3666 = vunpack.c.l.b16 %v1856
  %v3667 = vunpack.c.h.b16 %v1856
  %v3668 = vunpack.c.l.b16 %v1857
  %v3669 = vunpack.c.h.b16 %v1857
  %v3670 = vunpack.c.l.b16 %v1858
  %v3671 = vunpack.c.h.b16 %v1858
  %v3672 = vunpack.c.l.b16 %v1859
  %v3673 = vunpack.c.h.b16 %v1859
  %v3674 = vunpack.c.l.b16 %v1860
  %v3675 = vunpack.c.h.b16 %v1860
  %v3676 = vunpack.c.l.b16 %v1861
  %v3677 = vunpack.c.h.b16 %v1861
  %v3678 = vunpack.c.l.b16 %v1862
  %v3679 = vunpack.c.l.b16 %v1863
  %v3680 = vunpack.c.h.b16 %v1863
  %v3681 = vunpack.c.l.b16 %v1864
  %v3682 = vunpack.c.h.b16 %v1864
  %v3683 = vunpack.c.l.b16 %v1865
  %v3684 = vunpack.c.h.b16 %v1865
  %v3685 = vunpack.c.l.b16 %v1866
  %v3686 = vunpack.c.h.b16 %v1866
  %v3687 = vunpack.c.l.b16 %v1867
  %v3688 = vunpack.c.h.b16 %v1867
  %v3689 = vunpack.c.l.b16 %v1868
  %v3690 = vunpack.c.h.b16 %v1868
  %v3691 = vunpack.c.l.b16 %v1869
  %v3692 = vunpack.c.l.b16 %v1870
  %v3693 = vunpack.c.h.b16 %v1870
  %v3694 = vunpack.c.l.b16 %v1871
  %v3695 = vunpack.c.h.b16 %v1871
  %v3696 = vunpack.c.l.b16 %v1872
  %v3697 = vunpack.c.h.b16 %v1872
  %v3698 = vunpack.c.l.b16 %v1873
  %v3699 = vunpack.c.h.b16 %v1873
  %v3700 = vunpack.c.l.b16 %v1874
  %v3701 = vunpack.c.h.b16 %v1874
  %v3702 = vunpack.c.l.b16 %v1875
  %v3703 = vunpack.c.h.b16 %v1875
  %v3704 = vunpack.c.l.b16 %v1876
  %v3705 = vunpack.c.l.b16 %v1877
  %v3706 = vunpack.c.h.b16 %v1877
  %v3707 = vunpack.c.l.b16 %v1878
  %v3708 = vunpack.c.h.b16 %v1878
  %v3709 = vunpack.c.l.b16 %v1879
  %v3710 = vunpack.c.h.b16 %v1879
  %v3711 = vunpack.c.l.b16 %v1880
  %v3712 = vunpack.c.h.b16 %v1880
  %v3713 = vunpack.c.l.b16 %v1881
  %v3714 = vunpack.c.h.b16 %v1881
  %v3715 = vunpack.c.l.b16 %v1882
  %v3716 = vunpack.c.h.b16 %v1882
  %v3717 = vunpack.c.l.b16 %v1883
  %v3718 = vunpack.c.l.b16 %v1884
  %v3719 = vunpack.c.h.b16 %v1884
  %v3720 = vunpack.c.l.b16 %v1885
  %v3721 = vunpack.c.h.b16 %v1885
  %v3722 = vunpack.c.l.b16 %v1886
  %v3723 = vunpack.c.h.b16 %v1886
  %v3724 = vunpack.c.l.b16 %v1887
  %v3725 = vunpack.c.h.b16 %v1887
  %v3726 = vunpack.c.l.b16 %v1888
  %v3727 = vunpack.c.h.b16 %v1888
  %v3728 = vunpack.c.l.b16 %v1889
  %v3729 = vunpack.c.h.b16 %v1889
  %v3730 = vunpack.c.l.b16 %v1890
  %v3731 = vunpack.c.l.b16 %v1891
  %v3732 = vunpack.c.h.b16 %v1891
  %v3733 = vunpack.c.l.b16 %v1892
  %v3734 = vunpack.c.h.b16 %v1892
  %v3735 = vunpack.c.l.b16 %v1893
  %v3736 = vunpack.c.h.b16 %v1893
  %v3737 = vunpack.c.l.b16 %v1894
  %v3738 = vunpack.c.h.b16 %v1894
  %v3739 = vunpack.c.l.b16 %v1895
  %v3740 = vunpack.c.h.b16 %v1895
  %v3741 = vunpack.c.l.b16 %v1896
  %v3742 = vunpack.c.h.b16 %v1896
  %v3743 = vunpack.c.l.b16 %v1897
  %v3744 = vunpack.c.l.b16 %v1898
  %v3745 = vunpack.c.h.b16 %v1898
  %v3746 = vunpack.c.l.b16 %v1899
  %v3747 = vunpack.c.h.b16 %v1899
  %v3748 = vunpack.c.l.b16 %v1900
  %v3749 = vunpack.c.h.b16 %v1900
  %v3750 = vunpack.c.l.b16 %v1901
  %v3751 = vunpack.c.h.b16 %v1901
  %v3752 = vunpack.c.l.b16 %v1902
  %v3753 = vunpack.c.h.b16 %v1902
  %v3754 = vunpack.c.l.b16 %v1903
  %v3755 = vunpack.c.h.b16 %v1903
  %v3756 = vunpack.c.l.b16 %v1904
  %v3757 = vunpack.c.l.b16 %v1905
  %v3758 = vunpack.c.h.b16 %v1905
  %v3759 = vunpack.c.l.b16 %v1906
  %v3760 = vunpack.c.h.b16 %v1906
  %v3761 = vunpack.c.l.b16 %v1907
  %v3762 = vunpack.c.h.b16 %v1907
  %v3763 = vunpack.c.l.b16 %v1908
  %v3764 = vunpack.c.h.b16 %v1908
  %v3765 = vunpack.c.l.b16 %v1909
  %v3766 = vunpack.c.h.b16 %v1909
  %v3767 = vunpack.c.l.b16 %v1910
  %v3768 = vunpack.c.h.b16 %v1910
  %v3769 = vunpack.c.l.b16 %v1911
  %v3770 = vunpack.c.l.b16 %v1912
  %v3771 = vunpack.c.h.b16 %v1912
  %v3772 = vunpack.c.l.b16 %v1913
  %v3773 = vunpack.c.h.b16 %v1913
  %v3774 = vunpack.c.l.b16 %v1914
  %v3775 = vunpack.c.h.b16 %v1914
  %v3776 = vunpack.c.l.b16 %v1915
  %v3777 = vunpack.c.h.b16 %v1915
  %v3778 = vunpack.c.l.b16 %v1916
  %v3779 = vunpack.c.h.b16 %v1916
  %v3780 = vunpack.c.l.b16 %v1917
  %v3781 = vunpack.c.h.b16 %v1917
  %v3782 = vunpack.c.l.b16 %v1918
  %v3783 = vunpack.c.l.b16 %v1919
  %v3784 = vunpack.c.h.b16 %v1919
  %v3785 = vunpack.c.l.b16 %v1920
  %v3786 = vunpack.c.h.b16 %v1920
  %v3787 = vunpack.c.l.b16 %v1921
  %v3788 = vunpack.c.h.b16 %v1921
  %v3789 = vunpack.c.l.b16 %v1922
  %v3790 = vunpack.c.h.b16 %v1922
  %v3791 = vunpack.c.l.b16 %v1923
  %v3792 = vunpack.c.h.b16 %v1923
  %v3793 = vunpack.c.l.b16 %v1924
  %v3794 = vunpack.c.h.b16 %v1924
  %v3795 = vunpack.c.l.b16 %v1925
  %v3796 = vunpack.c.l.b16 %v1926
  %v3797 = vunpack.c.h.b16 %v1926
  %v3798 = vunpack.c.l.b16 %v1927
  %v3799 = vunpack.c.h.b16 %v1927
  %v3800 = vunpack.c.l.b16 %v1928
  %v3801 = vunpack.c.h.b16 %v1928
  %v3802 = vunpack.c.l.b16 %v1929
  %v3803 = vunpack.c.h.b16 %v1929
  %v3804 = vunpack.c.l.b16 %v1930
  %v3805 = vunpack.c.h.b16 %v1930
  %v3806 = vunpack.c.l.b16 %v1931
  %v3807 = vunpack.c.h.b16 %v1931
  %v3808 = vunpack.c.l.b16 %v1932
  %v3809 = vunpack.c.l.b16 %v1933
  %v3810 = vunpack.c.h.b16 %v1933
  %v3811 = vunpack.c.l.b16 %v1934
  %v3812 = vunpack.c.h.b16 %v1934
  %v3813 = vunpack.c.l.b16 %v1935
  %v3814 = vunpack.c.h.b16 %v1935
  %v3815 = vunpack.c.l.b16 %v1936
  %v3816 = vunpack.c.h.b16 %v1936
  %v3817 = vunpack.c.l.b16 %v1937
  %v3818 = vunpack.c.h.b16 %v1937
  %v3819 = vunpack.c.l.b16 %v1938
  %v3820 = vunpack.c.h.b16 %v1938
  %v3821 = vunpack.c.l.b16 %v1939
  %v3822 = vunpack.c.l.b16 %v1940
  %v3823 = vunpack.c.h.b16 %v1940
  %v3824 = vunpack.c.l.b16 %v1941
  %v3825 = vunpack.c.h.b16 %v1941
  %v3826 = vunpack.c.l.b16 %v1942
  %v3827 = vunpack.c.h.b16 %v1942
  %v3828 = vunpack.c.l.b16 %v1943
  %v3829 = vunpack.c.h.b16 %v1943
  %v3830 = vunpack.c.l.b16 %v1944
  %v3831 = vunpack.c.h.b16 %v1944
  %v3832 = vunpack.c.l.b16 %v1945
  %v3833 = vunpack.c.h.b16 %v1945
  %v3834 = vunpack.c.l.b16 %v1946
  %v3835 = vunpack.c.l.b16 %v1947
  %v3836 = vunpack.c.h.b16 %v1947
  %v3837 = vunpack.c.l.b16 %v1948
  %v3838 = vunpack.c.h.b16 %v1948
  %v3839 = vunpack.c.l.b16 %v1949
  %v3840 = vunpack.c.h.b16 %v1949
  %v3841 = vunpack.c.l.b16 %v1950
  %v3842 = vunpack.c.h.b16 %v1950
  %v3843 = vunpack.c.l.b16 %v1951
  %v3844 = vunpack.c.h.b16 %v1951
  %v3845 = vunpack.c.l.b16 %v1952
  %v3846 = vunpack.c.h.b16 %v1952
  %v3847 = vunpack.c.l.b16 %v1953
  %v3848 = vunpack.c.l.b16 %v1954
  %v3849 = vunpack.c.h.b16 %v1954
  %v3850 = vunpack.c.l.b16 %v1955
  %v3851 = vunpack.c.h.b16 %v1955
  %v3852 = vunpack.c.l.b16 %v1956
  %v3853 = vunpack.c.h.b16 %v1956
  %v3854 = vunpack.c.l.b16 %v1957
  %v3855 = vunpack.c.h.b16 %v1957
  %v3856 = vunpack.c.l.b16 %v1958
  %v3857 = vunpack.c.h.b16 %v1958
  %v3858 = vunpack.c.l.b16 %v1959
  %v3859 = vunpack.c.h.b16 %v1959
  %v3860 = vunpack.c.l.b16 %v1960
  %v3861 = vunpack.c.l.b16 %v1961
  %v3862 = vunpack.c.h.b16 %v1961
  %v3863 = vunpack.c.l.b16 %v1962
  %v3864 = vunpack.c.h.b16 %v1962
  %v3865 = vunpack.c.l.b16 %v1963
  %v3866 = vunpack.c.h.b16 %v1963
  %v3867 = vunpack.c.l.b16 %v1964
  %v3868 = vunpack.c.h.b16 %v1964
  %v3869 = vunpack.c.l.b16 %v1965
  %v3870 = vunpack.c.h.b16 %v1965
  %v3871 = vunpack.c.l.b16 %v1966
  %v3872 = vunpack.c.h.b16 %v1966
  %v3873 = vunpack.c.l.b16 %v1967
  %v3874 = vunpack.c.l.b16 %v1968
  %v3875 = vunpack.c.h.b16 %v1968
  %v3876 = vunpack.c.l.b16 %v1969
  %v3877 = vunpack.c.h.b16 %v1969
  %v3878 = vunpack.c.l.b16 %v1970
  %v3879 = vunpack.c.h.b16 %v1970
  %v3880 = vunpack.c.l.b16 %v1971
  %v3881 = vunpack.c.h.b16 %v1971
  %v3882 = vunpack.c.l.b16 %v1972
  %v3883 = vunpack.c.h.b16 %v1972
  %v3884 = vunpack.c.l.b16 %v1973
  %v3885 = vunpack.c.h.b16 %v1973
  %v3886 = vunpack.c.l.b16 %v1974
  %v3887 = vunpack.c.l.b16 %v1975
  %v3888 = vunpack.c.h.b16 %v1975
  %v3889 = vunpack.c.l.b16 %v1976
  %v3890 = vunpack.c.h.b16 %v1976
  %v3891 = vunpack.c.l.b16 %v1977
  %v3892 = vunpack.c.h.b16 %v1977
  %v3893 = vunpack.c.l.b16 %v1978
  %v3894 = vunpack.c.h.b16 %v1978
  %v3895 = vunpack.c.l.b16 %v1979
  %v3896 = vunpack.c.h.b16 %v1979
  %v3897 = vunpack.c.l.b16 %v1980
  %v3898 = vunpack.c.h.b16 %v1980
  %v3899 = vunpack.c.l.b16 %v1981
  %v3900 = vunpack.c.l.b16 %v1982
  %v3901 = vunpack.c.h.b16 %v1982
  %v3902 = vunpack.c.l.b16 %v1983
  %v3903 = vunpack.c.h.b16 %v1983
  %v3904 = vunpack.c.l.b16 %v1984
  %v3905 = vunpack.c.h.b16 %v1984
  %v3906 = vunpack.c.l.b16 %v1985
  %v3907 = vunpack.c.h.b16 %v1985
  %v3908 = vunpack.c.l.b16 %v1986
  %v3909 = vunpack.c.h.b16 %v1986
  %v3910 = vunpack.c.l.b16 %v1987
  %v3911 = vunpack.c.h.b16 %v1987
  %v3912 = vunpack.c.l.b16 %v1988
  %v3913 = vunpack.c.l.b16 %v1989
  %v3914 = vunpack.c.h.b16 %v1989
  %v3915 = vunpack.c.l.b16 %v1990
  %v3916 = vunpack.c.h.b16 %v1990
  %v3917 = vunpack.c.l.b16 %v1991
  %v3918 = vunpack.c.h.b16 %v1991
  %v3919 = vunpack.c.l.b16 %v1992
  %v3920 = vunpack.c.h.b16 %v1992
  %v3921 = vunpack.c.l.b16 %v1993
  %v3922 = vunpack.c.h.b16 %v1993
  %v3923 = vunpack.c.l.b16 %v1994
  %v3924 = vunpack.c.h.b16 %v1994
  %v3925 = vunpack.c.l.b16 %v1995
  %v3926 = vunpack.c.l.b16 %v1996
  %v3927 = vunpack.c.h.b16 %v1996
  %v3928 = vunpack.c.l.b16 %v1997
  %v3929 = vunpack.c.h.b16 %v1997
  %v3930 = vunpack.c.l.b16 %v1998
  %v3931 = vunpack.c.h.b16 %v1998
  %v3932 = vunpack.c.l.b16 %v1999
  %v3933 = vunpack.c.h.b16 %v1999
  %v3934 = vunpack.c.l.b16 %v2000
  %v3935 = vunpack.c.h.b16 %v2000
  %v3936 = vunpack.c.l.b16 %v2001
  %v3937 = vunpack.c.h.b16 %v2001
  %v3938 = vunpack.c.l.b16 %v2002
  %v3939 = vunpack.c.l.b16 %v2003
  %v3940 = vunpack.c.h.b16 %v2003
  %v3941 = vunpack.c.l.b16 %v2004
  %v3942 = vunpack.c.h.b16 %v2004
  %v3943 = vunpack.c.l.b16 %v2005
  %v3944 = vunpack.c.h.b16 %v2005
  %v3945 = vunpack.c.l.b16 %v2006
  %v3946 = vunpack.c.h.b16 %v2006
  %v3947 = vunpack.c.l.b16 %v2007
  %v3948 = vunpack.c.h.b16 %v2007
  %v3949 = vunpack.c.l.b16 %v2008
  %v3950 = vunpack.c.h.b16 %v2008
  %v3951 = vunpack.c.l.b16 %v2009
  %v3952 = vunpack.c.l.b16 %v2010
  %v3953 = vunpack.c.h.b16 %v2010
  %v3954 = vunpack.c.l.b16 %v2011
  %v3955 = vunpack.c.h.b16 %v2011
  %v3956 = vunpack.c.l.b16 %v2012
  %v3957 = vunpack.c.h.b16 %v2012
  %v3958 = vunpack.c.l.b16 %v2013
  %v3959 = vunpack.c.h.b16 %v2013
  %v3960 = vunpack.c.l.b16 %v2014
  %v3961 = vunpack.c.h.b16 %v2014
  %v3962 = vunpack.c.l.b16 %v2015
  %v3963 = vunpack.c.h.b16 %v2015
  %v3964 = vunpack.c.l.b16 %v2016
  %v3965 = vunpack.c.l.b16 %v2017
  %v3966 = vunpack.c.h.b16 %v2017
  %v3967 = vunpack.c.l.b16 %v2018
  %v3968 = vunpack.c.h.b16 %v2018
  %v3969 = vunpack.c.l.b16 %v2019
  %v3970 = vunpack.c.h.b16 %v2019
  %v3971 = vunpack.c.l.b16 %v2020
  %v3972 = vunpack.c.h.b16 %v2020
  %v3973 = vunpack.c.l.b16 %v2021
  %v3974 = vunpack.c.h.b16 %v2021
  %v3975 = vunpack.c.l.b16 %v2022
  %v3976 = vunpack.c.h.b16 %v2022
  %v3977 = vunpack.c.l.b16 %v2023
  %v3978 = vunpack.c.l.b16 %v2024
  %v3979 = vunpack.c.h.b16 %v2024
  %v3980 = vunpack.c.l.b16 %v2025
  %v3981 = vunpack.c.h.b16 %v2025
  %v3982 = vunpack.c.l.b16 %v2026
  %v3983 = vunpack.c.h.b16 %v2026
  %v3984 = vunpack.c.l.b16 %v2027
  %v3985 = vunpack.c.h.b16 %v2027
  %v3986 = vunpack.c.l.b16 %v2028
  %v3987 = vunpack.c.h.b16 %v2028
  %v3988 = vunpack.c.l.b16 %v2029
  %v3989 = vunpack.c.h.b16 %v2029
  %v3990 = vunpack.c.l.b16 %v2030
  %v3991 = vunpack.c.l.b16 %v2031
  %v3992 = vunpack.c.h.b16 %v2031
  %v3993 = vunpack.c.l.b16 %v2032
  %v3994 = vunpack.c.h.b16 %v2032
  %v3995 = vunpack.c.l.b16 %v2033
  %v3996 = vunpack.c.h.b16 %v2033
  %v3997 = vunpack.c.l.b16 %v2034
  %v3998 = vunpack.c.h.b16 %v2034
  %v3999 = vunpack.c.l.b16 %v2035
  %v4000 = vunpack.c.h.b16 %v2035
  %v4001 = vunpack.c.l.b16 %v2036
  %v4002 = vunpack.c.h.b16 %v2036
  %v4003 = vunpack.c.l.b16 %v2037
  %v4004 = vunpack.c.l.b16 %v2038
  %v4005 = vunpack.c.h.b16 %v2038
  %v4006 = vunpack.c.l.b16 %v2039
  %v4007 = vunpack.c.h.b16 %v2039
  %v4008 = vunpack.c.l.b16 %v2040
  %v4009 = vunpack.c.h.b16 %v2040
  %v4010 = vunpack.c.l.b16 %v2041
  %v4011 = vunpack.c.h.b16 %v2041
  %v4012 = vunpack.c.l.b16 %v2042
  %v4013 = vunpack.c.h.b16 %v2042
  %v4014 = vunpack.c.l.b16 %v2043
  %v4015 = vunpack.c.h.b16 %v2043
  %v4016 = vunpack.c.l.b16 %v2044
  %v4017 = vunpack.c.l.b16 %v2045
  %v4018 = vunpack.c.h.b16 %v2045
  %v4019 = vunpack.c.l.b16 %v2046
  %v4020 = vunpack.c.h.b16 %v2046
  %v4021 = vunpack.c.l.b16 %v2047
  %v4022 = vunpack.c.h.b16 %v2047
  %v4023 = vunpack.c.l.b16 %v2048
  %v4024 = vunpack.c.h.b16 %v2048
  %v4025 = vunpack.c.l.b16 %v2049
  %v4026 = vunpack.c.h.b16 %v2049
  %v4027 = vunpack.c.l.b16 %v2050
  %v4028 = vunpack.c.h.b16 %v2050
  %v4029 = vunpack.c.l.b16 %v2051
  %v4030 = vunpack.c.l.b16 %v2052
  %v4031 = vunpack.c.h.b16 %v2052
  %v4032 = vunpack.c.l.b16 %v2053
  %v4033 = vunpack.c.h.b16 %v2053
  %v4034 = vunpack.c.l.b16 %v2054
  %v4035 = vunpack.c.h.b16 %v2054
  %v4036 = vunpack.c.l.b16 %v2055
  %v4037 = vunpack.c.h.b16 %v2055
  %v4038 = vunpack.c.l.b16 %v2056
  %v4039 = vunpack.c.h.b16 %v2056
  %v4040 = vunpack.c.l.b16 %v2057
  %v4041 = vunpack.c.h.b16 %v2057
  %v4042 = vunpack.c.l.b16 %v2058
  %v4043 = vunpack.c.l.b16 %v2059
  %v4044 = vunpack.c.h.b16 %v2059
  %v4045 = vunpack.c.l.b16 %v2060
  %v4046 = vunpack.c.h.b16 %v2060
  %v4047 = vunpack.c.l.b16 %v2061
  %v4048 = vunpack.c.h.b16 %v2061
  %v4049 = vunpack.c.l.b16 %v2062
  %v4050 = vunpack.c.h.b16 %v2062
  %v4051 = vunpack.c.l.b16 %v2063
  %v4052 = vunpack.c.h.b16 %v2063
  %v4053 = vunpack.c.l.b16 %v2064
  %v4054 = vunpack.c.h.b16 %v2064
  %v4055 = vunpack.c.l.b16 %v2065
  %v4056 = vpack.c.b16 %v2795, %v2782
  %v4057 = vpack.c.b16 %v2796, %v2783
  %v4058 = vpack.c.b16 %v2797, %v2784
  %v4059 = vpack.c.b16 %v2798, %v2785
  %v4060 = vpack.c.b16 %v2799, %v2786
  %v4061 = vpack.c.b16 %v2800, %v2787
  %v4062 = vpack.c.b16 %v2801, %v2788
  %v4063 = vpack.c.b16 %v2802, %v2789
  %v4064 = vpack.c.b16 %v2803, %v2790
  %v4065 = vpack.c.b16 %v2804, %v2791
  %v4066 = vpack.c.b16 %v2805, %v2792
  %v4067 = vpack.c.b16 %v2806, %v2793
  %v4068 = vpack.c.b16 %v2807, %v2794
  %v4069 = vpack.c.b16 %v2821, %v2808
  %v4070 = vpack.c.b16 %v2822, %v2809
  %v4071 = vpack.c.b16 %v2823, %v2810
  %v4072 = vpack.c.b16 %v2824, %v2811
  %v4073 = vpack.c.b16 %v2825, %v2812
  %v4074 = vpack.c.b16 %v2826, %v2813
  %v4075 = vpack.c.b16 %v2827, %v2814
  %v4076 = vpack.c.b16 %v2828, %v2815
  %v4077 = vpack.c.b16 %v2829, %v2816
  %v4078 = vpack.c.b16 %v2830, %v2817
  %v4079 = vpack.c.b16 %v2831, %v2818
  %v4080 = vpack.c.b16 %v2832, %v2819
  %v4081 = vpack.c.b16 %v2833, %v2820
  %v4082 = vpack.c.b16 %v2847, %v2834
  %v4083 = vpack.c.b16 %v2848, %v2835
  %v4084 = vpack.c.b16 %v2849, %v2836
  %v4085 = vpack.c.b16 %v2850, %v2837
  %v4086 = vpack.c.b16 %v2851, %v2838
  %v4087 = vpack.c.b16 %v2852, %v2839
  %v4088 = vpack.c.b16 %v2853, %v2840
  %v4089 = vpack.c.b16 %v2854, %v2841
  %v4090 = vpack.c.b16 %v2855, %v2842
  %v4091 = vpack.c.b16 %v2856, %v2843
  %v4092 = vpack.c.b16 %v2857, %v2844
  %v4093 = vpack.c.b16 %v2858, %v2845
  %v4094 = vpack.c.b16 %v2859, %v2846
  %v4095 = vpack.c.b16 %v2873, %v2860
  %v4096 = vpack.c.b16 %v2874, %v2861
  %v4097 = vpack.c.b16 %v2875, %v2862
  %v4098 = vpack.c.b16 %v2876, %v2863
  %v4099 = vpack.c.b16 %v2877, %v2864
  %v4100 = vpack.c.b16 %v2878, %v2865
  %v4101 = vpack.c.b16 %v2879, %v2866
  %v4102 = vpack.c.b16 %v2880, %v2867
  %v4103 = vpack.c.b16 %v2881, %v2868
  %v4104 = vpack.c.b16 %v2882, %v2869
  %v4105 = vpack.c.b16 %v2883, %v2870
  %v4106 = vpack.c.b16 %v2884, %v2871
  %v4107 = vpack.c.b16 %v2885, %v2872
  %v4108 = vpack.c.b16 %v2899, %v2886
  %v4109 = vpack.c.b16 %v2900, %v2887
  %v4110 = vpack.c.b16 %v2901, %v2888
  %v4111 = vpack.c.b16 %v2902, %v2889
  %v4112 = vpack.c.b16 %v2903, %v2890
  %v4113 = vpack.c.b16 %v2904, %v2891
  %v4114 = vpack.c.b16 %v2905, %v2892
  %v4115 = vpack.c.b16 %v2906, %v2893
  %v4116 = vpack.c.b16 %v2907, %v2894
  %v4117 = vpack.c.b16 %v2908, %v2895
  %v4118 = vpack.c.b16 %v2909, %v2896
  %v4119 = vpack.c.b16 %v2910, %v2897
  %v4120 = vpack.c.b16 %v2911, %v2898
  %v4121 = vpack.c.b16 %v2925, %v2912
  %v4122 = vpack.c.b16 %v2926, %v2913
  %v4123 = vpack.c.b16 %v2927, %v2914
  %v4124 = vpack.c.b16 %v2928, %v2915
  %v4125 = vpack.c.b16 %v2929, %v2916
  %v4126 = vpack.c.b16 %v2930, %v2917
  %v4127 = vpack.c.b16 %v2931, %v2918
  %v4128 = vpack.c.b16 %v2932, %v2919
  %v4129 = vpack.c.b16 %v2933, %v2920
  %v4130 = vpack.c.b16 %v2934, %v2921
  %v4131 = vpack.c.b16 %v2935, %v2922
  %v4132 = vpack.c.b16 %v2936, %v2923
  %v4133 = vpack.c.b16 %v2937, %v2924
  %v4134 = vpack.c.b16 %v2951, %v2938
  %v4135 = vpack.c.b16 %v2952, %v2939
  %v4136 = vpack.c.b16 %v2953, %v2940
  %v4137 = vpack.c.b16 %v2954, %v2941
  %v4138 = vpack.c.b16 %v2955, %v2942
  %v4139 = vpack.c.b16 %v2956, %v2943
  %v4140 = vpack.c.b16 %v2957, %v2944
  %v4141 = vpack.c.b16 %v2958, %v2945
  %v4142 = vpack.c.b16 %v2959, %v2946
  %v4143 = vpack.c.b16 %v2960, %v2947
  %v4144 = vpack.c.b16 %v2961, %v2948
  %v4145 = vpack.c.b16 %v2962, %v2949
  %v4146 = vpack.c.b16 %v2963, %v2950
  %v4147 = vpack.c.b16 %v2977, %v2964
  %v4148 = vpack.c.b16 %v2978, %v2965
  %v4149 = vpack.c.b16 %v2979, %v2966
  %v4150 = vpack.c.b16 %v2980, %v2967
  %v4151 = vpack.c.b16 %v2981, %v2968
  %v4152 = vpack.c.b16 %v2982, %v2969
  %v4153 = vpack.c.b16 %v2983, %v2970
  %v4154 = vpack.c.b16 %v2984, %v2971
  %v4155 = vpack.c.b16 %v2985, %v2972
  %v4156 = vpack.c.b16 %v2986, %v2973
  %v4157 = vpack.c.b16 %v2987, %v2974
  %v4158 = vpack.c.b16 %v2988, %v2975
  %v4159 = vpack.c.b16 %v2989, %v2976
  %v4160 = vpack.c.b16 %v3003, %v2990
  %v4161 = vpack.c.b16 %v3004, %v2991
  %v4162 = vpack.c.b16 %v3005, %v2992
  %v4163 = vpack.c.b16 %v3006, %v2993
  %v4164 = vpack.c.b16 %v3007, %v2994
  %v4165 = vpack.c.b16 %v3008, %v2995
  %v4166 = vpack.c.b16 %v3009, %v2996
  %v4167 = vpack.c.b16 %v3010, %v2997
  %v4168 = vpack.c.b16 %v3011, %v2998
  %v4169 = vpack.c.b16 %v3012, %v2999
  %v4170 = vpack.c.b16 %v3013, %v3000
  %v4171 = vpack.c.b16 %v3014, %v3001
  %v4172 = vpack.c.b16 %v3015, %v3002
  %v4173 = vpack.c.b16 %v3029, %v3016
  %v4174 = vpack.c.b16 %v3030, %v3017
  %v4175 = vpack.c.b16 %v3031, %v3018
  %v4176 = vpack.c.b16 %v3032, %v3019
  %v4177 = vpack.c.b16 %v3033, %v3020
  %v4178 = vpack.c.b16 %v3034, %v3021
  %v4179 = vpack.c.b16 %v3035, %v3022
  %v4180 = vpack.c.b16 %v3036, %v3023
  %v4181 = vpack.c.b16 %v3037, %v3024
  %v4182 = vpack.c.b16 %v3038, %v3025
  %v4183 = vpack.c.b16 %v3039, %v3026
  %v4184 = vpack.c.b16 %v3040, %v3027
  %v4185 = vpack.c.b16 %v3041, %v3028
  %v4186 = vpack.c.b16 %v3055, %v3042
  %v4187 = vpack.c.b16 %v3056, %v3043
  %v4188 = vpack.c.b16 %v3057, %v3044
  %v4189 = vpack.c.b16 %v3058, %v3045
  %v4190 = vpack.c.b16 %v3059, %v3046
  %v4191 = vpack.c.b16 %v3060, %v3047
  %v4192 = vpack.c.b16 %v3061, %v3048
  %v4193 = vpack.c.b16 %v3062, %v3049
  %v4194 = vpack.c.b16 %v3063, %v3050
  %v4195 = vpack.c.b16 %v3064, %v3051
  %v4196 = vpack.c.b16 %v3065, %v3052
  %v4197 = vpack.c.b16 %v3066, %v3053
  %v4198 = vpack.c.b16 %v3067, %v3054
  %v4199 = vpack.c.b16 %v3081, %v3068
  %v4200 = vpack.c.b16 %v3082, %v3069
  %v4201 = vpack.c.b16 %v3083, %v3070
  %v4202 = vpack.c.b16 %v3084, %v3071
  %v4203 = vpack.c.b16 %v3085, %v3072
  %v4204 = vpack.c.b16 %v3086, %v3073
  %v4205 = vpack.c.b16 %v3087, %v3074
  %v4206 = vpack.c.b16 %v3088, %v3075
  %v4207 = vpack.c.b16 %v3089, %v3076
  %v4208 = vpack.c.b16 %v3090, %v3077
  %v4209 = vpack.c.b16 %v3091, %v3078
  %v4210 = vpack.c.b16 %v3092, %v3079
  %v4211 = vpack.c.b16 %v3093, %v3080
  %v4212 = vpack.c.b16 %v3107, %v3094
  %v4213 = vpack.c.b16 %v3108, %v3095
  %v4214 = vpack.c.b16 %v3109, %v3096
  %v4215 = vpack.c.b16 %v3110, %v3097
  %v4216 = vpack.c.b16 %v3111, %v3098
  %v4217 = vpack.c.b16 %v3112, %v3099
  %v4218 = vpack.c.b16 %v3113, %v3100
  %v4219 = vpack.c.b16 %v3114, %v3101
  %v4220 = vpack.c.b16 %v3115, %v3102
  %v4221 = vpack.c.b16 %v3116, %v3103
  %v4222 = vpack.c.b16 %v3117, %v3104
  %v4223 = vpack.c.b16 %v3118, %v3105
  %v4224 = vpack.c.b16 %v3119, %v3106
  %v4225 = vpack.c.b16 %v3133, %v3120
  %v4226 = vpack.c.b16 %v3134, %v3121
  %v4227 = vpack.c.b16 %v3135, %v3122
  %v4228 = vpack.c.b16 %v3136, %v3123
  %v4229 = vpack.c.b16 %v3137, %v3124
  %v4230 = vpack.c.b16 %v3138, %v3125
  %v4231 = vpack.c.b16 %v3139, %v3126
  %v4232 = vpack.c.b16 %v3140, %v3127
  %v4233 = vpack.c.b16 %v3141, %v3128
  %v4234 = vpack.c.b16 %v3142, %v3129
  %v4235 = vpack.c.b16 %v3143, %v3130
  %v4236 = vpack.c.b16 %v3144, %v3131
  %v4237 = vpack.c.b16 %v3145, %v3132
  %v4238 = vpack.c.b16 %v3159, %v3146
  %v4239 = vpack.c.b16 %v3160, %v3147
  %v4240 = vpack.c.b16 %v3161, %v3148
  %v4241 = vpack.c.b16 %v3162, %v3149
  %v4242 = vpack.c.b16 %v3163, %v3150
  %v4243 = vpack.c.b16 %v3164, %v3151
  %v4244 = vpack.c.b16 %v3165, %v3152
  %v4245 = vpack.c.b16 %v3166, %v3153
  %v4246 = vpack.c.b16 %v3167, %v3154
  %v4247 = vpack.c.b16 %v3168, %v3155
  %v4248 = vpack.c.b16 %v3169, %v3156
  %v4249 = vpack.c.b16 %v3170, %v3157
  %v4250 = vpack.c.b16 %v3171, %v3158
  %v4251 = vpack.c.b16 %v3185, %v3172
  %v4252 = vpack.c.b16 %v3186, %v3173
  %v4253 = vpack.c.b16 %v3187, %v3174
  %v4254 = vpack.c.b16 %v3188, %v3175
  %v4255 = vpack.c.b16 %v3189, %v3176
  %v4256 = vpack.c.b16 %v3190, %v3177
  %v4257 = vpack.c.b16 %v3191, %v3178
  %v4258 = vpack.c.b16 %v3192, %v3179
  %v4259 = vpack.c.b16 %v3193, %v3180
  %v4260 = vpack.c.b16 %v3194, %v3181
  %v4261 = vpack.c.b16 %v3195, %v3182
  %v4262 = vpack.c.b16 %v3196, %v3183
  %v4263 = vpack.c.b16 %v3197, %v3184
  %v4264 = vpack.c.b16 %v3211, %v3198
  %v4265 = vpack.c.b16 %v3212, %v3199
  %v4266 = vpack.c.b16 %v3213, %v3200
  %v4267 = vpack.c.b16 %v3214, %v3201
  %v4268 = vpack.c.b16 %v3215, %v3202
  %v4269 = vpack.c.b16 %v3216, %v3203
  %v4270 = vpack.c.b16 %v3217, %v3204
  %v4271 = vpack.c.b16 %v3218, %v3205
  %v4272 = vpack.c.b16 %v3219, %v3206
  %v4273 = vpack.c.b16 %v3220, %v3207
  %v4274 = vpack.c.b16 %v3221, %v3208
  %v4275 = vpack.c.b16 %v3222, %v3209
  %v4276 = vpack.c.b16 %v3223, %v3210
  %v4277 = vpack.c.b16 %v3237, %v3224
  %v4278 = vpack.c.b16 %v3238, %v3225
  %v4279 = vpack.c.b16 %v3239, %v3226
  %v4280 = vpack.c.b16 %v3240, %v3227
  %v4281 = vpack.c.b16 %v3241, %v3228
  %v4282 = vpack.c.b16 %v3242, %v3229
  %v4283 = vpack.c.b16 %v3243, %v3230
  %v4284 = vpack.c.b16 %v3244, %v3231
  %v4285 = vpack.c.b16 %v3245, %v3232
  %v4286 = vpack.c.b16 %v3246, %v3233
  %v4287 = vpack.c.b16 %v3247, %v3234
  %v4288 = vpack.c.b16 %v3248, %v3235
  %v4289 = vpack.c.b16 %v3249, %v3236
  %v4290 = vpack.c.b16 %v3263, %v3250
  %v4291 = vpack.c.b16 %v3264, %v3251
  %v4292 = vpack.c.b16 %v3265, %v3252
  %v4293 = vpack.c.b16 %v3266, %v3253
  %v4294 = vpack.c.b16 %v3267, %v3254
  %v4295 = vpack.c.b16 %v3268, %v3255
  %v4296 = vpack.c.b16 %v3269, %v3256
  %v4297 = vpack.c.b16 %v3270, %v3257
  %v4298 = vpack.c.b16 %v3271, %v3258
  %v4299 = vpack.c.b16 %v3272, %v3259
  %v4300 = vpack.c.b16 %v3273, %v3260
  %v4301 = vpack.c.b16 %v3274, %v3261
  %v4302 = vpack.c.b16 %v3275, %v3262
  %v4303 = vpack.c.b16 %v3289, %v3276
  %v4304 = vpack.c.b16 %v3290, %v3277
  %v4305 = vpack.c.b16 %v3291, %v3278
  %v4306 = vpack.c.b16 %v3292, %v3279
  %v4307 = vpack.c.b16 %v3293, %v3280
  %v4308 = vpack.c.b16 %v3294, %v3281
  %v4309 = vpack.c.b16 %v3295, %v3282
  %v4310 = vpack.c.b16 %v3296, %v3283
  %v4311 = vpack.c.b16 %v3297, %v3284
  %v4312 = vpack.c.b16 %v3298, %v3285
  %v4313 = vpack.c.b16 %v3299, %v3286
  %v4314 = vpack.c.b16 %v3300, %v3287
  %v4315 = vpack.c.b16 %v3301, %v3288
  %v4316 = vpack.c.b16 %v3315, %v3302
  %v4317 = vpack.c.b16 %v3316, %v3303
  %v4318 = vpack.c.b16 %v3317, %v3304
  %v4319 = vpack.c.b16 %v3318, %v3305
  %v4320 = vpack.c.b16 %v3319, %v3306
  %v4321 = vpack.c.b16 %v3320, %v3307
  %v4322 = vpack.c.b16 %v3321, %v3308
  %v4323 = vpack.c.b16 %v3322, %v3309
  %v4324 = vpack.c.b16 %v3323, %v3310
  %v4325 = vpack.c.b16 %v3324, %v3311
  %v4326 = vpack.c.b16 %v3325, %v3312
  %v4327 = vpack.c.b16 %v3326, %v3313
  %v4328 = vpack.c.b16 %v3327, %v3314
  %v4329 = vpack.c.b16 %v3341, %v3328
  %v4330 = vpack.c.b16 %v3342, %v3329
  %v4331 = vpack.c.b16 %v3343, %v3330
  %v4332 = vpack.c.b16 %v3344, %v3331
  %v4333 = vpack.c.b16 %v3345, %v3332
  %v4334 = vpack.c.b16 %v3346, %v3333
  %v4335 = vpack.c.b16 %v3347, %v3334
  %v4336 = vpack.c.b16 %v3348, %v3335
  %v4337 = vpack.c.b16 %v3349, %v3336
  %v4338 = vpack.c.b16 %v3350, %v3337
  %v4339 = vpack.c.b16 %v3351, %v3338
  %v4340 = vpack.c.b16 %v3352, %v3339
  %v4341 = vpack.c.b16 %v3353, %v3340
  %v4342 = vpack.c.b16 %v3367, %v3354
  %v4343 = vpack.c.b16 %v3368, %v3355
  %v4344 = vpack.c.b16 %v3369, %v3356
  %v4345 = vpack.c.b16 %v3370, %v3357
  %v4346 = vpack.c.b16 %v3371, %v3358
  %v4347 = vpack.c.b16 %v3372, %v3359
  %v4348 = vpack.c.b16 %v3373, %v3360
  %v4349 = vpack.c.b16 %v3374, %v3361
  %v4350 = vpack.c.b16 %v3375, %v3362
  %v4351 = vpack.c.b16 %v3376, %v3363
  %v4352 = vpack.c.b16 %v3377, %v3364
  %v4353 = vpack.c.b16 %v3378, %v3365
  %v4354 = vpack.c.b16 %v3379, %v3366
  %v4355 = vpack.c.b16 %v3393, %v3380
  %v4356 = vpack.c.b16 %v3394, %v3381
  %v4357 = vpack.c.b16 %v3395, %v3382
  %v4358 = vpack.c.b16 %v3396, %v3383
  %v4359 = vpack.c.b16 %v3397, %v3384
  %v4360 = vpack.c.b16 %v3398, %v3385
  %v4361 = vpack.c.b16 %v3399, %v3386
  %v4362 = vpack.c.b16 %v3400, %v3387
  %v4363 = vpack.c.b16 %v3401, %v3388
  %v4364 = vpack.c.b16 %v3402, %v3389
  %v4365 = vpack.c.b16 %v3403, %v3390
  %v4366 = vpack.c.b16 %v3404, %v3391
  %v4367 = vpack.c.b16 %v3405, %v3392
  %v4368 = vpack.c.b16 %v3419, %v3406
  %v4369 = vpack.c.b16 %v3420, %v3407
  %v4370 = vpack.c.b16 %v3421, %v3408
  %v4371 = vpack.c.b16 %v3422, %v3409
  %v4372 = vpack.c.b16 %v3423, %v3410
  %v4373 = vpack.c.b16 %v3424, %v3411
  %v4374 = vpack.c.b16 %v3425, %v3412
  %v4375 = vpack.c.b16 %v3426, %v3413
  %v4376 = vpack.c.b16 %v3427, %v3414
  %v4377 = vpack.c.b16 %v3428, %v3415
  %v4378 = vpack.c.b16 %v3429, %v3416
  %v4379 = vpack.c.b16 %v3430, %v3417
  %v4380 = vpack.c.b16 %v3431, %v3418
  %v4381 = vpack.c.b16 %v3445, %v3432
  %v4382 = vpack.c.b16 %v3446, %v3433
  %v4383 = vpack.c.b16 %v3447, %v3434
  %v4384 = vpack.c.b16 %v3448, %v3435
  %v4385 = vpack.c.b16 %v3449, %v3436
  %v4386 = vpack.c.b16 %v3450, %v3437
  %v4387 = vpack.c.b16 %v3451, %v3438
  %v4388 = vpack.c.b16 %v3452, %v3439
  %v4389 = vpack.c.b16 %v3453, %v3440
  %v4390 = vpack.c.b16 %v3454, %v3441
  %v4391 = vpack.c.b16 %v3455, %v3442
  %v4392 = vpack.c.b16 %v3456, %v3443
  %v4393 = vpack.c.b16 %v3457, %v3444
  %v4394 = vpack.c.b16 %v3471, %v3458
  %v4395 = vpack.c.b16 %v3472, %v3459
  %v4396 = vpack.c.b16 %v3473, %v3460
  %v4397 = vpack.c.b16 %v3474, %v3461
  %v4398 = vpack.c.b16 %v3475, %v3462
  %v4399 = vpack.c.b16 %v3476, %v3463
  %v4400 = vpack.c.b16 %v3477, %v3464
  %v4401 = vpack.c.b16 %v3478, %v3465
  %v4402 = vpack.c.b16 %v3479, %v3466
  %v4403 = vpack.c.b16 %v3480, %v3467
  %v4404 = vpack.c.b16 %v3481, %v3468
  %v4405 = vpack.c.b16 %v3482, %v3469
  %v4406 = vpack.c.b16 %v3483, %v3470
  %v4407 = vpack.c.b16 %v3497, %v3484
  %v4408 = vpack.c.b16 %v3498, %v3485
  %v4409 = vpack.c.b16 %v3499, %v3486
  %v4410 = vpack.c.b16 %v3500, %v3487
  %v4411 = vpack.c.b16 %v3501, %v3488
  %v4412 = vpack.c.b16 %v3502, %v3489
  %v4413 = vpack.c.b16 %v3503, %v3490
  %v4414 = vpack.c.b16 %v3504, %v3491
  %v4415 = vpack.c.b16 %v3505, %v3492
  %v4416 = vpack.c.b16 %v3506, %v3493
  %v4417 = vpack.c.b16 %v3507, %v3494
  %v4418 = vpack.c.b16 %v3508, %v3495
  %v4419 = vpack.c.b16 %v3509, %v3496
  %v4420 = vpack.c.b16 %v3523, %v3510
  %v4421 = vpack.c.b16 %v3524, %v3511
  %v4422 = vpack.c.b16 %v3525, %v3512
  %v4423 = vpack.c.b16 %v3526, %v3513
  %v4424 = vpack.c.b16 %v3527, %v3514
  %v4425 = vpack.c.b16 %v3528, %v3515
  %v4426 = vpack.c.b16 %v3529, %v3516
  %v4427 = vpack.c.b16 %v3530, %v3517
  %v4428 = vpack.c.b16 %v3531, %v3518
  %v4429 = vpack.c.b16 %v3532, %v3519
  %v4430 = vpack.c.b16 %v3533, %v3520
  %v4431 = vpack.c.b16 %v3534, %v3521
  %v4432 = vpack.c.b16 %v3535, %v3522
  %v4433 = vpack.c.b16 %v3549, %v3536
  %v4434 = vpack.c.b16 %v3550, %v3537
  %v4435 = vpack.c.b16 %v3551, %v3538
  %v4436 = vpack.c.b16 %v3552, %v3539
  %v4437 = vpack.c.b16 %v3553, %v3540
  %v4438 = vpack.c.b16 %v3554, %v3541
  %v4439 = vpack.c.b16 %v3555, %v3542
  %v4440 = vpack.c.b16 %v3556, %v3543
  %v4441 = vpack.c.b16 %v3557, %v3544
  %v4442 = vpack.c.b16 %v3558, %v3545
  %v4443 = vpack.c.b16 %v3559, %v3546
  %v4444 = vpack.c.b16 %v3560, %v3547
  %v4445 = vpack.c.b16 %v3561, %v3548
  %v4446 = vpack.c.b16 %v3575, %v3562
  %v4447 = vpack.c.b16 %v3576, %v3563
  %v4448 = vpack.c.b16 %v3577, %v3564
  %v4449 = vpack.c.b16 %v3578, %v3565
  %v4450 = vpack.c.b16 %v3579, %v3566
  %v4451 = vpack.c.b16 %v3580, %v3567
  %v4452 = vpack.c.b16 %v3581, %v3568
  %v4453 = vpack.c.b16 %v3582, %v3569
  %v4454 = vpack.c.b16 %v3583, %v3570
  %v4455 = vpack.c.b16 %v3584, %v3571
  %v4456 = vpack.c.b16 %v3585, %v3572
  %v4457 = vpack.c.b16 %v3586, %v3573
  %v4458 = vpack.c.b16 %v3587, %v3574
  %v4459 = vpack.c.b16 %v3601, %v3588
  %v4460 = vpack.c.b16 %v3602, %v3589
  %v4461 = vpack.c.b16 %v3603, %v3590
  %v4462 = vpack.c.b16 %v3604, %v3591
  %v4463 = vpack.c.b16 %v3605, %v3592
  %v4464 = vpack.c.b16 %v3606, %v3593
  %v4465 = vpack.c.b16 %v3607, %v3594
  %v4466 = vpack.c.b16 %v3608, %v3595
  %v4467 = vpack.c.b16 %v3609, %v3596
  %v4468 = vpack.c.b16 %v3610, %v3597
  %v4469 = vpack.c.b16 %v3611, %v3598
  %v4470 = vpack.c.b16 %v3612, %v3599
  %v4471 = vpack.c.b16 %v3613, %v3600
  %v4472 = vpack.c.b16 %v3627, %v3614
  %v4473 = vpack.c.b16 %v3628, %v3615
  %v4474 = vpack.c.b16 %v3629, %v3616
  %v4475 = vpack.c.b16 %v3630, %v3617
  %v4476 = vpack.c.b16 %v3631, %v3618
  %v4477 = vpack.c.b16 %v3632, %v3619
  %v4478 = vpack.c.b16 %v3633, %v3620
  %v4479 = vpack.c.b16 %v3634, %v3621
  %v4480 = vpack.c.b16 %v3635, %v3622
  %v4481 = vpack.c.b16 %v3636, %v3623
  %v4482 = vpack.c.b16 %v3637, %v3624
  %v4483 = vpack.c.b16 %v3638, %v3625
  %v4484 = vpack.c.b16 %v3639, %v3626
  %v4485 = vpack.c.b16 %v3653, %v3640
  %v4486 = vpack.c.b16 %v3654, %v3641
  %v4487 = vpack.c.b16 %v3655, %v3642
  %v4488 = vpack.c.b16 %v3656, %v3643
  %v4489 = vpack.c.b16 %v3657, %v3644
  %v4490 = vpack.c.b16 %v3658, %v3645
  %v4491 = vpack.c.b16 %v3659, %v3646
  %v4492 = vpack.c.b16 %v3660, %v3647
  %v4493 = vpack.c.b16 %v3661, %v3648
  %v4494 = vpack.c.b16 %v3662, %v3649
  %v4495 = vpack.c.b16 %v3663, %v3650
  %v4496 = vpack.c.b16 %v3664, %v3651
  %v4497 = vpack.c.b16 %v3665, %v3652
  %v4498 = vpack.c.b16 %v3679, %v3666
  %v4499 = vpack.c.b16 %v3680, %v3667
  %v4500 = vpack.c.b16 %v3681, %v3668
  %v4501 = vpack.c.b16 %v3682, %v3669
  %v4502 = vpack.c.b16 %v3683, %v3670
  %v4503 = vpack.c.b16 %v3684, %v3671
  %v4504 = vpack.c.b16 %v3685, %v3672
  %v4505 = vpack.c.b16 %v3686, %v3673
  %v4506 = vpack.c.b16 %v3687, %v3674
  %v4507 = vpack.c.b16 %v3688, %v3675
  %v4508 = vpack.c.b16 %v3689, %v3676
  %v4509 = vpack.c.b16 %v3690, %v3677
  %v4510 = vpack.c.b16 %v3691, %v3678
  %v4511 = vpack.c.b16 %v3705, %v3692
  %v4512 = vpack.c.b16 %v3706, %v3693
  %v4513 = vpack.c.b16 %v3707, %v3694
  %v4514 = vpack.c.b16 %v3708, %v3695
  %v4515 = vpack.c.b16 %v3709, %v3696
  %v4516 = vpack.c.b16 %v3710, %v3697
  %v4517 = vpack.c.b16 %v3711, %v3698
  %v4518 = vpack.c.b16 %v3712, %v3699
  %v4519 = vpack.c.b16 %v3713, %v3700
  %v4520 = vpack.c.b16 %v3714, %v3701
  %v4521 = vpack.c.b16 %v3715, %v3702
  %v4522 = vpack.c.b16 %v3716, %v3703
  %v4523 = vpack.c.b16 %v3717, %v3704
  %v4524 = vpack.c.b16 %v3731, %v3718
  %v4525 = vpack.c.b16 %v3732, %v3719
  %v4526 = vpack.c.b16 %v3733, %v3720
  %v4527 = vpack.c.b16 %v3734, %v3721
  %v4528 = vpack.c.b16 %v3735, %v3722
  %v4529 = vpack.c.b16 %v3736, %v3723
  %v4530 = vpack.c.b16 %v3737, %v3724
  %v4531 = vpack.c.b16 %v3738, %v3725
  %v4532 = vpack.c.b16 %v3739, %v3726
  %v4533 = vpack.c.b16 %v3740, %v3727
  %v4534 = vpack.c.b16 %v3741, %v3728
  %v4535 = vpack.c.b16 %v3742, %v3729
  %v4536 = vpack.c.b16 %v3743, %v3730
  %v4537 = vpack.c.b16 %v3757, %v3744
  %v4538 = vpack.c.b16 %v3758, %v3745
  %v4539 = vpack.c.b16 %v3759, %v3746
  %v4540 = vpack.c.b16 %v3760, %v3747
  %v4541 = vpack.c.b16 %v3761, %v3748
  %v4542 = vpack.c.b16 %v3762, %v3749
  %v4543 = vpack.c.b16 %v3763, %v3750
  %v4544 = vpack.c.b16 %v3764, %v3751
  %v4545 = vpack.c.b16 %v3765, %v3752
  %v4546 = vpack.c.b16 %v3766, %v3753
  %v4547 = vpack.c.b16 %v3767, %v3754
  %v4548 = vpack.c.b16 %v3768, %v3755
  %v4549 = vpack.c.b16 %v3769, %v3756
  %v4550 = vpack.c.b16 %v3783, %v3770
  %v4551 = vpack.c.b16 %v3784, %v3771
  %v4552 = vpack.c.b16 %v3785, %v3772
  %v4553 = vpack.c.b16 %v3786, %v3773
  %v4554 = vpack.c.b16 %v3787, %v3774
  %v4555 = vpack.c.b16 %v3788, %v3775
  %v4556 = vpack.c.b16 %v3789, %v3776
  %v4557 = vpack.c.b16 %v3790, %v3777
  %v4558 = vpack.c.b16 %v3791, %v3778
  %v4559 = vpack.c.b16 %v3792, %v3779
  %v4560 = vpack.c.b16 %v3793, %v3780
  %v4561 = vpack.c.b16 %v3794, %v3781
  %v4562 = vpack.c.b16 %v3795, %v3782
  %v4563 = vpack.c.b16 %v3809, %v3796
  %v4564 = vpack.c.b16 %v3810, %v3797
  %v4565 = vpack.c.b16 %v3811, %v3798
  %v4566 = vpack.c.b16 %v3812, %v3799
  %v4567 = vpack.c.b16 %v3813, %v3800
  %v4568 = vpack.c.b16 %v3814, %v3801
  %v4569 = vpack.c.b16 %v3815, %v3802
  %v4570 = vpack.c.b16 %v3816, %v3803
  %v4571 = vpack.c.b16 %v3817, %v3804
  %v4572 = vpack.c.b16 %v3818, %v3805
  %v4573 = vpack.c.b16 %v3819, %v3806
  %v4574 = vpack.c.b16 %v3820, %v3807
  %v4575 = vpack.c.b16 %v3821, %v3808
  %v4576 = vpack.c.b16 %v3835, %v3822
  %v4577 = vpack.c.b16 %v3836, %v3823
  %v4578 = vpack.c.b16 %v3837, %v3824
  %v4579 = vpack.c.b16 %v3838, %v3825
  %v4580 = vpack.c.b16 %v3839, %v3826
  %v4581 = vpack.c.b16 %v3840, %v3827
  %v4582 = vpack.c.b16 %v3841, %v3828
  %v4583 = vpack.c.b16 %v3842, %v3829
  %v4584 = vpack.c.b16 %v3843, %v3830
  %v4585 = vpack.c.b16 %v3844, %v3831
  %v4586 = vpack.c.b16 %v3845, %v3832
  %v4587 = vpack.c.b16 %v3846, %v3833
  %v4588 = vpack.c.b16 %v3847, %v3834
  %v4589 = vpack.c.b16 %v3861, %v3848
  %v4590 = vpack.c.b16 %v3862, %v3849
  %v4591 = vpack.c.b16 %v3863, %v3850
  %v4592 = vpack.c.b16 %v3864, %v3851
  %v4593 = vpack.c.b16 %v3865, %v3852
  %v4594 = vpack.c.b16 %v3866, %v3853
  %v4595 = vpack.c.b16 %v3867, %v3854
  %v4596 = vpack.c.b16 %v3868, %v3855
  %v4597 = vpack.c.b16 %v3869, %v3856
  %v4598 = vpack.c.b16 %v3870, %v3857
  %v4599 = vpack.c.b16 %v3871, %v3858
  %v4600 = vpack.c.b16 %v3872, %v3859
  %v4601 = vpack.c.b16 %v3873, %v3860
  %v4602 = vpack.c.b16 %v3887, %v3874
  %v4603 = vpack.c.b16 %v3888, %v3875
  %v4604 = vpack.c.b16 %v3889, %v3876
  %v4605 = vpack.c.b16 %v3890, %v3877
  %v4606 = vpack.c.b16 %v3891, %v3878
  %v4607 = vpack.c.b16 %v3892, %v3879
  %v4608 = vpack.c.b16 %v3893, %v3880
  %v4609 = vpack.c.b16 %v3894, %v3881
  %v4610 = vpack.c.b16 %v3895, %v3882
  %v4611 = vpack.c.b16 %v3896, %v3883
  %v4612 = vpack.c.b16 %v3897, %v3884
  %v4613 = vpack.c.b16 %v3898, %v3885
  %v4614 = vpack.c.b16 %v3899, %v3886
  %v4615 = vpack.c.b16 %v3913, %v3900
  %v4616 = vpack.c.b16 %v3914, %v3901
  %v4617 = vpack.c.b16 %v3915, %v3902
  %v4618 = vpack.c.b16 %v3916, %v3903
  %v4619 = vpack.c.b16 %v3917, %v3904
  %v4620 = vpack.c.b16 %v3918, %v3905
  %v4621 = vpack.c.b16 %v3919, %v3906
  %v4622 = vpack.c.b16 %v3920, %v3907
  %v4623 = vpack.c.b16 %v3921, %v3908
  %v4624 = vpack.c.b16 %v3922, %v3909
  %v4625 = vpack.c.b16 %v3923, %v3910
  %v4626 = vpack.c.b16 %v3924, %v3911
  %v4627 = vpack.c.b16 %v3925, %v3912
  %v4628 = vpack.c.b16 %v3939, %v3926
  %v4629 = vpack.c.b16 %v3940, %v3927
  %v4630 = vpack.c.b16 %v3941, %v3928
  %v4631 = vpack.c.b16 %v3942, %v3929
  %v4632 = vpack.c.b16 %v3943, %v3930
  %v4633 = vpack.c.b16 %v3944, %v3931
  %v4634 = vpack.c.b16 %v3945, %v3932
  %v4635 = vpack.c.b16 %v3946, %v3933
  %v4636 = vpack.c.b16 %v3947, %v3934
  %v4637 = vpack.c.b16 %v3948, %v3935
  %v4638 = vpack.c.b16 %v3949, %v3936
  %v4639 = vpack.c.b16 %v3950, %v3937
  %v4640 = vpack.c.b16 %v3951, %v3938
  %v4641 = vpack.c.b16 %v3965, %v3952
  %v4642 = vpack.c.b16 %v3966, %v3953
  %v4643 = vpack.c.b16 %v3967, %v3954
  %v4644 = vpack.c.b16 %v3968, %v3955
  %v4645 = vpack.c.b16 %v3969, %v3956
  %v4646 = vpack.c.b16 %v3970, %v3957
  %v4647 = vpack.c.b16 %v3971, %v3958
  %v4648 = vpack.c.b16 %v3972, %v3959
  %v4649 = vpack.c.b16 %v3973, %v3960
  %v4650 = vpack.c.b16 %v3974, %v3961
  %v4651 = vpack.c.b16 %v3975, %v3962
  %v4652 = vpack.c.b16 %v3976, %v3963
  %v4653 = vpack.c.b16 %v3977, %v3964
  %v4654 = vpack.c.b16 %v3991, %v3978
  %v4655 = vpack.c.b16 %v3992, %v3979
  %v4656 = vpack.c.b16 %v3993, %v3980
  %v4657 = vpack.c.b16 %v3994, %v3981
  %v4658 = vpack.c.b16 %v3995, %v3982
  %v4659 = vpack.c.b16 %v3996, %v3983
  %v4660 = vpack.c.b16 %v3997, %v3984
  %v4661 = vpack.c.b16 %v3998, %v3985
  %v4662 = vpack.c.b16 %v3999, %v3986
  %v4663 = vpack.c.b16 %v4000, %v3987
  %v4664 = vpack.c.b16 %v4001, %v3988
  %v4665 = vpack.c.b16 %v4002, %v3989
  %v4666 = vpack.c.b16 %v4003, %v3990
  %v4667 = vpack.c.b16 %v4017, %v4004
  %v4668 = vpack.c.b16 %v4018, %v4005
  %v4669 = vpack.c.b16 %v4019, %v4006
  %v4670 = vpack.c.b16 %v4020, %v4007
  %v4671 = vpack.c.b16 %v4021, %v4008
  %v4672 = vpack.c.b16 %v4022, %v4009
  %v4673 = vpack.c.b16 %v4023, %v4010
  %v4674 = vpack.c.b16 %v4024, %v4011
  %v4675 = vpack.c.b16 %v4025, %v4012
  %v4676 = vpack.c.b16 %v4026, %v4013
  %v4677 = vpack.c.b16 %v4027, %v4014
  %v4678 = vpack.c.b16 %v4028, %v4015
  %v4679 = vpack.c.b16 %v4029, %v4016
  %v4680 = vpack.c.b16 %v4043, %v4030
  %v4681 = vpack.c.b16 %v4044, %v4031
  %v4682 = vpack.c.b16 %v4045, %v4032
  %v4683 = vpack.c.b16 %v4046, %v4033
  %v4684 = vpack.c.b16 %v4047, %v4034
  %v4685 = vpack.c.b16 %v4048, %v4035
  %v4686 = vpack.c.b16 %v4049, %v4036
  %v4687 = vpack.c.b16 %v4050, %v4037
  %v4688 = vpack.c.b16 %v4051, %v4038
  %v4689 = vpack.c.b16 %v4052, %v4039
  %v4690 = vpack.c.b16 %v4053, %v4040
  %v4691 = vpack.c.b16 %v4054, %v4041
  %v4692 = vpack.c.b16 %v4055, %v4042
  %vm5330 = vcmask 130048
  %v5332 = vsel %vm5330, %v1379, 0
  %5334 = vmatpush.bf16.msra.mxu0 %v4147
  %5335 = vmatpush.bf16.msra.mxu0 %v4134
  %5336 = vmatpush.bf16.msra.mxu0 %v4121
  %5337 = vmatpush.bf16.msra.mxu0 %v4108
  %5338 = vmatpush.bf16.msra.mxu0 %v4095
  %5339 = vmatpush.bf16.msra.mxu0 %v4082
  %5340 = vmatpush.bf16.msra.mxu0 %v4069
  %5341 = vmatpush.bf16.msra.mxu0 %v4056
  %5342 = vmatmul.bf16.gmra.mxu0 %v1373
  %v5343 = vpop.f32.mrf.mxu0
  %v5344 = vadd.f32 %v2070, %v5343
  %v5345 = vpop.f32.mrf.mxu0
  %5346 = vdwg.mxu0
  %5347 = vmatpush.bf16.msra.mxu0 %v4251
  %5348 = vmatpush.bf16.msra.mxu0 %v4238
  %5349 = vmatpush.bf16.msra.mxu0 %v4225
  %5350 = vmatpush.bf16.msra.mxu0 %v4212
  %5351 = vmatpush.bf16.msra.mxu0 %v4199
  %5352 = vmatpush.bf16.msra.mxu0 %v4186
  %5353 = vmatpush.bf16.msra.mxu0 %v4173
  %5354 = vmatpush.bf16.msra.mxu0 %v4160
  %5355 = vmatmul.bf16.gmra.mxu0 %v1374
  %v5356 = vpop.f32.mrf.mxu0
  %v5357 = vadd.f32 %v5344, %v5356
  %v5358 = vpop.f32.mrf.mxu0
  %5359 = vdwg.mxu0
  %5360 = vmatpush.bf16.msra.mxu0 %v4355
  %5361 = vmatpush.bf16.msra.mxu0 %v4342
  %5362 = vmatpush.bf16.msra.mxu0 %v4329
  %5363 = vmatpush.bf16.msra.mxu0 %v4316
  %5364 = vmatpush.bf16.msra.mxu0 %v4303
  %5365 = vmatpush.bf16.msra.mxu0 %v4290
  %5366 = vmatpush.bf16.msra.mxu0 %v4277
  %5367 = vmatpush.bf16.msra.mxu0 %v4264
  %5368 = vmatmul.bf16.gmra.mxu0 %v1375
  %v5369 = vpop.f32.mrf.mxu0
  %v5370 = vadd.f32 %v5357, %v5369
  %v5371 = vpop.f32.mrf.mxu0
  %5372 = vdwg.mxu0
  %5373 = vmatpush.bf16.msra.mxu0 %v4459
  %5374 = vmatpush.bf16.msra.mxu0 %v4446
  %5375 = vmatpush.bf16.msra.mxu0 %v4433
  %5376 = vmatpush.bf16.msra.mxu0 %v4420
  %5377 = vmatpush.bf16.msra.mxu0 %v4407
  %5378 = vmatpush.bf16.msra.mxu0 %v4394
  %5379 = vmatpush.bf16.msra.mxu0 %v4381
  %5380 = vmatpush.bf16.msra.mxu0 %v4368
  %5381 = vmatmul.bf16.gmra.mxu0 %v1376
  %v5382 = vpop.f32.mrf.mxu0
  %v5383 = vadd.f32 %v5370, %v5382
  %v5384 = vpop.f32.mrf.mxu0
  %5385 = vdwg.mxu0
  %5386 = vmatpush.bf16.msra.mxu0 %v4563
  %5387 = vmatpush.bf16.msra.mxu0 %v4550
  %5388 = vmatpush.bf16.msra.mxu0 %v4537
  %5389 = vmatpush.bf16.msra.mxu0 %v4524
  %5390 = vmatpush.bf16.msra.mxu0 %v4511
  %5391 = vmatpush.bf16.msra.mxu0 %v4498
  %5392 = vmatpush.bf16.msra.mxu0 %v4485
  %5393 = vmatpush.bf16.msra.mxu0 %v4472
  %5394 = vmatmul.bf16.gmra.mxu0 %v1377
  %v5395 = vpop.f32.mrf.mxu0
  %v5396 = vadd.f32 %v5383, %v5395
  %v5397 = vpop.f32.mrf.mxu0
  %5398 = vdwg.mxu0
  %5399 = vmatpush.bf16.msra.mxu0 %v4667
  %5400 = vmatpush.bf16.msra.mxu0 %v4654
  %5401 = vmatpush.bf16.msra.mxu0 %v4641
  %5402 = vmatpush.bf16.msra.mxu0 %v4628
  %5403 = vmatpush.bf16.msra.mxu0 %v4615
  %5404 = vmatpush.bf16.msra.mxu0 %v4602
  %5405 = vmatpush.bf16.msra.mxu0 %v4589
  %5406 = vmatpush.bf16.msra.mxu0 %v4576
  %5407 = vmatmul.bf16.gmra.mxu0 %v1378
  %v5408 = vpop.f32.mrf.mxu0
  %v5409 = vadd.f32 %v5396, %v5408
  %v5410 = vpop.f32.mrf.mxu0
  %5411 = vdwg.mxu0
  %5412 = vmatpush.bf16.msra.mxu0 0
  %5413 = vmatpush.bf16.msra.mxu0 0
  %5414 = vmatpush.bf16.msra.mxu0 0
  %5415 = vmatpush.bf16.msra.mxu0 0
  %5416 = vmatpush.bf16.msra.mxu0 0
  %5417 = vmatpush.bf16.msra.mxu0 0
  %5418 = vmatpush.bf16.msra.mxu0 0
  %5419 = vmatpush.bf16.msra.mxu0 %v4680
  %5420 = vmatmul.bf16.gmra.mxu0 %v5332
  %v5421 = vpop.f32.mrf.mxu0
  %v5422 = vadd.f32 %v5409, %v5421
  %v5423 = vpop.f32.mrf.mxu0
  %5424 = vdwg.mxu0
  %5425 = vmatpush.bf16.msra.mxu0 %v4148
  %5426 = vmatpush.bf16.msra.mxu0 %v4135
  %5427 = vmatpush.bf16.msra.mxu0 %v4122
  %5428 = vmatpush.bf16.msra.mxu0 %v4109
  %5429 = vmatpush.bf16.msra.mxu0 %v4096
  %5430 = vmatpush.bf16.msra.mxu0 %v4083
  %5431 = vmatpush.bf16.msra.mxu0 %v4070
  %5432 = vmatpush.bf16.msra.mxu0 %v4057
  %5433 = vmatmul.bf16.gmra.mxu0 %v1373
  %v5434 = vpop.f32.mrf.mxu0
  %v5435 = vadd.f32 %v2071, %v5434
  %v5436 = vpop.f32.mrf.mxu0
  %5437 = vdwg.mxu0
  %5438 = vmatpush.bf16.msra.mxu0 %v4252
  %5439 = vmatpush.bf16.msra.mxu0 %v4239
  %5440 = vmatpush.bf16.msra.mxu0 %v4226
  %5441 = vmatpush.bf16.msra.mxu0 %v4213
  %5442 = vmatpush.bf16.msra.mxu0 %v4200
  %5443 = vmatpush.bf16.msra.mxu0 %v4187
  %5444 = vmatpush.bf16.msra.mxu0 %v4174
  %5445 = vmatpush.bf16.msra.mxu0 %v4161
  %5446 = vmatmul.bf16.gmra.mxu0 %v1374
  %v5447 = vpop.f32.mrf.mxu0
  %v5448 = vadd.f32 %v5435, %v5447
  %v5449 = vpop.f32.mrf.mxu0
  %5450 = vdwg.mxu0
  %5451 = vmatpush.bf16.msra.mxu0 %v4356
  %5452 = vmatpush.bf16.msra.mxu0 %v4343
  %5453 = vmatpush.bf16.msra.mxu0 %v4330
  %5454 = vmatpush.bf16.msra.mxu0 %v4317
  %5455 = vmatpush.bf16.msra.mxu0 %v4304
  %5456 = vmatpush.bf16.msra.mxu0 %v4291
  %5457 = vmatpush.bf16.msra.mxu0 %v4278
  %5458 = vmatpush.bf16.msra.mxu0 %v4265
  %5459 = vmatmul.bf16.gmra.mxu0 %v1375
  %v5460 = vpop.f32.mrf.mxu0
  %v5461 = vadd.f32 %v5448, %v5460
  %v5462 = vpop.f32.mrf.mxu0
  %5463 = vdwg.mxu0
  %5464 = vmatpush.bf16.msra.mxu0 %v4460
  %5465 = vmatpush.bf16.msra.mxu0 %v4447
  %5466 = vmatpush.bf16.msra.mxu0 %v4434
  %5467 = vmatpush.bf16.msra.mxu0 %v4421
  %5468 = vmatpush.bf16.msra.mxu0 %v4408
  %5469 = vmatpush.bf16.msra.mxu0 %v4395
  %5470 = vmatpush.bf16.msra.mxu0 %v4382
  %5471 = vmatpush.bf16.msra.mxu0 %v4369
  %5472 = vmatmul.bf16.gmra.mxu0 %v1376
  %v5473 = vpop.f32.mrf.mxu0
  %v5474 = vadd.f32 %v5461, %v5473
  %v5475 = vpop.f32.mrf.mxu0
  %5476 = vdwg.mxu0
  %5477 = vmatpush.bf16.msra.mxu0 %v4564
  %5478 = vmatpush.bf16.msra.mxu0 %v4551
  %5479 = vmatpush.bf16.msra.mxu0 %v4538
  %5480 = vmatpush.bf16.msra.mxu0 %v4525
  %5481 = vmatpush.bf16.msra.mxu0 %v4512
  %5482 = vmatpush.bf16.msra.mxu0 %v4499
  %5483 = vmatpush.bf16.msra.mxu0 %v4486
  %5484 = vmatpush.bf16.msra.mxu0 %v4473
  %5485 = vmatmul.bf16.gmra.mxu0 %v1377
  %v5486 = vpop.f32.mrf.mxu0
  %v5487 = vadd.f32 %v5474, %v5486
  %v5488 = vpop.f32.mrf.mxu0
  %5489 = vdwg.mxu0
  %5490 = vmatpush.bf16.msra.mxu0 %v4668
  %5491 = vmatpush.bf16.msra.mxu0 %v4655
  %5492 = vmatpush.bf16.msra.mxu0 %v4642
  %5493 = vmatpush.bf16.msra.mxu0 %v4629
  %5494 = vmatpush.bf16.msra.mxu0 %v4616
  %5495 = vmatpush.bf16.msra.mxu0 %v4603
  %5496 = vmatpush.bf16.msra.mxu0 %v4590
  %5497 = vmatpush.bf16.msra.mxu0 %v4577
  %5498 = vmatmul.bf16.gmra.mxu0 %v1378
  %v5499 = vpop.f32.mrf.mxu0
  %v5500 = vadd.f32 %v5487, %v5499
  %v5501 = vpop.f32.mrf.mxu0
  %5502 = vdwg.mxu0
  %5503 = vmatpush.bf16.msra.mxu0 0
  %5504 = vmatpush.bf16.msra.mxu0 0
  %5505 = vmatpush.bf16.msra.mxu0 0
  %5506 = vmatpush.bf16.msra.mxu0 0
  %5507 = vmatpush.bf16.msra.mxu0 0
  %5508 = vmatpush.bf16.msra.mxu0 0
  %5509 = vmatpush.bf16.msra.mxu0 0
  %5510 = vmatpush.bf16.msra.mxu0 %v4681
  %5511 = vmatmul.bf16.gmra.mxu0 %v5332
  %v5512 = vpop.f32.mrf.mxu0
  %v5513 = vadd.f32 %v5500, %v5512
  %v5514 = vpop.f32.mrf.mxu0
  %5515 = vdwg.mxu0
  %5516 = vmatpush.bf16.msra.mxu0 %v4149
  %5517 = vmatpush.bf16.msra.mxu0 %v4136
  %5518 = vmatpush.bf16.msra.mxu0 %v4123
  %5519 = vmatpush.bf16.msra.mxu0 %v4110
  %5520 = vmatpush.bf16.msra.mxu0 %v4097
  %5521 = vmatpush.bf16.msra.mxu0 %v4084
  %5522 = vmatpush.bf16.msra.mxu0 %v4071
  %5523 = vmatpush.bf16.msra.mxu0 %v4058
  %5524 = vmatmul.bf16.gmra.mxu0 %v1373
  %v5525 = vpop.f32.mrf.mxu0
  %v5526 = vadd.f32 %v2072, %v5525
  %v5527 = vpop.f32.mrf.mxu0
  %5528 = vdwg.mxu0
  %5529 = vmatpush.bf16.msra.mxu0 %v4253
  %5530 = vmatpush.bf16.msra.mxu0 %v4240
  %5531 = vmatpush.bf16.msra.mxu0 %v4227
  %5532 = vmatpush.bf16.msra.mxu0 %v4214
  %5533 = vmatpush.bf16.msra.mxu0 %v4201
  %5534 = vmatpush.bf16.msra.mxu0 %v4188
  %5535 = vmatpush.bf16.msra.mxu0 %v4175
  %5536 = vmatpush.bf16.msra.mxu0 %v4162
  %5537 = vmatmul.bf16.gmra.mxu0 %v1374
  %v5538 = vpop.f32.mrf.mxu0
  %v5539 = vadd.f32 %v5526, %v5538
  %v5540 = vpop.f32.mrf.mxu0
  %5541 = vdwg.mxu0
  %5542 = vmatpush.bf16.msra.mxu0 %v4357
  %5543 = vmatpush.bf16.msra.mxu0 %v4344
  %5544 = vmatpush.bf16.msra.mxu0 %v4331
  %5545 = vmatpush.bf16.msra.mxu0 %v4318
  %5546 = vmatpush.bf16.msra.mxu0 %v4305
  %5547 = vmatpush.bf16.msra.mxu0 %v4292
  %5548 = vmatpush.bf16.msra.mxu0 %v4279
  %5549 = vmatpush.bf16.msra.mxu0 %v4266
  %5550 = vmatmul.bf16.gmra.mxu0 %v1375
  %v5551 = vpop.f32.mrf.mxu0
  %v5552 = vadd.f32 %v5539, %v5551
  %v5553 = vpop.f32.mrf.mxu0
  %5554 = vdwg.mxu0
  %5555 = vmatpush.bf16.msra.mxu0 %v4461
  %5556 = vmatpush.bf16.msra.mxu0 %v4448
  %5557 = vmatpush.bf16.msra.mxu0 %v4435
  %5558 = vmatpush.bf16.msra.mxu0 %v4422
  %5559 = vmatpush.bf16.msra.mxu0 %v4409
  %5560 = vmatpush.bf16.msra.mxu0 %v4396
  %5561 = vmatpush.bf16.msra.mxu0 %v4383
  %5562 = vmatpush.bf16.msra.mxu0 %v4370
  %5563 = vmatmul.bf16.gmra.mxu0 %v1376
  %v5564 = vpop.f32.mrf.mxu0
  %v5565 = vadd.f32 %v5552, %v5564
  %v5566 = vpop.f32.mrf.mxu0
  %5567 = vdwg.mxu0
  %5568 = vmatpush.bf16.msra.mxu0 %v4565
  %5569 = vmatpush.bf16.msra.mxu0 %v4552
  %5570 = vmatpush.bf16.msra.mxu0 %v4539
  %5571 = vmatpush.bf16.msra.mxu0 %v4526
  %5572 = vmatpush.bf16.msra.mxu0 %v4513
  %5573 = vmatpush.bf16.msra.mxu0 %v4500
  %5574 = vmatpush.bf16.msra.mxu0 %v4487
  %5575 = vmatpush.bf16.msra.mxu0 %v4474
  %5576 = vmatmul.bf16.gmra.mxu0 %v1377
  %v5577 = vpop.f32.mrf.mxu0
  %v5578 = vadd.f32 %v5565, %v5577
  %v5579 = vpop.f32.mrf.mxu0
  %5580 = vdwg.mxu0
  %5581 = vmatpush.bf16.msra.mxu0 %v4669
  %5582 = vmatpush.bf16.msra.mxu0 %v4656
  %5583 = vmatpush.bf16.msra.mxu0 %v4643
  %5584 = vmatpush.bf16.msra.mxu0 %v4630
  %5585 = vmatpush.bf16.msra.mxu0 %v4617
  %5586 = vmatpush.bf16.msra.mxu0 %v4604
  %5587 = vmatpush.bf16.msra.mxu0 %v4591
  %5588 = vmatpush.bf16.msra.mxu0 %v4578
  %5589 = vmatmul.bf16.gmra.mxu0 %v1378
  %v5590 = vpop.f32.mrf.mxu0
  %v5591 = vadd.f32 %v5578, %v5590
  %v5592 = vpop.f32.mrf.mxu0
  %5593 = vdwg.mxu0
  %5594 = vmatpush.bf16.msra.mxu0 0
  %5595 = vmatpush.bf16.msra.mxu0 0
  %5596 = vmatpush.bf16.msra.mxu0 0
  %5597 = vmatpush.bf16.msra.mxu0 0
  %5598 = vmatpush.bf16.msra.mxu0 0
  %5599 = vmatpush.bf16.msra.mxu0 0
  %5600 = vmatpush.bf16.msra.mxu0 0
  %5601 = vmatpush.bf16.msra.mxu0 %v4682
  %5602 = vmatmul.bf16.gmra.mxu0 %v5332
  %v5603 = vpop.f32.mrf.mxu0
  %v5604 = vadd.f32 %v5591, %v5603
  %v5605 = vpop.f32.mrf.mxu0
  %5606 = vdwg.mxu0
  %5607 = vmatpush.bf16.msra.mxu0 %v4150
  %5608 = vmatpush.bf16.msra.mxu0 %v4137
  %5609 = vmatpush.bf16.msra.mxu0 %v4124
  %5610 = vmatpush.bf16.msra.mxu0 %v4111
  %5611 = vmatpush.bf16.msra.mxu0 %v4098
  %5612 = vmatpush.bf16.msra.mxu0 %v4085
  %5613 = vmatpush.bf16.msra.mxu0 %v4072
  %5614 = vmatpush.bf16.msra.mxu0 %v4059
  %5615 = vmatmul.bf16.gmra.mxu0 %v1373
  %v5616 = vpop.f32.mrf.mxu0
  %v5617 = vadd.f32 %v2073, %v5616
  %v5618 = vpop.f32.mrf.mxu0
  %5619 = vdwg.mxu0
  %5620 = vmatpush.bf16.msra.mxu0 %v4254
  %5621 = vmatpush.bf16.msra.mxu0 %v4241
  %5622 = vmatpush.bf16.msra.mxu0 %v4228
  %5623 = vmatpush.bf16.msra.mxu0 %v4215
  %5624 = vmatpush.bf16.msra.mxu0 %v4202
  %5625 = vmatpush.bf16.msra.mxu0 %v4189
  %5626 = vmatpush.bf16.msra.mxu0 %v4176
  %5627 = vmatpush.bf16.msra.mxu0 %v4163
  %5628 = vmatmul.bf16.gmra.mxu0 %v1374
  %v5629 = vpop.f32.mrf.mxu0
  %v5630 = vadd.f32 %v5617, %v5629
  %v5631 = vpop.f32.mrf.mxu0
  %5632 = vdwg.mxu0
  %5633 = vmatpush.bf16.msra.mxu0 %v4358
  %5634 = vmatpush.bf16.msra.mxu0 %v4345
  %5635 = vmatpush.bf16.msra.mxu0 %v4332
  %5636 = vmatpush.bf16.msra.mxu0 %v4319
  %5637 = vmatpush.bf16.msra.mxu0 %v4306
  %5638 = vmatpush.bf16.msra.mxu0 %v4293
  %5639 = vmatpush.bf16.msra.mxu0 %v4280
  %5640 = vmatpush.bf16.msra.mxu0 %v4267
  %5641 = vmatmul.bf16.gmra.mxu0 %v1375
  %v5642 = vpop.f32.mrf.mxu0
  %v5643 = vadd.f32 %v5630, %v5642
  %v5644 = vpop.f32.mrf.mxu0
  %5645 = vdwg.mxu0
  %5646 = vmatpush.bf16.msra.mxu0 %v4462
  %5647 = vmatpush.bf16.msra.mxu0 %v4449
  %5648 = vmatpush.bf16.msra.mxu0 %v4436
  %5649 = vmatpush.bf16.msra.mxu0 %v4423
  %5650 = vmatpush.bf16.msra.mxu0 %v4410
  %5651 = vmatpush.bf16.msra.mxu0 %v4397
  %5652 = vmatpush.bf16.msra.mxu0 %v4384
  %5653 = vmatpush.bf16.msra.mxu0 %v4371
  %5654 = vmatmul.bf16.gmra.mxu0 %v1376
  %v5655 = vpop.f32.mrf.mxu0
  %v5656 = vadd.f32 %v5643, %v5655
  %v5657 = vpop.f32.mrf.mxu0
  %5658 = vdwg.mxu0
  %5659 = vmatpush.bf16.msra.mxu0 %v4566
  %5660 = vmatpush.bf16.msra.mxu0 %v4553
  %5661 = vmatpush.bf16.msra.mxu0 %v4540
  %5662 = vmatpush.bf16.msra.mxu0 %v4527
  %5663 = vmatpush.bf16.msra.mxu0 %v4514
  %5664 = vmatpush.bf16.msra.mxu0 %v4501
  %5665 = vmatpush.bf16.msra.mxu0 %v4488
  %5666 = vmatpush.bf16.msra.mxu0 %v4475
  %5667 = vmatmul.bf16.gmra.mxu0 %v1377
  %v5668 = vpop.f32.mrf.mxu0
  %v5669 = vadd.f32 %v5656, %v5668
  %v5670 = vpop.f32.mrf.mxu0
  %5671 = vdwg.mxu0
  %5672 = vmatpush.bf16.msra.mxu0 %v4670
  %5673 = vmatpush.bf16.msra.mxu0 %v4657
  %5674 = vmatpush.bf16.msra.mxu0 %v4644
  %5675 = vmatpush.bf16.msra.mxu0 %v4631
  %5676 = vmatpush.bf16.msra.mxu0 %v4618
  %5677 = vmatpush.bf16.msra.mxu0 %v4605
  %5678 = vmatpush.bf16.msra.mxu0 %v4592
  %5679 = vmatpush.bf16.msra.mxu0 %v4579
  %5680 = vmatmul.bf16.gmra.mxu0 %v1378
  %v5681 = vpop.f32.mrf.mxu0
  %v5682 = vadd.f32 %v5669, %v5681
  %v5683 = vpop.f32.mrf.mxu0
  %5684 = vdwg.mxu0
  %5685 = vmatpush.bf16.msra.mxu0 0
  %5686 = vmatpush.bf16.msra.mxu0 0
  %5687 = vmatpush.bf16.msra.mxu0 0
  %5688 = vmatpush.bf16.msra.mxu0 0
  %5689 = vmatpush.bf16.msra.mxu0 0
  %5690 = vmatpush.bf16.msra.mxu0 0
  %5691 = vmatpush.bf16.msra.mxu0 0
  %5692 = vmatpush.bf16.msra.mxu0 %v4683
  %5693 = vmatmul.bf16.gmra.mxu0 %v5332
  %v5694 = vpop.f32.mrf.mxu0
  %v5695 = vadd.f32 %v5682, %v5694
  %v5696 = vpop.f32.mrf.mxu0
  %5697 = vdwg.mxu0
  %5698 = vmatpush.bf16.msra.mxu0 %v4151
  %5699 = vmatpush.bf16.msra.mxu0 %v4138
  %5700 = vmatpush.bf16.msra.mxu0 %v4125
  %5701 = vmatpush.bf16.msra.mxu0 %v4112
  %5702 = vmatpush.bf16.msra.mxu0 %v4099
  %5703 = vmatpush.bf16.msra.mxu0 %v4086
  %5704 = vmatpush.bf16.msra.mxu0 %v4073
  %5705 = vmatpush.bf16.msra.mxu0 %v4060
  %5706 = vmatmul.bf16.gmra.mxu0 %v1373
  %v5707 = vpop.f32.mrf.mxu0
  %v5708 = vadd.f32 %v2074, %v5707
  %v5709 = vpop.f32.mrf.mxu0
  %5710 = vdwg.mxu0
  %5711 = vmatpush.bf16.msra.mxu0 %v4255
  %5712 = vmatpush.bf16.msra.mxu0 %v4242
  %5713 = vmatpush.bf16.msra.mxu0 %v4229
  %5714 = vmatpush.bf16.msra.mxu0 %v4216
  %5715 = vmatpush.bf16.msra.mxu0 %v4203
  %5716 = vmatpush.bf16.msra.mxu0 %v4190
  %5717 = vmatpush.bf16.msra.mxu0 %v4177
  %5718 = vmatpush.bf16.msra.mxu0 %v4164
  %5719 = vmatmul.bf16.gmra.mxu0 %v1374
  %v5720 = vpop.f32.mrf.mxu0
  %v5721 = vadd.f32 %v5708, %v5720
  %v5722 = vpop.f32.mrf.mxu0
  %5723 = vdwg.mxu0
  %5724 = vmatpush.bf16.msra.mxu0 %v4359
  %5725 = vmatpush.bf16.msra.mxu0 %v4346
  %5726 = vmatpush.bf16.msra.mxu0 %v4333
  %5727 = vmatpush.bf16.msra.mxu0 %v4320
  %5728 = vmatpush.bf16.msra.mxu0 %v4307
  %5729 = vmatpush.bf16.msra.mxu0 %v4294
  %5730 = vmatpush.bf16.msra.mxu0 %v4281
  %5731 = vmatpush.bf16.msra.mxu0 %v4268
  %5732 = vmatmul.bf16.gmra.mxu0 %v1375
  %v5733 = vpop.f32.mrf.mxu0
  %v5734 = vadd.f32 %v5721, %v5733
  %v5735 = vpop.f32.mrf.mxu0
  %5736 = vdwg.mxu0
  %5737 = vmatpush.bf16.msra.mxu0 %v4463
  %5738 = vmatpush.bf16.msra.mxu0 %v4450
  %5739 = vmatpush.bf16.msra.mxu0 %v4437
  %5740 = vmatpush.bf16.msra.mxu0 %v4424
  %5741 = vmatpush.bf16.msra.mxu0 %v4411
  %5742 = vmatpush.bf16.msra.mxu0 %v4398
  %5743 = vmatpush.bf16.msra.mxu0 %v4385
  %5744 = vmatpush.bf16.msra.mxu0 %v4372
  %5745 = vmatmul.bf16.gmra.mxu0 %v1376
  %v5746 = vpop.f32.mrf.mxu0
  %v5747 = vadd.f32 %v5734, %v5746
  %v5748 = vpop.f32.mrf.mxu0
  %5749 = vdwg.mxu0
  %5750 = vmatpush.bf16.msra.mxu0 %v4567
  %5751 = vmatpush.bf16.msra.mxu0 %v4554
  %5752 = vmatpush.bf16.msra.mxu0 %v4541
  %5753 = vmatpush.bf16.msra.mxu0 %v4528
  %5754 = vmatpush.bf16.msra.mxu0 %v4515
  %5755 = vmatpush.bf16.msra.mxu0 %v4502
  %5756 = vmatpush.bf16.msra.mxu0 %v4489
  %5757 = vmatpush.bf16.msra.mxu0 %v4476
  %5758 = vmatmul.bf16.gmra.mxu0 %v1377
  %v5759 = vpop.f32.mrf.mxu0
  %v5760 = vadd.f32 %v5747, %v5759
  %v5761 = vpop.f32.mrf.mxu0
  %5762 = vdwg.mxu0
  %5763 = vmatpush.bf16.msra.mxu0 %v4671
  %5764 = vmatpush.bf16.msra.mxu0 %v4658
  %5765 = vmatpush.bf16.msra.mxu0 %v4645
  %5766 = vmatpush.bf16.msra.mxu0 %v4632
  %5767 = vmatpush.bf16.msra.mxu0 %v4619
  %5768 = vmatpush.bf16.msra.mxu0 %v4606
  %5769 = vmatpush.bf16.msra.mxu0 %v4593
  %5770 = vmatpush.bf16.msra.mxu0 %v4580
  %5771 = vmatmul.bf16.gmra.mxu0 %v1378
  %v5772 = vpop.f32.mrf.mxu0
  %v5773 = vadd.f32 %v5760, %v5772
  %v5774 = vpop.f32.mrf.mxu0
  %5775 = vdwg.mxu0
  %5776 = vmatpush.bf16.msra.mxu0 0
  %5777 = vmatpush.bf16.msra.mxu0 0
  %5778 = vmatpush.bf16.msra.mxu0 0
  %5779 = vmatpush.bf16.msra.mxu0 0
  %5780 = vmatpush.bf16.msra.mxu0 0
  %5781 = vmatpush.bf16.msra.mxu0 0
  %5782 = vmatpush.bf16.msra.mxu0 0
  %5783 = vmatpush.bf16.msra.mxu0 %v4684
  %5784 = vmatmul.bf16.gmra.mxu0 %v5332
  %v5785 = vpop.f32.mrf.mxu0
  %v5786 = vadd.f32 %v5773, %v5785
  %v5787 = vpop.f32.mrf.mxu0
  %5788 = vdwg.mxu0
  %5789 = vmatpush.bf16.msra.mxu0 %v4152
  %5790 = vmatpush.bf16.msra.mxu0 %v4139
  %5791 = vmatpush.bf16.msra.mxu0 %v4126
  %5792 = vmatpush.bf16.msra.mxu0 %v4113
  %5793 = vmatpush.bf16.msra.mxu0 %v4100
  %5794 = vmatpush.bf16.msra.mxu0 %v4087
  %5795 = vmatpush.bf16.msra.mxu0 %v4074
  %5796 = vmatpush.bf16.msra.mxu0 %v4061
  %5797 = vmatmul.bf16.gmra.mxu0 %v1373
  %v5798 = vpop.f32.mrf.mxu0
  %v5799 = vadd.f32 %v2075, %v5798
  %v5800 = vpop.f32.mrf.mxu0
  %5801 = vdwg.mxu0
  %5802 = vmatpush.bf16.msra.mxu0 %v4256
  %5803 = vmatpush.bf16.msra.mxu0 %v4243
  %5804 = vmatpush.bf16.msra.mxu0 %v4230
  %5805 = vmatpush.bf16.msra.mxu0 %v4217
  %5806 = vmatpush.bf16.msra.mxu0 %v4204
  %5807 = vmatpush.bf16.msra.mxu0 %v4191
  %5808 = vmatpush.bf16.msra.mxu0 %v4178
  %5809 = vmatpush.bf16.msra.mxu0 %v4165
  %5810 = vmatmul.bf16.gmra.mxu0 %v1374
  %v5811 = vpop.f32.mrf.mxu0
  %v5812 = vadd.f32 %v5799, %v5811
  %v5813 = vpop.f32.mrf.mxu0
  %5814 = vdwg.mxu0
  %5815 = vmatpush.bf16.msra.mxu0 %v4360
  %5816 = vmatpush.bf16.msra.mxu0 %v4347
  %5817 = vmatpush.bf16.msra.mxu0 %v4334
  %5818 = vmatpush.bf16.msra.mxu0 %v4321
  %5819 = vmatpush.bf16.msra.mxu0 %v4308
  %5820 = vmatpush.bf16.msra.mxu0 %v4295
  %5821 = vmatpush.bf16.msra.mxu0 %v4282
  %5822 = vmatpush.bf16.msra.mxu0 %v4269
  %5823 = vmatmul.bf16.gmra.mxu0 %v1375
  %v5824 = vpop.f32.mrf.mxu0
  %v5825 = vadd.f32 %v5812, %v5824
  %v5826 = vpop.f32.mrf.mxu0
  %5827 = vdwg.mxu0
  %5828 = vmatpush.bf16.msra.mxu0 %v4464
  %5829 = vmatpush.bf16.msra.mxu0 %v4451
  %5830 = vmatpush.bf16.msra.mxu0 %v4438
  %5831 = vmatpush.bf16.msra.mxu0 %v4425
  %5832 = vmatpush.bf16.msra.mxu0 %v4412
  %5833 = vmatpush.bf16.msra.mxu0 %v4399
  %5834 = vmatpush.bf16.msra.mxu0 %v4386
  %5835 = vmatpush.bf16.msra.mxu0 %v4373
  %5836 = vmatmul.bf16.gmra.mxu0 %v1376
  %v5837 = vpop.f32.mrf.mxu0
  %v5838 = vadd.f32 %v5825, %v5837
  %v5839 = vpop.f32.mrf.mxu0
  %5840 = vdwg.mxu0
  %5841 = vmatpush.bf16.msra.mxu0 %v4568
  %5842 = vmatpush.bf16.msra.mxu0 %v4555
  %5843 = vmatpush.bf16.msra.mxu0 %v4542
  %5844 = vmatpush.bf16.msra.mxu0 %v4529
  %5845 = vmatpush.bf16.msra.mxu0 %v4516
  %5846 = vmatpush.bf16.msra.mxu0 %v4503
  %5847 = vmatpush.bf16.msra.mxu0 %v4490
  %5848 = vmatpush.bf16.msra.mxu0 %v4477
  %5849 = vmatmul.bf16.gmra.mxu0 %v1377
  %v5850 = vpop.f32.mrf.mxu0
  %v5851 = vadd.f32 %v5838, %v5850
  %v5852 = vpop.f32.mrf.mxu0
  %5853 = vdwg.mxu0
  %5854 = vmatpush.bf16.msra.mxu0 %v4672
  %5855 = vmatpush.bf16.msra.mxu0 %v4659
  %5856 = vmatpush.bf16.msra.mxu0 %v4646
  %5857 = vmatpush.bf16.msra.mxu0 %v4633
  %5858 = vmatpush.bf16.msra.mxu0 %v4620
  %5859 = vmatpush.bf16.msra.mxu0 %v4607
  %5860 = vmatpush.bf16.msra.mxu0 %v4594
  %5861 = vmatpush.bf16.msra.mxu0 %v4581
  %5862 = vmatmul.bf16.gmra.mxu0 %v1378
  %v5863 = vpop.f32.mrf.mxu0
  %v5864 = vadd.f32 %v5851, %v5863
  %v5865 = vpop.f32.mrf.mxu0
  %5866 = vdwg.mxu0
  %5867 = vmatpush.bf16.msra.mxu0 0
  %5868 = vmatpush.bf16.msra.mxu0 0
  %5869 = vmatpush.bf16.msra.mxu0 0
  %5870 = vmatpush.bf16.msra.mxu0 0
  %5871 = vmatpush.bf16.msra.mxu0 0
  %5872 = vmatpush.bf16.msra.mxu0 0
  %5873 = vmatpush.bf16.msra.mxu0 0
  %5874 = vmatpush.bf16.msra.mxu0 %v4685
  %5875 = vmatmul.bf16.gmra.mxu0 %v5332
  %v5876 = vpop.f32.mrf.mxu0
  %v5877 = vadd.f32 %v5864, %v5876
  %v5878 = vpop.f32.mrf.mxu0
  %5879 = vdwg.mxu0
  %5880 = vmatpush.bf16.msra.mxu0 %v4153
  %5881 = vmatpush.bf16.msra.mxu0 %v4140
  %5882 = vmatpush.bf16.msra.mxu0 %v4127
  %5883 = vmatpush.bf16.msra.mxu0 %v4114
  %5884 = vmatpush.bf16.msra.mxu0 %v4101
  %5885 = vmatpush.bf16.msra.mxu0 %v4088
  %5886 = vmatpush.bf16.msra.mxu0 %v4075
  %5887 = vmatpush.bf16.msra.mxu0 %v4062
  %5888 = vmatmul.bf16.gmra.mxu0 %v1373
  %v5889 = vpop.f32.mrf.mxu0
  %v5890 = vadd.f32 %v2076, %v5889
  %v5891 = vpop.f32.mrf.mxu0
  %5892 = vdwg.mxu0
  %5893 = vmatpush.bf16.msra.mxu0 %v4257
  %5894 = vmatpush.bf16.msra.mxu0 %v4244
  %5895 = vmatpush.bf16.msra.mxu0 %v4231
  %5896 = vmatpush.bf16.msra.mxu0 %v4218
  %5897 = vmatpush.bf16.msra.mxu0 %v4205
  %5898 = vmatpush.bf16.msra.mxu0 %v4192
  %5899 = vmatpush.bf16.msra.mxu0 %v4179
  %5900 = vmatpush.bf16.msra.mxu0 %v4166
  %5901 = vmatmul.bf16.gmra.mxu0 %v1374
  %v5902 = vpop.f32.mrf.mxu0
  %v5903 = vadd.f32 %v5890, %v5902
  %v5904 = vpop.f32.mrf.mxu0
  %5905 = vdwg.mxu0
  %5906 = vmatpush.bf16.msra.mxu0 %v4361
  %5907 = vmatpush.bf16.msra.mxu0 %v4348
  %5908 = vmatpush.bf16.msra.mxu0 %v4335
  %5909 = vmatpush.bf16.msra.mxu0 %v4322
  %5910 = vmatpush.bf16.msra.mxu0 %v4309
  %5911 = vmatpush.bf16.msra.mxu0 %v4296
  %5912 = vmatpush.bf16.msra.mxu0 %v4283
  %5913 = vmatpush.bf16.msra.mxu0 %v4270
  %5914 = vmatmul.bf16.gmra.mxu0 %v1375
  %v5915 = vpop.f32.mrf.mxu0
  %v5916 = vadd.f32 %v5903, %v5915
  %v5917 = vpop.f32.mrf.mxu0
  %5918 = vdwg.mxu0
  %5919 = vmatpush.bf16.msra.mxu0 %v4465
  %5920 = vmatpush.bf16.msra.mxu0 %v4452
  %5921 = vmatpush.bf16.msra.mxu0 %v4439
  %5922 = vmatpush.bf16.msra.mxu0 %v4426
  %5923 = vmatpush.bf16.msra.mxu0 %v4413
  %5924 = vmatpush.bf16.msra.mxu0 %v4400
  %5925 = vmatpush.bf16.msra.mxu0 %v4387
  %5926 = vmatpush.bf16.msra.mxu0 %v4374
  %5927 = vmatmul.bf16.gmra.mxu0 %v1376
  %v5928 = vpop.f32.mrf.mxu0
  %v5929 = vadd.f32 %v5916, %v5928
  %v5930 = vpop.f32.mrf.mxu0
  %5931 = vdwg.mxu0
  %5932 = vmatpush.bf16.msra.mxu0 %v4569
  %5933 = vmatpush.bf16.msra.mxu0 %v4556
  %5934 = vmatpush.bf16.msra.mxu0 %v4543
  %5935 = vmatpush.bf16.msra.mxu0 %v4530
  %5936 = vmatpush.bf16.msra.mxu0 %v4517
  %5937 = vmatpush.bf16.msra.mxu0 %v4504
  %5938 = vmatpush.bf16.msra.mxu0 %v4491
  %5939 = vmatpush.bf16.msra.mxu0 %v4478
  %5940 = vmatmul.bf16.gmra.mxu0 %v1377
  %v5941 = vpop.f32.mrf.mxu0
  %v5942 = vadd.f32 %v5929, %v5941
  %v5943 = vpop.f32.mrf.mxu0
  %5944 = vdwg.mxu0
  %5945 = vmatpush.bf16.msra.mxu0 %v4673
  %5946 = vmatpush.bf16.msra.mxu0 %v4660
  %5947 = vmatpush.bf16.msra.mxu0 %v4647
  %5948 = vmatpush.bf16.msra.mxu0 %v4634
  %5949 = vmatpush.bf16.msra.mxu0 %v4621
  %5950 = vmatpush.bf16.msra.mxu0 %v4608
  %5951 = vmatpush.bf16.msra.mxu0 %v4595
  %5952 = vmatpush.bf16.msra.mxu0 %v4582
  %5953 = vmatmul.bf16.gmra.mxu0 %v1378
  %v5954 = vpop.f32.mrf.mxu0
  %v5955 = vadd.f32 %v5942, %v5954
  %v5956 = vpop.f32.mrf.mxu0
  %5957 = vdwg.mxu0
  %5958 = vmatpush.bf16.msra.mxu0 0
  %5959 = vmatpush.bf16.msra.mxu0 0
  %5960 = vmatpush.bf16.msra.mxu0 0
  %5961 = vmatpush.bf16.msra.mxu0 0
  %5962 = vmatpush.bf16.msra.mxu0 0
  %5963 = vmatpush.bf16.msra.mxu0 0
  %5964 = vmatpush.bf16.msra.mxu0 0
  %5965 = vmatpush.bf16.msra.mxu0 %v4686
  %5966 = vmatmul.bf16.gmra.mxu0 %v5332
  %v5967 = vpop.f32.mrf.mxu0
  %v5968 = vadd.f32 %v5955, %v5967
  %v5969 = vpop.f32.mrf.mxu0
  %5970 = vdwg.mxu0
  %5971 = vmatpush.bf16.msra.mxu0 %v4154
  %5972 = vmatpush.bf16.msra.mxu0 %v4141
  %5973 = vmatpush.bf16.msra.mxu0 %v4128
  %5974 = vmatpush.bf16.msra.mxu0 %v4115
  %5975 = vmatpush.bf16.msra.mxu0 %v4102
  %5976 = vmatpush.bf16.msra.mxu0 %v4089
  %5977 = vmatpush.bf16.msra.mxu0 %v4076
  %5978 = vmatpush.bf16.msra.mxu0 %v4063
  %5979 = vmatmul.bf16.gmra.mxu0 %v1373
  %v5980 = vpop.f32.mrf.mxu0
  %v5981 = vadd.f32 %v2077, %v5980
  %v5982 = vpop.f32.mrf.mxu0
  %5983 = vdwg.mxu0
  %5984 = vmatpush.bf16.msra.mxu0 %v4258
  %5985 = vmatpush.bf16.msra.mxu0 %v4245
  %5986 = vmatpush.bf16.msra.mxu0 %v4232
  %5987 = vmatpush.bf16.msra.mxu0 %v4219
  %5988 = vmatpush.bf16.msra.mxu0 %v4206
  %5989 = vmatpush.bf16.msra.mxu0 %v4193
  %5990 = vmatpush.bf16.msra.mxu0 %v4180
  %5991 = vmatpush.bf16.msra.mxu0 %v4167
  %5992 = vmatmul.bf16.gmra.mxu0 %v1374
  %v5993 = vpop.f32.mrf.mxu0
  %v5994 = vadd.f32 %v5981, %v5993
  %v5995 = vpop.f32.mrf.mxu0
  %5996 = vdwg.mxu0
  %5997 = vmatpush.bf16.msra.mxu0 %v4362
  %5998 = vmatpush.bf16.msra.mxu0 %v4349
  %5999 = vmatpush.bf16.msra.mxu0 %v4336
  %6000 = vmatpush.bf16.msra.mxu0 %v4323
  %6001 = vmatpush.bf16.msra.mxu0 %v4310
  %6002 = vmatpush.bf16.msra.mxu0 %v4297
  %6003 = vmatpush.bf16.msra.mxu0 %v4284
  %6004 = vmatpush.bf16.msra.mxu0 %v4271
  %6005 = vmatmul.bf16.gmra.mxu0 %v1375
  %v6006 = vpop.f32.mrf.mxu0
  %v6007 = vadd.f32 %v5994, %v6006
  %v6008 = vpop.f32.mrf.mxu0
  %6009 = vdwg.mxu0
  %6010 = vmatpush.bf16.msra.mxu0 %v4466
  %6011 = vmatpush.bf16.msra.mxu0 %v4453
  %6012 = vmatpush.bf16.msra.mxu0 %v4440
  %6013 = vmatpush.bf16.msra.mxu0 %v4427
  %6014 = vmatpush.bf16.msra.mxu0 %v4414
  %6015 = vmatpush.bf16.msra.mxu0 %v4401
  %6016 = vmatpush.bf16.msra.mxu0 %v4388
  %6017 = vmatpush.bf16.msra.mxu0 %v4375
  %6018 = vmatmul.bf16.gmra.mxu0 %v1376
  %v6019 = vpop.f32.mrf.mxu0
  %v6020 = vadd.f32 %v6007, %v6019
  %v6021 = vpop.f32.mrf.mxu0
  %6022 = vdwg.mxu0
  %6023 = vmatpush.bf16.msra.mxu0 %v4570
  %6024 = vmatpush.bf16.msra.mxu0 %v4557
  %6025 = vmatpush.bf16.msra.mxu0 %v4544
  %6026 = vmatpush.bf16.msra.mxu0 %v4531
  %6027 = vmatpush.bf16.msra.mxu0 %v4518
  %6028 = vmatpush.bf16.msra.mxu0 %v4505
  %6029 = vmatpush.bf16.msra.mxu0 %v4492
  %6030 = vmatpush.bf16.msra.mxu0 %v4479
  %6031 = vmatmul.bf16.gmra.mxu0 %v1377
  %v6032 = vpop.f32.mrf.mxu0
  %v6033 = vadd.f32 %v6020, %v6032
  %v6034 = vpop.f32.mrf.mxu0
  %6035 = vdwg.mxu0
  %6036 = vmatpush.bf16.msra.mxu0 %v4674
  %6037 = vmatpush.bf16.msra.mxu0 %v4661
  %6038 = vmatpush.bf16.msra.mxu0 %v4648
  %6039 = vmatpush.bf16.msra.mxu0 %v4635
  %6040 = vmatpush.bf16.msra.mxu0 %v4622
  %6041 = vmatpush.bf16.msra.mxu0 %v4609
  %6042 = vmatpush.bf16.msra.mxu0 %v4596
  %6043 = vmatpush.bf16.msra.mxu0 %v4583
  %6044 = vmatmul.bf16.gmra.mxu0 %v1378
  %v6045 = vpop.f32.mrf.mxu0
  %v6046 = vadd.f32 %v6033, %v6045
  %v6047 = vpop.f32.mrf.mxu0
  %6048 = vdwg.mxu0
  %6049 = vmatpush.bf16.msra.mxu0 0
  %6050 = vmatpush.bf16.msra.mxu0 0
  %6051 = vmatpush.bf16.msra.mxu0 0
  %6052 = vmatpush.bf16.msra.mxu0 0
  %6053 = vmatpush.bf16.msra.mxu0 0
  %6054 = vmatpush.bf16.msra.mxu0 0
  %6055 = vmatpush.bf16.msra.mxu0 0
  %6056 = vmatpush.bf16.msra.mxu0 %v4687
  %6057 = vmatmul.bf16.gmra.mxu0 %v5332
  %v6058 = vpop.f32.mrf.mxu0
  %v6059 = vadd.f32 %v6046, %v6058
  %v6060 = vpop.f32.mrf.mxu0
  %6061 = vdwg.mxu0
  %6062 = vmatpush.bf16.msra.mxu0 %v4155
  %6063 = vmatpush.bf16.msra.mxu0 %v4142
  %6064 = vmatpush.bf16.msra.mxu0 %v4129
  %6065 = vmatpush.bf16.msra.mxu0 %v4116
  %6066 = vmatpush.bf16.msra.mxu0 %v4103
  %6067 = vmatpush.bf16.msra.mxu0 %v4090
  %6068 = vmatpush.bf16.msra.mxu0 %v4077
  %6069 = vmatpush.bf16.msra.mxu0 %v4064
  %6070 = vmatmul.bf16.gmra.mxu0 %v1373
  %v6071 = vpop.f32.mrf.mxu0
  %v6072 = vadd.f32 %v2078, %v6071
  %v6073 = vpop.f32.mrf.mxu0
  %6074 = vdwg.mxu0
  %6075 = vmatpush.bf16.msra.mxu0 %v4259
  %6076 = vmatpush.bf16.msra.mxu0 %v4246
  %6077 = vmatpush.bf16.msra.mxu0 %v4233
  %6078 = vmatpush.bf16.msra.mxu0 %v4220
  %6079 = vmatpush.bf16.msra.mxu0 %v4207
  %6080 = vmatpush.bf16.msra.mxu0 %v4194
  %6081 = vmatpush.bf16.msra.mxu0 %v4181
  %6082 = vmatpush.bf16.msra.mxu0 %v4168
  %6083 = vmatmul.bf16.gmra.mxu0 %v1374
  %v6084 = vpop.f32.mrf.mxu0
  %v6085 = vadd.f32 %v6072, %v6084
  %v6086 = vpop.f32.mrf.mxu0
  %6087 = vdwg.mxu0
  %6088 = vmatpush.bf16.msra.mxu0 %v4363
  %6089 = vmatpush.bf16.msra.mxu0 %v4350
  %6090 = vmatpush.bf16.msra.mxu0 %v4337
  %6091 = vmatpush.bf16.msra.mxu0 %v4324
  %6092 = vmatpush.bf16.msra.mxu0 %v4311
  %6093 = vmatpush.bf16.msra.mxu0 %v4298
  %6094 = vmatpush.bf16.msra.mxu0 %v4285
  %6095 = vmatpush.bf16.msra.mxu0 %v4272
  %6096 = vmatmul.bf16.gmra.mxu0 %v1375
  %v6097 = vpop.f32.mrf.mxu0
  %v6098 = vadd.f32 %v6085, %v6097
  %v6099 = vpop.f32.mrf.mxu0
  %6100 = vdwg.mxu0
  %6101 = vmatpush.bf16.msra.mxu0 %v4467
  %6102 = vmatpush.bf16.msra.mxu0 %v4454
  %6103 = vmatpush.bf16.msra.mxu0 %v4441
  %6104 = vmatpush.bf16.msra.mxu0 %v4428
  %6105 = vmatpush.bf16.msra.mxu0 %v4415
  %6106 = vmatpush.bf16.msra.mxu0 %v4402
  %6107 = vmatpush.bf16.msra.mxu0 %v4389
  %6108 = vmatpush.bf16.msra.mxu0 %v4376
  %6109 = vmatmul.bf16.gmra.mxu0 %v1376
  %v6110 = vpop.f32.mrf.mxu0
  %v6111 = vadd.f32 %v6098, %v6110
  %v6112 = vpop.f32.mrf.mxu0
  %6113 = vdwg.mxu0
  %6114 = vmatpush.bf16.msra.mxu0 %v4571
  %6115 = vmatpush.bf16.msra.mxu0 %v4558
  %6116 = vmatpush.bf16.msra.mxu0 %v4545
  %6117 = vmatpush.bf16.msra.mxu0 %v4532
  %6118 = vmatpush.bf16.msra.mxu0 %v4519
  %6119 = vmatpush.bf16.msra.mxu0 %v4506
  %6120 = vmatpush.bf16.msra.mxu0 %v4493
  %6121 = vmatpush.bf16.msra.mxu0 %v4480
  %6122 = vmatmul.bf16.gmra.mxu0 %v1377
  %v6123 = vpop.f32.mrf.mxu0
  %v6124 = vadd.f32 %v6111, %v6123
  %v6125 = vpop.f32.mrf.mxu0
  %6126 = vdwg.mxu0
  %6127 = vmatpush.bf16.msra.mxu0 %v4675
  %6128 = vmatpush.bf16.msra.mxu0 %v4662
  %6129 = vmatpush.bf16.msra.mxu0 %v4649
  %6130 = vmatpush.bf16.msra.mxu0 %v4636
  %6131 = vmatpush.bf16.msra.mxu0 %v4623
  %6132 = vmatpush.bf16.msra.mxu0 %v4610
  %6133 = vmatpush.bf16.msra.mxu0 %v4597
  %6134 = vmatpush.bf16.msra.mxu0 %v4584
  %6135 = vmatmul.bf16.gmra.mxu0 %v1378
  %v6136 = vpop.f32.mrf.mxu0
  %v6137 = vadd.f32 %v6124, %v6136
  %v6138 = vpop.f32.mrf.mxu0
  %6139 = vdwg.mxu0
  %6140 = vmatpush.bf16.msra.mxu0 0
  %6141 = vmatpush.bf16.msra.mxu0 0
  %6142 = vmatpush.bf16.msra.mxu0 0
  %6143 = vmatpush.bf16.msra.mxu0 0
  %6144 = vmatpush.bf16.msra.mxu0 0
  %6145 = vmatpush.bf16.msra.mxu0 0
  %6146 = vmatpush.bf16.msra.mxu0 0
  %6147 = vmatpush.bf16.msra.mxu0 %v4688
  %6148 = vmatmul.bf16.gmra.mxu0 %v5332
  %v6149 = vpop.f32.mrf.mxu0
  %v6150 = vadd.f32 %v6137, %v6149
  %v6151 = vpop.f32.mrf.mxu0
  %6152 = vdwg.mxu0
  %6153 = vmatpush.bf16.msra.mxu0 %v4156
  %6154 = vmatpush.bf16.msra.mxu0 %v4143
  %6155 = vmatpush.bf16.msra.mxu0 %v4130
  %6156 = vmatpush.bf16.msra.mxu0 %v4117
  %6157 = vmatpush.bf16.msra.mxu0 %v4104
  %6158 = vmatpush.bf16.msra.mxu0 %v4091
  %6159 = vmatpush.bf16.msra.mxu0 %v4078
  %6160 = vmatpush.bf16.msra.mxu0 %v4065
  %6161 = vmatmul.bf16.gmra.mxu0 %v1373
  %v6162 = vpop.f32.mrf.mxu0
  %v6163 = vadd.f32 %v2079, %v6162
  %v6164 = vpop.f32.mrf.mxu0
  %6165 = vdwg.mxu0
  %6166 = vmatpush.bf16.msra.mxu0 %v4260
  %6167 = vmatpush.bf16.msra.mxu0 %v4247
  %6168 = vmatpush.bf16.msra.mxu0 %v4234
  %6169 = vmatpush.bf16.msra.mxu0 %v4221
  %6170 = vmatpush.bf16.msra.mxu0 %v4208
  %6171 = vmatpush.bf16.msra.mxu0 %v4195
  %6172 = vmatpush.bf16.msra.mxu0 %v4182
  %6173 = vmatpush.bf16.msra.mxu0 %v4169
  %6174 = vmatmul.bf16.gmra.mxu0 %v1374
  %v6175 = vpop.f32.mrf.mxu0
  %v6176 = vadd.f32 %v6163, %v6175
  %v6177 = vpop.f32.mrf.mxu0
  %6178 = vdwg.mxu0
  %6179 = vmatpush.bf16.msra.mxu0 %v4364
  %6180 = vmatpush.bf16.msra.mxu0 %v4351
  %6181 = vmatpush.bf16.msra.mxu0 %v4338
  %6182 = vmatpush.bf16.msra.mxu0 %v4325
  %6183 = vmatpush.bf16.msra.mxu0 %v4312
  %6184 = vmatpush.bf16.msra.mxu0 %v4299
  %6185 = vmatpush.bf16.msra.mxu0 %v4286
  %6186 = vmatpush.bf16.msra.mxu0 %v4273
  %6187 = vmatmul.bf16.gmra.mxu0 %v1375
  %v6188 = vpop.f32.mrf.mxu0
  %v6189 = vadd.f32 %v6176, %v6188
  %v6190 = vpop.f32.mrf.mxu0
  %6191 = vdwg.mxu0
  %6192 = vmatpush.bf16.msra.mxu0 %v4468
  %6193 = vmatpush.bf16.msra.mxu0 %v4455
  %6194 = vmatpush.bf16.msra.mxu0 %v4442
  %6195 = vmatpush.bf16.msra.mxu0 %v4429
  %6196 = vmatpush.bf16.msra.mxu0 %v4416
  %6197 = vmatpush.bf16.msra.mxu0 %v4403
  %6198 = vmatpush.bf16.msra.mxu0 %v4390
  %6199 = vmatpush.bf16.msra.mxu0 %v4377
  %6200 = vmatmul.bf16.gmra.mxu0 %v1376
  %v6201 = vpop.f32.mrf.mxu0
  %v6202 = vadd.f32 %v6189, %v6201
  %v6203 = vpop.f32.mrf.mxu0
  %6204 = vdwg.mxu0
  %6205 = vmatpush.bf16.msra.mxu0 %v4572
  %6206 = vmatpush.bf16.msra.mxu0 %v4559
  %6207 = vmatpush.bf16.msra.mxu0 %v4546
  %6208 = vmatpush.bf16.msra.mxu0 %v4533
  %6209 = vmatpush.bf16.msra.mxu0 %v4520
  %6210 = vmatpush.bf16.msra.mxu0 %v4507
  %6211 = vmatpush.bf16.msra.mxu0 %v4494
  %6212 = vmatpush.bf16.msra.mxu0 %v4481
  %6213 = vmatmul.bf16.gmra.mxu0 %v1377
  %v6214 = vpop.f32.mrf.mxu0
  %v6215 = vadd.f32 %v6202, %v6214
  %v6216 = vpop.f32.mrf.mxu0
  %6217 = vdwg.mxu0
  %6218 = vmatpush.bf16.msra.mxu0 %v4676
  %6219 = vmatpush.bf16.msra.mxu0 %v4663
  %6220 = vmatpush.bf16.msra.mxu0 %v4650
  %6221 = vmatpush.bf16.msra.mxu0 %v4637
  %6222 = vmatpush.bf16.msra.mxu0 %v4624
  %6223 = vmatpush.bf16.msra.mxu0 %v4611
  %6224 = vmatpush.bf16.msra.mxu0 %v4598
  %6225 = vmatpush.bf16.msra.mxu0 %v4585
  %6226 = vmatmul.bf16.gmra.mxu0 %v1378
  %v6227 = vpop.f32.mrf.mxu0
  %v6228 = vadd.f32 %v6215, %v6227
  %v6229 = vpop.f32.mrf.mxu0
  %6230 = vdwg.mxu0
  %6231 = vmatpush.bf16.msra.mxu0 0
  %6232 = vmatpush.bf16.msra.mxu0 0
  %6233 = vmatpush.bf16.msra.mxu0 0
  %6234 = vmatpush.bf16.msra.mxu0 0
  %6235 = vmatpush.bf16.msra.mxu0 0
  %6236 = vmatpush.bf16.msra.mxu0 0
  %6237 = vmatpush.bf16.msra.mxu0 0
  %6238 = vmatpush.bf16.msra.mxu0 %v4689
  %6239 = vmatmul.bf16.gmra.mxu0 %v5332
  %v6240 = vpop.f32.mrf.mxu0
  %v6241 = vadd.f32 %v6228, %v6240
  %v6242 = vpop.f32.mrf.mxu0
  %6243 = vdwg.mxu0
  %6244 = vmatpush.bf16.msra.mxu0 %v4157
  %6245 = vmatpush.bf16.msra.mxu0 %v4144
  %6246 = vmatpush.bf16.msra.mxu0 %v4131
  %6247 = vmatpush.bf16.msra.mxu0 %v4118
  %6248 = vmatpush.bf16.msra.mxu0 %v4105
  %6249 = vmatpush.bf16.msra.mxu0 %v4092
  %6250 = vmatpush.bf16.msra.mxu0 %v4079
  %6251 = vmatpush.bf16.msra.mxu0 %v4066
  %6252 = vmatmul.bf16.gmra.mxu0 %v1373
  %v6253 = vpop.f32.mrf.mxu0
  %v6254 = vadd.f32 %v2080, %v6253
  %v6255 = vpop.f32.mrf.mxu0
  %6256 = vdwg.mxu0
  %6257 = vmatpush.bf16.msra.mxu0 %v4261
  %6258 = vmatpush.bf16.msra.mxu0 %v4248
  %6259 = vmatpush.bf16.msra.mxu0 %v4235
  %6260 = vmatpush.bf16.msra.mxu0 %v4222
  %6261 = vmatpush.bf16.msra.mxu0 %v4209
  %6262 = vmatpush.bf16.msra.mxu0 %v4196
  %6263 = vmatpush.bf16.msra.mxu0 %v4183
  %6264 = vmatpush.bf16.msra.mxu0 %v4170
  %6265 = vmatmul.bf16.gmra.mxu0 %v1374
  %v6266 = vpop.f32.mrf.mxu0
  %v6267 = vadd.f32 %v6254, %v6266
  %v6268 = vpop.f32.mrf.mxu0
  %6269 = vdwg.mxu0
  %6270 = vmatpush.bf16.msra.mxu0 %v4365
  %6271 = vmatpush.bf16.msra.mxu0 %v4352
  %6272 = vmatpush.bf16.msra.mxu0 %v4339
  %6273 = vmatpush.bf16.msra.mxu0 %v4326
  %6274 = vmatpush.bf16.msra.mxu0 %v4313
  %6275 = vmatpush.bf16.msra.mxu0 %v4300
  %6276 = vmatpush.bf16.msra.mxu0 %v4287
  %6277 = vmatpush.bf16.msra.mxu0 %v4274
  %6278 = vmatmul.bf16.gmra.mxu0 %v1375
  %v6279 = vpop.f32.mrf.mxu0
  %v6280 = vadd.f32 %v6267, %v6279
  %v6281 = vpop.f32.mrf.mxu0
  %6282 = vdwg.mxu0
  %6283 = vmatpush.bf16.msra.mxu0 %v4469
  %6284 = vmatpush.bf16.msra.mxu0 %v4456
  %6285 = vmatpush.bf16.msra.mxu0 %v4443
  %6286 = vmatpush.bf16.msra.mxu0 %v4430
  %6287 = vmatpush.bf16.msra.mxu0 %v4417
  %6288 = vmatpush.bf16.msra.mxu0 %v4404
  %6289 = vmatpush.bf16.msra.mxu0 %v4391
  %6290 = vmatpush.bf16.msra.mxu0 %v4378
  %6291 = vmatmul.bf16.gmra.mxu0 %v1376
  %v6292 = vpop.f32.mrf.mxu0
  %v6293 = vadd.f32 %v6280, %v6292
  %v6294 = vpop.f32.mrf.mxu0
  %6295 = vdwg.mxu0
  %6296 = vmatpush.bf16.msra.mxu0 %v4573
  %6297 = vmatpush.bf16.msra.mxu0 %v4560
  %6298 = vmatpush.bf16.msra.mxu0 %v4547
  %6299 = vmatpush.bf16.msra.mxu0 %v4534
  %6300 = vmatpush.bf16.msra.mxu0 %v4521
  %6301 = vmatpush.bf16.msra.mxu0 %v4508
  %6302 = vmatpush.bf16.msra.mxu0 %v4495
  %6303 = vmatpush.bf16.msra.mxu0 %v4482
  %6304 = vmatmul.bf16.gmra.mxu0 %v1377
  %v6305 = vpop.f32.mrf.mxu0
  %v6306 = vadd.f32 %v6293, %v6305
  %v6307 = vpop.f32.mrf.mxu0
  %6308 = vdwg.mxu0
  %6309 = vmatpush.bf16.msra.mxu0 %v4677
  %6310 = vmatpush.bf16.msra.mxu0 %v4664
  %6311 = vmatpush.bf16.msra.mxu0 %v4651
  %6312 = vmatpush.bf16.msra.mxu0 %v4638
  %6313 = vmatpush.bf16.msra.mxu0 %v4625
  %6314 = vmatpush.bf16.msra.mxu0 %v4612
  %6315 = vmatpush.bf16.msra.mxu0 %v4599
  %6316 = vmatpush.bf16.msra.mxu0 %v4586
  %6317 = vmatmul.bf16.gmra.mxu0 %v1378
  %v6318 = vpop.f32.mrf.mxu0
  %v6319 = vadd.f32 %v6306, %v6318
  %v6320 = vpop.f32.mrf.mxu0
  %6321 = vdwg.mxu0
  %6322 = vmatpush.bf16.msra.mxu0 0
  %6323 = vmatpush.bf16.msra.mxu0 0
  %6324 = vmatpush.bf16.msra.mxu0 0
  %6325 = vmatpush.bf16.msra.mxu0 0
  %6326 = vmatpush.bf16.msra.mxu0 0
  %6327 = vmatpush.bf16.msra.mxu0 0
  %6328 = vmatpush.bf16.msra.mxu0 0
  %6329 = vmatpush.bf16.msra.mxu0 %v4690
  %6330 = vmatmul.bf16.gmra.mxu0 %v5332
  %v6331 = vpop.f32.mrf.mxu0
  %v6332 = vadd.f32 %v6319, %v6331
  %v6333 = vpop.f32.mrf.mxu0
  %6334 = vdwg.mxu0
  %6335 = vmatpush.bf16.msra.mxu0 %v4158
  %6336 = vmatpush.bf16.msra.mxu0 %v4145
  %6337 = vmatpush.bf16.msra.mxu0 %v4132
  %6338 = vmatpush.bf16.msra.mxu0 %v4119
  %6339 = vmatpush.bf16.msra.mxu0 %v4106
  %6340 = vmatpush.bf16.msra.mxu0 %v4093
  %6341 = vmatpush.bf16.msra.mxu0 %v4080
  %6342 = vmatpush.bf16.msra.mxu0 %v4067
  %6343 = vmatmul.bf16.gmra.mxu0 %v1373
  %v6344 = vpop.f32.mrf.mxu0
  %v6345 = vadd.f32 %v2081, %v6344
  %v6346 = vpop.f32.mrf.mxu0
  %6347 = vdwg.mxu0
  %6348 = vmatpush.bf16.msra.mxu0 %v4262
  %6349 = vmatpush.bf16.msra.mxu0 %v4249
  %6350 = vmatpush.bf16.msra.mxu0 %v4236
  %6351 = vmatpush.bf16.msra.mxu0 %v4223
  %6352 = vmatpush.bf16.msra.mxu0 %v4210
  %6353 = vmatpush.bf16.msra.mxu0 %v4197
  %6354 = vmatpush.bf16.msra.mxu0 %v4184
  %6355 = vmatpush.bf16.msra.mxu0 %v4171
  %6356 = vmatmul.bf16.gmra.mxu0 %v1374
  %v6357 = vpop.f32.mrf.mxu0
  %v6358 = vadd.f32 %v6345, %v6357
  %v6359 = vpop.f32.mrf.mxu0
  %6360 = vdwg.mxu0
  %6361 = vmatpush.bf16.msra.mxu0 %v4366
  %6362 = vmatpush.bf16.msra.mxu0 %v4353
  %6363 = vmatpush.bf16.msra.mxu0 %v4340
  %6364 = vmatpush.bf16.msra.mxu0 %v4327
  %6365 = vmatpush.bf16.msra.mxu0 %v4314
  %6366 = vmatpush.bf16.msra.mxu0 %v4301
  %6367 = vmatpush.bf16.msra.mxu0 %v4288
  %6368 = vmatpush.bf16.msra.mxu0 %v4275
  %6369 = vmatmul.bf16.gmra.mxu0 %v1375
  %v6370 = vpop.f32.mrf.mxu0
  %v6371 = vadd.f32 %v6358, %v6370
  %v6372 = vpop.f32.mrf.mxu0
  %6373 = vdwg.mxu0
  %6374 = vmatpush.bf16.msra.mxu0 %v4470
  %6375 = vmatpush.bf16.msra.mxu0 %v4457
  %6376 = vmatpush.bf16.msra.mxu0 %v4444
  %6377 = vmatpush.bf16.msra.mxu0 %v4431
  %6378 = vmatpush.bf16.msra.mxu0 %v4418
  %6379 = vmatpush.bf16.msra.mxu0 %v4405
  %6380 = vmatpush.bf16.msra.mxu0 %v4392
  %6381 = vmatpush.bf16.msra.mxu0 %v4379
  %6382 = vmatmul.bf16.gmra.mxu0 %v1376
  %v6383 = vpop.f32.mrf.mxu0
  %v6384 = vadd.f32 %v6371, %v6383
  %v6385 = vpop.f32.mrf.mxu0
  %6386 = vdwg.mxu0
  %6387 = vmatpush.bf16.msra.mxu0 %v4574
  %6388 = vmatpush.bf16.msra.mxu0 %v4561
  %6389 = vmatpush.bf16.msra.mxu0 %v4548
  %6390 = vmatpush.bf16.msra.mxu0 %v4535
  %6391 = vmatpush.bf16.msra.mxu0 %v4522
  %6392 = vmatpush.bf16.msra.mxu0 %v4509
  %6393 = vmatpush.bf16.msra.mxu0 %v4496
  %6394 = vmatpush.bf16.msra.mxu0 %v4483
  %6395 = vmatmul.bf16.gmra.mxu0 %v1377
  %v6396 = vpop.f32.mrf.mxu0
  %v6397 = vadd.f32 %v6384, %v6396
  %v6398 = vpop.f32.mrf.mxu0
  %6399 = vdwg.mxu0
  %6400 = vmatpush.bf16.msra.mxu0 %v4678
  %6401 = vmatpush.bf16.msra.mxu0 %v4665
  %6402 = vmatpush.bf16.msra.mxu0 %v4652
  %6403 = vmatpush.bf16.msra.mxu0 %v4639
  %6404 = vmatpush.bf16.msra.mxu0 %v4626
  %6405 = vmatpush.bf16.msra.mxu0 %v4613
  %6406 = vmatpush.bf16.msra.mxu0 %v4600
  %6407 = vmatpush.bf16.msra.mxu0 %v4587
  %6408 = vmatmul.bf16.gmra.mxu0 %v1378
  %v6409 = vpop.f32.mrf.mxu0
  %v6410 = vadd.f32 %v6397, %v6409
  %v6411 = vpop.f32.mrf.mxu0
  %6412 = vdwg.mxu0
  %6413 = vmatpush.bf16.msra.mxu0 0
  %6414 = vmatpush.bf16.msra.mxu0 0
  %6415 = vmatpush.bf16.msra.mxu0 0
  %6416 = vmatpush.bf16.msra.mxu0 0
  %6417 = vmatpush.bf16.msra.mxu0 0
  %6418 = vmatpush.bf16.msra.mxu0 0
  %6419 = vmatpush.bf16.msra.mxu0 0
  %6420 = vmatpush.bf16.msra.mxu0 %v4691
  %6421 = vmatmul.bf16.gmra.mxu0 %v5332
  %v6422 = vpop.f32.mrf.mxu0
  %v6423 = vadd.f32 %v6410, %v6422
  %v6424 = vpop.f32.mrf.mxu0
  %6425 = vdwg.mxu0
  %6426 = vmatpush.bf16.msra.mxu0 %v4159
  %6427 = vmatpush.bf16.msra.mxu0 %v4146
  %6428 = vmatpush.bf16.msra.mxu0 %v4133
  %6429 = vmatpush.bf16.msra.mxu0 %v4120
  %6430 = vmatpush.bf16.msra.mxu0 %v4107
  %6431 = vmatpush.bf16.msra.mxu0 %v4094
  %6432 = vmatpush.bf16.msra.mxu0 %v4081
  %6433 = vmatpush.bf16.msra.mxu0 %v4068
  %6434 = vmatmul.bf16.gmra.mxu0 %v1373
  %v6435 = vpop.f32.mrf.mxu0
  %v6436 = vadd.f32 %v2082, %v6435
  %v6437 = vpop.f32.mrf.mxu0
  %6438 = vdwg.mxu0
  %6439 = vmatpush.bf16.msra.mxu0 %v4263
  %6440 = vmatpush.bf16.msra.mxu0 %v4250
  %6441 = vmatpush.bf16.msra.mxu0 %v4237
  %6442 = vmatpush.bf16.msra.mxu0 %v4224
  %6443 = vmatpush.bf16.msra.mxu0 %v4211
  %6444 = vmatpush.bf16.msra.mxu0 %v4198
  %6445 = vmatpush.bf16.msra.mxu0 %v4185
  %6446 = vmatpush.bf16.msra.mxu0 %v4172
  %6447 = vmatmul.bf16.gmra.mxu0 %v1374
  %v6448 = vpop.f32.mrf.mxu0
  %v6449 = vadd.f32 %v6436, %v6448
  %v6450 = vpop.f32.mrf.mxu0
  %6451 = vdwg.mxu0
  %6452 = vmatpush.bf16.msra.mxu0 %v4367
  %6453 = vmatpush.bf16.msra.mxu0 %v4354
  %6454 = vmatpush.bf16.msra.mxu0 %v4341
  %6455 = vmatpush.bf16.msra.mxu0 %v4328
  %6456 = vmatpush.bf16.msra.mxu0 %v4315
  %6457 = vmatpush.bf16.msra.mxu0 %v4302
  %6458 = vmatpush.bf16.msra.mxu0 %v4289
  %6459 = vmatpush.bf16.msra.mxu0 %v4276
  %6460 = vmatmul.bf16.gmra.mxu0 %v1375
  %v6461 = vpop.f32.mrf.mxu0
  %v6462 = vadd.f32 %v6449, %v6461
  %v6463 = vpop.f32.mrf.mxu0
  %6464 = vdwg.mxu0
  %6465 = vmatpush.bf16.msra.mxu0 %v4471
  %6466 = vmatpush.bf16.msra.mxu0 %v4458
  %6467 = vmatpush.bf16.msra.mxu0 %v4445
  %6468 = vmatpush.bf16.msra.mxu0 %v4432
  %6469 = vmatpush.bf16.msra.mxu0 %v4419
  %6470 = vmatpush.bf16.msra.mxu0 %v4406
  %6471 = vmatpush.bf16.msra.mxu0 %v4393
  %6472 = vmatpush.bf16.msra.mxu0 %v4380
  %6473 = vmatmul.bf16.gmra.mxu0 %v1376
  %v6474 = vpop.f32.mrf.mxu0
  %v6475 = vadd.f32 %v6462, %v6474
  %v6476 = vpop.f32.mrf.mxu0
  %6477 = vdwg.mxu0
  %6478 = vmatpush.bf16.msra.mxu0 %v4575
  %6479 = vmatpush.bf16.msra.mxu0 %v4562
  %6480 = vmatpush.bf16.msra.mxu0 %v4549
  %6481 = vmatpush.bf16.msra.mxu0 %v4536
  %6482 = vmatpush.bf16.msra.mxu0 %v4523
  %6483 = vmatpush.bf16.msra.mxu0 %v4510
  %6484 = vmatpush.bf16.msra.mxu0 %v4497
  %6485 = vmatpush.bf16.msra.mxu0 %v4484
  %6486 = vmatmul.bf16.gmra.mxu0 %v1377
  %v6487 = vpop.f32.mrf.mxu0
  %v6488 = vadd.f32 %v6475, %v6487
  %v6489 = vpop.f32.mrf.mxu0
  %6490 = vdwg.mxu0
  %6491 = vmatpush.bf16.msra.mxu0 %v4679
  %6492 = vmatpush.bf16.msra.mxu0 %v4666
  %6493 = vmatpush.bf16.msra.mxu0 %v4653
  %6494 = vmatpush.bf16.msra.mxu0 %v4640
  %6495 = vmatpush.bf16.msra.mxu0 %v4627
  %6496 = vmatpush.bf16.msra.mxu0 %v4614
  %6497 = vmatpush.bf16.msra.mxu0 %v4601
  %6498 = vmatpush.bf16.msra.mxu0 %v4588
  %6499 = vmatmul.bf16.gmra.mxu0 %v1378
  %v6500 = vpop.f32.mrf.mxu0
  %v6501 = vadd.f32 %v6488, %v6500
  %v6502 = vpop.f32.mrf.mxu0
  %6503 = vdwg.mxu0
  %6504 = vmatpush.bf16.msra.mxu0 0
  %6505 = vmatpush.bf16.msra.mxu0 0
  %6506 = vmatpush.bf16.msra.mxu0 0
  %6507 = vmatpush.bf16.msra.mxu0 0
  %6508 = vmatpush.bf16.msra.mxu0 0
  %6509 = vmatpush.bf16.msra.mxu0 0
  %6510 = vmatpush.bf16.msra.mxu0 0
  %6511 = vmatpush.bf16.msra.mxu0 %v4692
  %6512 = vmatmul.bf16.gmra.mxu0 %v5332
  %v6513 = vpop.f32.mrf.mxu0
  %v6514 = vadd.f32 %v6501, %v6513
  %v6515 = vpop.f32.mrf.mxu0
  %6516 = vdwg.mxu0
  %v6517 = vmax.f32 %v5422, 0.0
  %v6518 = vmax.f32 %v5513, 0.0
  %v6519 = vmax.f32 %v5604, 0.0
  %v6520 = vmax.f32 %v5695, 0.0
  %v6521 = vmax.f32 %v5786, 0.0
  %v6522 = vmax.f32 %v5877, 0.0
  %v6523 = vmax.f32 %v5968, 0.0
  %v6524 = vmax.f32 %v6059, 0.0
  %v6525 = vmax.f32 %v6150, 0.0
  %v6526 = vmax.f32 %v6241, 0.0
  %v6527 = vmax.f32 %v6332, 0.0
  %v6528 = vmax.f32 %v6423, 0.0
  %v6529 = vmax.f32 %v6514, 0.0
  %v6530 = vpack.c.bf16 %v6517, %v6517
  %v6531 = vpack.c.bf16 %v6518, %v6518
  %v6532 = vpack.c.bf16 %v6519, %v6519
  %v6533 = vpack.c.bf16 %v6520, %v6520
  %v6534 = vpack.c.bf16 %v6521, %v6521
  %v6535 = vpack.c.bf16 %v6522, %v6522
  %v6536 = vpack.c.bf16 %v6523, %v6523
  %v6537 = vpack.c.bf16 %v6524, %v6524
  %v6538 = vpack.c.bf16 %v6525, %v6525
  %v6539 = vpack.c.bf16 %v6526, %v6526
  %v6540 = vpack.c.bf16 %v6527, %v6527
  %v6541 = vpack.c.bf16 %v6528, %v6528
  %v6542 = vpack.c.bf16 %v6529, %v6529
  %v6543 = vld [vmem:[%s9] sm:$0xff]
  %v6544 = vld [vmem:[%s9 + $0x8] sm:$0xff]
  %v6545 = vld [vmem:[%s9 + $0x10] sm:$0xff]
  %v6546 = vld [vmem:[%s9 + $0x18] sm:$0xf]
  %v6547 = vld [vmem:[%s9 + $0x1c] sm:$0xff]
  %v6548 = vld [vmem:[%s9 + $0x24] sm:$0xff]
  %v6549 = vld [vmem:[%s9 + $0x2c] sm:$0xff]
  %v6550 = vld [vmem:[%s9 + $0x34] sm:$0xf]
  %v6551 = vld [vmem:[%s9 + $0x38] sm:$0xff]
  %v6552 = vld [vmem:[%s9 + $0x40] sm:$0xff]
  %v6553 = vld [vmem:[%s9 + $0x48] sm:$0xff]
  %v6554 = vld [vmem:[%s9 + $0x50] sm:$0xf]
  %v6555 = vld [vmem:[%s9 + $0x54] sm:$0xff]
  %v6556 = vld [vmem:[%s9 + $0x5c] sm:$0xff]
  %v6557 = vld [vmem:[%s9 + $0x64] sm:$0xff]
  %v6558 = vld [vmem:[%s9 + $0x6c] sm:$0xf]
  %v6559 = vld [vmem:[%s9 + $0x70] sm:$0xff]
  %v6560 = vld [vmem:[%s9 + $0x78] sm:$0xff]
  %v6561 = vld [vmem:[%s9 + $0x80] sm:$0xff]
  %v6562 = vld [vmem:[%s9 + $0x88] sm:$0xf]
  %v6563 = vld [vmem:[%s9 + $0x8c] sm:$0xff]
  %v6564 = vld [vmem:[%s9 + $0x94] sm:$0xff]
  %v6565 = vld [vmem:[%s9 + $0x9c] sm:$0xff]
  %v6566 = vld [vmem:[%s9 + $0xa4] sm:$0xf]
  %v6567 = vld [vmem:[%s9 + $0xa8] sm:$0xff]
  %v6568 = vld [vmem:[%s9 + $0xb0] sm:$0xff]
  %v6569 = vld [vmem:[%s9 + $0xb8] sm:$0xff]
  %v6570 = vld [vmem:[%s9 + $0xc0] sm:$0xf]
  %v6571 = vld [vmem:[%s9 + $0xc4] sm:$0xff]
  %v6572 = vld [vmem:[%s9 + $0xcc] sm:$0xff]
  %v6573 = vld [vmem:[%s9 + $0xd4] sm:$0xff]
  %v6574 = vld [vmem:[%s9 + $0xdc] sm:$0xf]
  %v6575 = vld [vmem:[%s9 + $0xe0] sm:$0xff]
  %v6576 = vld [vmem:[%s9 + $0xe8] sm:$0xff]
  %v6577 = vld [vmem:[%s9 + $0xf0] sm:$0xff]
  %v6578 = vld [vmem:[%s9 + $0xf8] sm:$0xf]
  %v6579 = vld [vmem:[%s9 + $0xfc] sm:$0xff]
  %v6580 = vld [vmem:[%s9 + $0x104] sm:$0xff]
  %v6581 = vld [vmem:[%s9 + $0x10c] sm:$0xff]
  %v6582 = vld [vmem:[%s9 + $0x114] sm:$0xf]
  %v6583 = vld [vmem:[%s9 + $0x118] sm:$0xff]
  %v6584 = vld [vmem:[%s9 + $0x120] sm:$0xff]
  %v6585 = vld [vmem:[%s9 + $0x128] sm:$0xff]
  %v6586 = vld [vmem:[%s9 + $0x130] sm:$0xf]
  %v6587 = vld [vmem:[%s9 + $0x134] sm:$0xff]
  %v6588 = vld [vmem:[%s9 + $0x13c] sm:$0xff]
  %v6589 = vld [vmem:[%s9 + $0x144] sm:$0xff]
  %v6590 = vld [vmem:[%s9 + $0x14c] sm:$0xf]
  %v6591 = vld [vmem:[%s9 + $0x150] sm:$0xff]
  %v6592 = vld [vmem:[%s9 + $0x158] sm:$0xff]
  %v6593 = vld [vmem:[%s9 + $0x160] sm:$0xff]
  %v6594 = vld [vmem:[%s9 + $0x168] sm:$0xf]
  %v6595 = vld [vmem:[%s9 + $0x16c] sm:$0xff]
  %v6596 = vld [vmem:[%s9 + $0x174] sm:$0xff]
  %v6597 = vld [vmem:[%s9 + $0x17c] sm:$0xff]
  %v6598 = vld [vmem:[%s9 + $0x184] sm:$0xf]
  %v6599 = vld [vmem:[%s9 + $0x188] sm:$0xff]
  %v6600 = vld [vmem:[%s9 + $0x190] sm:$0xff]
  %v6601 = vld [vmem:[%s9 + $0x198] sm:$0xff]
  %v6602 = vld [vmem:[%s9 + $0x1a0] sm:$0xf]
  %v6603 = vld [vmem:[%s9 + $0x1a4] sm:$0xff]
  %v6604 = vld [vmem:[%s9 + $0x1ac] sm:$0xff]
  %v6605 = vld [vmem:[%s9 + $0x1b4] sm:$0xff]
  %v6606 = vld [vmem:[%s9 + $0x1bc] sm:$0xf]
  %v6607 = vld [vmem:[%s9 + $0x1c0] sm:$0xff]
  %v6608 = vld [vmem:[%s9 + $0x1c8] sm:$0xff]
  %v6609 = vld [vmem:[%s9 + $0x1d0] sm:$0xff]
  %v6610 = vld [vmem:[%s9 + $0x1d8] sm:$0xf]
  %v6611 = vld [vmem:[%s9 + $0x1dc] sm:$0xff]
  %v6612 = vld [vmem:[%s9 + $0x1e4] sm:$0xff]
  %v6613 = vld [vmem:[%s9 + $0x1ec] sm:$0xff]
  %v6614 = vld [vmem:[%s9 + $0x1f4] sm:$0xf]
  %v6615 = vld [vmem:[%s9 + $0x1f8] sm:$0xff]
  %v6616 = vld [vmem:[%s9 + $0x200] sm:$0xff]
  %v6617 = vld [vmem:[%s9 + $0x208] sm:$0xff]
  %v6618 = vld [vmem:[%s9 + $0x210] sm:$0xf]
  %v6619 = vld [vmem:[%s9 + $0x214] sm:$0xff]
  %v6620 = vld [vmem:[%s9 + $0x21c] sm:$0xff]
  %v6621 = vld [vmem:[%s9 + $0x224] sm:$0xff]
  %v6622 = vld [vmem:[%s9 + $0x22c] sm:$0xf]
  %v6623 = vld [vmem:[%s9 + $0x230] sm:$0xff]
  %v6624 = vld [vmem:[%s9 + $0x238] sm:$0xff]
  %v6625 = vld [vmem:[%s9 + $0x240] sm:$0xff]
  %v6626 = vld [vmem:[%s9 + $0x248] sm:$0xf]
  %v6627 = vld [vmem:[%s9 + $0x24c] sm:$0xff]
  %v6628 = vld [vmem:[%s9 + $0x254] sm:$0xff]
  %v6629 = vld [vmem:[%s9 + $0x25c] sm:$0xff]
  %v6630 = vld [vmem:[%s9 + $0x264] sm:$0xf]
  %v6631 = vld [vmem:[%s9 + $0x268] sm:$0xff]
  %v6632 = vld [vmem:[%s9 + $0x270] sm:$0xff]
  %v6633 = vld [vmem:[%s9 + $0x278] sm:$0xff]
  %v6634 = vld [vmem:[%s9 + $0x280] sm:$0xf]
  %v6635 = vld [vmem:[%s9 + $0x284] sm:$0xff]
  %v6636 = vld [vmem:[%s9 + $0x28c] sm:$0xff]
  %v6637 = vld [vmem:[%s9 + $0x294] sm:$0xff]
  %v6638 = vld [vmem:[%s9 + $0x29c] sm:$0xf]
  %v6639 = vld [vmem:[%s9 + $0x2a0] sm:$0xff]
  %v6640 = vld [vmem:[%s9 + $0x2a8] sm:$0xff]
  %v6641 = vld [vmem:[%s9 + $0x2b0] sm:$0xff]
  %v6642 = vld [vmem:[%s9 + $0x2b8] sm:$0xf]
  %v6643 = vld [vmem:[%s9 + $0x2bc] sm:$0xff]
  %v6644 = vld [vmem:[%s9 + $0x2c4] sm:$0xff]
  %v6645 = vld [vmem:[%s9 + $0x2cc] sm:$0xff]
  %v6646 = vld [vmem:[%s9 + $0x2d4] sm:$0xf]
  %v6647 = vld [vmem:[%s9 + $0x2d8] sm:$0xff]
  %v6648 = vld [vmem:[%s9 + $0x2e0] sm:$0xff]
  %v6649 = vld [vmem:[%s9 + $0x2e8] sm:$0xff]
  %v6650 = vld [vmem:[%s9 + $0x2f0] sm:$0xf]
  %v6651 = vld [vmem:[%s9 + $0x2f4] sm:$0xff]
  %v6652 = vld [vmem:[%s9 + $0x2fc] sm:$0xff]
  %v6653 = vld [vmem:[%s9 + $0x304] sm:$0xff]
  %v6654 = vld [vmem:[%s9 + $0x30c] sm:$0xf]
  %v6655 = vld [vmem:[%s9 + $0x310] sm:$0xff]
  %v6656 = vld [vmem:[%s9 + $0x318] sm:$0xff]
  %v6657 = vld [vmem:[%s9 + $0x320] sm:$0xff]
  %v6658 = vld [vmem:[%s9 + $0x328] sm:$0xf]
  %v6659 = vld [vmem:[%s9 + $0x32c] sm:$0xff]
  %v6660 = vld [vmem:[%s9 + $0x334] sm:$0xff]
  %v6661 = vld [vmem:[%s9 + $0x33c] sm:$0xff]
  %v6662 = vld [vmem:[%s9 + $0x344] sm:$0xf]
  %v6663 = vld [vmem:[%s9 + $0x348] sm:$0xff]
  %v6664 = vld [vmem:[%s9 + $0x350] sm:$0xff]
  %v6665 = vld [vmem:[%s9 + $0x358] sm:$0xff]
  %v6666 = vld [vmem:[%s9 + $0x360] sm:$0xf]
  %v6667 = vld [vmem:[%s9 + $0x364] sm:$0xff]
  %v6668 = vld [vmem:[%s9 + $0x36c] sm:$0xff]
  %v6669 = vld [vmem:[%s9 + $0x374] sm:$0xff]
  %v6670 = vld [vmem:[%s9 + $0x37c] sm:$0xf]
  %v6671 = vld [vmem:[%s9 + $0x380] sm:$0xff]
  %v6672 = vld [vmem:[%s9 + $0x388] sm:$0xff]
  %v6673 = vld [vmem:[%s9 + $0x390] sm:$0xff]
  %v6674 = vld [vmem:[%s9 + $0x398] sm:$0xf]
  %v6675 = vld [vmem:[%s9 + $0x39c] sm:$0xff]
  %v6676 = vld [vmem:[%s9 + $0x3a4] sm:$0xff]
  %v6677 = vld [vmem:[%s9 + $0x3ac] sm:$0xff]
  %v6678 = vld [vmem:[%s9 + $0x3b4] sm:$0xf]
  %v6679 = vld [vmem:[%s9 + $0x3b8] sm:$0xff]
  %v6680 = vld [vmem:[%s9 + $0x3c0] sm:$0xff]
  %v6681 = vld [vmem:[%s9 + $0x3c8] sm:$0xff]
  %v6682 = vld [vmem:[%s9 + $0x3d0] sm:$0xf]
  %v6683 = vld [vmem:[%s9 + $0x3d4] sm:$0xff]
  %v6684 = vld [vmem:[%s9 + $0x3dc] sm:$0xff]
  %v6685 = vld [vmem:[%s9 + $0x3e4] sm:$0xff]
  %v6686 = vld [vmem:[%s9 + $0x3ec] sm:$0xf]
  %v6687 = vld [vmem:[%s9 + $0x3f0] sm:$0xff]
  %v6688 = vld [vmem:[%s9 + $0x3f8] sm:$0xff]
  %v6689 = vld [vmem:[%s9 + $0x400] sm:$0xff]
  %v6690 = vld [vmem:[%s9 + $0x408] sm:$0xf]
  %v6691 = vld [vmem:[%s9 + $0x40c] sm:$0xff]
  %v6692 = vld [vmem:[%s9 + $0x414] sm:$0xff]
  %v6693 = vld [vmem:[%s9 + $0x41c] sm:$0xff]
  %v6694 = vld [vmem:[%s9 + $0x424] sm:$0xf]
  %v6695 = vld [vmem:[%s9 + $0x428] sm:$0xff]
  %v6696 = vld [vmem:[%s9 + $0x430] sm:$0xff]
  %v6697 = vld [vmem:[%s9 + $0x438] sm:$0xff]
  %v6698 = vld [vmem:[%s9 + $0x440] sm:$0xf]
  %v6699 = vld [vmem:[%s9 + $0x444] sm:$0xff]
  %v6700 = vld [vmem:[%s9 + $0x44c] sm:$0xff]
  %v6701 = vld [vmem:[%s9 + $0x454] sm:$0xff]
  %v6702 = vld [vmem:[%s9 + $0x45c] sm:$0xf]
  %v6703 = vld [vmem:[%s9 + $0x460] sm:$0xff]
  %v6704 = vld [vmem:[%s9 + $0x468] sm:$0xff]
  %v6705 = vld [vmem:[%s9 + $0x470] sm:$0xff]
  %v6706 = vld [vmem:[%s9 + $0x478] sm:$0xf]
  %v6707 = vld [vmem:[%s9 + $0x47c] sm:$0xff]
  %v6708 = vld [vmem:[%s9 + $0x484] sm:$0xff]
  %v6709 = vld [vmem:[%s9 + $0x48c] sm:$0xff]
  %v6710 = vld [vmem:[%s9 + $0x494] sm:$0xf]
  %v6711 = vld [vmem:[%s9 + $0x498] sm:$0xff]
  %v6712 = vld [vmem:[%s9 + $0x4a0] sm:$0xff]
  %v6713 = vld [vmem:[%s9 + $0x4a8] sm:$0xff]
  %v6714 = vld [vmem:[%s9 + $0x4b0] sm:$0xf]
  %v6715 = vld [vmem:[%s9 + $0x4b4] sm:$0xff]
  %v6716 = vld [vmem:[%s9 + $0x4bc] sm:$0xff]
  %v6717 = vld [vmem:[%s9 + $0x4c4] sm:$0xff]
  %v6718 = vld [vmem:[%s9 + $0x4cc] sm:$0xf]
  %v6719 = vld [vmem:[%s9 + $0x4d0] sm:$0xff]
  %v6720 = vld [vmem:[%s9 + $0x4d8] sm:$0xff]
  %v6721 = vld [vmem:[%s9 + $0x4e0] sm:$0xff]
  %v6722 = vld [vmem:[%s9 + $0x4e8] sm:$0xf]
  %v6723 = vld [vmem:[%s9 + $0x4ec] sm:$0xff]
  %v6724 = vld [vmem:[%s9 + $0x4f4] sm:$0xff]
  %v6725 = vld [vmem:[%s9 + $0x4fc] sm:$0xff]
  %v6726 = vld [vmem:[%s9 + $0x504] sm:$0xf]
  %v6727 = vld [vmem:[%s9 + $0x508] sm:$0xff]
  %v6728 = vld [vmem:[%s9 + $0x510] sm:$0xff]
  %v6729 = vld [vmem:[%s9 + $0x518] sm:$0xff]
  %v6730 = vld [vmem:[%s9 + $0x520] sm:$0xf]
  %v6731 = vld [vmem:[%s9 + $0x524] sm:$0xff]
  %v6732 = vld [vmem:[%s9 + $0x52c] sm:$0xff]
  %v6733 = vld [vmem:[%s9 + $0x534] sm:$0xff]
  %v6734 = vld [vmem:[%s9 + $0x53c] sm:$0xf]
  %v6735 = vld [vmem:[%s9 + $0x540] sm:$0xff]
  %v6736 = vld [vmem:[%s9 + $0x548] sm:$0xff]
  %v6737 = vld [vmem:[%s9 + $0x550] sm:$0xff]
  %v6738 = vld [vmem:[%s9 + $0x558] sm:$0xf]
  %v6739 = vld [vmem:[%s9 + $0x55c] sm:$0xff]
  %v6740 = vld [vmem:[%s9 + $0x564] sm:$0xff]
  %v6741 = vld [vmem:[%s9 + $0x56c] sm:$0xff]
  %v6742 = vld [vmem:[%s9 + $0x574] sm:$0xf]
  %v6743 = vld [vmem:[%s9 + $0x578] sm:$0xff]
  %v6744 = vld [vmem:[%s9 + $0x580] sm:$0xff]
  %v6745 = vld [vmem:[%s9 + $0x588] sm:$0xff]
  %v6746 = vld [vmem:[%s9 + $0x590] sm:$0xf]
  %v6747 = vld [vmem:[%s9 + $0x594] sm:$0xff]
  %v6748 = vld [vmem:[%s9 + $0x59c] sm:$0xff]
  %v6749 = vld [vmem:[%s9 + $0x5a4] sm:$0xff]
  %v6750 = vld [vmem:[%s9 + $0x5ac] sm:$0xf]
  %v6751 = vld [vmem:[%s9 + $0x5b0] sm:$0xff]
  %v6752 = vld [vmem:[%s9 + $0x5b8] sm:$0xff]
  %v6753 = vld [vmem:[%s9 + $0x5c0] sm:$0xff]
  %v6754 = vld [vmem:[%s9 + $0x5c8] sm:$0xf]
  %v6755 = vld [vmem:[%s9 + $0x5cc] sm:$0xff]
  %v6756 = vld [vmem:[%s9 + $0x5d4] sm:$0xff]
  %v6757 = vld [vmem:[%s9 + $0x5dc] sm:$0xff]
  %v6758 = vld [vmem:[%s9 + $0x5e4] sm:$0xf]
  %v6759 = vld [vmem:[%s9 + $0x5e8] sm:$0xff]
  %v6760 = vld [vmem:[%s9 + $0x5f0] sm:$0xff]
  %v6761 = vld [vmem:[%s9 + $0x5f8] sm:$0xff]
  %v6762 = vld [vmem:[%s9 + $0x600] sm:$0xf]
  %v6763 = vld [vmem:[%s9 + $0x604] sm:$0xff]
  %v6764 = vld [vmem:[%s9 + $0x60c] sm:$0xff]
  %v6765 = vld [vmem:[%s9 + $0x614] sm:$0xff]
  %v6766 = vld [vmem:[%s9 + $0x61c] sm:$0xf]
  %v6767 = vld [vmem:[%s9 + $0x620] sm:$0xff]
  %v6768 = vld [vmem:[%s9 + $0x628] sm:$0xff]
  %v6769 = vld [vmem:[%s9 + $0x630] sm:$0xff]
  %v6770 = vld [vmem:[%s9 + $0x638] sm:$0xf]
  %v6771 = vld [vmem:[%s9 + $0x63c] sm:$0xff]
  %v6772 = vld [vmem:[%s9 + $0x644] sm:$0xff]
  %v6773 = vld [vmem:[%s9 + $0x64c] sm:$0xff]
  %v6774 = vld [vmem:[%s9 + $0x654] sm:$0xf]
  %v6775 = vld [vmem:[%s9 + $0x658] sm:$0xff]
  %v6776 = vld [vmem:[%s9 + $0x660] sm:$0xff]
  %v6777 = vld [vmem:[%s9 + $0x668] sm:$0xff]
  %v6778 = vld [vmem:[%s9 + $0x670] sm:$0xf]
  %v6779 = vld [vmem:[%s9 + $0x674] sm:$0xff]
  %v6780 = vld [vmem:[%s9 + $0x67c] sm:$0xff]
  %v6781 = vld [vmem:[%s9 + $0x684] sm:$0xff]
  %v6782 = vld [vmem:[%s9 + $0x68c] sm:$0xf]
  %v6783 = vld [vmem:[%s9 + $0x690] sm:$0xff]
  %v6784 = vld [vmem:[%s9 + $0x698] sm:$0xff]
  %v6785 = vld [vmem:[%s9 + $0x6a0] sm:$0xff]
  %v6786 = vld [vmem:[%s9 + $0x6a8] sm:$0xf]
  %v6787 = vld [vmem:[%s9 + $0x6ac] sm:$0xff]
  %v6788 = vld [vmem:[%s9 + $0x6b4] sm:$0xff]
  %v6789 = vld [vmem:[%s9 + $0x6bc] sm:$0xff]
  %v6790 = vld [vmem:[%s9 + $0x6c4] sm:$0xf]
  %v6791 = vld [vmem:[%s9 + $0x6c8] sm:$0xff]
  %v6792 = vld [vmem:[%s9 + $0x6d0] sm:$0xff]
  %v6793 = vld [vmem:[%s9 + $0x6d8] sm:$0xff]
  %v6794 = vld [vmem:[%s9 + $0x6e0] sm:$0xf]
  %v6795 = vld [vmem:[%s9 + $0x6e4] sm:$0xff]
  %v6796 = vld [vmem:[%s9 + $0x6ec] sm:$0xff]
  %v6797 = vld [vmem:[%s9 + $0x6f4] sm:$0xff]
  %v6798 = vld [vmem:[%s9 + $0x6fc] sm:$0xf]
  %v6799 = vld [vmem:[%s9 + $0x700] sm:$0xff]
  %v6800 = vld [vmem:[%s9 + $0x708] sm:$0xff]
  %v6801 = vld [vmem:[%s9 + $0x710] sm:$0xff]
  %v6802 = vld [vmem:[%s9 + $0x718] sm:$0xf]
  %v6803 = vld [vmem:[%s9 + $0x71c] sm:$0xff]
  %v6804 = vld [vmem:[%s9 + $0x724] sm:$0xff]
  %v6805 = vld [vmem:[%s9 + $0x72c] sm:$0xff]
  %v6806 = vld [vmem:[%s9 + $0x734] sm:$0xf]
  %v6807 = vld [vmem:[%s9 + $0x738] sm:$0xff]
  %v6808 = vld [vmem:[%s9 + $0x740] sm:$0xff]
  %v6809 = vld [vmem:[%s9 + $0x748] sm:$0xff]
  %v6810 = vld [vmem:[%s9 + $0x750] sm:$0xf]
  %v6811 = vld [vmem:[%s9 + $0x754] sm:$0xff]
  %v6812 = vld [vmem:[%s9 + $0x75c] sm:$0xff]
  %v6813 = vld [vmem:[%s9 + $0x764] sm:$0xff]
  %v6814 = vld [vmem:[%s9 + $0x76c] sm:$0xf]
  %v6815 = vld [vmem:[%s9 + $0x770] sm:$0xff]
  %v6816 = vld [vmem:[%s9 + $0x778] sm:$0xff]
  %v6817 = vld [vmem:[%s9 + $0x780] sm:$0xff]
  %v6818 = vld [vmem:[%s9 + $0x788] sm:$0xf]
  %v6819 = vld [vmem:[%s9 + $0x78c] sm:$0xff]
  %v6820 = vld [vmem:[%s9 + $0x794] sm:$0xff]
  %v6821 = vld [vmem:[%s9 + $0x79c] sm:$0xff]
  %v6822 = vld [vmem:[%s9 + $0x7a4] sm:$0xf]
  %v6823 = vld [vmem:[%s9 + $0x7a8] sm:$0xff]
  %v6824 = vld [vmem:[%s9 + $0x7b0] sm:$0xff]
  %v6825 = vld [vmem:[%s9 + $0x7b8] sm:$0xff]
  %v6826 = vld [vmem:[%s9 + $0x7c0] sm:$0xf]
  %v6827 = vld [vmem:[%s9 + $0x7c4] sm:$0xff]
  %v6828 = vld [vmem:[%s9 + $0x7cc] sm:$0xff]
  %v6829 = vld [vmem:[%s9 + $0x7d4] sm:$0xff]
  %v6830 = vld [vmem:[%s9 + $0x7dc] sm:$0xf]
  %v6831 = vld [vmem:[%s9 + $0x7e0] sm:$0xff]
  %v6832 = vld [vmem:[%s9 + $0x7e8] sm:$0xff]
  %v6833 = vld [vmem:[%s9 + $0x7f0] sm:$0xff]
  %v6834 = vld [vmem:[%s9 + $0x7f8] sm:$0xf]
  %v6835 = vld [vmem:[%s9 + $0x7fc] sm:$0xff]
  %v6836 = vld [vmem:[%s9 + $0x804] sm:$0xff]
  %v6837 = vld [vmem:[%s9 + $0x80c] sm:$0xff]
  %v6838 = vld [vmem:[%s9 + $0x814] sm:$0xf]
  %v6839 = vld [vmem:[%s9 + $0x818] sm:$0xff]
  %v6840 = vld [vmem:[%s9 + $0x820] sm:$0xff]
  %v6841 = vld [vmem:[%s9 + $0x828] sm:$0xff]
  %v6842 = vld [vmem:[%s9 + $0x830] sm:$0xf]
  %v6843 = vld [vmem:[%s9 + $0x834] sm:$0xff]
  %v6844 = vld [vmem:[%s9 + $0x83c] sm:$0xff]
  %v6845 = vld [vmem:[%s9 + $0x844] sm:$0xff]
  %v6846 = vld [vmem:[%s9 + $0x84c] sm:$0xf]
  %v6847 = vld [vmem:[%s9 + $0x850] sm:$0xff]
  %v6848 = vld [vmem:[%s9 + $0x858] sm:$0xff]
  %v6849 = vld [vmem:[%s9 + $0x860] sm:$0xff]
  %v6850 = vld [vmem:[%s9 + $0x868] sm:$0xf]
  %v6851 = vld [vmem:[%s9 + $0x86c] sm:$0xff]
  %v6852 = vld [vmem:[%s9 + $0x874] sm:$0xff]
  %v6853 = vld [vmem:[%s9 + $0x87c] sm:$0xff]
  %v6854 = vld [vmem:[%s9 + $0x884] sm:$0xf]
  %v6855 = vld [vmem:[%s9 + $0x888] sm:$0xff]
  %v6856 = vld [vmem:[%s9 + $0x890] sm:$0xff]
  %v6857 = vld [vmem:[%s9 + $0x898] sm:$0xff]
  %v6858 = vld [vmem:[%s9 + $0x8a0] sm:$0xf]
  %v6859 = vld [vmem:[%s9 + $0x8a4] sm:$0xff]
  %v6860 = vld [vmem:[%s9 + $0x8ac] sm:$0xff]
  %v6861 = vld [vmem:[%s9 + $0x8b4] sm:$0xff]
  %v6862 = vld [vmem:[%s9 + $0x8bc] sm:$0xf]
  %v6863 = vld [vmem:[%s9 + $0x8c0] sm:$0xff]
  %v6864 = vld [vmem:[%s9 + $0x8c8] sm:$0xff]
  %v6865 = vld [vmem:[%s9 + $0x8d0] sm:$0xff]
  %v6866 = vld [vmem:[%s9 + $0x8d8] sm:$0xf]
  %v6867 = vld [vmem:[%s9 + $0x8dc] sm:$0xff]
  %v6868 = vld [vmem:[%s9 + $0x8e4] sm:$0xff]
  %v6869 = vld [vmem:[%s9 + $0x8ec] sm:$0xff]
  %v6870 = vld [vmem:[%s9 + $0x8f4] sm:$0xf]
  %v6871 = vld [vmem:[%s9 + $0x8f8] sm:$0xff]
  %v6872 = vld [vmem:[%s9 + $0x900] sm:$0xff]
  %v6873 = vld [vmem:[%s9 + $0x908] sm:$0xff]
  %v6874 = vld [vmem:[%s9 + $0x910] sm:$0xf]
  %v6875 = vld [vmem:[%s9 + $0x914] sm:$0xff]
  %v6876 = vld [vmem:[%s9 + $0x91c] sm:$0xff]
  %v6877 = vld [vmem:[%s9 + $0x924] sm:$0xff]
  %v6878 = vld [vmem:[%s9 + $0x92c] sm:$0xf]
  %v6879 = vld [vmem:[%s9 + $0x930] sm:$0xff]
  %v6880 = vld [vmem:[%s9 + $0x938] sm:$0xff]
  %v6881 = vld [vmem:[%s9 + $0x940] sm:$0xff]
  %v6882 = vld [vmem:[%s9 + $0x948] sm:$0xf]
  %v6883 = vld [vmem:[%s9 + $0x94c] sm:$0xff]
  %v6884 = vld [vmem:[%s9 + $0x954] sm:$0xff]
  %v6885 = vld [vmem:[%s9 + $0x95c] sm:$0xff]
  %v6886 = vld [vmem:[%s9 + $0x964] sm:$0xf]
  %v6887 = vld [vmem:[%s9 + $0x968] sm:$0xff]
  %v6888 = vld [vmem:[%s9 + $0x970] sm:$0xff]
  %v6889 = vld [vmem:[%s9 + $0x978] sm:$0xff]
  %v6890 = vld [vmem:[%s9 + $0x980] sm:$0xf]
  %v6891 = vld [vmem:[%s9 + $0x984] sm:$0xff]
  %v6892 = vld [vmem:[%s9 + $0x98c] sm:$0xff]
  %v6893 = vld [vmem:[%s9 + $0x994] sm:$0xff]
  %v6894 = vld [vmem:[%s9 + $0x99c] sm:$0xf]
  %v6895 = vld [vmem:[%s9 + $0x9a0] sm:$0xff]
  %v6896 = vld [vmem:[%s9 + $0x9a8] sm:$0xff]
  %v6897 = vld [vmem:[%s9 + $0x9b0] sm:$0xff]
  %v6898 = vld [vmem:[%s9 + $0x9b8] sm:$0xf]
  %v6899 = vld [vmem:[%s9 + $0x9bc] sm:$0xff]
  %v6900 = vld [vmem:[%s9 + $0x9c4] sm:$0xff]
  %v6901 = vld [vmem:[%s9 + $0x9cc] sm:$0xff]
  %v6902 = vld [vmem:[%s9 + $0x9d4] sm:$0xf]
  %v6903 = vld [vmem:[%s9 + $0x9d8] sm:$0xff]
  %v6904 = vld [vmem:[%s9 + $0x9e0] sm:$0xff]
  %v6905 = vld [vmem:[%s9 + $0x9e8] sm:$0xff]
  %v6906 = vld [vmem:[%s9 + $0x9f0] sm:$0xf]
  %v6907 = vld [vmem:[%s9 + $0x9f4] sm:$0xff]
  %v6908 = vld [vmem:[%s9 + $0x9fc] sm:$0xff]
  %v6909 = vld [vmem:[%s9 + $0xa04] sm:$0xff]
  %v6910 = vld [vmem:[%s9 + $0xa0c] sm:$0xf]
  %v6911 = vld [vmem:[%s9 + $0xa10] sm:$0xff]
  %v6912 = vld [vmem:[%s9 + $0xa18] sm:$0xff]
  %v6913 = vld [vmem:[%s9 + $0xa20] sm:$0xff]
  %v6914 = vld [vmem:[%s9 + $0xa28] sm:$0xf]
  %v6915 = vld [vmem:[%s9 + $0xa2c] sm:$0xff]
  %v6916 = vld [vmem:[%s9 + $0xa34] sm:$0xff]
  %v6917 = vld [vmem:[%s9 + $0xa3c] sm:$0xff]
  %v6918 = vld [vmem:[%s9 + $0xa44] sm:$0xf]
  %v6919 = vld [vmem:[%s9 + $0xa48] sm:$0xff]
  %v6920 = vld [vmem:[%s9 + $0xa50] sm:$0xff]
  %v6921 = vld [vmem:[%s9 + $0xa58] sm:$0xff]
  %v6922 = vld [vmem:[%s9 + $0xa60] sm:$0xf]
  %v6923 = vld [vmem:[%s9 + $0xa64] sm:$0xff]
  %v6924 = vld [vmem:[%s9 + $0xa6c] sm:$0xff]
  %v6925 = vld [vmem:[%s9 + $0xa74] sm:$0xff]
  %v6926 = vld [vmem:[%s9 + $0xa7c] sm:$0xf]
  %v6927 = vld [vmem:[%s9 + $0xa80] sm:$0xff]
  %v6928 = vld [vmem:[%s9 + $0xa88] sm:$0xff]
  %v6929 = vld [vmem:[%s9 + $0xa90] sm:$0xff]
  %v6930 = vld [vmem:[%s9 + $0xa98] sm:$0xf]
  %v6931 = vld [vmem:[%s9 + $0xa9c] sm:$0xff]
  %v6932 = vld [vmem:[%s9 + $0xaa4] sm:$0xff]
  %v6933 = vld [vmem:[%s9 + $0xaac] sm:$0xff]
  %v6934 = vld [vmem:[%s9 + $0xab4] sm:$0xf]
  %v6935 = vld [vmem:[%s9 + $0xab8] sm:$0xff]
  %v6936 = vld [vmem:[%s9 + $0xac0] sm:$0xff]
  %v6937 = vld [vmem:[%s9 + $0xac8] sm:$0xff]
  %v6938 = vld [vmem:[%s9 + $0xad0] sm:$0xf]
  %v6939 = vld [vmem:[%s9 + $0xad4] sm:$0xff]
  %v6940 = vld [vmem:[%s9 + $0xadc] sm:$0xff]
  %v6941 = vld [vmem:[%s9 + $0xae4] sm:$0xff]
  %v6942 = vld [vmem:[%s9 + $0xaec] sm:$0xf]
  %v6943 = vld [vmem:[%s9 + $0xaf0] sm:$0xff]
  %v6944 = vld [vmem:[%s9 + $0xaf8] sm:$0xff]
  %v6945 = vld [vmem:[%s9 + $0xb00] sm:$0xff]
  %v6946 = vld [vmem:[%s9 + $0xb08] sm:$0xf]
  %v6947 = vld [vmem:[%s9 + $0xb0c] sm:$0xff]
  %v6948 = vld [vmem:[%s9 + $0xb14] sm:$0xff]
  %v6949 = vld [vmem:[%s9 + $0xb1c] sm:$0xff]
  %v6950 = vld [vmem:[%s9 + $0xb24] sm:$0xf]
  %v6951 = vld [vmem:[%s9 + $0xb28] sm:$0xff]
  %v6952 = vld [vmem:[%s9 + $0xb30] sm:$0xff]
  %v6953 = vld [vmem:[%s9 + $0xb38] sm:$0xff]
  %v6954 = vld [vmem:[%s9 + $0xb40] sm:$0xf]
  %v6955 = vld [vmem:[%s9 + $0xb44] sm:$0xff]
  %v6956 = vld [vmem:[%s9 + $0xb4c] sm:$0xff]
  %v6957 = vld [vmem:[%s9 + $0xb54] sm:$0xff]
  %v6958 = vld [vmem:[%s9 + $0xb5c] sm:$0xf]
  %v6959 = vld [vmem:[%s9 + $0xb60] sm:$0xff]
  %v6960 = vld [vmem:[%s9 + $0xb68] sm:$0xff]
  %v6961 = vld [vmem:[%s9 + $0xb70] sm:$0xff]
  %v6962 = vld [vmem:[%s9 + $0xb78] sm:$0xf]
  %v6963 = vld [vmem:[%s9 + $0xb7c] sm:$0xff]
  %v6964 = vld [vmem:[%s9 + $0xb84] sm:$0xff]
  %v6965 = vld [vmem:[%s9 + $0xb8c] sm:$0xff]
  %v6966 = vld [vmem:[%s9 + $0xb94] sm:$0xf]
  %v6967 = vld [vmem:[%s9 + $0xb98] sm:$0xff]
  %v6968 = vld [vmem:[%s9 + $0xba0] sm:$0xff]
  %v6969 = vld [vmem:[%s9 + $0xba8] sm:$0xff]
  %v6970 = vld [vmem:[%s9 + $0xbb0] sm:$0xf]
  %v6971 = vld [vmem:[%s9 + $0xbb4] sm:$0xff]
  %v6972 = vld [vmem:[%s9 + $0xbbc] sm:$0xff]
  %v6973 = vld [vmem:[%s9 + $0xbc4] sm:$0xff]
  %v6974 = vld [vmem:[%s9 + $0xbcc] sm:$0xf]
  %v6975 = vld [vmem:[%s9 + $0xbd0] sm:$0xff]
  %v6976 = vld [vmem:[%s9 + $0xbd8] sm:$0xff]
  %v6977 = vld [vmem:[%s9 + $0xbe0] sm:$0xff]
  %v6978 = vld [vmem:[%s9 + $0xbe8] sm:$0xf]
  %v6979 = vld [vmem:[%s9 + $0xbec] sm:$0xff]
  %v6980 = vld [vmem:[%s9 + $0xbf4] sm:$0xff]
  %v6981 = vld [vmem:[%s9 + $0xbfc] sm:$0xff]
  %v6982 = vld [vmem:[%s9 + $0xc04] sm:$0xf]
  %v6983 = vld [vmem:[%s9 + $0xc08] sm:$0xff]
  %v6984 = vld [vmem:[%s9 + $0xc10] sm:$0xff]
  %v6985 = vld [vmem:[%s9 + $0xc18] sm:$0xff]
  %v6986 = vld [vmem:[%s9 + $0xc20] sm:$0xf]
  %v6987 = vld [vmem:[%s9 + $0xc24] sm:$0xff]
  %v6988 = vld [vmem:[%s9 + $0xc2c] sm:$0xff]
  %v6989 = vld [vmem:[%s9 + $0xc34] sm:$0xff]
  %v6990 = vld [vmem:[%s9 + $0xc3c] sm:$0xf]
  %v6991 = vld [vmem:[%s9 + $0xc40] sm:$0xff]
  %v6992 = vld [vmem:[%s9 + $0xc48] sm:$0xff]
  %v6993 = vld [vmem:[%s9 + $0xc50] sm:$0xff]
  %v6994 = vld [vmem:[%s9 + $0xc58] sm:$0xf]
  %v6995 = vld [vmem:[%s9 + $0xc5c] sm:$0xff]
  %v6996 = vld [vmem:[%s9 + $0xc64] sm:$0xff]
  %v6997 = vld [vmem:[%s9 + $0xc6c] sm:$0xff]
  %v6998 = vld [vmem:[%s9 + $0xc74] sm:$0xf]
  %v6999 = vld [vmem:[%s9 + $0xc78] sm:$0xff]
  %v7000 = vld [vmem:[%s9 + $0xc80] sm:$0xff]
  %v7001 = vld [vmem:[%s9 + $0xc88] sm:$0xff]
  %v7002 = vld [vmem:[%s9 + $0xc90] sm:$0xf]
  %v7003 = vld [vmem:[%s9 + $0xc94] sm:$0xff]
  %v7004 = vld [vmem:[%s9 + $0xc9c] sm:$0xff]
  %v7005 = vld [vmem:[%s9 + $0xca4] sm:$0xff]
  %v7006 = vld [vmem:[%s9 + $0xcac] sm:$0xf]
  %v7007 = vld [vmem:[%s9 + $0xcb0] sm:$0xff]
  %v7008 = vld [vmem:[%s9 + $0xcb8] sm:$0xff]
  %v7009 = vld [vmem:[%s9 + $0xcc0] sm:$0xff]
  %v7010 = vld [vmem:[%s9 + $0xcc8] sm:$0xf]
  %v7011 = vld [vmem:[%s9 + $0xccc] sm:$0xff]
  %v7012 = vld [vmem:[%s9 + $0xcd4] sm:$0xff]
  %v7013 = vld [vmem:[%s9 + $0xcdc] sm:$0xff]
  %v7014 = vld [vmem:[%s9 + $0xce4] sm:$0xf]
  %v7015 = vld [vmem:[%s9 + $0xce8] sm:$0xff]
  %v7016 = vld [vmem:[%s9 + $0xcf0] sm:$0xff]
  %v7017 = vld [vmem:[%s9 + $0xcf8] sm:$0xff]
  %v7018 = vld [vmem:[%s9 + $0xd00] sm:$0xf]
  %v7019 = vld [vmem:[%s9 + $0xd04] sm:$0xff]
  %v7020 = vld [vmem:[%s9 + $0xd0c] sm:$0xff]
  %v7021 = vld [vmem:[%s9 + $0xd14] sm:$0xff]
  %v7022 = vld [vmem:[%s9 + $0xd1c] sm:$0xf]
  %v7023 = vld [vmem:[%s9 + $0xd20] sm:$0xff]
  %v7024 = vld [vmem:[%s9 + $0xd28] sm:$0xff]
  %v7025 = vld [vmem:[%s9 + $0xd30] sm:$0xff]
  %v7026 = vld [vmem:[%s9 + $0xd38] sm:$0xf]
  %v7027 = vld [vmem:[%s9 + $0xd3c] sm:$0xff]
  %v7028 = vld [vmem:[%s9 + $0xd44] sm:$0xff]
  %v7029 = vld [vmem:[%s9 + $0xd4c] sm:$0xff]
  %v7030 = vld [vmem:[%s9 + $0xd54] sm:$0xf]
  %v7031 = vld [vmem:[%s9 + $0xd58] sm:$0xff]
  %v7032 = vld [vmem:[%s9 + $0xd60] sm:$0xff]
  %v7033 = vld [vmem:[%s9 + $0xd68] sm:$0xff]
  %v7034 = vld [vmem:[%s9 + $0xd70] sm:$0xf]
  %v7035 = vld [vmem:[%s9 + $0xd74] sm:$0xff]
  %v7036 = vld [vmem:[%s9 + $0xd7c] sm:$0xff]
  %v7037 = vld [vmem:[%s9 + $0xd84] sm:$0xff]
  %v7038 = vld [vmem:[%s9 + $0xd8c] sm:$0xf]
  %v7039 = vld [vmem:[%s9 + $0xd90] sm:$0xff]
  %v7040 = vld [vmem:[%s9 + $0xd98] sm:$0xff]
  %v7041 = vld [vmem:[%s9 + $0xda0] sm:$0xff]
  %v7042 = vld [vmem:[%s9 + $0xda8] sm:$0xf]
  %v7043 = vld [vmem:[%s9 + $0xdac] sm:$0xff]
  %v7044 = vld [vmem:[%s9 + $0xdb4] sm:$0xff]
  %v7045 = vld [vmem:[%s9 + $0xdbc] sm:$0xff]
  %v7046 = vld [vmem:[%s9 + $0xdc4] sm:$0xf]
  %v7047 = vld [vmem:[%s9 + $0xdc8] sm:$0xff]
  %v7048 = vld [vmem:[%s9 + $0xdd0] sm:$0xff]
  %v7049 = vld [vmem:[%s9 + $0xdd8] sm:$0xff]
  %v7050 = vld [vmem:[%s9 + $0xde0] sm:$0xf]
  %v7051 = vld [vmem:[%s9 + $0xde4] sm:$0xff]
  %v7052 = vld [vmem:[%s9 + $0xdec] sm:$0xff]
  %v7053 = vld [vmem:[%s9 + $0xdf4] sm:$0xff]
  %v7054 = vld [vmem:[%s9 + $0xdfc] sm:$0xf]
  %v7055 = vld [vmem:[%s9 + $0xe00] sm:$0xff]
  %v7056 = vld [vmem:[%s9 + $0xe08] sm:$0xff]
  %v7057 = vld [vmem:[%s9 + $0xe10] sm:$0xff]
  %v7058 = vld [vmem:[%s9 + $0xe18] sm:$0xf]
  %v7059 = vld [vmem:[%s9 + $0xe1c] sm:$0xff]
  %v7060 = vld [vmem:[%s9 + $0xe24] sm:$0xff]
  %v7061 = vld [vmem:[%s9 + $0xe2c] sm:$0xff]
  %v7062 = vld [vmem:[%s9 + $0xe34] sm:$0xf]
  %v7063 = vld [vmem:[%s9 + $0xe38] sm:$0xff]
  %v7064 = vld [vmem:[%s9 + $0xe40] sm:$0xff]
  %v7065 = vld [vmem:[%s9 + $0xe48] sm:$0xff]
  %v7066 = vld [vmem:[%s9 + $0xe50] sm:$0xf]
  %v7067 = vld [vmem:[%s9 + $0xe54] sm:$0xff]
  %v7068 = vld [vmem:[%s9 + $0xe5c] sm:$0xff]
  %v7069 = vld [vmem:[%s9 + $0xe64] sm:$0xff]
  %v7070 = vld [vmem:[%s9 + $0xe6c] sm:$0xf]
  %v7071 = vld [vmem:[%s9 + $0xe70] sm:$0xff]
  %v7072 = vld [vmem:[%s9 + $0xe78] sm:$0xff]
  %v7073 = vld [vmem:[%s9 + $0xe80] sm:$0xff]
  %v7074 = vld [vmem:[%s9 + $0xe88] sm:$0xf]
  %v7075 = vld [vmem:[%s9 + $0xe8c] sm:$0xff]
  %v7076 = vld [vmem:[%s9 + $0xe94] sm:$0xff]
  %v7077 = vld [vmem:[%s9 + $0xe9c] sm:$0xff]
  %v7078 = vld [vmem:[%s9 + $0xea4] sm:$0xf]
  %v7079 = vld [vmem:[%s9 + $0xea8] sm:$0xff]
  %v7080 = vld [vmem:[%s9 + $0xeb0] sm:$0xff]
  %v7081 = vld [vmem:[%s9 + $0xeb8] sm:$0xff]
  %v7082 = vld [vmem:[%s9 + $0xec0] sm:$0xf]
  %v7083 = vld [vmem:[%s9 + $0xec4] sm:$0xff]
  %v7084 = vld [vmem:[%s9 + $0xecc] sm:$0xff]
  %v7085 = vld [vmem:[%s9 + $0xed4] sm:$0xff]
  %v7086 = vld [vmem:[%s9 + $0xedc] sm:$0xf]
  %v7087 = vld [vmem:[%s9 + $0xee0] sm:$0xff]
  %v7088 = vld [vmem:[%s9 + $0xee8] sm:$0xff]
  %v7089 = vld [vmem:[%s9 + $0xef0] sm:$0xff]
  %v7090 = vld [vmem:[%s9 + $0xef8] sm:$0xf]
  %v7091 = vld [vmem:[%s9 + $0xefc] sm:$0xff]
  %v7092 = vld [vmem:[%s9 + $0xf04] sm:$0xff]
  %v7093 = vld [vmem:[%s9 + $0xf0c] sm:$0xff]
  %v7094 = vld [vmem:[%s9 + $0xf14] sm:$0xf]
  %v7095 = vld [vmem:[%s9 + $0xf18] sm:$0xff]
  %v7096 = vld [vmem:[%s9 + $0xf20] sm:$0xff]
  %v7097 = vld [vmem:[%s9 + $0xf28] sm:$0xff]
  %v7098 = vld [vmem:[%s9 + $0xf30] sm:$0xf]
  %v7099 = vld [vmem:[%s9 + $0xf34] sm:$0xff]
  %v7100 = vld [vmem:[%s9 + $0xf3c] sm:$0xff]
  %v7101 = vld [vmem:[%s9 + $0xf44] sm:$0xff]
  %v7102 = vld [vmem:[%s9 + $0xf4c] sm:$0xf]
  %v7103 = vld [vmem:[%s9 + $0xf50] sm:$0xff]
  %v7104 = vld [vmem:[%s9 + $0xf58] sm:$0xff]
  %v7105 = vld [vmem:[%s9 + $0xf60] sm:$0xff]
  %v7106 = vld [vmem:[%s9 + $0xf68] sm:$0xf]
  %v7107 = vld [vmem:[%s9 + $0xf6c] sm:$0xff]
  %v7108 = vld [vmem:[%s9 + $0xf74] sm:$0xff]
  %v7109 = vld [vmem:[%s9 + $0xf7c] sm:$0xff]
  %v7110 = vld [vmem:[%s9 + $0xf84] sm:$0xf]
  %v7111 = vld [vmem:[%s9 + $0xf88] sm:$0xff]
  %v7112 = vld [vmem:[%s9 + $0xf90] sm:$0xff]
  %v7113 = vld [vmem:[%s9 + $0xf98] sm:$0xff]
  %v7114 = vld [vmem:[%s9 + $0xfa0] sm:$0xf]
  %v7115 = vld [vmem:[%s9 + $0xfa4] sm:$0xff]
  %v7116 = vld [vmem:[%s9 + $0xfac] sm:$0xff]
  %v7117 = vld [vmem:[%s9 + $0xfb4] sm:$0xff]
  %v7118 = vld [vmem:[%s9 + $0xfbc] sm:$0xf]
  %v7119 = vld [vmem:[%s9 + $0xfc0] sm:$0xff]
  %v7120 = vld [vmem:[%s9 + $0xfc8] sm:$0xff]
  %v7121 = vld [vmem:[%s9 + $0xfd0] sm:$0xff]
  %v7122 = vld [vmem:[%s9 + $0xfd8] sm:$0xf]
  %v7123 = vld [vmem:[%s9 + $0xfdc] sm:$0xff]
  %v7124 = vld [vmem:[%s9 + $0xfe4] sm:$0xff]
  %v7125 = vld [vmem:[%s9 + $0xfec] sm:$0xff]
  %v7126 = vld [vmem:[%s9 + $0xff4] sm:$0xf]
  %v7127 = vld [vmem:[%s9 + $0xff8] sm:$0xff]
  %v7128 = vld [vmem:[%s9 + $0x1000] sm:$0xff]
  %v7129 = vld [vmem:[%s9 + $0x1008] sm:$0xff]
  %v7130 = vld [vmem:[%s9 + $0x1010] sm:$0xf]
  %v7131 = vld [vmem:[%s9 + $0x1014] sm:$0xff]
  %v7132 = vld [vmem:[%s9 + $0x101c] sm:$0xff]
  %v7133 = vld [vmem:[%s9 + $0x1024] sm:$0xff]
  %v7134 = vld [vmem:[%s9 + $0x102c] sm:$0xf]
  %v7135 = vld [vmem:[%s9 + $0x1030] sm:$0xff]
  %v7136 = vld [vmem:[%s9 + $0x1038] sm:$0xff]
  %v7137 = vld [vmem:[%s9 + $0x1040] sm:$0xff]
  %v7138 = vld [vmem:[%s9 + $0x1048] sm:$0xf]
  %v7139 = vld [vmem:[%s9 + $0x104c] sm:$0xff]
  %v7140 = vld [vmem:[%s9 + $0x1054] sm:$0xff]
  %v7141 = vld [vmem:[%s9 + $0x105c] sm:$0xff]
  %v7142 = vld [vmem:[%s9 + $0x1064] sm:$0xf]
  %v7143 = vld [vmem:[%s9 + $0x1068] sm:$0xff]
  %v7144 = vld [vmem:[%s9 + $0x1070] sm:$0xff]
  %v7145 = vld [vmem:[%s9 + $0x1078] sm:$0xff]
  %v7146 = vld [vmem:[%s9 + $0x1080] sm:$0xf]
  %v7147 = vld [vmem:[%s9 + $0x1084] sm:$0xff]
  %v7148 = vld [vmem:[%s9 + $0x108c] sm:$0xff]
  %v7149 = vld [vmem:[%s9 + $0x1094] sm:$0xff]
  %v7150 = vld [vmem:[%s9 + $0x109c] sm:$0xf]
  %v7151 = vld [vmem:[%s9 + $0x10a0] sm:$0xff]
  %v7152 = vld [vmem:[%s9 + $0x10a8] sm:$0xff]
  %v7153 = vld [vmem:[%s9 + $0x10b0] sm:$0xff]
  %v7154 = vld [vmem:[%s9 + $0x10b8] sm:$0xf]
  %v7155 = vld [vmem:[%s9 + $0x10bc] sm:$0xff]
  %v7156 = vld [vmem:[%s9 + $0x10c4] sm:$0xff]
  %v7157 = vld [vmem:[%s9 + $0x10cc] sm:$0xff]
  %v7158 = vld [vmem:[%s9 + $0x10d4] sm:$0xf]
  %v7159 = vld [vmem:[%s9 + $0x10d8] sm:$0xff]
  %v7160 = vld [vmem:[%s9 + $0x10e0] sm:$0xff]
  %v7161 = vld [vmem:[%s9 + $0x10e8] sm:$0xff]
  %v7162 = vld [vmem:[%s9 + $0x10f0] sm:$0xf]
  %v7163 = vld [vmem:[%s9 + $0x10f4] sm:$0xff]
  %v7164 = vld [vmem:[%s9 + $0x10fc] sm:$0xff]
  %v7165 = vld [vmem:[%s9 + $0x1104] sm:$0xff]
  %v7166 = vld [vmem:[%s9 + $0x110c] sm:$0xf]
  %v7167 = vld [vmem:[%s9 + $0x1110] sm:$0xff]
  %v7168 = vld [vmem:[%s9 + $0x1118] sm:$0xff]
  %v7169 = vld [vmem:[%s9 + $0x1120] sm:$0xff]
  %v7170 = vld [vmem:[%s9 + $0x1128] sm:$0xf]
  %v7171 = vld [vmem:[%s9 + $0x112c] sm:$0xff]
  %v7172 = vld [vmem:[%s9 + $0x1134] sm:$0xff]
  %v7173 = vld [vmem:[%s9 + $0x113c] sm:$0xff]
  %v7174 = vld [vmem:[%s9 + $0x1144] sm:$0xf]
  %v7175 = vld [vmem:[%s9 + $0x1148] sm:$0xff]
  %v7176 = vld [vmem:[%s9 + $0x1150] sm:$0xff]
  %v7177 = vld [vmem:[%s9 + $0x1158] sm:$0xff]
  %v7178 = vld [vmem:[%s9 + $0x1160] sm:$0xf]
  %v7179 = vld [vmem:[%s9 + $0x1164] sm:$0xff]
  %v7180 = vld [vmem:[%s9 + $0x116c] sm:$0xff]
  %v7181 = vld [vmem:[%s9 + $0x1174] sm:$0xff]
  %v7182 = vld [vmem:[%s9 + $0x117c] sm:$0xf]
  %v7183 = vld [vmem:[%s9 + $0x1180] sm:$0xff]
  %v7184 = vld [vmem:[%s9 + $0x1188] sm:$0xff]
  %v7185 = vld [vmem:[%s9 + $0x1190] sm:$0xff]
  %v7186 = vld [vmem:[%s9 + $0x1198] sm:$0xf]
  %v7187 = vld [vmem:[%s9 + $0x119c] sm:$0xff]
  %v7188 = vld [vmem:[%s9 + $0x11a4] sm:$0xff]
  %v7189 = vld [vmem:[%s9 + $0x11ac] sm:$0xff]
  %v7190 = vld [vmem:[%s9 + $0x11b4] sm:$0xf]
  %v7191 = vld [vmem:[%s9 + $0x11b8] sm:$0xff]
  %v7192 = vld [vmem:[%s9 + $0x11c0] sm:$0xff]
  %v7193 = vld [vmem:[%s9 + $0x11c8] sm:$0xff]
  %v7194 = vld [vmem:[%s9 + $0x11d0] sm:$0xf]
  %v7195 = vld [vmem:[%s9 + $0x11d4] sm:$0xff]
  %v7196 = vld [vmem:[%s9 + $0x11dc] sm:$0xff]
  %v7197 = vld [vmem:[%s9 + $0x11e4] sm:$0xff]
  %v7198 = vld [vmem:[%s9 + $0x11ec] sm:$0xf]
  %v7199 = vld [vmem:[%s9 + $0x11f0] sm:$0xff]
  %v7200 = vld [vmem:[%s9 + $0x11f8] sm:$0xff]
  %v7201 = vld [vmem:[%s9 + $0x1200] sm:$0xff]
  %v7202 = vld [vmem:[%s9 + $0x1208] sm:$0xf]
  %v7203 = vld [vmem:[%s9 + $0x120c] sm:$0xff]
  %v7204 = vld [vmem:[%s9 + $0x1214] sm:$0xff]
  %v7205 = vld [vmem:[%s9 + $0x121c] sm:$0xff]
  %v7206 = vld [vmem:[%s9 + $0x1224] sm:$0xf]
  %v7207 = vld [vmem:[%s9 + $0x1228] sm:$0xff]
  %v7208 = vld [vmem:[%s9 + $0x1230] sm:$0xff]
  %v7209 = vld [vmem:[%s9 + $0x1238] sm:$0xff]
  %v7210 = vld [vmem:[%s9 + $0x1240] sm:$0xf]
  %v7211 = vld [vmem:[%s9 + $0x1244] sm:$0xff]
  %v7212 = vld [vmem:[%s9 + $0x124c] sm:$0xff]
  %v7213 = vld [vmem:[%s9 + $0x1254] sm:$0xff]
  %v7214 = vld [vmem:[%s9 + $0x125c] sm:$0xf]
  %v7215 = vld [vmem:[%s9 + $0x1260] sm:$0xff]
  %v7216 = vld [vmem:[%s9 + $0x1268] sm:$0xff]
  %v7217 = vld [vmem:[%s9 + $0x1270] sm:$0xff]
  %v7218 = vld [vmem:[%s9 + $0x1278] sm:$0xf]
  %v7219 = vld [vmem:[%s9 + $0x127c] sm:$0xff]
  %v7220 = vld [vmem:[%s9 + $0x1284] sm:$0xff]
  %v7221 = vld [vmem:[%s9 + $0x128c] sm:$0xff]
  %v7222 = vld [vmem:[%s9 + $0x1294] sm:$0xf]
  %v7223 = vld [vmem:[%s9 + $0x1298] sm:$0xff]
  %v7224 = vld [vmem:[%s9 + $0x12a0] sm:$0xff]
  %v7225 = vld [vmem:[%s9 + $0x12a8] sm:$0xff]
  %v7226 = vld [vmem:[%s9 + $0x12b0] sm:$0xf]
  %v7227 = vld [vmem:[%s9 + $0x12b4] sm:$0xff]
  %v7228 = vld [vmem:[%s9 + $0x12bc] sm:$0xff]
  %v7229 = vld [vmem:[%s9 + $0x12c4] sm:$0xff]
  %v7230 = vld [vmem:[%s9 + $0x12cc] sm:$0xf]
  %v7231 = vld [vmem:[%s9 + $0x12d0] sm:$0xff]
  %v7232 = vld [vmem:[%s9 + $0x12d8] sm:$0xff]
  %v7233 = vld [vmem:[%s9 + $0x12e0] sm:$0xff]
  %v7234 = vld [vmem:[%s9 + $0x12e8] sm:$0xf]
  %v7235 = vld [vmem:[%s9 + $0x12ec] sm:$0xff]
  %v7236 = vld [vmem:[%s9 + $0x12f4] sm:$0xff]
  %v7237 = vld [vmem:[%s9 + $0x12fc] sm:$0xff]
  %v7238 = vld [vmem:[%s9 + $0x1304] sm:$0xf]
  %v7239 = vld [vmem:[%s9 + $0x1308] sm:$0xff]
  %v7240 = vld [vmem:[%s9 + $0x1310] sm:$0xff]
  %v7241 = vld [vmem:[%s9 + $0x1318] sm:$0xff]
  %v7242 = vld [vmem:[%s9 + $0x1320] sm:$0xf]
  %v7243 = vld [vmem:[%s9 + $0x1324] sm:$0xff]
  %v7244 = vld [vmem:[%s9 + $0x132c] sm:$0xff]
  %v7245 = vld [vmem:[%s9 + $0x1334] sm:$0xff]
  %v7246 = vld [vmem:[%s9 + $0x133c] sm:$0xf]
  %v7247 = vld [vmem:[%s9 + $0x1340] sm:$0xff]
  %v7248 = vld [vmem:[%s9 + $0x1348] sm:$0xff]
  %v7249 = vld [vmem:[%s9 + $0x1350] sm:$0xff]
  %v7250 = vld [vmem:[%s9 + $0x1358] sm:$0xf]
  %v7251 = vld [vmem:[%s9 + $0x135c] sm:$0xff]
  %v7252 = vld [vmem:[%s9 + $0x1364] sm:$0xff]
  %v7253 = vld [vmem:[%s9 + $0x136c] sm:$0xff]
  %v7254 = vld [vmem:[%s9 + $0x1374] sm:$0xf]
  %v7255 = vld [vmem:[%s9 + $0x1378] sm:$0xff]
  %v7256 = vld [vmem:[%s9 + $0x1380] sm:$0xff]
  %v7257 = vld [vmem:[%s9 + $0x1388] sm:$0xff]
  %v7258 = vld [vmem:[%s9 + $0x1390] sm:$0xf]
  %v7259 = vld [vmem:[%s9 + $0x1394] sm:$0xff]
  %v7260 = vld [vmem:[%s9 + $0x139c] sm:$0xff]
  %v7261 = vld [vmem:[%s9 + $0x13a4] sm:$0xff]
  %v7262 = vld [vmem:[%s9 + $0x13ac] sm:$0xf]
  %v7263 = vld [vmem:[%s9 + $0x13b0] sm:$0xff]
  %v7264 = vld [vmem:[%s9 + $0x13b8] sm:$0xff]
  %v7265 = vld [vmem:[%s9 + $0x13c0] sm:$0xff]
  %v7266 = vld [vmem:[%s9 + $0x13c8] sm:$0xf]
  %v7267 = vld [vmem:[%s9 + $0x13cc] sm:$0xff]
  %v7268 = vld [vmem:[%s9 + $0x13d4] sm:$0xff]
  %v7269 = vld [vmem:[%s9 + $0x13dc] sm:$0xff]
  %v7270 = vld [vmem:[%s9 + $0x13e4] sm:$0xf]
  %v7271 = vld [vmem:[%s9 + $0x13e8] sm:$0xff]
  %v7272 = vld [vmem:[%s9 + $0x13f0] sm:$0xff]
  %v7273 = vld [vmem:[%s9 + $0x13f8] sm:$0xff]
  %v7274 = vld [vmem:[%s9 + $0x1400] sm:$0xf]
  %v7275 = vld [vmem:[%s9 + $0x1404] sm:$0xff]
  %v7276 = vld [vmem:[%s9 + $0x140c] sm:$0xff]
  %v7277 = vld [vmem:[%s9 + $0x1414] sm:$0xff]
  %v7278 = vld [vmem:[%s9 + $0x141c] sm:$0xf]
  %v7279 = vld [vmem:[%s9 + $0x1420] sm:$0xff]
  %v7280 = vld [vmem:[%s9 + $0x1428] sm:$0xff]
  %v7281 = vld [vmem:[%s9 + $0x1430] sm:$0xff]
  %v7282 = vld [vmem:[%s9 + $0x1438] sm:$0xf]
  %v7283 = vld [vmem:[%s9 + $0x143c] sm:$0xff]
  %v7284 = vld [vmem:[%s9 + $0x1444] sm:$0xff]
  %v7285 = vld [vmem:[%s9 + $0x144c] sm:$0xff]
  %v7286 = vld [vmem:[%s9 + $0x1454] sm:$0xf]
  %v7287 = vld [vmem:[%s9 + $0x1458] sm:$0xff]
  %v7288 = vld [vmem:[%s9 + $0x1460] sm:$0xff]
  %v7289 = vld [vmem:[%s9 + $0x1468] sm:$0xff]
  %v7290 = vld [vmem:[%s9 + $0x1470] sm:$0xf]
  %v7291 = vld [vmem:[%s9 + $0x1474] sm:$0xff]
  %v7292 = vld [vmem:[%s9 + $0x147c] sm:$0xff]
  %v7293 = vld [vmem:[%s9 + $0x1484] sm:$0xff]
  %v7294 = vld [vmem:[%s9 + $0x148c] sm:$0xf]
  %v7295 = vld [vmem:[%s9 + $0x1490] sm:$0xff]
  %v7296 = vld [vmem:[%s9 + $0x1498] sm:$0xff]
  %v7297 = vld [vmem:[%s9 + $0x14a0] sm:$0xff]
  %v7298 = vld [vmem:[%s9 + $0x14a8] sm:$0xf]
  %v7299 = vld [vmem:[%s9 + $0x14ac] sm:$0xff]
  %v7300 = vld [vmem:[%s9 + $0x14b4] sm:$0xff]
  %v7301 = vld [vmem:[%s9 + $0x14bc] sm:$0xff]
  %v7302 = vld [vmem:[%s9 + $0x14c4] sm:$0xf]
  %v7303 = vld [vmem:[%s9 + $0x14c8] sm:$0xff]
  %v7304 = vld [vmem:[%s9 + $0x14d0] sm:$0xff]
  %v7305 = vld [vmem:[%s9 + $0x14d8] sm:$0xff]
  %v7306 = vld [vmem:[%s9 + $0x14e0] sm:$0xf]
  %v7307 = vld [vmem:[%s9 + $0x14e4] sm:$0xff]
  %v7308 = vld [vmem:[%s9 + $0x14ec] sm:$0xff]
  %v7309 = vld [vmem:[%s9 + $0x14f4] sm:$0xff]
  %v7310 = vld [vmem:[%s9 + $0x14fc] sm:$0xf]
  %v7311 = vld [vmem:[%s9 + $0x1500] sm:$0xff]
  %v7312 = vld [vmem:[%s9 + $0x1508] sm:$0xff]
  %v7313 = vld [vmem:[%s9 + $0x1510] sm:$0xff]
  %v7314 = vld [vmem:[%s9 + $0x1518] sm:$0xf]
  %v7315 = vld [vmem:[%s9 + $0x151c] sm:$0xff]
  %v7316 = vld [vmem:[%s9 + $0x1524] sm:$0xff]
  %v7317 = vld [vmem:[%s9 + $0x152c] sm:$0xff]
  %v7318 = vld [vmem:[%s9 + $0x1534] sm:$0xf]
  %v7319 = vld [vmem:[%s9 + $0x1538] sm:$0xff]
  %v7320 = vld [vmem:[%s9 + $0x1540] sm:$0xff]
  %v7321 = vld [vmem:[%s9 + $0x1548] sm:$0xff]
  %v7322 = vld [vmem:[%s9 + $0x1550] sm:$0xf]
  %v7323 = vld [vmem:[%s9 + $0x1554] sm:$0xff]
  %v7324 = vld [vmem:[%s9 + $0x155c] sm:$0xff]
  %v7325 = vld [vmem:[%s9 + $0x1564] sm:$0xff]
  %v7326 = vld [vmem:[%s9 + $0x156c] sm:$0xf]
  %v7327 = vld [vmem:[%s10] sm:$0x7f]
  %v7329 = vperm.slane %v7327, 0
  %v7330 = vperm.slane %v7327, 1
  %v7331 = vperm.slane %v7327, 2
  %v7332 = vperm.slane %v7327, 3
  %v7333 = vperm.slane %v7327, 4
  %v7334 = vperm.slane %v7327, 5
  %v7335 = vperm.slane %v7327, 6
  %v8127 = vunpack.c.l.b16 %v6543
  %v8128 = vunpack.c.h.b16 %v6543
  %v8129 = vunpack.c.l.b16 %v6544
  %v8130 = vunpack.c.h.b16 %v6544
  %v8131 = vunpack.c.l.b16 %v6545
  %v8132 = vunpack.c.h.b16 %v6545
  %v8133 = vunpack.c.l.b16 %v6546
  %v8134 = vunpack.c.l.b16 %v6547
  %v8135 = vunpack.c.h.b16 %v6547
  %v8136 = vunpack.c.l.b16 %v6548
  %v8137 = vunpack.c.h.b16 %v6548
  %v8138 = vunpack.c.l.b16 %v6549
  %v8139 = vunpack.c.h.b16 %v6549
  %v8140 = vunpack.c.l.b16 %v6550
  %v8141 = vunpack.c.l.b16 %v6551
  %v8142 = vunpack.c.h.b16 %v6551
  %v8143 = vunpack.c.l.b16 %v6552
  %v8144 = vunpack.c.h.b16 %v6552
  %v8145 = vunpack.c.l.b16 %v6553
  %v8146 = vunpack.c.h.b16 %v6553
  %v8147 = vunpack.c.l.b16 %v6554
  %v8148 = vunpack.c.l.b16 %v6555
  %v8149 = vunpack.c.h.b16 %v6555
  %v8150 = vunpack.c.l.b16 %v6556
  %v8151 = vunpack.c.h.b16 %v6556
  %v8152 = vunpack.c.l.b16 %v6557
  %v8153 = vunpack.c.h.b16 %v6557
  %v8154 = vunpack.c.l.b16 %v6558
  %v8155 = vunpack.c.l.b16 %v6559
  %v8156 = vunpack.c.h.b16 %v6559
  %v8157 = vunpack.c.l.b16 %v6560
  %v8158 = vunpack.c.h.b16 %v6560
  %v8159 = vunpack.c.l.b16 %v6561
  %v8160 = vunpack.c.h.b16 %v6561
  %v8161 = vunpack.c.l.b16 %v6562
  %v8162 = vunpack.c.l.b16 %v6563
  %v8163 = vunpack.c.h.b16 %v6563
  %v8164 = vunpack.c.l.b16 %v6564
  %v8165 = vunpack.c.h.b16 %v6564
  %v8166 = vunpack.c.l.b16 %v6565
  %v8167 = vunpack.c.h.b16 %v6565
  %v8168 = vunpack.c.l.b16 %v6566
  %v8169 = vunpack.c.l.b16 %v6567
  %v8170 = vunpack.c.h.b16 %v6567
  %v8171 = vunpack.c.l.b16 %v6568
  %v8172 = vunpack.c.h.b16 %v6568
  %v8173 = vunpack.c.l.b16 %v6569
  %v8174 = vunpack.c.h.b16 %v6569
  %v8175 = vunpack.c.l.b16 %v6570
  %v8176 = vunpack.c.l.b16 %v6571
  %v8177 = vunpack.c.h.b16 %v6571
  %v8178 = vunpack.c.l.b16 %v6572
  %v8179 = vunpack.c.h.b16 %v6572
  %v8180 = vunpack.c.l.b16 %v6573
  %v8181 = vunpack.c.h.b16 %v6573
  %v8182 = vunpack.c.l.b16 %v6574
  %v8183 = vunpack.c.l.b16 %v6575
  %v8184 = vunpack.c.h.b16 %v6575
  %v8185 = vunpack.c.l.b16 %v6576
  %v8186 = vunpack.c.h.b16 %v6576
  %v8187 = vunpack.c.l.b16 %v6577
  %v8188 = vunpack.c.h.b16 %v6577
  %v8189 = vunpack.c.l.b16 %v6578
  %v8190 = vunpack.c.l.b16 %v6579
  %v8191 = vunpack.c.h.b16 %v6579
  %v8192 = vunpack.c.l.b16 %v6580
  %v8193 = vunpack.c.h.b16 %v6580
  %v8194 = vunpack.c.l.b16 %v6581
  %v8195 = vunpack.c.h.b16 %v6581
  %v8196 = vunpack.c.l.b16 %v6582
  %v8197 = vunpack.c.l.b16 %v6583
  %v8198 = vunpack.c.h.b16 %v6583
  %v8199 = vunpack.c.l.b16 %v6584
  %v8200 = vunpack.c.h.b16 %v6584
  %v8201 = vunpack.c.l.b16 %v6585
  %v8202 = vunpack.c.h.b16 %v6585
  %v8203 = vunpack.c.l.b16 %v6586
  %v8204 = vunpack.c.l.b16 %v6587
  %v8205 = vunpack.c.h.b16 %v6587
  %v8206 = vunpack.c.l.b16 %v6588
  %v8207 = vunpack.c.h.b16 %v6588
  %v8208 = vunpack.c.l.b16 %v6589
  %v8209 = vunpack.c.h.b16 %v6589
  %v8210 = vunpack.c.l.b16 %v6590
  %v8211 = vunpack.c.l.b16 %v6591
  %v8212 = vunpack.c.h.b16 %v6591
  %v8213 = vunpack.c.l.b16 %v6592
  %v8214 = vunpack.c.h.b16 %v6592
  %v8215 = vunpack.c.l.b16 %v6593
  %v8216 = vunpack.c.h.b16 %v6593
  %v8217 = vunpack.c.l.b16 %v6594
  %v8218 = vunpack.c.l.b16 %v6595
  %v8219 = vunpack.c.h.b16 %v6595
  %v8220 = vunpack.c.l.b16 %v6596
  %v8221 = vunpack.c.h.b16 %v6596
  %v8222 = vunpack.c.l.b16 %v6597
  %v8223 = vunpack.c.h.b16 %v6597
  %v8224 = vunpack.c.l.b16 %v6598
  %v8225 = vunpack.c.l.b16 %v6599
  %v8226 = vunpack.c.h.b16 %v6599
  %v8227 = vunpack.c.l.b16 %v6600
  %v8228 = vunpack.c.h.b16 %v6600
  %v8229 = vunpack.c.l.b16 %v6601
  %v8230 = vunpack.c.h.b16 %v6601
  %v8231 = vunpack.c.l.b16 %v6602
  %v8232 = vunpack.c.l.b16 %v6603
  %v8233 = vunpack.c.h.b16 %v6603
  %v8234 = vunpack.c.l.b16 %v6604
  %v8235 = vunpack.c.h.b16 %v6604
  %v8236 = vunpack.c.l.b16 %v6605
  %v8237 = vunpack.c.h.b16 %v6605
  %v8238 = vunpack.c.l.b16 %v6606
  %v8239 = vunpack.c.l.b16 %v6607
  %v8240 = vunpack.c.h.b16 %v6607
  %v8241 = vunpack.c.l.b16 %v6608
  %v8242 = vunpack.c.h.b16 %v6608
  %v8243 = vunpack.c.l.b16 %v6609
  %v8244 = vunpack.c.h.b16 %v6609
  %v8245 = vunpack.c.l.b16 %v6610
  %v8246 = vunpack.c.l.b16 %v6611
  %v8247 = vunpack.c.h.b16 %v6611
  %v8248 = vunpack.c.l.b16 %v6612
  %v8249 = vunpack.c.h.b16 %v6612
  %v8250 = vunpack.c.l.b16 %v6613
  %v8251 = vunpack.c.h.b16 %v6613
  %v8252 = vunpack.c.l.b16 %v6614
  %v8253 = vunpack.c.l.b16 %v6615
  %v8254 = vunpack.c.h.b16 %v6615
  %v8255 = vunpack.c.l.b16 %v6616
  %v8256 = vunpack.c.h.b16 %v6616
  %v8257 = vunpack.c.l.b16 %v6617
  %v8258 = vunpack.c.h.b16 %v6617
  %v8259 = vunpack.c.l.b16 %v6618
  %v8260 = vunpack.c.l.b16 %v6619
  %v8261 = vunpack.c.h.b16 %v6619
  %v8262 = vunpack.c.l.b16 %v6620
  %v8263 = vunpack.c.h.b16 %v6620
  %v8264 = vunpack.c.l.b16 %v6621
  %v8265 = vunpack.c.h.b16 %v6621
  %v8266 = vunpack.c.l.b16 %v6622
  %v8267 = vunpack.c.l.b16 %v6623
  %v8268 = vunpack.c.h.b16 %v6623
  %v8269 = vunpack.c.l.b16 %v6624
  %v8270 = vunpack.c.h.b16 %v6624
  %v8271 = vunpack.c.l.b16 %v6625
  %v8272 = vunpack.c.h.b16 %v6625
  %v8273 = vunpack.c.l.b16 %v6626
  %v8274 = vunpack.c.l.b16 %v6627
  %v8275 = vunpack.c.h.b16 %v6627
  %v8276 = vunpack.c.l.b16 %v6628
  %v8277 = vunpack.c.h.b16 %v6628
  %v8278 = vunpack.c.l.b16 %v6629
  %v8279 = vunpack.c.h.b16 %v6629
  %v8280 = vunpack.c.l.b16 %v6630
  %v8281 = vunpack.c.l.b16 %v6631
  %v8282 = vunpack.c.h.b16 %v6631
  %v8283 = vunpack.c.l.b16 %v6632
  %v8284 = vunpack.c.h.b16 %v6632
  %v8285 = vunpack.c.l.b16 %v6633
  %v8286 = vunpack.c.h.b16 %v6633
  %v8287 = vunpack.c.l.b16 %v6634
  %v8288 = vunpack.c.l.b16 %v6635
  %v8289 = vunpack.c.h.b16 %v6635
  %v8290 = vunpack.c.l.b16 %v6636
  %v8291 = vunpack.c.h.b16 %v6636
  %v8292 = vunpack.c.l.b16 %v6637
  %v8293 = vunpack.c.h.b16 %v6637
  %v8294 = vunpack.c.l.b16 %v6638
  %v8295 = vunpack.c.l.b16 %v6639
  %v8296 = vunpack.c.h.b16 %v6639
  %v8297 = vunpack.c.l.b16 %v6640
  %v8298 = vunpack.c.h.b16 %v6640
  %v8299 = vunpack.c.l.b16 %v6641
  %v8300 = vunpack.c.h.b16 %v6641
  %v8301 = vunpack.c.l.b16 %v6642
  %v8302 = vunpack.c.l.b16 %v6643
  %v8303 = vunpack.c.h.b16 %v6643
  %v8304 = vunpack.c.l.b16 %v6644
  %v8305 = vunpack.c.h.b16 %v6644
  %v8306 = vunpack.c.l.b16 %v6645
  %v8307 = vunpack.c.h.b16 %v6645
  %v8308 = vunpack.c.l.b16 %v6646
  %v8309 = vunpack.c.l.b16 %v6647
  %v8310 = vunpack.c.h.b16 %v6647
  %v8311 = vunpack.c.l.b16 %v6648
  %v8312 = vunpack.c.h.b16 %v6648
  %v8313 = vunpack.c.l.b16 %v6649
  %v8314 = vunpack.c.h.b16 %v6649
  %v8315 = vunpack.c.l.b16 %v6650
  %v8316 = vunpack.c.l.b16 %v6651
  %v8317 = vunpack.c.h.b16 %v6651
  %v8318 = vunpack.c.l.b16 %v6652
  %v8319 = vunpack.c.h.b16 %v6652
  %v8320 = vunpack.c.l.b16 %v6653
  %v8321 = vunpack.c.h.b16 %v6653
  %v8322 = vunpack.c.l.b16 %v6654
  %v8323 = vunpack.c.l.b16 %v6655
  %v8324 = vunpack.c.h.b16 %v6655
  %v8325 = vunpack.c.l.b16 %v6656
  %v8326 = vunpack.c.h.b16 %v6656
  %v8327 = vunpack.c.l.b16 %v6657
  %v8328 = vunpack.c.h.b16 %v6657
  %v8329 = vunpack.c.l.b16 %v6658
  %v8330 = vunpack.c.l.b16 %v6659
  %v8331 = vunpack.c.h.b16 %v6659
  %v8332 = vunpack.c.l.b16 %v6660
  %v8333 = vunpack.c.h.b16 %v6660
  %v8334 = vunpack.c.l.b16 %v6661
  %v8335 = vunpack.c.h.b16 %v6661
  %v8336 = vunpack.c.l.b16 %v6662
  %v8337 = vunpack.c.l.b16 %v6663
  %v8338 = vunpack.c.h.b16 %v6663
  %v8339 = vunpack.c.l.b16 %v6664
  %v8340 = vunpack.c.h.b16 %v6664
  %v8341 = vunpack.c.l.b16 %v6665
  %v8342 = vunpack.c.h.b16 %v6665
  %v8343 = vunpack.c.l.b16 %v6666
  %v8344 = vunpack.c.l.b16 %v6667
  %v8345 = vunpack.c.h.b16 %v6667
  %v8346 = vunpack.c.l.b16 %v6668
  %v8347 = vunpack.c.h.b16 %v6668
  %v8348 = vunpack.c.l.b16 %v6669
  %v8349 = vunpack.c.h.b16 %v6669
  %v8350 = vunpack.c.l.b16 %v6670
  %v8351 = vunpack.c.l.b16 %v6671
  %v8352 = vunpack.c.h.b16 %v6671
  %v8353 = vunpack.c.l.b16 %v6672
  %v8354 = vunpack.c.h.b16 %v6672
  %v8355 = vunpack.c.l.b16 %v6673
  %v8356 = vunpack.c.h.b16 %v6673
  %v8357 = vunpack.c.l.b16 %v6674
  %v8358 = vunpack.c.l.b16 %v6675
  %v8359 = vunpack.c.h.b16 %v6675
  %v8360 = vunpack.c.l.b16 %v6676
  %v8361 = vunpack.c.h.b16 %v6676
  %v8362 = vunpack.c.l.b16 %v6677
  %v8363 = vunpack.c.h.b16 %v6677
  %v8364 = vunpack.c.l.b16 %v6678
  %v8365 = vunpack.c.l.b16 %v6679
  %v8366 = vunpack.c.h.b16 %v6679
  %v8367 = vunpack.c.l.b16 %v6680
  %v8368 = vunpack.c.h.b16 %v6680
  %v8369 = vunpack.c.l.b16 %v6681
  %v8370 = vunpack.c.h.b16 %v6681
  %v8371 = vunpack.c.l.b16 %v6682
  %v8372 = vunpack.c.l.b16 %v6683
  %v8373 = vunpack.c.h.b16 %v6683
  %v8374 = vunpack.c.l.b16 %v6684
  %v8375 = vunpack.c.h.b16 %v6684
  %v8376 = vunpack.c.l.b16 %v6685
  %v8377 = vunpack.c.h.b16 %v6685
  %v8378 = vunpack.c.l.b16 %v6686
  %v8379 = vunpack.c.l.b16 %v6687
  %v8380 = vunpack.c.h.b16 %v6687
  %v8381 = vunpack.c.l.b16 %v6688
  %v8382 = vunpack.c.h.b16 %v6688
  %v8383 = vunpack.c.l.b16 %v6689
  %v8384 = vunpack.c.h.b16 %v6689
  %v8385 = vunpack.c.l.b16 %v6690
  %v8386 = vunpack.c.l.b16 %v6691
  %v8387 = vunpack.c.h.b16 %v6691
  %v8388 = vunpack.c.l.b16 %v6692
  %v8389 = vunpack.c.h.b16 %v6692
  %v8390 = vunpack.c.l.b16 %v6693
  %v8391 = vunpack.c.h.b16 %v6693
  %v8392 = vunpack.c.l.b16 %v6694
  %v8393 = vunpack.c.l.b16 %v6695
  %v8394 = vunpack.c.h.b16 %v6695
  %v8395 = vunpack.c.l.b16 %v6696
  %v8396 = vunpack.c.h.b16 %v6696
  %v8397 = vunpack.c.l.b16 %v6697
  %v8398 = vunpack.c.h.b16 %v6697
  %v8399 = vunpack.c.l.b16 %v6698
  %v8400 = vunpack.c.l.b16 %v6699
  %v8401 = vunpack.c.h.b16 %v6699
  %v8402 = vunpack.c.l.b16 %v6700
  %v8403 = vunpack.c.h.b16 %v6700
  %v8404 = vunpack.c.l.b16 %v6701
  %v8405 = vunpack.c.h.b16 %v6701
  %v8406 = vunpack.c.l.b16 %v6702
  %v8407 = vunpack.c.l.b16 %v6703
  %v8408 = vunpack.c.h.b16 %v6703
  %v8409 = vunpack.c.l.b16 %v6704
  %v8410 = vunpack.c.h.b16 %v6704
  %v8411 = vunpack.c.l.b16 %v6705
  %v8412 = vunpack.c.h.b16 %v6705
  %v8413 = vunpack.c.l.b16 %v6706
  %v8414 = vunpack.c.l.b16 %v6707
  %v8415 = vunpack.c.h.b16 %v6707
  %v8416 = vunpack.c.l.b16 %v6708
  %v8417 = vunpack.c.h.b16 %v6708
  %v8418 = vunpack.c.l.b16 %v6709
  %v8419 = vunpack.c.h.b16 %v6709
  %v8420 = vunpack.c.l.b16 %v6710
  %v8421 = vunpack.c.l.b16 %v6711
  %v8422 = vunpack.c.h.b16 %v6711
  %v8423 = vunpack.c.l.b16 %v6712
  %v8424 = vunpack.c.h.b16 %v6712
  %v8425 = vunpack.c.l.b16 %v6713
  %v8426 = vunpack.c.h.b16 %v6713
  %v8427 = vunpack.c.l.b16 %v6714
  %v8428 = vunpack.c.l.b16 %v6715
  %v8429 = vunpack.c.h.b16 %v6715
  %v8430 = vunpack.c.l.b16 %v6716
  %v8431 = vunpack.c.h.b16 %v6716
  %v8432 = vunpack.c.l.b16 %v6717
  %v8433 = vunpack.c.h.b16 %v6717
  %v8434 = vunpack.c.l.b16 %v6718
  %v8435 = vunpack.c.l.b16 %v6719
  %v8436 = vunpack.c.h.b16 %v6719
  %v8437 = vunpack.c.l.b16 %v6720
  %v8438 = vunpack.c.h.b16 %v6720
  %v8439 = vunpack.c.l.b16 %v6721
  %v8440 = vunpack.c.h.b16 %v6721
  %v8441 = vunpack.c.l.b16 %v6722
  %v8442 = vunpack.c.l.b16 %v6723
  %v8443 = vunpack.c.h.b16 %v6723
  %v8444 = vunpack.c.l.b16 %v6724
  %v8445 = vunpack.c.h.b16 %v6724
  %v8446 = vunpack.c.l.b16 %v6725
  %v8447 = vunpack.c.h.b16 %v6725
  %v8448 = vunpack.c.l.b16 %v6726
  %v8449 = vunpack.c.l.b16 %v6727
  %v8450 = vunpack.c.h.b16 %v6727
  %v8451 = vunpack.c.l.b16 %v6728
  %v8452 = vunpack.c.h.b16 %v6728
  %v8453 = vunpack.c.l.b16 %v6729
  %v8454 = vunpack.c.h.b16 %v6729
  %v8455 = vunpack.c.l.b16 %v6730
  %v8456 = vunpack.c.l.b16 %v6731
  %v8457 = vunpack.c.h.b16 %v6731
  %v8458 = vunpack.c.l.b16 %v6732
  %v8459 = vunpack.c.h.b16 %v6732
  %v8460 = vunpack.c.l.b16 %v6733
  %v8461 = vunpack.c.h.b16 %v6733
  %v8462 = vunpack.c.l.b16 %v6734
  %v8463 = vunpack.c.l.b16 %v6735
  %v8464 = vunpack.c.h.b16 %v6735
  %v8465 = vunpack.c.l.b16 %v6736
  %v8466 = vunpack.c.h.b16 %v6736
  %v8467 = vunpack.c.l.b16 %v6737
  %v8468 = vunpack.c.h.b16 %v6737
  %v8469 = vunpack.c.l.b16 %v6738
  %v8470 = vunpack.c.l.b16 %v6739
  %v8471 = vunpack.c.h.b16 %v6739
  %v8472 = vunpack.c.l.b16 %v6740
  %v8473 = vunpack.c.h.b16 %v6740
  %v8474 = vunpack.c.l.b16 %v6741
  %v8475 = vunpack.c.h.b16 %v6741
  %v8476 = vunpack.c.l.b16 %v6742
  %v8477 = vunpack.c.l.b16 %v6743
  %v8478 = vunpack.c.h.b16 %v6743
  %v8479 = vunpack.c.l.b16 %v6744
  %v8480 = vunpack.c.h.b16 %v6744
  %v8481 = vunpack.c.l.b16 %v6745
  %v8482 = vunpack.c.h.b16 %v6745
  %v8483 = vunpack.c.l.b16 %v6746
  %v8484 = vunpack.c.l.b16 %v6747
  %v8485 = vunpack.c.h.b16 %v6747
  %v8486 = vunpack.c.l.b16 %v6748
  %v8487 = vunpack.c.h.b16 %v6748
  %v8488 = vunpack.c.l.b16 %v6749
  %v8489 = vunpack.c.h.b16 %v6749
  %v8490 = vunpack.c.l.b16 %v6750
  %v8491 = vunpack.c.l.b16 %v6751
  %v8492 = vunpack.c.h.b16 %v6751
  %v8493 = vunpack.c.l.b16 %v6752
  %v8494 = vunpack.c.h.b16 %v6752
  %v8495 = vunpack.c.l.b16 %v6753
  %v8496 = vunpack.c.h.b16 %v6753
  %v8497 = vunpack.c.l.b16 %v6754
  %v8498 = vunpack.c.l.b16 %v6755
  %v8499 = vunpack.c.h.b16 %v6755
  %v8500 = vunpack.c.l.b16 %v6756
  %v8501 = vunpack.c.h.b16 %v6756
  %v8502 = vunpack.c.l.b16 %v6757
  %v8503 = vunpack.c.h.b16 %v6757
  %v8504 = vunpack.c.l.b16 %v6758
  %v8505 = vunpack.c.l.b16 %v6759
  %v8506 = vunpack.c.h.b16 %v6759
  %v8507 = vunpack.c.l.b16 %v6760
  %v8508 = vunpack.c.h.b16 %v6760
  %v8509 = vunpack.c.l.b16 %v6761
  %v8510 = vunpack.c.h.b16 %v6761
  %v8511 = vunpack.c.l.b16 %v6762
  %v8512 = vunpack.c.l.b16 %v6763
  %v8513 = vunpack.c.h.b16 %v6763
  %v8514 = vunpack.c.l.b16 %v6764
  %v8515 = vunpack.c.h.b16 %v6764
  %v8516 = vunpack.c.l.b16 %v6765
  %v8517 = vunpack.c.h.b16 %v6765
  %v8518 = vunpack.c.l.b16 %v6766
  %v8519 = vunpack.c.l.b16 %v6767
  %v8520 = vunpack.c.h.b16 %v6767
  %v8521 = vunpack.c.l.b16 %v6768
  %v8522 = vunpack.c.h.b16 %v6768
  %v8523 = vunpack.c.l.b16 %v6769
  %v8524 = vunpack.c.h.b16 %v6769
  %v8525 = vunpack.c.l.b16 %v6770
  %v8526 = vunpack.c.l.b16 %v6771
  %v8527 = vunpack.c.h.b16 %v6771
  %v8528 = vunpack.c.l.b16 %v6772
  %v8529 = vunpack.c.h.b16 %v6772
  %v8530 = vunpack.c.l.b16 %v6773
  %v8531 = vunpack.c.h.b16 %v6773
  %v8532 = vunpack.c.l.b16 %v6774
  %v8533 = vunpack.c.l.b16 %v6775
  %v8534 = vunpack.c.h.b16 %v6775
  %v8535 = vunpack.c.l.b16 %v6776
  %v8536 = vunpack.c.h.b16 %v6776
  %v8537 = vunpack.c.l.b16 %v6777
  %v8538 = vunpack.c.h.b16 %v6777
  %v8539 = vunpack.c.l.b16 %v6778
  %v8540 = vunpack.c.l.b16 %v6779
  %v8541 = vunpack.c.h.b16 %v6779
  %v8542 = vunpack.c.l.b16 %v6780
  %v8543 = vunpack.c.h.b16 %v6780
  %v8544 = vunpack.c.l.b16 %v6781
  %v8545 = vunpack.c.h.b16 %v6781
  %v8546 = vunpack.c.l.b16 %v6782
  %v8547 = vunpack.c.l.b16 %v6783
  %v8548 = vunpack.c.h.b16 %v6783
  %v8549 = vunpack.c.l.b16 %v6784
  %v8550 = vunpack.c.h.b16 %v6784
  %v8551 = vunpack.c.l.b16 %v6785
  %v8552 = vunpack.c.h.b16 %v6785
  %v8553 = vunpack.c.l.b16 %v6786
  %v8554 = vunpack.c.l.b16 %v6787
  %v8555 = vunpack.c.h.b16 %v6787
  %v8556 = vunpack.c.l.b16 %v6788
  %v8557 = vunpack.c.h.b16 %v6788
  %v8558 = vunpack.c.l.b16 %v6789
  %v8559 = vunpack.c.h.b16 %v6789
  %v8560 = vunpack.c.l.b16 %v6790
  %v8561 = vunpack.c.l.b16 %v6791
  %v8562 = vunpack.c.h.b16 %v6791
  %v8563 = vunpack.c.l.b16 %v6792
  %v8564 = vunpack.c.h.b16 %v6792
  %v8565 = vunpack.c.l.b16 %v6793
  %v8566 = vunpack.c.h.b16 %v6793
  %v8567 = vunpack.c.l.b16 %v6794
  %v8568 = vunpack.c.l.b16 %v6795
  %v8569 = vunpack.c.h.b16 %v6795
  %v8570 = vunpack.c.l.b16 %v6796
  %v8571 = vunpack.c.h.b16 %v6796
  %v8572 = vunpack.c.l.b16 %v6797
  %v8573 = vunpack.c.h.b16 %v6797
  %v8574 = vunpack.c.l.b16 %v6798
  %v8575 = vunpack.c.l.b16 %v6799
  %v8576 = vunpack.c.h.b16 %v6799
  %v8577 = vunpack.c.l.b16 %v6800
  %v8578 = vunpack.c.h.b16 %v6800
  %v8579 = vunpack.c.l.b16 %v6801
  %v8580 = vunpack.c.h.b16 %v6801
  %v8581 = vunpack.c.l.b16 %v6802
  %v8582 = vunpack.c.l.b16 %v6803
  %v8583 = vunpack.c.h.b16 %v6803
  %v8584 = vunpack.c.l.b16 %v6804
  %v8585 = vunpack.c.h.b16 %v6804
  %v8586 = vunpack.c.l.b16 %v6805
  %v8587 = vunpack.c.h.b16 %v6805
  %v8588 = vunpack.c.l.b16 %v6806
  %v8589 = vunpack.c.l.b16 %v6807
  %v8590 = vunpack.c.h.b16 %v6807
  %v8591 = vunpack.c.l.b16 %v6808
  %v8592 = vunpack.c.h.b16 %v6808
  %v8593 = vunpack.c.l.b16 %v6809
  %v8594 = vunpack.c.h.b16 %v6809
  %v8595 = vunpack.c.l.b16 %v6810
  %v8596 = vunpack.c.l.b16 %v6811
  %v8597 = vunpack.c.h.b16 %v6811
  %v8598 = vunpack.c.l.b16 %v6812
  %v8599 = vunpack.c.h.b16 %v6812
  %v8600 = vunpack.c.l.b16 %v6813
  %v8601 = vunpack.c.h.b16 %v6813
  %v8602 = vunpack.c.l.b16 %v6814
  %v8603 = vunpack.c.l.b16 %v6815
  %v8604 = vunpack.c.h.b16 %v6815
  %v8605 = vunpack.c.l.b16 %v6816
  %v8606 = vunpack.c.h.b16 %v6816
  %v8607 = vunpack.c.l.b16 %v6817
  %v8608 = vunpack.c.h.b16 %v6817
  %v8609 = vunpack.c.l.b16 %v6818
  %v8610 = vunpack.c.l.b16 %v6819
  %v8611 = vunpack.c.h.b16 %v6819
  %v8612 = vunpack.c.l.b16 %v6820
  %v8613 = vunpack.c.h.b16 %v6820
  %v8614 = vunpack.c.l.b16 %v6821
  %v8615 = vunpack.c.h.b16 %v6821
  %v8616 = vunpack.c.l.b16 %v6822
  %v8617 = vunpack.c.l.b16 %v6823
  %v8618 = vunpack.c.h.b16 %v6823
  %v8619 = vunpack.c.l.b16 %v6824
  %v8620 = vunpack.c.h.b16 %v6824
  %v8621 = vunpack.c.l.b16 %v6825
  %v8622 = vunpack.c.h.b16 %v6825
  %v8623 = vunpack.c.l.b16 %v6826
  %v8624 = vunpack.c.l.b16 %v6827
  %v8625 = vunpack.c.h.b16 %v6827
  %v8626 = vunpack.c.l.b16 %v6828
  %v8627 = vunpack.c.h.b16 %v6828
  %v8628 = vunpack.c.l.b16 %v6829
  %v8629 = vunpack.c.h.b16 %v6829
  %v8630 = vunpack.c.l.b16 %v6830
  %v8631 = vunpack.c.l.b16 %v6831
  %v8632 = vunpack.c.h.b16 %v6831
  %v8633 = vunpack.c.l.b16 %v6832
  %v8634 = vunpack.c.h.b16 %v6832
  %v8635 = vunpack.c.l.b16 %v6833
  %v8636 = vunpack.c.h.b16 %v6833
  %v8637 = vunpack.c.l.b16 %v6834
  %v8638 = vunpack.c.l.b16 %v6835
  %v8639 = vunpack.c.h.b16 %v6835
  %v8640 = vunpack.c.l.b16 %v6836
  %v8641 = vunpack.c.h.b16 %v6836
  %v8642 = vunpack.c.l.b16 %v6837
  %v8643 = vunpack.c.h.b16 %v6837
  %v8644 = vunpack.c.l.b16 %v6838
  %v8645 = vunpack.c.l.b16 %v6839
  %v8646 = vunpack.c.h.b16 %v6839
  %v8647 = vunpack.c.l.b16 %v6840
  %v8648 = vunpack.c.h.b16 %v6840
  %v8649 = vunpack.c.l.b16 %v6841
  %v8650 = vunpack.c.h.b16 %v6841
  %v8651 = vunpack.c.l.b16 %v6842
  %v8652 = vunpack.c.l.b16 %v6843
  %v8653 = vunpack.c.h.b16 %v6843
  %v8654 = vunpack.c.l.b16 %v6844
  %v8655 = vunpack.c.h.b16 %v6844
  %v8656 = vunpack.c.l.b16 %v6845
  %v8657 = vunpack.c.h.b16 %v6845
  %v8658 = vunpack.c.l.b16 %v6846
  %v8659 = vunpack.c.l.b16 %v6847
  %v8660 = vunpack.c.h.b16 %v6847
  %v8661 = vunpack.c.l.b16 %v6848
  %v8662 = vunpack.c.h.b16 %v6848
  %v8663 = vunpack.c.l.b16 %v6849
  %v8664 = vunpack.c.h.b16 %v6849
  %v8665 = vunpack.c.l.b16 %v6850
  %v8666 = vunpack.c.l.b16 %v6851
  %v8667 = vunpack.c.h.b16 %v6851
  %v8668 = vunpack.c.l.b16 %v6852
  %v8669 = vunpack.c.h.b16 %v6852
  %v8670 = vunpack.c.l.b16 %v6853
  %v8671 = vunpack.c.h.b16 %v6853
  %v8672 = vunpack.c.l.b16 %v6854
  %v8673 = vunpack.c.l.b16 %v6855
  %v8674 = vunpack.c.h.b16 %v6855
  %v8675 = vunpack.c.l.b16 %v6856
  %v8676 = vunpack.c.h.b16 %v6856
  %v8677 = vunpack.c.l.b16 %v6857
  %v8678 = vunpack.c.h.b16 %v6857
  %v8679 = vunpack.c.l.b16 %v6858
  %v8680 = vunpack.c.l.b16 %v6859
  %v8681 = vunpack.c.h.b16 %v6859
  %v8682 = vunpack.c.l.b16 %v6860
  %v8683 = vunpack.c.h.b16 %v6860
  %v8684 = vunpack.c.l.b16 %v6861
  %v8685 = vunpack.c.h.b16 %v6861
  %v8686 = vunpack.c.l.b16 %v6862
  %v8687 = vunpack.c.l.b16 %v6863
  %v8688 = vunpack.c.h.b16 %v6863
  %v8689 = vunpack.c.l.b16 %v6864
  %v8690 = vunpack.c.h.b16 %v6864
  %v8691 = vunpack.c.l.b16 %v6865
  %v8692 = vunpack.c.h.b16 %v6865
  %v8693 = vunpack.c.l.b16 %v6866
  %v8694 = vunpack.c.l.b16 %v6867
  %v8695 = vunpack.c.h.b16 %v6867
  %v8696 = vunpack.c.l.b16 %v6868
  %v8697 = vunpack.c.h.b16 %v6868
  %v8698 = vunpack.c.l.b16 %v6869
  %v8699 = vunpack.c.h.b16 %v6869
  %v8700 = vunpack.c.l.b16 %v6870
  %v8701 = vunpack.c.l.b16 %v6871
  %v8702 = vunpack.c.h.b16 %v6871
  %v8703 = vunpack.c.l.b16 %v6872
  %v8704 = vunpack.c.h.b16 %v6872
  %v8705 = vunpack.c.l.b16 %v6873
  %v8706 = vunpack.c.h.b16 %v6873
  %v8707 = vunpack.c.l.b16 %v6874
  %v8708 = vunpack.c.l.b16 %v6875
  %v8709 = vunpack.c.h.b16 %v6875
  %v8710 = vunpack.c.l.b16 %v6876
  %v8711 = vunpack.c.h.b16 %v6876
  %v8712 = vunpack.c.l.b16 %v6877
  %v8713 = vunpack.c.h.b16 %v6877
  %v8714 = vunpack.c.l.b16 %v6878
  %v8715 = vunpack.c.l.b16 %v6879
  %v8716 = vunpack.c.h.b16 %v6879
  %v8717 = vunpack.c.l.b16 %v6880
  %v8718 = vunpack.c.h.b16 %v6880
  %v8719 = vunpack.c.l.b16 %v6881
  %v8720 = vunpack.c.h.b16 %v6881
  %v8721 = vunpack.c.l.b16 %v6882
  %v8722 = vunpack.c.l.b16 %v6883
  %v8723 = vunpack.c.h.b16 %v6883
  %v8724 = vunpack.c.l.b16 %v6884
  %v8725 = vunpack.c.h.b16 %v6884
  %v8726 = vunpack.c.l.b16 %v6885
  %v8727 = vunpack.c.h.b16 %v6885
  %v8728 = vunpack.c.l.b16 %v6886
  %v8729 = vunpack.c.l.b16 %v6887
  %v8730 = vunpack.c.h.b16 %v6887
  %v8731 = vunpack.c.l.b16 %v6888
  %v8732 = vunpack.c.h.b16 %v6888
  %v8733 = vunpack.c.l.b16 %v6889
  %v8734 = vunpack.c.h.b16 %v6889
  %v8735 = vunpack.c.l.b16 %v6890
  %v8736 = vunpack.c.l.b16 %v6891
  %v8737 = vunpack.c.h.b16 %v6891
  %v8738 = vunpack.c.l.b16 %v6892
  %v8739 = vunpack.c.h.b16 %v6892
  %v8740 = vunpack.c.l.b16 %v6893
  %v8741 = vunpack.c.h.b16 %v6893
  %v8742 = vunpack.c.l.b16 %v6894
  %v8743 = vunpack.c.l.b16 %v6895
  %v8744 = vunpack.c.h.b16 %v6895
  %v8745 = vunpack.c.l.b16 %v6896
  %v8746 = vunpack.c.h.b16 %v6896
  %v8747 = vunpack.c.l.b16 %v6897
  %v8748 = vunpack.c.h.b16 %v6897
  %v8749 = vunpack.c.l.b16 %v6898
  %v8750 = vunpack.c.l.b16 %v6899
  %v8751 = vunpack.c.h.b16 %v6899
  %v8752 = vunpack.c.l.b16 %v6900
  %v8753 = vunpack.c.h.b16 %v6900
  %v8754 = vunpack.c.l.b16 %v6901
  %v8755 = vunpack.c.h.b16 %v6901
  %v8756 = vunpack.c.l.b16 %v6902
  %v8757 = vunpack.c.l.b16 %v6903
  %v8758 = vunpack.c.h.b16 %v6903
  %v8759 = vunpack.c.l.b16 %v6904
  %v8760 = vunpack.c.h.b16 %v6904
  %v8761 = vunpack.c.l.b16 %v6905
  %v8762 = vunpack.c.h.b16 %v6905
  %v8763 = vunpack.c.l.b16 %v6906
  %v8764 = vunpack.c.l.b16 %v6907
  %v8765 = vunpack.c.h.b16 %v6907
  %v8766 = vunpack.c.l.b16 %v6908
  %v8767 = vunpack.c.h.b16 %v6908
  %v8768 = vunpack.c.l.b16 %v6909
  %v8769 = vunpack.c.h.b16 %v6909
  %v8770 = vunpack.c.l.b16 %v6910
  %v8771 = vunpack.c.l.b16 %v6911
  %v8772 = vunpack.c.h.b16 %v6911
  %v8773 = vunpack.c.l.b16 %v6912
  %v8774 = vunpack.c.h.b16 %v6912
  %v8775 = vunpack.c.l.b16 %v6913
  %v8776 = vunpack.c.h.b16 %v6913
  %v8777 = vunpack.c.l.b16 %v6914
  %v8778 = vunpack.c.l.b16 %v6915
  %v8779 = vunpack.c.h.b16 %v6915
  %v8780 = vunpack.c.l.b16 %v6916
  %v8781 = vunpack.c.h.b16 %v6916
  %v8782 = vunpack.c.l.b16 %v6917
  %v8783 = vunpack.c.h.b16 %v6917
  %v8784 = vunpack.c.l.b16 %v6918
  %v8785 = vunpack.c.l.b16 %v6919
  %v8786 = vunpack.c.h.b16 %v6919
  %v8787 = vunpack.c.l.b16 %v6920
  %v8788 = vunpack.c.h.b16 %v6920
  %v8789 = vunpack.c.l.b16 %v6921
  %v8790 = vunpack.c.h.b16 %v6921
  %v8791 = vunpack.c.l.b16 %v6922
  %v8792 = vunpack.c.l.b16 %v6923
  %v8793 = vunpack.c.h.b16 %v6923
  %v8794 = vunpack.c.l.b16 %v6924
  %v8795 = vunpack.c.h.b16 %v6924
  %v8796 = vunpack.c.l.b16 %v6925
  %v8797 = vunpack.c.h.b16 %v6925
  %v8798 = vunpack.c.l.b16 %v6926
  %v8799 = vunpack.c.l.b16 %v6927
  %v8800 = vunpack.c.h.b16 %v6927
  %v8801 = vunpack.c.l.b16 %v6928
  %v8802 = vunpack.c.h.b16 %v6928
  %v8803 = vunpack.c.l.b16 %v6929
  %v8804 = vunpack.c.h.b16 %v6929
  %v8805 = vunpack.c.l.b16 %v6930
  %v8806 = vunpack.c.l.b16 %v6931
  %v8807 = vunpack.c.h.b16 %v6931
  %v8808 = vunpack.c.l.b16 %v6932
  %v8809 = vunpack.c.h.b16 %v6932
  %v8810 = vunpack.c.l.b16 %v6933
  %v8811 = vunpack.c.h.b16 %v6933
  %v8812 = vunpack.c.l.b16 %v6934
  %v8813 = vunpack.c.l.b16 %v6935
  %v8814 = vunpack.c.h.b16 %v6935
  %v8815 = vunpack.c.l.b16 %v6936
  %v8816 = vunpack.c.h.b16 %v6936
  %v8817 = vunpack.c.l.b16 %v6937
  %v8818 = vunpack.c.h.b16 %v6937
  %v8819 = vunpack.c.l.b16 %v6938
  %v8820 = vunpack.c.l.b16 %v6939
  %v8821 = vunpack.c.h.b16 %v6939
  %v8822 = vunpack.c.l.b16 %v6940
  %v8823 = vunpack.c.h.b16 %v6940
  %v8824 = vunpack.c.l.b16 %v6941
  %v8825 = vunpack.c.h.b16 %v6941
  %v8826 = vunpack.c.l.b16 %v6942
  %v8827 = vunpack.c.l.b16 %v6943
  %v8828 = vunpack.c.h.b16 %v6943
  %v8829 = vunpack.c.l.b16 %v6944
  %v8830 = vunpack.c.h.b16 %v6944
  %v8831 = vunpack.c.l.b16 %v6945
  %v8832 = vunpack.c.h.b16 %v6945
  %v8833 = vunpack.c.l.b16 %v6946
  %v8834 = vunpack.c.l.b16 %v6947
  %v8835 = vunpack.c.h.b16 %v6947
  %v8836 = vunpack.c.l.b16 %v6948
  %v8837 = vunpack.c.h.b16 %v6948
  %v8838 = vunpack.c.l.b16 %v6949
  %v8839 = vunpack.c.h.b16 %v6949
  %v8840 = vunpack.c.l.b16 %v6950
  %v8841 = vunpack.c.l.b16 %v6951
  %v8842 = vunpack.c.h.b16 %v6951
  %v8843 = vunpack.c.l.b16 %v6952
  %v8844 = vunpack.c.h.b16 %v6952
  %v8845 = vunpack.c.l.b16 %v6953
  %v8846 = vunpack.c.h.b16 %v6953
  %v8847 = vunpack.c.l.b16 %v6954
  %v8848 = vunpack.c.l.b16 %v6955
  %v8849 = vunpack.c.h.b16 %v6955
  %v8850 = vunpack.c.l.b16 %v6956
  %v8851 = vunpack.c.h.b16 %v6956
  %v8852 = vunpack.c.l.b16 %v6957
  %v8853 = vunpack.c.h.b16 %v6957
  %v8854 = vunpack.c.l.b16 %v6958
  %v8855 = vunpack.c.l.b16 %v6959
  %v8856 = vunpack.c.h.b16 %v6959
  %v8857 = vunpack.c.l.b16 %v6960
  %v8858 = vunpack.c.h.b16 %v6960
  %v8859 = vunpack.c.l.b16 %v6961
  %v8860 = vunpack.c.h.b16 %v6961
  %v8861 = vunpack.c.l.b16 %v6962
  %v8862 = vunpack.c.l.b16 %v6963
  %v8863 = vunpack.c.h.b16 %v6963
  %v8864 = vunpack.c.l.b16 %v6964
  %v8865 = vunpack.c.h.b16 %v6964
  %v8866 = vunpack.c.l.b16 %v6965
  %v8867 = vunpack.c.h.b16 %v6965
  %v8868 = vunpack.c.l.b16 %v6966
  %v8869 = vunpack.c.l.b16 %v6967
  %v8870 = vunpack.c.h.b16 %v6967
  %v8871 = vunpack.c.l.b16 %v6968
  %v8872 = vunpack.c.h.b16 %v6968
  %v8873 = vunpack.c.l.b16 %v6969
  %v8874 = vunpack.c.h.b16 %v6969
  %v8875 = vunpack.c.l.b16 %v6970
  %v8876 = vunpack.c.l.b16 %v6971
  %v8877 = vunpack.c.h.b16 %v6971
  %v8878 = vunpack.c.l.b16 %v6972
  %v8879 = vunpack.c.h.b16 %v6972
  %v8880 = vunpack.c.l.b16 %v6973
  %v8881 = vunpack.c.h.b16 %v6973
  %v8882 = vunpack.c.l.b16 %v6974
  %v8883 = vunpack.c.l.b16 %v6975
  %v8884 = vunpack.c.h.b16 %v6975
  %v8885 = vunpack.c.l.b16 %v6976
  %v8886 = vunpack.c.h.b16 %v6976
  %v8887 = vunpack.c.l.b16 %v6977
  %v8888 = vunpack.c.h.b16 %v6977
  %v8889 = vunpack.c.l.b16 %v6978
  %v8890 = vunpack.c.l.b16 %v6979
  %v8891 = vunpack.c.h.b16 %v6979
  %v8892 = vunpack.c.l.b16 %v6980
  %v8893 = vunpack.c.h.b16 %v6980
  %v8894 = vunpack.c.l.b16 %v6981
  %v8895 = vunpack.c.h.b16 %v6981
  %v8896 = vunpack.c.l.b16 %v6982
  %v8897 = vunpack.c.l.b16 %v6983
  %v8898 = vunpack.c.h.b16 %v6983
  %v8899 = vunpack.c.l.b16 %v6984
  %v8900 = vunpack.c.h.b16 %v6984
  %v8901 = vunpack.c.l.b16 %v6985
  %v8902 = vunpack.c.h.b16 %v6985
  %v8903 = vunpack.c.l.b16 %v6986
  %v8904 = vunpack.c.l.b16 %v6987
  %v8905 = vunpack.c.h.b16 %v6987
  %v8906 = vunpack.c.l.b16 %v6988
  %v8907 = vunpack.c.h.b16 %v6988
  %v8908 = vunpack.c.l.b16 %v6989
  %v8909 = vunpack.c.h.b16 %v6989
  %v8910 = vunpack.c.l.b16 %v6990
  %v8911 = vunpack.c.l.b16 %v6991
  %v8912 = vunpack.c.h.b16 %v6991
  %v8913 = vunpack.c.l.b16 %v6992
  %v8914 = vunpack.c.h.b16 %v6992
  %v8915 = vunpack.c.l.b16 %v6993
  %v8916 = vunpack.c.h.b16 %v6993
  %v8917 = vunpack.c.l.b16 %v6994
  %v8918 = vunpack.c.l.b16 %v6995
  %v8919 = vunpack.c.h.b16 %v6995
  %v8920 = vunpack.c.l.b16 %v6996
  %v8921 = vunpack.c.h.b16 %v6996
  %v8922 = vunpack.c.l.b16 %v6997
  %v8923 = vunpack.c.h.b16 %v6997
  %v8924 = vunpack.c.l.b16 %v6998
  %v8925 = vunpack.c.l.b16 %v6999
  %v8926 = vunpack.c.h.b16 %v6999
  %v8927 = vunpack.c.l.b16 %v7000
  %v8928 = vunpack.c.h.b16 %v7000
  %v8929 = vunpack.c.l.b16 %v7001
  %v8930 = vunpack.c.h.b16 %v7001
  %v8931 = vunpack.c.l.b16 %v7002
  %v8932 = vunpack.c.l.b16 %v7003
  %v8933 = vunpack.c.h.b16 %v7003
  %v8934 = vunpack.c.l.b16 %v7004
  %v8935 = vunpack.c.h.b16 %v7004
  %v8936 = vunpack.c.l.b16 %v7005
  %v8937 = vunpack.c.h.b16 %v7005
  %v8938 = vunpack.c.l.b16 %v7006
  %v8939 = vunpack.c.l.b16 %v7007
  %v8940 = vunpack.c.h.b16 %v7007
  %v8941 = vunpack.c.l.b16 %v7008
  %v8942 = vunpack.c.h.b16 %v7008
  %v8943 = vunpack.c.l.b16 %v7009
  %v8944 = vunpack.c.h.b16 %v7009
  %v8945 = vunpack.c.l.b16 %v7010
  %v8946 = vunpack.c.l.b16 %v7011
  %v8947 = vunpack.c.h.b16 %v7011
  %v8948 = vunpack.c.l.b16 %v7012
  %v8949 = vunpack.c.h.b16 %v7012
  %v8950 = vunpack.c.l.b16 %v7013
  %v8951 = vunpack.c.h.b16 %v7013
  %v8952 = vunpack.c.l.b16 %v7014
  %v8953 = vunpack.c.l.b16 %v7015
  %v8954 = vunpack.c.h.b16 %v7015
  %v8955 = vunpack.c.l.b16 %v7016
  %v8956 = vunpack.c.h.b16 %v7016
  %v8957 = vunpack.c.l.b16 %v7017
  %v8958 = vunpack.c.h.b16 %v7017
  %v8959 = vunpack.c.l.b16 %v7018
  %v8960 = vunpack.c.l.b16 %v7019
  %v8961 = vunpack.c.h.b16 %v7019
  %v8962 = vunpack.c.l.b16 %v7020
  %v8963 = vunpack.c.h.b16 %v7020
  %v8964 = vunpack.c.l.b16 %v7021
  %v8965 = vunpack.c.h.b16 %v7021
  %v8966 = vunpack.c.l.b16 %v7022
  %v8967 = vunpack.c.l.b16 %v7023
  %v8968 = vunpack.c.h.b16 %v7023
  %v8969 = vunpack.c.l.b16 %v7024
  %v8970 = vunpack.c.h.b16 %v7024
  %v8971 = vunpack.c.l.b16 %v7025
  %v8972 = vunpack.c.h.b16 %v7025
  %v8973 = vunpack.c.l.b16 %v7026
  %v8974 = vunpack.c.l.b16 %v7027
  %v8975 = vunpack.c.h.b16 %v7027
  %v8976 = vunpack.c.l.b16 %v7028
  %v8977 = vunpack.c.h.b16 %v7028
  %v8978 = vunpack.c.l.b16 %v7029
  %v8979 = vunpack.c.h.b16 %v7029
  %v8980 = vunpack.c.l.b16 %v7030
  %v8981 = vunpack.c.l.b16 %v7031
  %v8982 = vunpack.c.h.b16 %v7031
  %v8983 = vunpack.c.l.b16 %v7032
  %v8984 = vunpack.c.h.b16 %v7032
  %v8985 = vunpack.c.l.b16 %v7033
  %v8986 = vunpack.c.h.b16 %v7033
  %v8987 = vunpack.c.l.b16 %v7034
  %v8988 = vunpack.c.l.b16 %v7035
  %v8989 = vunpack.c.h.b16 %v7035
  %v8990 = vunpack.c.l.b16 %v7036
  %v8991 = vunpack.c.h.b16 %v7036
  %v8992 = vunpack.c.l.b16 %v7037
  %v8993 = vunpack.c.h.b16 %v7037
  %v8994 = vunpack.c.l.b16 %v7038
  %v8995 = vunpack.c.l.b16 %v7039
  %v8996 = vunpack.c.h.b16 %v7039
  %v8997 = vunpack.c.l.b16 %v7040
  %v8998 = vunpack.c.h.b16 %v7040
  %v8999 = vunpack.c.l.b16 %v7041
  %v9000 = vunpack.c.h.b16 %v7041
  %v9001 = vunpack.c.l.b16 %v7042
  %v9002 = vunpack.c.l.b16 %v7043
  %v9003 = vunpack.c.h.b16 %v7043
  %v9004 = vunpack.c.l.b16 %v7044
  %v9005 = vunpack.c.h.b16 %v7044
  %v9006 = vunpack.c.l.b16 %v7045
  %v9007 = vunpack.c.h.b16 %v7045
  %v9008 = vunpack.c.l.b16 %v7046
  %v9009 = vunpack.c.l.b16 %v7047
  %v9010 = vunpack.c.h.b16 %v7047
  %v9011 = vunpack.c.l.b16 %v7048
  %v9012 = vunpack.c.h.b16 %v7048
  %v9013 = vunpack.c.l.b16 %v7049
  %v9014 = vunpack.c.h.b16 %v7049
  %v9015 = vunpack.c.l.b16 %v7050
  %v9016 = vunpack.c.l.b16 %v7051
  %v9017 = vunpack.c.h.b16 %v7051
  %v9018 = vunpack.c.l.b16 %v7052
  %v9019 = vunpack.c.h.b16 %v7052
  %v9020 = vunpack.c.l.b16 %v7053
  %v9021 = vunpack.c.h.b16 %v7053
  %v9022 = vunpack.c.l.b16 %v7054
  %v9023 = vunpack.c.l.b16 %v7055
  %v9024 = vunpack.c.h.b16 %v7055
  %v9025 = vunpack.c.l.b16 %v7056
  %v9026 = vunpack.c.h.b16 %v7056
  %v9027 = vunpack.c.l.b16 %v7057
  %v9028 = vunpack.c.h.b16 %v7057
  %v9029 = vunpack.c.l.b16 %v7058
  %v9030 = vunpack.c.l.b16 %v7059
  %v9031 = vunpack.c.h.b16 %v7059
  %v9032 = vunpack.c.l.b16 %v7060
  %v9033 = vunpack.c.h.b16 %v7060
  %v9034 = vunpack.c.l.b16 %v7061
  %v9035 = vunpack.c.h.b16 %v7061
  %v9036 = vunpack.c.l.b16 %v7062
  %v9037 = vunpack.c.l.b16 %v7063
  %v9038 = vunpack.c.h.b16 %v7063
  %v9039 = vunpack.c.l.b16 %v7064
  %v9040 = vunpack.c.h.b16 %v7064
  %v9041 = vunpack.c.l.b16 %v7065
  %v9042 = vunpack.c.h.b16 %v7065
  %v9043 = vunpack.c.l.b16 %v7066
  %v9044 = vunpack.c.l.b16 %v7067
  %v9045 = vunpack.c.h.b16 %v7067
  %v9046 = vunpack.c.l.b16 %v7068
  %v9047 = vunpack.c.h.b16 %v7068
  %v9048 = vunpack.c.l.b16 %v7069
  %v9049 = vunpack.c.h.b16 %v7069
  %v9050 = vunpack.c.l.b16 %v7070
  %v9051 = vunpack.c.l.b16 %v7071
  %v9052 = vunpack.c.h.b16 %v7071
  %v9053 = vunpack.c.l.b16 %v7072
  %v9054 = vunpack.c.h.b16 %v7072
  %v9055 = vunpack.c.l.b16 %v7073
  %v9056 = vunpack.c.h.b16 %v7073
  %v9057 = vunpack.c.l.b16 %v7074
  %v9058 = vunpack.c.l.b16 %v7075
  %v9059 = vunpack.c.h.b16 %v7075
  %v9060 = vunpack.c.l.b16 %v7076
  %v9061 = vunpack.c.h.b16 %v7076
  %v9062 = vunpack.c.l.b16 %v7077
  %v9063 = vunpack.c.h.b16 %v7077
  %v9064 = vunpack.c.l.b16 %v7078
  %v9065 = vunpack.c.l.b16 %v7079
  %v9066 = vunpack.c.h.b16 %v7079
  %v9067 = vunpack.c.l.b16 %v7080
  %v9068 = vunpack.c.h.b16 %v7080
  %v9069 = vunpack.c.l.b16 %v7081
  %v9070 = vunpack.c.h.b16 %v7081
  %v9071 = vunpack.c.l.b16 %v7082
  %v9072 = vunpack.c.l.b16 %v7083
  %v9073 = vunpack.c.h.b16 %v7083
  %v9074 = vunpack.c.l.b16 %v7084
  %v9075 = vunpack.c.h.b16 %v7084
  %v9076 = vunpack.c.l.b16 %v7085
  %v9077 = vunpack.c.h.b16 %v7085
  %v9078 = vunpack.c.l.b16 %v7086
  %v9079 = vunpack.c.l.b16 %v7087
  %v9080 = vunpack.c.h.b16 %v7087
  %v9081 = vunpack.c.l.b16 %v7088
  %v9082 = vunpack.c.h.b16 %v7088
  %v9083 = vunpack.c.l.b16 %v7089
  %v9084 = vunpack.c.h.b16 %v7089
  %v9085 = vunpack.c.l.b16 %v7090
  %v9086 = vunpack.c.l.b16 %v7091
  %v9087 = vunpack.c.h.b16 %v7091
  %v9088 = vunpack.c.l.b16 %v7092
  %v9089 = vunpack.c.h.b16 %v7092
  %v9090 = vunpack.c.l.b16 %v7093
  %v9091 = vunpack.c.h.b16 %v7093
  %v9092 = vunpack.c.l.b16 %v7094
  %v9093 = vunpack.c.l.b16 %v7095
  %v9094 = vunpack.c.h.b16 %v7095
  %v9095 = vunpack.c.l.b16 %v7096
  %v9096 = vunpack.c.h.b16 %v7096
  %v9097 = vunpack.c.l.b16 %v7097
  %v9098 = vunpack.c.h.b16 %v7097
  %v9099 = vunpack.c.l.b16 %v7098
  %v9100 = vunpack.c.l.b16 %v7099
  %v9101 = vunpack.c.h.b16 %v7099
  %v9102 = vunpack.c.l.b16 %v7100
  %v9103 = vunpack.c.h.b16 %v7100
  %v9104 = vunpack.c.l.b16 %v7101
  %v9105 = vunpack.c.h.b16 %v7101
  %v9106 = vunpack.c.l.b16 %v7102
  %v9107 = vunpack.c.l.b16 %v7103
  %v9108 = vunpack.c.h.b16 %v7103
  %v9109 = vunpack.c.l.b16 %v7104
  %v9110 = vunpack.c.h.b16 %v7104
  %v9111 = vunpack.c.l.b16 %v7105
  %v9112 = vunpack.c.h.b16 %v7105
  %v9113 = vunpack.c.l.b16 %v7106
  %v9114 = vunpack.c.l.b16 %v7107
  %v9115 = vunpack.c.h.b16 %v7107
  %v9116 = vunpack.c.l.b16 %v7108
  %v9117 = vunpack.c.h.b16 %v7108
  %v9118 = vunpack.c.l.b16 %v7109
  %v9119 = vunpack.c.h.b16 %v7109
  %v9120 = vunpack.c.l.b16 %v7110
  %v9121 = vunpack.c.l.b16 %v7111
  %v9122 = vunpack.c.h.b16 %v7111
  %v9123 = vunpack.c.l.b16 %v7112
  %v9124 = vunpack.c.h.b16 %v7112
  %v9125 = vunpack.c.l.b16 %v7113
  %v9126 = vunpack.c.h.b16 %v7113
  %v9127 = vunpack.c.l.b16 %v7114
  %v9128 = vunpack.c.l.b16 %v7115
  %v9129 = vunpack.c.h.b16 %v7115
  %v9130 = vunpack.c.l.b16 %v7116
  %v9131 = vunpack.c.h.b16 %v7116
  %v9132 = vunpack.c.l.b16 %v7117
  %v9133 = vunpack.c.h.b16 %v7117
  %v9134 = vunpack.c.l.b16 %v7118
  %v9135 = vunpack.c.l.b16 %v7119
  %v9136 = vunpack.c.h.b16 %v7119
  %v9137 = vunpack.c.l.b16 %v7120
  %v9138 = vunpack.c.h.b16 %v7120
  %v9139 = vunpack.c.l.b16 %v7121
  %v9140 = vunpack.c.h.b16 %v7121
  %v9141 = vunpack.c.l.b16 %v7122
  %v9142 = vunpack.c.l.b16 %v7123
  %v9143 = vunpack.c.h.b16 %v7123
  %v9144 = vunpack.c.l.b16 %v7124
  %v9145 = vunpack.c.h.b16 %v7124
  %v9146 = vunpack.c.l.b16 %v7125
  %v9147 = vunpack.c.h.b16 %v7125
  %v9148 = vunpack.c.l.b16 %v7126
  %v9149 = vunpack.c.l.b16 %v7127
  %v9150 = vunpack.c.h.b16 %v7127
  %v9151 = vunpack.c.l.b16 %v7128
  %v9152 = vunpack.c.h.b16 %v7128
  %v9153 = vunpack.c.l.b16 %v7129
  %v9154 = vunpack.c.h.b16 %v7129
  %v9155 = vunpack.c.l.b16 %v7130
  %v9156 = vunpack.c.l.b16 %v7131
  %v9157 = vunpack.c.h.b16 %v7131
  %v9158 = vunpack.c.l.b16 %v7132
  %v9159 = vunpack.c.h.b16 %v7132
  %v9160 = vunpack.c.l.b16 %v7133
  %v9161 = vunpack.c.h.b16 %v7133
  %v9162 = vunpack.c.l.b16 %v7134
  %v9163 = vunpack.c.l.b16 %v7135
  %v9164 = vunpack.c.h.b16 %v7135
  %v9165 = vunpack.c.l.b16 %v7136
  %v9166 = vunpack.c.h.b16 %v7136
  %v9167 = vunpack.c.l.b16 %v7137
  %v9168 = vunpack.c.h.b16 %v7137
  %v9169 = vunpack.c.l.b16 %v7138
  %v9170 = vunpack.c.l.b16 %v7139
  %v9171 = vunpack.c.h.b16 %v7139
  %v9172 = vunpack.c.l.b16 %v7140
  %v9173 = vunpack.c.h.b16 %v7140
  %v9174 = vunpack.c.l.b16 %v7141
  %v9175 = vunpack.c.h.b16 %v7141
  %v9176 = vunpack.c.l.b16 %v7142
  %v9177 = vunpack.c.l.b16 %v7143
  %v9178 = vunpack.c.h.b16 %v7143
  %v9179 = vunpack.c.l.b16 %v7144
  %v9180 = vunpack.c.h.b16 %v7144
  %v9181 = vunpack.c.l.b16 %v7145
  %v9182 = vunpack.c.h.b16 %v7145
  %v9183 = vunpack.c.l.b16 %v7146
  %v9184 = vunpack.c.l.b16 %v7147
  %v9185 = vunpack.c.h.b16 %v7147
  %v9186 = vunpack.c.l.b16 %v7148
  %v9187 = vunpack.c.h.b16 %v7148
  %v9188 = vunpack.c.l.b16 %v7149
  %v9189 = vunpack.c.h.b16 %v7149
  %v9190 = vunpack.c.l.b16 %v7150
  %v9191 = vunpack.c.l.b16 %v7151
  %v9192 = vunpack.c.h.b16 %v7151
  %v9193 = vunpack.c.l.b16 %v7152
  %v9194 = vunpack.c.h.b16 %v7152
  %v9195 = vunpack.c.l.b16 %v7153
  %v9196 = vunpack.c.h.b16 %v7153
  %v9197 = vunpack.c.l.b16 %v7154
  %v9198 = vunpack.c.l.b16 %v7155
  %v9199 = vunpack.c.h.b16 %v7155
  %v9200 = vunpack.c.l.b16 %v7156
  %v9201 = vunpack.c.h.b16 %v7156
  %v9202 = vunpack.c.l.b16 %v7157
  %v9203 = vunpack.c.h.b16 %v7157
  %v9204 = vunpack.c.l.b16 %v7158
  %v9205 = vunpack.c.l.b16 %v7159
  %v9206 = vunpack.c.h.b16 %v7159
  %v9207 = vunpack.c.l.b16 %v7160
  %v9208 = vunpack.c.h.b16 %v7160
  %v9209 = vunpack.c.l.b16 %v7161
  %v9210 = vunpack.c.h.b16 %v7161
  %v9211 = vunpack.c.l.b16 %v7162
  %v9212 = vunpack.c.l.b16 %v7163
  %v9213 = vunpack.c.h.b16 %v7163
  %v9214 = vunpack.c.l.b16 %v7164
  %v9215 = vunpack.c.h.b16 %v7164
  %v9216 = vunpack.c.l.b16 %v7165
  %v9217 = vunpack.c.h.b16 %v7165
  %v9218 = vunpack.c.l.b16 %v7166
  %v9219 = vunpack.c.l.b16 %v7167
  %v9220 = vunpack.c.h.b16 %v7167
  %v9221 = vunpack.c.l.b16 %v7168
  %v9222 = vunpack.c.h.b16 %v7168
  %v9223 = vunpack.c.l.b16 %v7169
  %v9224 = vunpack.c.h.b16 %v7169
  %v9225 = vunpack.c.l.b16 %v7170
  %v9226 = vunpack.c.l.b16 %v7171
  %v9227 = vunpack.c.h.b16 %v7171
  %v9228 = vunpack.c.l.b16 %v7172
  %v9229 = vunpack.c.h.b16 %v7172
  %v9230 = vunpack.c.l.b16 %v7173
  %v9231 = vunpack.c.h.b16 %v7173
  %v9232 = vunpack.c.l.b16 %v7174
  %v9233 = vunpack.c.l.b16 %v7175
  %v9234 = vunpack.c.h.b16 %v7175
  %v9235 = vunpack.c.l.b16 %v7176
  %v9236 = vunpack.c.h.b16 %v7176
  %v9237 = vunpack.c.l.b16 %v7177
  %v9238 = vunpack.c.h.b16 %v7177
  %v9239 = vunpack.c.l.b16 %v7178
  %v9240 = vunpack.c.l.b16 %v7179
  %v9241 = vunpack.c.h.b16 %v7179
  %v9242 = vunpack.c.l.b16 %v7180
  %v9243 = vunpack.c.h.b16 %v7180
  %v9244 = vunpack.c.l.b16 %v7181
  %v9245 = vunpack.c.h.b16 %v7181
  %v9246 = vunpack.c.l.b16 %v7182
  %v9247 = vunpack.c.l.b16 %v7183
  %v9248 = vunpack.c.h.b16 %v7183
  %v9249 = vunpack.c.l.b16 %v7184
  %v9250 = vunpack.c.h.b16 %v7184
  %v9251 = vunpack.c.l.b16 %v7185
  %v9252 = vunpack.c.h.b16 %v7185
  %v9253 = vunpack.c.l.b16 %v7186
  %v9254 = vunpack.c.l.b16 %v7187
  %v9255 = vunpack.c.h.b16 %v7187
  %v9256 = vunpack.c.l.b16 %v7188
  %v9257 = vunpack.c.h.b16 %v7188
  %v9258 = vunpack.c.l.b16 %v7189
  %v9259 = vunpack.c.h.b16 %v7189
  %v9260 = vunpack.c.l.b16 %v7190
  %v9261 = vunpack.c.l.b16 %v7191
  %v9262 = vunpack.c.h.b16 %v7191
  %v9263 = vunpack.c.l.b16 %v7192
  %v9264 = vunpack.c.h.b16 %v7192
  %v9265 = vunpack.c.l.b16 %v7193
  %v9266 = vunpack.c.h.b16 %v7193
  %v9267 = vunpack.c.l.b16 %v7194
  %v9268 = vunpack.c.l.b16 %v7195
  %v9269 = vunpack.c.h.b16 %v7195
  %v9270 = vunpack.c.l.b16 %v7196
  %v9271 = vunpack.c.h.b16 %v7196
  %v9272 = vunpack.c.l.b16 %v7197
  %v9273 = vunpack.c.h.b16 %v7197
  %v9274 = vunpack.c.l.b16 %v7198
  %v9275 = vunpack.c.l.b16 %v7199
  %v9276 = vunpack.c.h.b16 %v7199
  %v9277 = vunpack.c.l.b16 %v7200
  %v9278 = vunpack.c.h.b16 %v7200
  %v9279 = vunpack.c.l.b16 %v7201
  %v9280 = vunpack.c.h.b16 %v7201
  %v9281 = vunpack.c.l.b16 %v7202
  %v9282 = vunpack.c.l.b16 %v7203
  %v9283 = vunpack.c.h.b16 %v7203
  %v9284 = vunpack.c.l.b16 %v7204
  %v9285 = vunpack.c.h.b16 %v7204
  %v9286 = vunpack.c.l.b16 %v7205
  %v9287 = vunpack.c.h.b16 %v7205
  %v9288 = vunpack.c.l.b16 %v7206
  %v9289 = vunpack.c.l.b16 %v7207
  %v9290 = vunpack.c.h.b16 %v7207
  %v9291 = vunpack.c.l.b16 %v7208
  %v9292 = vunpack.c.h.b16 %v7208
  %v9293 = vunpack.c.l.b16 %v7209
  %v9294 = vunpack.c.h.b16 %v7209
  %v9295 = vunpack.c.l.b16 %v7210
  %v9296 = vunpack.c.l.b16 %v7211
  %v9297 = vunpack.c.h.b16 %v7211
  %v9298 = vunpack.c.l.b16 %v7212
  %v9299 = vunpack.c.h.b16 %v7212
  %v9300 = vunpack.c.l.b16 %v7213
  %v9301 = vunpack.c.h.b16 %v7213
  %v9302 = vunpack.c.l.b16 %v7214
  %v9303 = vunpack.c.l.b16 %v7215
  %v9304 = vunpack.c.h.b16 %v7215
  %v9305 = vunpack.c.l.b16 %v7216
  %v9306 = vunpack.c.h.b16 %v7216
  %v9307 = vunpack.c.l.b16 %v7217
  %v9308 = vunpack.c.h.b16 %v7217
  %v9309 = vunpack.c.l.b16 %v7218
  %v9310 = vunpack.c.l.b16 %v7219
  %v9311 = vunpack.c.h.b16 %v7219
  %v9312 = vunpack.c.l.b16 %v7220
  %v9313 = vunpack.c.h.b16 %v7220
  %v9314 = vunpack.c.l.b16 %v7221
  %v9315 = vunpack.c.h.b16 %v7221
  %v9316 = vunpack.c.l.b16 %v7222
  %v9317 = vunpack.c.l.b16 %v7223
  %v9318 = vunpack.c.h.b16 %v7223
  %v9319 = vunpack.c.l.b16 %v7224
  %v9320 = vunpack.c.h.b16 %v7224
  %v9321 = vunpack.c.l.b16 %v7225
  %v9322 = vunpack.c.h.b16 %v7225
  %v9323 = vunpack.c.l.b16 %v7226
  %v9324 = vunpack.c.l.b16 %v7227
  %v9325 = vunpack.c.h.b16 %v7227
  %v9326 = vunpack.c.l.b16 %v7228
  %v9327 = vunpack.c.h.b16 %v7228
  %v9328 = vunpack.c.l.b16 %v7229
  %v9329 = vunpack.c.h.b16 %v7229
  %v9330 = vunpack.c.l.b16 %v7230
  %v9331 = vunpack.c.l.b16 %v7231
  %v9332 = vunpack.c.h.b16 %v7231
  %v9333 = vunpack.c.l.b16 %v7232
  %v9334 = vunpack.c.h.b16 %v7232
  %v9335 = vunpack.c.l.b16 %v7233
  %v9336 = vunpack.c.h.b16 %v7233
  %v9337 = vunpack.c.l.b16 %v7234
  %v9338 = vunpack.c.l.b16 %v7235
  %v9339 = vunpack.c.h.b16 %v7235
  %v9340 = vunpack.c.l.b16 %v7236
  %v9341 = vunpack.c.h.b16 %v7236
  %v9342 = vunpack.c.l.b16 %v7237
  %v9343 = vunpack.c.h.b16 %v7237
  %v9344 = vunpack.c.l.b16 %v7238
  %v9345 = vunpack.c.l.b16 %v7239
  %v9346 = vunpack.c.h.b16 %v7239
  %v9347 = vunpack.c.l.b16 %v7240
  %v9348 = vunpack.c.h.b16 %v7240
  %v9349 = vunpack.c.l.b16 %v7241
  %v9350 = vunpack.c.h.b16 %v7241
  %v9351 = vunpack.c.l.b16 %v7242
  %v9352 = vunpack.c.l.b16 %v7243
  %v9353 = vunpack.c.h.b16 %v7243
  %v9354 = vunpack.c.l.b16 %v7244
  %v9355 = vunpack.c.h.b16 %v7244
  %v9356 = vunpack.c.l.b16 %v7245
  %v9357 = vunpack.c.h.b16 %v7245
  %v9358 = vunpack.c.l.b16 %v7246
  %v9359 = vunpack.c.l.b16 %v7247
  %v9360 = vunpack.c.h.b16 %v7247
  %v9361 = vunpack.c.l.b16 %v7248
  %v9362 = vunpack.c.h.b16 %v7248
  %v9363 = vunpack.c.l.b16 %v7249
  %v9364 = vunpack.c.h.b16 %v7249
  %v9365 = vunpack.c.l.b16 %v7250
  %v9366 = vunpack.c.l.b16 %v7251
  %v9367 = vunpack.c.h.b16 %v7251
  %v9368 = vunpack.c.l.b16 %v7252
  %v9369 = vunpack.c.h.b16 %v7252
  %v9370 = vunpack.c.l.b16 %v7253
  %v9371 = vunpack.c.h.b16 %v7253
  %v9372 = vunpack.c.l.b16 %v7254
  %v9373 = vunpack.c.l.b16 %v7255
  %v9374 = vunpack.c.h.b16 %v7255
  %v9375 = vunpack.c.l.b16 %v7256
  %v9376 = vunpack.c.h.b16 %v7256
  %v9377 = vunpack.c.l.b16 %v7257
  %v9378 = vunpack.c.h.b16 %v7257
  %v9379 = vunpack.c.l.b16 %v7258
  %v9380 = vunpack.c.l.b16 %v7259
  %v9381 = vunpack.c.h.b16 %v7259
  %v9382 = vunpack.c.l.b16 %v7260
  %v9383 = vunpack.c.h.b16 %v7260
  %v9384 = vunpack.c.l.b16 %v7261
  %v9385 = vunpack.c.h.b16 %v7261
  %v9386 = vunpack.c.l.b16 %v7262
  %v9387 = vunpack.c.l.b16 %v7263
  %v9388 = vunpack.c.h.b16 %v7263
  %v9389 = vunpack.c.l.b16 %v7264
  %v9390 = vunpack.c.h.b16 %v7264
  %v9391 = vunpack.c.l.b16 %v7265
  %v9392 = vunpack.c.h.b16 %v7265
  %v9393 = vunpack.c.l.b16 %v7266
  %v9394 = vunpack.c.l.b16 %v7267
  %v9395 = vunpack.c.h.b16 %v7267
  %v9396 = vunpack.c.l.b16 %v7268
  %v9397 = vunpack.c.h.b16 %v7268
  %v9398 = vunpack.c.l.b16 %v7269
  %v9399 = vunpack.c.h.b16 %v7269
  %v9400 = vunpack.c.l.b16 %v7270
  %v9401 = vunpack.c.l.b16 %v7271
  %v9402 = vunpack.c.h.b16 %v7271
  %v9403 = vunpack.c.l.b16 %v7272
  %v9404 = vunpack.c.h.b16 %v7272
  %v9405 = vunpack.c.l.b16 %v7273
  %v9406 = vunpack.c.h.b16 %v7273
  %v9407 = vunpack.c.l.b16 %v7274
  %v9408 = vunpack.c.l.b16 %v7275
  %v9409 = vunpack.c.h.b16 %v7275
  %v9410 = vunpack.c.l.b16 %v7276
  %v9411 = vunpack.c.h.b16 %v7276
  %v9412 = vunpack.c.l.b16 %v7277
  %v9413 = vunpack.c.h.b16 %v7277
  %v9414 = vunpack.c.l.b16 %v7278
  %v9415 = vunpack.c.l.b16 %v7279
  %v9416 = vunpack.c.h.b16 %v7279
  %v9417 = vunpack.c.l.b16 %v7280
  %v9418 = vunpack.c.h.b16 %v7280
  %v9419 = vunpack.c.l.b16 %v7281
  %v9420 = vunpack.c.h.b16 %v7281
  %v9421 = vunpack.c.l.b16 %v7282
  %v9422 = vunpack.c.l.b16 %v7283
  %v9423 = vunpack.c.h.b16 %v7283
  %v9424 = vunpack.c.l.b16 %v7284
  %v9425 = vunpack.c.h.b16 %v7284
  %v9426 = vunpack.c.l.b16 %v7285
  %v9427 = vunpack.c.h.b16 %v7285
  %v9428 = vunpack.c.l.b16 %v7286
  %v9429 = vunpack.c.l.b16 %v7287
  %v9430 = vunpack.c.h.b16 %v7287
  %v9431 = vunpack.c.l.b16 %v7288
  %v9432 = vunpack.c.h.b16 %v7288
  %v9433 = vunpack.c.l.b16 %v7289
  %v9434 = vunpack.c.h.b16 %v7289
  %v9435 = vunpack.c.l.b16 %v7290
  %v9436 = vunpack.c.l.b16 %v7291
  %v9437 = vunpack.c.h.b16 %v7291
  %v9438 = vunpack.c.l.b16 %v7292
  %v9439 = vunpack.c.h.b16 %v7292
  %v9440 = vunpack.c.l.b16 %v7293
  %v9441 = vunpack.c.h.b16 %v7293
  %v9442 = vunpack.c.l.b16 %v7294
  %v9443 = vunpack.c.l.b16 %v7295
  %v9444 = vunpack.c.h.b16 %v7295
  %v9445 = vunpack.c.l.b16 %v7296
  %v9446 = vunpack.c.h.b16 %v7296
  %v9447 = vunpack.c.l.b16 %v7297
  %v9448 = vunpack.c.h.b16 %v7297
  %v9449 = vunpack.c.l.b16 %v7298
  %v9450 = vunpack.c.l.b16 %v7299
  %v9451 = vunpack.c.h.b16 %v7299
  %v9452 = vunpack.c.l.b16 %v7300
  %v9453 = vunpack.c.h.b16 %v7300
  %v9454 = vunpack.c.l.b16 %v7301
  %v9455 = vunpack.c.h.b16 %v7301
  %v9456 = vunpack.c.l.b16 %v7302
  %v9457 = vunpack.c.l.b16 %v7303
  %v9458 = vunpack.c.h.b16 %v7303
  %v9459 = vunpack.c.l.b16 %v7304
  %v9460 = vunpack.c.h.b16 %v7304
  %v9461 = vunpack.c.l.b16 %v7305
  %v9462 = vunpack.c.h.b16 %v7305
  %v9463 = vunpack.c.l.b16 %v7306
  %v9464 = vunpack.c.l.b16 %v7307
  %v9465 = vunpack.c.h.b16 %v7307
  %v9466 = vunpack.c.l.b16 %v7308
  %v9467 = vunpack.c.h.b16 %v7308
  %v9468 = vunpack.c.l.b16 %v7309
  %v9469 = vunpack.c.h.b16 %v7309
  %v9470 = vunpack.c.l.b16 %v7310
  %v9471 = vunpack.c.l.b16 %v7311
  %v9472 = vunpack.c.h.b16 %v7311
  %v9473 = vunpack.c.l.b16 %v7312
  %v9474 = vunpack.c.h.b16 %v7312
  %v9475 = vunpack.c.l.b16 %v7313
  %v9476 = vunpack.c.h.b16 %v7313
  %v9477 = vunpack.c.l.b16 %v7314
  %v9478 = vunpack.c.l.b16 %v7315
  %v9479 = vunpack.c.h.b16 %v7315
  %v9480 = vunpack.c.l.b16 %v7316
  %v9481 = vunpack.c.h.b16 %v7316
  %v9482 = vunpack.c.l.b16 %v7317
  %v9483 = vunpack.c.h.b16 %v7317
  %v9484 = vunpack.c.l.b16 %v7318
  %v9485 = vunpack.c.l.b16 %v7319
  %v9486 = vunpack.c.h.b16 %v7319
  %v9487 = vunpack.c.l.b16 %v7320
  %v9488 = vunpack.c.h.b16 %v7320
  %v9489 = vunpack.c.l.b16 %v7321
  %v9490 = vunpack.c.h.b16 %v7321
  %v9491 = vunpack.c.l.b16 %v7322
  %v9492 = vunpack.c.l.b16 %v7323
  %v9493 = vunpack.c.h.b16 %v7323
  %v9494 = vunpack.c.l.b16 %v7324
  %v9495 = vunpack.c.h.b16 %v7324
  %v9496 = vunpack.c.l.b16 %v7325
  %v9497 = vunpack.c.h.b16 %v7325
  %v9498 = vunpack.c.l.b16 %v7326
  %v9499 = vpack.c.b16 %v8134, %v8127
  %v9500 = vpack.c.b16 %v8135, %v8128
  %v9501 = vpack.c.b16 %v8136, %v8129
  %v9502 = vpack.c.b16 %v8137, %v8130
  %v9503 = vpack.c.b16 %v8138, %v8131
  %v9504 = vpack.c.b16 %v8139, %v8132
  %v9505 = vpack.c.b16 %v8140, %v8133
  %v9506 = vpack.c.b16 %v8148, %v8141
  %v9507 = vpack.c.b16 %v8149, %v8142
  %v9508 = vpack.c.b16 %v8150, %v8143
  %v9509 = vpack.c.b16 %v8151, %v8144
  %v9510 = vpack.c.b16 %v8152, %v8145
  %v9511 = vpack.c.b16 %v8153, %v8146
  %v9512 = vpack.c.b16 %v8154, %v8147
  %v9513 = vpack.c.b16 %v8162, %v8155
  %v9514 = vpack.c.b16 %v8163, %v8156
  %v9515 = vpack.c.b16 %v8164, %v8157
  %v9516 = vpack.c.b16 %v8165, %v8158
  %v9517 = vpack.c.b16 %v8166, %v8159
  %v9518 = vpack.c.b16 %v8167, %v8160
  %v9519 = vpack.c.b16 %v8168, %v8161
  %v9520 = vpack.c.b16 %v8176, %v8169
  %v9521 = vpack.c.b16 %v8177, %v8170
  %v9522 = vpack.c.b16 %v8178, %v8171
  %v9523 = vpack.c.b16 %v8179, %v8172
  %v9524 = vpack.c.b16 %v8180, %v8173
  %v9525 = vpack.c.b16 %v8181, %v8174
  %v9526 = vpack.c.b16 %v8182, %v8175
  %v9527 = vpack.c.b16 %v8190, %v8183
  %v9528 = vpack.c.b16 %v8191, %v8184
  %v9529 = vpack.c.b16 %v8192, %v8185
  %v9530 = vpack.c.b16 %v8193, %v8186
  %v9531 = vpack.c.b16 %v8194, %v8187
  %v9532 = vpack.c.b16 %v8195, %v8188
  %v9533 = vpack.c.b16 %v8196, %v8189
  %v9534 = vpack.c.b16 %v8204, %v8197
  %v9535 = vpack.c.b16 %v8205, %v8198
  %v9536 = vpack.c.b16 %v8206, %v8199
  %v9537 = vpack.c.b16 %v8207, %v8200
  %v9538 = vpack.c.b16 %v8208, %v8201
  %v9539 = vpack.c.b16 %v8209, %v8202
  %v9540 = vpack.c.b16 %v8210, %v8203
  %v9541 = vpack.c.b16 %v8218, %v8211
  %v9542 = vpack.c.b16 %v8219, %v8212
  %v9543 = vpack.c.b16 %v8220, %v8213
  %v9544 = vpack.c.b16 %v8221, %v8214
  %v9545 = vpack.c.b16 %v8222, %v8215
  %v9546 = vpack.c.b16 %v8223, %v8216
  %v9547 = vpack.c.b16 %v8224, %v8217
  %v9548 = vpack.c.b16 %v8232, %v8225
  %v9549 = vpack.c.b16 %v8233, %v8226
  %v9550 = vpack.c.b16 %v8234, %v8227
  %v9551 = vpack.c.b16 %v8235, %v8228
  %v9552 = vpack.c.b16 %v8236, %v8229
  %v9553 = vpack.c.b16 %v8237, %v8230
  %v9554 = vpack.c.b16 %v8238, %v8231
  %v9555 = vpack.c.b16 %v8246, %v8239
  %v9556 = vpack.c.b16 %v8247, %v8240
  %v9557 = vpack.c.b16 %v8248, %v8241
  %v9558 = vpack.c.b16 %v8249, %v8242
  %v9559 = vpack.c.b16 %v8250, %v8243
  %v9560 = vpack.c.b16 %v8251, %v8244
  %v9561 = vpack.c.b16 %v8252, %v8245
  %v9562 = vpack.c.b16 %v8260, %v8253
  %v9563 = vpack.c.b16 %v8261, %v8254
  %v9564 = vpack.c.b16 %v8262, %v8255
  %v9565 = vpack.c.b16 %v8263, %v8256
  %v9566 = vpack.c.b16 %v8264, %v8257
  %v9567 = vpack.c.b16 %v8265, %v8258
  %v9568 = vpack.c.b16 %v8266, %v8259
  %v9569 = vpack.c.b16 %v8274, %v8267
  %v9570 = vpack.c.b16 %v8275, %v8268
  %v9571 = vpack.c.b16 %v8276, %v8269
  %v9572 = vpack.c.b16 %v8277, %v8270
  %v9573 = vpack.c.b16 %v8278, %v8271
  %v9574 = vpack.c.b16 %v8279, %v8272
  %v9575 = vpack.c.b16 %v8280, %v8273
  %v9576 = vpack.c.b16 %v8288, %v8281
  %v9577 = vpack.c.b16 %v8289, %v8282
  %v9578 = vpack.c.b16 %v8290, %v8283
  %v9579 = vpack.c.b16 %v8291, %v8284
  %v9580 = vpack.c.b16 %v8292, %v8285
  %v9581 = vpack.c.b16 %v8293, %v8286
  %v9582 = vpack.c.b16 %v8294, %v8287
  %v9583 = vpack.c.b16 %v8302, %v8295
  %v9584 = vpack.c.b16 %v8303, %v8296
  %v9585 = vpack.c.b16 %v8304, %v8297
  %v9586 = vpack.c.b16 %v8305, %v8298
  %v9587 = vpack.c.b16 %v8306, %v8299
  %v9588 = vpack.c.b16 %v8307, %v8300
  %v9589 = vpack.c.b16 %v8308, %v8301
  %v9590 = vpack.c.b16 %v8316, %v8309
  %v9591 = vpack.c.b16 %v8317, %v8310
  %v9592 = vpack.c.b16 %v8318, %v8311
  %v9593 = vpack.c.b16 %v8319, %v8312
  %v9594 = vpack.c.b16 %v8320, %v8313
  %v9595 = vpack.c.b16 %v8321, %v8314
  %v9596 = vpack.c.b16 %v8322, %v8315
  %v9597 = vpack.c.b16 %v8330, %v8323
  %v9598 = vpack.c.b16 %v8331, %v8324
  %v9599 = vpack.c.b16 %v8332, %v8325
  %v9600 = vpack.c.b16 %v8333, %v8326
  %v9601 = vpack.c.b16 %v8334, %v8327
  %v9602 = vpack.c.b16 %v8335, %v8328
  %v9603 = vpack.c.b16 %v8336, %v8329
  %v9604 = vpack.c.b16 %v8344, %v8337
  %v9605 = vpack.c.b16 %v8345, %v8338
  %v9606 = vpack.c.b16 %v8346, %v8339
  %v9607 = vpack.c.b16 %v8347, %v8340
  %v9608 = vpack.c.b16 %v8348, %v8341
  %v9609 = vpack.c.b16 %v8349, %v8342
  %v9610 = vpack.c.b16 %v8350, %v8343
  %v9611 = vpack.c.b16 %v8358, %v8351
  %v9612 = vpack.c.b16 %v8359, %v8352
  %v9613 = vpack.c.b16 %v8360, %v8353
  %v9614 = vpack.c.b16 %v8361, %v8354
  %v9615 = vpack.c.b16 %v8362, %v8355
  %v9616 = vpack.c.b16 %v8363, %v8356
  %v9617 = vpack.c.b16 %v8364, %v8357
  %v9618 = vpack.c.b16 %v8372, %v8365
  %v9619 = vpack.c.b16 %v8373, %v8366
  %v9620 = vpack.c.b16 %v8374, %v8367
  %v9621 = vpack.c.b16 %v8375, %v8368
  %v9622 = vpack.c.b16 %v8376, %v8369
  %v9623 = vpack.c.b16 %v8377, %v8370
  %v9624 = vpack.c.b16 %v8378, %v8371
  %v9625 = vpack.c.b16 %v8386, %v8379
  %v9626 = vpack.c.b16 %v8387, %v8380
  %v9627 = vpack.c.b16 %v8388, %v8381
  %v9628 = vpack.c.b16 %v8389, %v8382
  %v9629 = vpack.c.b16 %v8390, %v8383
  %v9630 = vpack.c.b16 %v8391, %v8384
  %v9631 = vpack.c.b16 %v8392, %v8385
  %v9632 = vpack.c.b16 %v8400, %v8393
  %v9633 = vpack.c.b16 %v8401, %v8394
  %v9634 = vpack.c.b16 %v8402, %v8395
  %v9635 = vpack.c.b16 %v8403, %v8396
  %v9636 = vpack.c.b16 %v8404, %v8397
  %v9637 = vpack.c.b16 %v8405, %v8398
  %v9638 = vpack.c.b16 %v8406, %v8399
  %v9639 = vpack.c.b16 %v8414, %v8407
  %v9640 = vpack.c.b16 %v8415, %v8408
  %v9641 = vpack.c.b16 %v8416, %v8409
  %v9642 = vpack.c.b16 %v8417, %v8410
  %v9643 = vpack.c.b16 %v8418, %v8411
  %v9644 = vpack.c.b16 %v8419, %v8412
  %v9645 = vpack.c.b16 %v8420, %v8413
  %v9646 = vpack.c.b16 %v8428, %v8421
  %v9647 = vpack.c.b16 %v8429, %v8422
  %v9648 = vpack.c.b16 %v8430, %v8423
  %v9649 = vpack.c.b16 %v8431, %v8424
  %v9650 = vpack.c.b16 %v8432, %v8425
  %v9651 = vpack.c.b16 %v8433, %v8426
  %v9652 = vpack.c.b16 %v8434, %v8427
  %v9653 = vpack.c.b16 %v8442, %v8435
  %v9654 = vpack.c.b16 %v8443, %v8436
  %v9655 = vpack.c.b16 %v8444, %v8437
  %v9656 = vpack.c.b16 %v8445, %v8438
  %v9657 = vpack.c.b16 %v8446, %v8439
  %v9658 = vpack.c.b16 %v8447, %v8440
  %v9659 = vpack.c.b16 %v8448, %v8441
  %v9660 = vpack.c.b16 %v8456, %v8449
  %v9661 = vpack.c.b16 %v8457, %v8450
  %v9662 = vpack.c.b16 %v8458, %v8451
  %v9663 = vpack.c.b16 %v8459, %v8452
  %v9664 = vpack.c.b16 %v8460, %v8453
  %v9665 = vpack.c.b16 %v8461, %v8454
  %v9666 = vpack.c.b16 %v8462, %v8455
  %v9667 = vpack.c.b16 %v8470, %v8463
  %v9668 = vpack.c.b16 %v8471, %v8464
  %v9669 = vpack.c.b16 %v8472, %v8465
  %v9670 = vpack.c.b16 %v8473, %v8466
  %v9671 = vpack.c.b16 %v8474, %v8467
  %v9672 = vpack.c.b16 %v8475, %v8468
  %v9673 = vpack.c.b16 %v8476, %v8469
  %v9674 = vpack.c.b16 %v8484, %v8477
  %v9675 = vpack.c.b16 %v8485, %v8478
  %v9676 = vpack.c.b16 %v8486, %v8479
  %v9677 = vpack.c.b16 %v8487, %v8480
  %v9678 = vpack.c.b16 %v8488, %v8481
  %v9679 = vpack.c.b16 %v8489, %v8482
  %v9680 = vpack.c.b16 %v8490, %v8483
  %v9681 = vpack.c.b16 %v8498, %v8491
  %v9682 = vpack.c.b16 %v8499, %v8492
  %v9683 = vpack.c.b16 %v8500, %v8493
  %v9684 = vpack.c.b16 %v8501, %v8494
  %v9685 = vpack.c.b16 %v8502, %v8495
  %v9686 = vpack.c.b16 %v8503, %v8496
  %v9687 = vpack.c.b16 %v8504, %v8497
  %v9688 = vpack.c.b16 %v8512, %v8505
  %v9689 = vpack.c.b16 %v8513, %v8506
  %v9690 = vpack.c.b16 %v8514, %v8507
  %v9691 = vpack.c.b16 %v8515, %v8508
  %v9692 = vpack.c.b16 %v8516, %v8509
  %v9693 = vpack.c.b16 %v8517, %v8510
  %v9694 = vpack.c.b16 %v8518, %v8511
  %v9695 = vpack.c.b16 %v8526, %v8519
  %v9696 = vpack.c.b16 %v8527, %v8520
  %v9697 = vpack.c.b16 %v8528, %v8521
  %v9698 = vpack.c.b16 %v8529, %v8522
  %v9699 = vpack.c.b16 %v8530, %v8523
  %v9700 = vpack.c.b16 %v8531, %v8524
  %v9701 = vpack.c.b16 %v8532, %v8525
  %v9702 = vpack.c.b16 %v8540, %v8533
  %v9703 = vpack.c.b16 %v8541, %v8534
  %v9704 = vpack.c.b16 %v8542, %v8535
  %v9705 = vpack.c.b16 %v8543, %v8536
  %v9706 = vpack.c.b16 %v8544, %v8537
  %v9707 = vpack.c.b16 %v8545, %v8538
  %v9708 = vpack.c.b16 %v8546, %v8539
  %v9709 = vpack.c.b16 %v8554, %v8547
  %v9710 = vpack.c.b16 %v8555, %v8548
  %v9711 = vpack.c.b16 %v8556, %v8549
  %v9712 = vpack.c.b16 %v8557, %v8550
  %v9713 = vpack.c.b16 %v8558, %v8551
  %v9714 = vpack.c.b16 %v8559, %v8552
  %v9715 = vpack.c.b16 %v8560, %v8553
  %v9716 = vpack.c.b16 %v8568, %v8561
  %v9717 = vpack.c.b16 %v8569, %v8562
  %v9718 = vpack.c.b16 %v8570, %v8563
  %v9719 = vpack.c.b16 %v8571, %v8564
  %v9720 = vpack.c.b16 %v8572, %v8565
  %v9721 = vpack.c.b16 %v8573, %v8566
  %v9722 = vpack.c.b16 %v8574, %v8567
  %v9723 = vpack.c.b16 %v8582, %v8575
  %v9724 = vpack.c.b16 %v8583, %v8576
  %v9725 = vpack.c.b16 %v8584, %v8577
  %v9726 = vpack.c.b16 %v8585, %v8578
  %v9727 = vpack.c.b16 %v8586, %v8579
  %v9728 = vpack.c.b16 %v8587, %v8580
  %v9729 = vpack.c.b16 %v8588, %v8581
  %v9730 = vpack.c.b16 %v8596, %v8589
  %v9731 = vpack.c.b16 %v8597, %v8590
  %v9732 = vpack.c.b16 %v8598, %v8591
  %v9733 = vpack.c.b16 %v8599, %v8592
  %v9734 = vpack.c.b16 %v8600, %v8593
  %v9735 = vpack.c.b16 %v8601, %v8594
  %v9736 = vpack.c.b16 %v8602, %v8595
  %v9737 = vpack.c.b16 %v8610, %v8603
  %v9738 = vpack.c.b16 %v8611, %v8604
  %v9739 = vpack.c.b16 %v8612, %v8605
  %v9740 = vpack.c.b16 %v8613, %v8606
  %v9741 = vpack.c.b16 %v8614, %v8607
  %v9742 = vpack.c.b16 %v8615, %v8608
  %v9743 = vpack.c.b16 %v8616, %v8609
  %v9744 = vpack.c.b16 %v8624, %v8617
  %v9745 = vpack.c.b16 %v8625, %v8618
  %v9746 = vpack.c.b16 %v8626, %v8619
  %v9747 = vpack.c.b16 %v8627, %v8620
  %v9748 = vpack.c.b16 %v8628, %v8621
  %v9749 = vpack.c.b16 %v8629, %v8622
  %v9750 = vpack.c.b16 %v8630, %v8623
  %v9751 = vpack.c.b16 %v8638, %v8631
  %v9752 = vpack.c.b16 %v8639, %v8632
  %v9753 = vpack.c.b16 %v8640, %v8633
  %v9754 = vpack.c.b16 %v8641, %v8634
  %v9755 = vpack.c.b16 %v8642, %v8635
  %v9756 = vpack.c.b16 %v8643, %v8636
  %v9757 = vpack.c.b16 %v8644, %v8637
  %v9758 = vpack.c.b16 %v8652, %v8645
  %v9759 = vpack.c.b16 %v8653, %v8646
  %v9760 = vpack.c.b16 %v8654, %v8647
  %v9761 = vpack.c.b16 %v8655, %v8648
  %v9762 = vpack.c.b16 %v8656, %v8649
  %v9763 = vpack.c.b16 %v8657, %v8650
  %v9764 = vpack.c.b16 %v8658, %v8651
  %v9765 = vpack.c.b16 %v8666, %v8659
  %v9766 = vpack.c.b16 %v8667, %v8660
  %v9767 = vpack.c.b16 %v8668, %v8661
  %v9768 = vpack.c.b16 %v8669, %v8662
  %v9769 = vpack.c.b16 %v8670, %v8663
  %v9770 = vpack.c.b16 %v8671, %v8664
  %v9771 = vpack.c.b16 %v8672, %v8665
  %v9772 = vpack.c.b16 %v8680, %v8673
  %v9773 = vpack.c.b16 %v8681, %v8674
  %v9774 = vpack.c.b16 %v8682, %v8675
  %v9775 = vpack.c.b16 %v8683, %v8676
  %v9776 = vpack.c.b16 %v8684, %v8677
  %v9777 = vpack.c.b16 %v8685, %v8678
  %v9778 = vpack.c.b16 %v8686, %v8679
  %v9779 = vpack.c.b16 %v8694, %v8687
  %v9780 = vpack.c.b16 %v8695, %v8688
  %v9781 = vpack.c.b16 %v8696, %v8689
  %v9782 = vpack.c.b16 %v8697, %v8690
  %v9783 = vpack.c.b16 %v8698, %v8691
  %v9784 = vpack.c.b16 %v8699, %v8692
  %v9785 = vpack.c.b16 %v8700, %v8693
  %v9786 = vpack.c.b16 %v8708, %v8701
  %v9787 = vpack.c.b16 %v8709, %v8702
  %v9788 = vpack.c.b16 %v8710, %v8703
  %v9789 = vpack.c.b16 %v8711, %v8704
  %v9790 = vpack.c.b16 %v8712, %v8705
  %v9791 = vpack.c.b16 %v8713, %v8706
  %v9792 = vpack.c.b16 %v8714, %v8707
  %v9793 = vpack.c.b16 %v8722, %v8715
  %v9794 = vpack.c.b16 %v8723, %v8716
  %v9795 = vpack.c.b16 %v8724, %v8717
  %v9796 = vpack.c.b16 %v8725, %v8718
  %v9797 = vpack.c.b16 %v8726, %v8719
  %v9798 = vpack.c.b16 %v8727, %v8720
  %v9799 = vpack.c.b16 %v8728, %v8721
  %v9800 = vpack.c.b16 %v8736, %v8729
  %v9801 = vpack.c.b16 %v8737, %v8730
  %v9802 = vpack.c.b16 %v8738, %v8731
  %v9803 = vpack.c.b16 %v8739, %v8732
  %v9804 = vpack.c.b16 %v8740, %v8733
  %v9805 = vpack.c.b16 %v8741, %v8734
  %v9806 = vpack.c.b16 %v8742, %v8735
  %v9807 = vpack.c.b16 %v8750, %v8743
  %v9808 = vpack.c.b16 %v8751, %v8744
  %v9809 = vpack.c.b16 %v8752, %v8745
  %v9810 = vpack.c.b16 %v8753, %v8746
  %v9811 = vpack.c.b16 %v8754, %v8747
  %v9812 = vpack.c.b16 %v8755, %v8748
  %v9813 = vpack.c.b16 %v8756, %v8749
  %v9814 = vpack.c.b16 %v8764, %v8757
  %v9815 = vpack.c.b16 %v8765, %v8758
  %v9816 = vpack.c.b16 %v8766, %v8759
  %v9817 = vpack.c.b16 %v8767, %v8760
  %v9818 = vpack.c.b16 %v8768, %v8761
  %v9819 = vpack.c.b16 %v8769, %v8762
  %v9820 = vpack.c.b16 %v8770, %v8763
  %v9821 = vpack.c.b16 %v8778, %v8771
  %v9822 = vpack.c.b16 %v8779, %v8772
  %v9823 = vpack.c.b16 %v8780, %v8773
  %v9824 = vpack.c.b16 %v8781, %v8774
  %v9825 = vpack.c.b16 %v8782, %v8775
  %v9826 = vpack.c.b16 %v8783, %v8776
  %v9827 = vpack.c.b16 %v8784, %v8777
  %v9828 = vpack.c.b16 %v8792, %v8785
  %v9829 = vpack.c.b16 %v8793, %v8786
  %v9830 = vpack.c.b16 %v8794, %v8787
  %v9831 = vpack.c.b16 %v8795, %v8788
  %v9832 = vpack.c.b16 %v8796, %v8789
  %v9833 = vpack.c.b16 %v8797, %v8790
  %v9834 = vpack.c.b16 %v8798, %v8791
  %v9835 = vpack.c.b16 %v8806, %v8799
  %v9836 = vpack.c.b16 %v8807, %v8800
  %v9837 = vpack.c.b16 %v8808, %v8801
  %v9838 = vpack.c.b16 %v8809, %v8802
  %v9839 = vpack.c.b16 %v8810, %v8803
  %v9840 = vpack.c.b16 %v8811, %v8804
  %v9841 = vpack.c.b16 %v8812, %v8805
  %v9842 = vpack.c.b16 %v8820, %v8813
  %v9843 = vpack.c.b16 %v8821, %v8814
  %v9844 = vpack.c.b16 %v8822, %v8815
  %v9845 = vpack.c.b16 %v8823, %v8816
  %v9846 = vpack.c.b16 %v8824, %v8817
  %v9847 = vpack.c.b16 %v8825, %v8818
  %v9848 = vpack.c.b16 %v8826, %v8819
  %v9849 = vpack.c.b16 %v8834, %v8827
  %v9850 = vpack.c.b16 %v8835, %v8828
  %v9851 = vpack.c.b16 %v8836, %v8829
  %v9852 = vpack.c.b16 %v8837, %v8830
  %v9853 = vpack.c.b16 %v8838, %v8831
  %v9854 = vpack.c.b16 %v8839, %v8832
  %v9855 = vpack.c.b16 %v8840, %v8833
  %v9856 = vpack.c.b16 %v8848, %v8841
  %v9857 = vpack.c.b16 %v8849, %v8842
  %v9858 = vpack.c.b16 %v8850, %v8843
  %v9859 = vpack.c.b16 %v8851, %v8844
  %v9860 = vpack.c.b16 %v8852, %v8845
  %v9861 = vpack.c.b16 %v8853, %v8846
  %v9862 = vpack.c.b16 %v8854, %v8847
  %v9863 = vpack.c.b16 %v8862, %v8855
  %v9864 = vpack.c.b16 %v8863, %v8856
  %v9865 = vpack.c.b16 %v8864, %v8857
  %v9866 = vpack.c.b16 %v8865, %v8858
  %v9867 = vpack.c.b16 %v8866, %v8859
  %v9868 = vpack.c.b16 %v8867, %v8860
  %v9869 = vpack.c.b16 %v8868, %v8861
  %v9870 = vpack.c.b16 %v8876, %v8869
  %v9871 = vpack.c.b16 %v8877, %v8870
  %v9872 = vpack.c.b16 %v8878, %v8871
  %v9873 = vpack.c.b16 %v8879, %v8872
  %v9874 = vpack.c.b16 %v8880, %v8873
  %v9875 = vpack.c.b16 %v8881, %v8874
  %v9876 = vpack.c.b16 %v8882, %v8875
  %v9877 = vpack.c.b16 %v8890, %v8883
  %v9878 = vpack.c.b16 %v8891, %v8884
  %v9879 = vpack.c.b16 %v8892, %v8885
  %v9880 = vpack.c.b16 %v8893, %v8886
  %v9881 = vpack.c.b16 %v8894, %v8887
  %v9882 = vpack.c.b16 %v8895, %v8888
  %v9883 = vpack.c.b16 %v8896, %v8889
  %v9884 = vpack.c.b16 %v8904, %v8897
  %v9885 = vpack.c.b16 %v8905, %v8898
  %v9886 = vpack.c.b16 %v8906, %v8899
  %v9887 = vpack.c.b16 %v8907, %v8900
  %v9888 = vpack.c.b16 %v8908, %v8901
  %v9889 = vpack.c.b16 %v8909, %v8902
  %v9890 = vpack.c.b16 %v8910, %v8903
  %v9891 = vpack.c.b16 %v8918, %v8911
  %v9892 = vpack.c.b16 %v8919, %v8912
  %v9893 = vpack.c.b16 %v8920, %v8913
  %v9894 = vpack.c.b16 %v8921, %v8914
  %v9895 = vpack.c.b16 %v8922, %v8915
  %v9896 = vpack.c.b16 %v8923, %v8916
  %v9897 = vpack.c.b16 %v8924, %v8917
  %v9898 = vpack.c.b16 %v8932, %v8925
  %v9899 = vpack.c.b16 %v8933, %v8926
  %v9900 = vpack.c.b16 %v8934, %v8927
  %v9901 = vpack.c.b16 %v8935, %v8928
  %v9902 = vpack.c.b16 %v8936, %v8929
  %v9903 = vpack.c.b16 %v8937, %v8930
  %v9904 = vpack.c.b16 %v8938, %v8931
  %v9905 = vpack.c.b16 %v8946, %v8939
  %v9906 = vpack.c.b16 %v8947, %v8940
  %v9907 = vpack.c.b16 %v8948, %v8941
  %v9908 = vpack.c.b16 %v8949, %v8942
  %v9909 = vpack.c.b16 %v8950, %v8943
  %v9910 = vpack.c.b16 %v8951, %v8944
  %v9911 = vpack.c.b16 %v8952, %v8945
  %v9912 = vpack.c.b16 %v8960, %v8953
  %v9913 = vpack.c.b16 %v8961, %v8954
  %v9914 = vpack.c.b16 %v8962, %v8955
  %v9915 = vpack.c.b16 %v8963, %v8956
  %v9916 = vpack.c.b16 %v8964, %v8957
  %v9917 = vpack.c.b16 %v8965, %v8958
  %v9918 = vpack.c.b16 %v8966, %v8959
  %v9919 = vpack.c.b16 %v8974, %v8967
  %v9920 = vpack.c.b16 %v8975, %v8968
  %v9921 = vpack.c.b16 %v8976, %v8969
  %v9922 = vpack.c.b16 %v8977, %v8970
  %v9923 = vpack.c.b16 %v8978, %v8971
  %v9924 = vpack.c.b16 %v8979, %v8972
  %v9925 = vpack.c.b16 %v8980, %v8973
  %v9926 = vpack.c.b16 %v8988, %v8981
  %v9927 = vpack.c.b16 %v8989, %v8982
  %v9928 = vpack.c.b16 %v8990, %v8983
  %v9929 = vpack.c.b16 %v8991, %v8984
  %v9930 = vpack.c.b16 %v8992, %v8985
  %v9931 = vpack.c.b16 %v8993, %v8986
  %v9932 = vpack.c.b16 %v8994, %v8987
  %v9933 = vpack.c.b16 %v9002, %v8995
  %v9934 = vpack.c.b16 %v9003, %v8996
  %v9935 = vpack.c.b16 %v9004, %v8997
  %v9936 = vpack.c.b16 %v9005, %v8998
  %v9937 = vpack.c.b16 %v9006, %v8999
  %v9938 = vpack.c.b16 %v9007, %v9000
  %v9939 = vpack.c.b16 %v9008, %v9001
  %v9940 = vpack.c.b16 %v9016, %v9009
  %v9941 = vpack.c.b16 %v9017, %v9010
  %v9942 = vpack.c.b16 %v9018, %v9011
  %v9943 = vpack.c.b16 %v9019, %v9012
  %v9944 = vpack.c.b16 %v9020, %v9013
  %v9945 = vpack.c.b16 %v9021, %v9014
  %v9946 = vpack.c.b16 %v9022, %v9015
  %v9947 = vpack.c.b16 %v9030, %v9023
  %v9948 = vpack.c.b16 %v9031, %v9024
  %v9949 = vpack.c.b16 %v9032, %v9025
  %v9950 = vpack.c.b16 %v9033, %v9026
  %v9951 = vpack.c.b16 %v9034, %v9027
  %v9952 = vpack.c.b16 %v9035, %v9028
  %v9953 = vpack.c.b16 %v9036, %v9029
  %v9954 = vpack.c.b16 %v9044, %v9037
  %v9955 = vpack.c.b16 %v9045, %v9038
  %v9956 = vpack.c.b16 %v9046, %v9039
  %v9957 = vpack.c.b16 %v9047, %v9040
  %v9958 = vpack.c.b16 %v9048, %v9041
  %v9959 = vpack.c.b16 %v9049, %v9042
  %v9960 = vpack.c.b16 %v9050, %v9043
  %v9961 = vpack.c.b16 %v9058, %v9051
  %v9962 = vpack.c.b16 %v9059, %v9052
  %v9963 = vpack.c.b16 %v9060, %v9053
  %v9964 = vpack.c.b16 %v9061, %v9054
  %v9965 = vpack.c.b16 %v9062, %v9055
  %v9966 = vpack.c.b16 %v9063, %v9056
  %v9967 = vpack.c.b16 %v9064, %v9057
  %v9968 = vpack.c.b16 %v9072, %v9065
  %v9969 = vpack.c.b16 %v9073, %v9066
  %v9970 = vpack.c.b16 %v9074, %v9067
  %v9971 = vpack.c.b16 %v9075, %v9068
  %v9972 = vpack.c.b16 %v9076, %v9069
  %v9973 = vpack.c.b16 %v9077, %v9070
  %v9974 = vpack.c.b16 %v9078, %v9071
  %v9975 = vpack.c.b16 %v9086, %v9079
  %v9976 = vpack.c.b16 %v9087, %v9080
  %v9977 = vpack.c.b16 %v9088, %v9081
  %v9978 = vpack.c.b16 %v9089, %v9082
  %v9979 = vpack.c.b16 %v9090, %v9083
  %v9980 = vpack.c.b16 %v9091, %v9084
  %v9981 = vpack.c.b16 %v9092, %v9085
  %v9982 = vpack.c.b16 %v9100, %v9093
  %v9983 = vpack.c.b16 %v9101, %v9094
  %v9984 = vpack.c.b16 %v9102, %v9095
  %v9985 = vpack.c.b16 %v9103, %v9096
  %v9986 = vpack.c.b16 %v9104, %v9097
  %v9987 = vpack.c.b16 %v9105, %v9098
  %v9988 = vpack.c.b16 %v9106, %v9099
  %v9989 = vpack.c.b16 %v9114, %v9107
  %v9990 = vpack.c.b16 %v9115, %v9108
  %v9991 = vpack.c.b16 %v9116, %v9109
  %v9992 = vpack.c.b16 %v9117, %v9110
  %v9993 = vpack.c.b16 %v9118, %v9111
  %v9994 = vpack.c.b16 %v9119, %v9112
  %v9995 = vpack.c.b16 %v9120, %v9113
  %v9996 = vpack.c.b16 %v9128, %v9121
  %v9997 = vpack.c.b16 %v9129, %v9122
  %v9998 = vpack.c.b16 %v9130, %v9123
  %v9999 = vpack.c.b16 %v9131, %v9124
  %v10000 = vpack.c.b16 %v9132, %v9125
  %v10001 = vpack.c.b16 %v9133, %v9126
  %v10002 = vpack.c.b16 %v9134, %v9127
  %v10003 = vpack.c.b16 %v9142, %v9135
  %v10004 = vpack.c.b16 %v9143, %v9136
  %v10005 = vpack.c.b16 %v9144, %v9137
  %v10006 = vpack.c.b16 %v9145, %v9138
  %v10007 = vpack.c.b16 %v9146, %v9139
  %v10008 = vpack.c.b16 %v9147, %v9140
  %v10009 = vpack.c.b16 %v9148, %v9141
  %v10010 = vpack.c.b16 %v9156, %v9149
  %v10011 = vpack.c.b16 %v9157, %v9150
  %v10012 = vpack.c.b16 %v9158, %v9151
  %v10013 = vpack.c.b16 %v9159, %v9152
  %v10014 = vpack.c.b16 %v9160, %v9153
  %v10015 = vpack.c.b16 %v9161, %v9154
  %v10016 = vpack.c.b16 %v9162, %v9155
  %v10017 = vpack.c.b16 %v9170, %v9163
  %v10018 = vpack.c.b16 %v9171, %v9164
  %v10019 = vpack.c.b16 %v9172, %v9165
  %v10020 = vpack.c.b16 %v9173, %v9166
  %v10021 = vpack.c.b16 %v9174, %v9167
  %v10022 = vpack.c.b16 %v9175, %v9168
  %v10023 = vpack.c.b16 %v9176, %v9169
  %v10024 = vpack.c.b16 %v9184, %v9177
  %v10025 = vpack.c.b16 %v9185, %v9178
  %v10026 = vpack.c.b16 %v9186, %v9179
  %v10027 = vpack.c.b16 %v9187, %v9180
  %v10028 = vpack.c.b16 %v9188, %v9181
  %v10029 = vpack.c.b16 %v9189, %v9182
  %v10030 = vpack.c.b16 %v9190, %v9183
  %v10031 = vpack.c.b16 %v9198, %v9191
  %v10032 = vpack.c.b16 %v9199, %v9192
  %v10033 = vpack.c.b16 %v9200, %v9193
  %v10034 = vpack.c.b16 %v9201, %v9194
  %v10035 = vpack.c.b16 %v9202, %v9195
  %v10036 = vpack.c.b16 %v9203, %v9196
  %v10037 = vpack.c.b16 %v9204, %v9197
  %v10038 = vpack.c.b16 %v9212, %v9205
  %v10039 = vpack.c.b16 %v9213, %v9206
  %v10040 = vpack.c.b16 %v9214, %v9207
  %v10041 = vpack.c.b16 %v9215, %v9208
  %v10042 = vpack.c.b16 %v9216, %v9209
  %v10043 = vpack.c.b16 %v9217, %v9210
  %v10044 = vpack.c.b16 %v9218, %v9211
  %v10045 = vpack.c.b16 %v9226, %v9219
  %v10046 = vpack.c.b16 %v9227, %v9220
  %v10047 = vpack.c.b16 %v9228, %v9221
  %v10048 = vpack.c.b16 %v9229, %v9222
  %v10049 = vpack.c.b16 %v9230, %v9223
  %v10050 = vpack.c.b16 %v9231, %v9224
  %v10051 = vpack.c.b16 %v9232, %v9225
  %v10052 = vpack.c.b16 %v9240, %v9233
  %v10053 = vpack.c.b16 %v9241, %v9234
  %v10054 = vpack.c.b16 %v9242, %v9235
  %v10055 = vpack.c.b16 %v9243, %v9236
  %v10056 = vpack.c.b16 %v9244, %v9237
  %v10057 = vpack.c.b16 %v9245, %v9238
  %v10058 = vpack.c.b16 %v9246, %v9239
  %v10059 = vpack.c.b16 %v9254, %v9247
  %v10060 = vpack.c.b16 %v9255, %v9248
  %v10061 = vpack.c.b16 %v9256, %v9249
  %v10062 = vpack.c.b16 %v9257, %v9250
  %v10063 = vpack.c.b16 %v9258, %v9251
  %v10064 = vpack.c.b16 %v9259, %v9252
  %v10065 = vpack.c.b16 %v9260, %v9253
  %v10066 = vpack.c.b16 %v9268, %v9261
  %v10067 = vpack.c.b16 %v9269, %v9262
  %v10068 = vpack.c.b16 %v9270, %v9263
  %v10069 = vpack.c.b16 %v9271, %v9264
  %v10070 = vpack.c.b16 %v9272, %v9265
  %v10071 = vpack.c.b16 %v9273, %v9266
  %v10072 = vpack.c.b16 %v9274, %v9267
  %v10073 = vpack.c.b16 %v9282, %v9275
  %v10074 = vpack.c.b16 %v9283, %v9276
  %v10075 = vpack.c.b16 %v9284, %v9277
  %v10076 = vpack.c.b16 %v9285, %v9278
  %v10077 = vpack.c.b16 %v9286, %v9279
  %v10078 = vpack.c.b16 %v9287, %v9280
  %v10079 = vpack.c.b16 %v9288, %v9281
  %v10080 = vpack.c.b16 %v9296, %v9289
  %v10081 = vpack.c.b16 %v9297, %v9290
  %v10082 = vpack.c.b16 %v9298, %v9291
  %v10083 = vpack.c.b16 %v9299, %v9292
  %v10084 = vpack.c.b16 %v9300, %v9293
  %v10085 = vpack.c.b16 %v9301, %v9294
  %v10086 = vpack.c.b16 %v9302, %v9295
  %v10087 = vpack.c.b16 %v9310, %v9303
  %v10088 = vpack.c.b16 %v9311, %v9304
  %v10089 = vpack.c.b16 %v9312, %v9305
  %v10090 = vpack.c.b16 %v9313, %v9306
  %v10091 = vpack.c.b16 %v9314, %v9307
  %v10092 = vpack.c.b16 %v9315, %v9308
  %v10093 = vpack.c.b16 %v9316, %v9309
  %v10094 = vpack.c.b16 %v9324, %v9317
  %v10095 = vpack.c.b16 %v9325, %v9318
  %v10096 = vpack.c.b16 %v9326, %v9319
  %v10097 = vpack.c.b16 %v9327, %v9320
  %v10098 = vpack.c.b16 %v9328, %v9321
  %v10099 = vpack.c.b16 %v9329, %v9322
  %v10100 = vpack.c.b16 %v9330, %v9323
  %v10101 = vpack.c.b16 %v9338, %v9331
  %v10102 = vpack.c.b16 %v9339, %v9332
  %v10103 = vpack.c.b16 %v9340, %v9333
  %v10104 = vpack.c.b16 %v9341, %v9334
  %v10105 = vpack.c.b16 %v9342, %v9335
  %v10106 = vpack.c.b16 %v9343, %v9336
  %v10107 = vpack.c.b16 %v9344, %v9337
  %v10108 = vpack.c.b16 %v9352, %v9345
  %v10109 = vpack.c.b16 %v9353, %v9346
  %v10110 = vpack.c.b16 %v9354, %v9347
  %v10111 = vpack.c.b16 %v9355, %v9348
  %v10112 = vpack.c.b16 %v9356, %v9349
  %v10113 = vpack.c.b16 %v9357, %v9350
  %v10114 = vpack.c.b16 %v9358, %v9351
  %v10115 = vpack.c.b16 %v9366, %v9359
  %v10116 = vpack.c.b16 %v9367, %v9360
  %v10117 = vpack.c.b16 %v9368, %v9361
  %v10118 = vpack.c.b16 %v9369, %v9362
  %v10119 = vpack.c.b16 %v9370, %v9363
  %v10120 = vpack.c.b16 %v9371, %v9364
  %v10121 = vpack.c.b16 %v9372, %v9365
  %v10122 = vpack.c.b16 %v9380, %v9373
  %v10123 = vpack.c.b16 %v9381, %v9374
  %v10124 = vpack.c.b16 %v9382, %v9375
  %v10125 = vpack.c.b16 %v9383, %v9376
  %v10126 = vpack.c.b16 %v9384, %v9377
  %v10127 = vpack.c.b16 %v9385, %v9378
  %v10128 = vpack.c.b16 %v9386, %v9379
  %v10129 = vpack.c.b16 %v9394, %v9387
  %v10130 = vpack.c.b16 %v9395, %v9388
  %v10131 = vpack.c.b16 %v9396, %v9389
  %v10132 = vpack.c.b16 %v9397, %v9390
  %v10133 = vpack.c.b16 %v9398, %v9391
  %v10134 = vpack.c.b16 %v9399, %v9392
  %v10135 = vpack.c.b16 %v9400, %v9393
  %v10136 = vpack.c.b16 %v9408, %v9401
  %v10137 = vpack.c.b16 %v9409, %v9402
  %v10138 = vpack.c.b16 %v9410, %v9403
  %v10139 = vpack.c.b16 %v9411, %v9404
  %v10140 = vpack.c.b16 %v9412, %v9405
  %v10141 = vpack.c.b16 %v9413, %v9406
  %v10142 = vpack.c.b16 %v9414, %v9407
  %v10143 = vpack.c.b16 %v9422, %v9415
  %v10144 = vpack.c.b16 %v9423, %v9416
  %v10145 = vpack.c.b16 %v9424, %v9417
  %v10146 = vpack.c.b16 %v9425, %v9418
  %v10147 = vpack.c.b16 %v9426, %v9419
  %v10148 = vpack.c.b16 %v9427, %v9420
  %v10149 = vpack.c.b16 %v9428, %v9421
  %v10150 = vpack.c.b16 %v9436, %v9429
  %v10151 = vpack.c.b16 %v9437, %v9430
  %v10152 = vpack.c.b16 %v9438, %v9431
  %v10153 = vpack.c.b16 %v9439, %v9432
  %v10154 = vpack.c.b16 %v9440, %v9433
  %v10155 = vpack.c.b16 %v9441, %v9434
  %v10156 = vpack.c.b16 %v9442, %v9435
  %v10157 = vpack.c.b16 %v9450, %v9443
  %v10158 = vpack.c.b16 %v9451, %v9444
  %v10159 = vpack.c.b16 %v9452, %v9445
  %v10160 = vpack.c.b16 %v9453, %v9446
  %v10161 = vpack.c.b16 %v9454, %v9447
  %v10162 = vpack.c.b16 %v9455, %v9448
  %v10163 = vpack.c.b16 %v9456, %v9449
  %v10164 = vpack.c.b16 %v9464, %v9457
  %v10165 = vpack.c.b16 %v9465, %v9458
  %v10166 = vpack.c.b16 %v9466, %v9459
  %v10167 = vpack.c.b16 %v9467, %v9460
  %v10168 = vpack.c.b16 %v9468, %v9461
  %v10169 = vpack.c.b16 %v9469, %v9462
  %v10170 = vpack.c.b16 %v9470, %v9463
  %v10171 = vpack.c.b16 %v9478, %v9471
  %v10172 = vpack.c.b16 %v9479, %v9472
  %v10173 = vpack.c.b16 %v9480, %v9473
  %v10174 = vpack.c.b16 %v9481, %v9474
  %v10175 = vpack.c.b16 %v9482, %v9475
  %v10176 = vpack.c.b16 %v9483, %v9476
  %v10177 = vpack.c.b16 %v9484, %v9477
  %v10178 = vpack.c.b16 %v9492, %v9485
  %v10179 = vpack.c.b16 %v9493, %v9486
  %v10180 = vpack.c.b16 %v9494, %v9487
  %v10181 = vpack.c.b16 %v9495, %v9488
  %v10182 = vpack.c.b16 %v9496, %v9489
  %v10183 = vpack.c.b16 %v9497, %v9490
  %v10184 = vpack.c.b16 %v9498, %v9491
  %v10872 = vsel %vm1089, %v6542, 0
  %10874 = vmatpush.bf16.msra.mxu0 %v9548
  %10875 = vmatpush.bf16.msra.mxu0 %v9541
  %10876 = vmatpush.bf16.msra.mxu0 %v9534
  %10877 = vmatpush.bf16.msra.mxu0 %v9527
  %10878 = vmatpush.bf16.msra.mxu0 %v9520
  %10879 = vmatpush.bf16.msra.mxu0 %v9513
  %10880 = vmatpush.bf16.msra.mxu0 %v9506
  %10881 = vmatpush.bf16.msra.mxu0 %v9499
  %10882 = vmatmul.bf16.gmra.mxu0 %v6530
  %v10883 = vpop.f32.mrf.mxu0
  %v10884 = vadd.f32 %v7329, %v10883
  %v10885 = vpop.f32.mrf.mxu0
  %10886 = vdwg.mxu0
  %10887 = vmatpush.bf16.msra.mxu0 %v9604
  %10888 = vmatpush.bf16.msra.mxu0 %v9597
  %10889 = vmatpush.bf16.msra.mxu0 %v9590
  %10890 = vmatpush.bf16.msra.mxu0 %v9583
  %10891 = vmatpush.bf16.msra.mxu0 %v9576
  %10892 = vmatpush.bf16.msra.mxu0 %v9569
  %10893 = vmatpush.bf16.msra.mxu0 %v9562
  %10894 = vmatpush.bf16.msra.mxu0 %v9555
  %10895 = vmatmul.bf16.gmra.mxu0 %v6531
  %v10896 = vpop.f32.mrf.mxu0
  %v10897 = vadd.f32 %v10884, %v10896
  %v10898 = vpop.f32.mrf.mxu0
  %10899 = vdwg.mxu0
  %10900 = vmatpush.bf16.msra.mxu0 %v9660
  %10901 = vmatpush.bf16.msra.mxu0 %v9653
  %10902 = vmatpush.bf16.msra.mxu0 %v9646
  %10903 = vmatpush.bf16.msra.mxu0 %v9639
  %10904 = vmatpush.bf16.msra.mxu0 %v9632
  %10905 = vmatpush.bf16.msra.mxu0 %v9625
  %10906 = vmatpush.bf16.msra.mxu0 %v9618
  %10907 = vmatpush.bf16.msra.mxu0 %v9611
  %10908 = vmatmul.bf16.gmra.mxu0 %v6532
  %v10909 = vpop.f32.mrf.mxu0
  %v10910 = vadd.f32 %v10897, %v10909
  %v10911 = vpop.f32.mrf.mxu0
  %10912 = vdwg.mxu0
  %10913 = vmatpush.bf16.msra.mxu0 %v9716
  %10914 = vmatpush.bf16.msra.mxu0 %v9709
  %10915 = vmatpush.bf16.msra.mxu0 %v9702
  %10916 = vmatpush.bf16.msra.mxu0 %v9695
  %10917 = vmatpush.bf16.msra.mxu0 %v9688
  %10918 = vmatpush.bf16.msra.mxu0 %v9681
  %10919 = vmatpush.bf16.msra.mxu0 %v9674
  %10920 = vmatpush.bf16.msra.mxu0 %v9667
  %10921 = vmatmul.bf16.gmra.mxu0 %v6533
  %v10922 = vpop.f32.mrf.mxu0
  %v10923 = vadd.f32 %v10910, %v10922
  %v10924 = vpop.f32.mrf.mxu0
  %10925 = vdwg.mxu0
  %10926 = vmatpush.bf16.msra.mxu0 %v9772
  %10927 = vmatpush.bf16.msra.mxu0 %v9765
  %10928 = vmatpush.bf16.msra.mxu0 %v9758
  %10929 = vmatpush.bf16.msra.mxu0 %v9751
  %10930 = vmatpush.bf16.msra.mxu0 %v9744
  %10931 = vmatpush.bf16.msra.mxu0 %v9737
  %10932 = vmatpush.bf16.msra.mxu0 %v9730
  %10933 = vmatpush.bf16.msra.mxu0 %v9723
  %10934 = vmatmul.bf16.gmra.mxu0 %v6534
  %v10935 = vpop.f32.mrf.mxu0
  %v10936 = vadd.f32 %v10923, %v10935
  %v10937 = vpop.f32.mrf.mxu0
  %10938 = vdwg.mxu0
  %10939 = vmatpush.bf16.msra.mxu0 %v9828
  %10940 = vmatpush.bf16.msra.mxu0 %v9821
  %10941 = vmatpush.bf16.msra.mxu0 %v9814
  %10942 = vmatpush.bf16.msra.mxu0 %v9807
  %10943 = vmatpush.bf16.msra.mxu0 %v9800
  %10944 = vmatpush.bf16.msra.mxu0 %v9793
  %10945 = vmatpush.bf16.msra.mxu0 %v9786
  %10946 = vmatpush.bf16.msra.mxu0 %v9779
  %10947 = vmatmul.bf16.gmra.mxu0 %v6535
  %v10948 = vpop.f32.mrf.mxu0
  %v10949 = vadd.f32 %v10936, %v10948
  %v10950 = vpop.f32.mrf.mxu0
  %10951 = vdwg.mxu0
  %10952 = vmatpush.bf16.msra.mxu0 %v9884
  %10953 = vmatpush.bf16.msra.mxu0 %v9877
  %10954 = vmatpush.bf16.msra.mxu0 %v9870
  %10955 = vmatpush.bf16.msra.mxu0 %v9863
  %10956 = vmatpush.bf16.msra.mxu0 %v9856
  %10957 = vmatpush.bf16.msra.mxu0 %v9849
  %10958 = vmatpush.bf16.msra.mxu0 %v9842
  %10959 = vmatpush.bf16.msra.mxu0 %v9835
  %10960 = vmatmul.bf16.gmra.mxu0 %v6536
  %v10961 = vpop.f32.mrf.mxu0
  %v10962 = vadd.f32 %v10949, %v10961
  %v10963 = vpop.f32.mrf.mxu0
  %10964 = vdwg.mxu0
  %10965 = vmatpush.bf16.msra.mxu0 %v9940
  %10966 = vmatpush.bf16.msra.mxu0 %v9933
  %10967 = vmatpush.bf16.msra.mxu0 %v9926
  %10968 = vmatpush.bf16.msra.mxu0 %v9919
  %10969 = vmatpush.bf16.msra.mxu0 %v9912
  %10970 = vmatpush.bf16.msra.mxu0 %v9905
  %10971 = vmatpush.bf16.msra.mxu0 %v9898
  %10972 = vmatpush.bf16.msra.mxu0 %v9891
  %10973 = vmatmul.bf16.gmra.mxu0 %v6537
  %v10974 = vpop.f32.mrf.mxu0
  %v10975 = vadd.f32 %v10962, %v10974
  %v10976 = vpop.f32.mrf.mxu0
  %10977 = vdwg.mxu0
  %10978 = vmatpush.bf16.msra.mxu0 %v9996
  %10979 = vmatpush.bf16.msra.mxu0 %v9989
  %10980 = vmatpush.bf16.msra.mxu0 %v9982
  %10981 = vmatpush.bf16.msra.mxu0 %v9975
  %10982 = vmatpush.bf16.msra.mxu0 %v9968
  %10983 = vmatpush.bf16.msra.mxu0 %v9961
  %10984 = vmatpush.bf16.msra.mxu0 %v9954
  %10985 = vmatpush.bf16.msra.mxu0 %v9947
  %10986 = vmatmul.bf16.gmra.mxu0 %v6538
  %v10987 = vpop.f32.mrf.mxu0
  %v10988 = vadd.f32 %v10975, %v10987
  %v10989 = vpop.f32.mrf.mxu0
  %10990 = vdwg.mxu0
  %10991 = vmatpush.bf16.msra.mxu0 %v10052
  %10992 = vmatpush.bf16.msra.mxu0 %v10045
  %10993 = vmatpush.bf16.msra.mxu0 %v10038
  %10994 = vmatpush.bf16.msra.mxu0 %v10031
  %10995 = vmatpush.bf16.msra.mxu0 %v10024
  %10996 = vmatpush.bf16.msra.mxu0 %v10017
  %10997 = vmatpush.bf16.msra.mxu0 %v10010
  %10998 = vmatpush.bf16.msra.mxu0 %v10003
  %10999 = vmatmul.bf16.gmra.mxu0 %v6539
  %v11000 = vpop.f32.mrf.mxu0
  %v11001 = vadd.f32 %v10988, %v11000
  %v11002 = vpop.f32.mrf.mxu0
  %11003 = vdwg.mxu0
  %11004 = vmatpush.bf16.msra.mxu0 %v10108
  %11005 = vmatpush.bf16.msra.mxu0 %v10101
  %11006 = vmatpush.bf16.msra.mxu0 %v10094
  %11007 = vmatpush.bf16.msra.mxu0 %v10087
  %11008 = vmatpush.bf16.msra.mxu0 %v10080
  %11009 = vmatpush.bf16.msra.mxu0 %v10073
  %11010 = vmatpush.bf16.msra.mxu0 %v10066
  %11011 = vmatpush.bf16.msra.mxu0 %v10059
  %11012 = vmatmul.bf16.gmra.mxu0 %v6540
  %v11013 = vpop.f32.mrf.mxu0
  %v11014 = vadd.f32 %v11001, %v11013
  %v11015 = vpop.f32.mrf.mxu0
  %11016 = vdwg.mxu0
  %11017 = vmatpush.bf16.msra.mxu0 %v10164
  %11018 = vmatpush.bf16.msra.mxu0 %v10157
  %11019 = vmatpush.bf16.msra.mxu0 %v10150
  %11020 = vmatpush.bf16.msra.mxu0 %v10143
  %11021 = vmatpush.bf16.msra.mxu0 %v10136
  %11022 = vmatpush.bf16.msra.mxu0 %v10129
  %11023 = vmatpush.bf16.msra.mxu0 %v10122
  %11024 = vmatpush.bf16.msra.mxu0 %v10115
  %11025 = vmatmul.bf16.gmra.mxu0 %v6541
  %v11026 = vpop.f32.mrf.mxu0
  %v11027 = vadd.f32 %v11014, %v11026
  %v11028 = vpop.f32.mrf.mxu0
  %11029 = vdwg.mxu0
  %11030 = vmatpush.bf16.msra.mxu0 0
  %11031 = vmatpush.bf16.msra.mxu0 0
  %11032 = vmatpush.bf16.msra.mxu0 0
  %11033 = vmatpush.bf16.msra.mxu0 0
  %11034 = vmatpush.bf16.msra.mxu0 0
  %11035 = vmatpush.bf16.msra.mxu0 0
  %11036 = vmatpush.bf16.msra.mxu0 %v10178
  %11037 = vmatpush.bf16.msra.mxu0 %v10171
  %11038 = vmatmul.bf16.gmra.mxu0 %v10872
  %v11039 = vpop.f32.mrf.mxu0
  %v11040 = vadd.f32 %v11027, %v11039
  %v11041 = vpop.f32.mrf.mxu0
  %11042 = vdwg.mxu0
  %11043 = vmatpush.bf16.msra.mxu0 %v9549
  %11044 = vmatpush.bf16.msra.mxu0 %v9542
  %11045 = vmatpush.bf16.msra.mxu0 %v9535
  %11046 = vmatpush.bf16.msra.mxu0 %v9528
  %11047 = vmatpush.bf16.msra.mxu0 %v9521
  %11048 = vmatpush.bf16.msra.mxu0 %v9514
  %11049 = vmatpush.bf16.msra.mxu0 %v9507
  %11050 = vmatpush.bf16.msra.mxu0 %v9500
  %11051 = vmatmul.bf16.gmra.mxu0 %v6530
  %v11052 = vpop.f32.mrf.mxu0
  %v11053 = vadd.f32 %v7330, %v11052
  %v11054 = vpop.f32.mrf.mxu0
  %11055 = vdwg.mxu0
  %11056 = vmatpush.bf16.msra.mxu0 %v9605
  %11057 = vmatpush.bf16.msra.mxu0 %v9598
  %11058 = vmatpush.bf16.msra.mxu0 %v9591
  %11059 = vmatpush.bf16.msra.mxu0 %v9584
  %11060 = vmatpush.bf16.msra.mxu0 %v9577
  %11061 = vmatpush.bf16.msra.mxu0 %v9570
  %11062 = vmatpush.bf16.msra.mxu0 %v9563
  %11063 = vmatpush.bf16.msra.mxu0 %v9556
  %11064 = vmatmul.bf16.gmra.mxu0 %v6531
  %v11065 = vpop.f32.mrf.mxu0
  %v11066 = vadd.f32 %v11053, %v11065
  %v11067 = vpop.f32.mrf.mxu0
  %11068 = vdwg.mxu0
  %11069 = vmatpush.bf16.msra.mxu0 %v9661
  %11070 = vmatpush.bf16.msra.mxu0 %v9654
  %11071 = vmatpush.bf16.msra.mxu0 %v9647
  %11072 = vmatpush.bf16.msra.mxu0 %v9640
  %11073 = vmatpush.bf16.msra.mxu0 %v9633
  %11074 = vmatpush.bf16.msra.mxu0 %v9626
  %11075 = vmatpush.bf16.msra.mxu0 %v9619
  %11076 = vmatpush.bf16.msra.mxu0 %v9612
  %11077 = vmatmul.bf16.gmra.mxu0 %v6532
  %v11078 = vpop.f32.mrf.mxu0
  %v11079 = vadd.f32 %v11066, %v11078
  %v11080 = vpop.f32.mrf.mxu0
  %11081 = vdwg.mxu0
  %11082 = vmatpush.bf16.msra.mxu0 %v9717
  %11083 = vmatpush.bf16.msra.mxu0 %v9710
  %11084 = vmatpush.bf16.msra.mxu0 %v9703
  %11085 = vmatpush.bf16.msra.mxu0 %v9696
  %11086 = vmatpush.bf16.msra.mxu0 %v9689
  %11087 = vmatpush.bf16.msra.mxu0 %v9682
  %11088 = vmatpush.bf16.msra.mxu0 %v9675
  %11089 = vmatpush.bf16.msra.mxu0 %v9668
  %11090 = vmatmul.bf16.gmra.mxu0 %v6533
  %v11091 = vpop.f32.mrf.mxu0
  %v11092 = vadd.f32 %v11079, %v11091
  %v11093 = vpop.f32.mrf.mxu0
  %11094 = vdwg.mxu0
  %11095 = vmatpush.bf16.msra.mxu0 %v9773
  %11096 = vmatpush.bf16.msra.mxu0 %v9766
  %11097 = vmatpush.bf16.msra.mxu0 %v9759
  %11098 = vmatpush.bf16.msra.mxu0 %v9752
  %11099 = vmatpush.bf16.msra.mxu0 %v9745
  %11100 = vmatpush.bf16.msra.mxu0 %v9738
  %11101 = vmatpush.bf16.msra.mxu0 %v9731
  %11102 = vmatpush.bf16.msra.mxu0 %v9724
  %11103 = vmatmul.bf16.gmra.mxu0 %v6534
  %v11104 = vpop.f32.mrf.mxu0
  %v11105 = vadd.f32 %v11092, %v11104
  %v11106 = vpop.f32.mrf.mxu0
  %11107 = vdwg.mxu0
  %11108 = vmatpush.bf16.msra.mxu0 %v9829
  %11109 = vmatpush.bf16.msra.mxu0 %v9822
  %11110 = vmatpush.bf16.msra.mxu0 %v9815
  %11111 = vmatpush.bf16.msra.mxu0 %v9808
  %11112 = vmatpush.bf16.msra.mxu0 %v9801
  %11113 = vmatpush.bf16.msra.mxu0 %v9794
  %11114 = vmatpush.bf16.msra.mxu0 %v9787
  %11115 = vmatpush.bf16.msra.mxu0 %v9780
  %11116 = vmatmul.bf16.gmra.mxu0 %v6535
  %v11117 = vpop.f32.mrf.mxu0
  %v11118 = vadd.f32 %v11105, %v11117
  %v11119 = vpop.f32.mrf.mxu0
  %11120 = vdwg.mxu0
  %11121 = vmatpush.bf16.msra.mxu0 %v9885
  %11122 = vmatpush.bf16.msra.mxu0 %v9878
  %11123 = vmatpush.bf16.msra.mxu0 %v9871
  %11124 = vmatpush.bf16.msra.mxu0 %v9864
  %11125 = vmatpush.bf16.msra.mxu0 %v9857
  %11126 = vmatpush.bf16.msra.mxu0 %v9850
  %11127 = vmatpush.bf16.msra.mxu0 %v9843
  %11128 = vmatpush.bf16.msra.mxu0 %v9836
  %11129 = vmatmul.bf16.gmra.mxu0 %v6536
  %v11130 = vpop.f32.mrf.mxu0
  %v11131 = vadd.f32 %v11118, %v11130
  %v11132 = vpop.f32.mrf.mxu0
  %11133 = vdwg.mxu0
  %11134 = vmatpush.bf16.msra.mxu0 %v9941
  %11135 = vmatpush.bf16.msra.mxu0 %v9934
  %11136 = vmatpush.bf16.msra.mxu0 %v9927
  %11137 = vmatpush.bf16.msra.mxu0 %v9920
  %11138 = vmatpush.bf16.msra.mxu0 %v9913
  %11139 = vmatpush.bf16.msra.mxu0 %v9906
  %11140 = vmatpush.bf16.msra.mxu0 %v9899
  %11141 = vmatpush.bf16.msra.mxu0 %v9892
  %11142 = vmatmul.bf16.gmra.mxu0 %v6537
  %v11143 = vpop.f32.mrf.mxu0
  %v11144 = vadd.f32 %v11131, %v11143
  %v11145 = vpop.f32.mrf.mxu0
  %11146 = vdwg.mxu0
  %11147 = vmatpush.bf16.msra.mxu0 %v9997
  %11148 = vmatpush.bf16.msra.mxu0 %v9990
  %11149 = vmatpush.bf16.msra.mxu0 %v9983
  %11150 = vmatpush.bf16.msra.mxu0 %v9976
  %11151 = vmatpush.bf16.msra.mxu0 %v9969
  %11152 = vmatpush.bf16.msra.mxu0 %v9962
  %11153 = vmatpush.bf16.msra.mxu0 %v9955
  %11154 = vmatpush.bf16.msra.mxu0 %v9948
  %11155 = vmatmul.bf16.gmra.mxu0 %v6538
  %v11156 = vpop.f32.mrf.mxu0
  %v11157 = vadd.f32 %v11144, %v11156
  %v11158 = vpop.f32.mrf.mxu0
  %11159 = vdwg.mxu0
  %11160 = vmatpush.bf16.msra.mxu0 %v10053
  %11161 = vmatpush.bf16.msra.mxu0 %v10046
  %11162 = vmatpush.bf16.msra.mxu0 %v10039
  %11163 = vmatpush.bf16.msra.mxu0 %v10032
  %11164 = vmatpush.bf16.msra.mxu0 %v10025
  %11165 = vmatpush.bf16.msra.mxu0 %v10018
  %11166 = vmatpush.bf16.msra.mxu0 %v10011
  %11167 = vmatpush.bf16.msra.mxu0 %v10004
  %11168 = vmatmul.bf16.gmra.mxu0 %v6539
  %v11169 = vpop.f32.mrf.mxu0
  %v11170 = vadd.f32 %v11157, %v11169
  %v11171 = vpop.f32.mrf.mxu0
  %11172 = vdwg.mxu0
  %11173 = vmatpush.bf16.msra.mxu0 %v10109
  %11174 = vmatpush.bf16.msra.mxu0 %v10102
  %11175 = vmatpush.bf16.msra.mxu0 %v10095
  %11176 = vmatpush.bf16.msra.mxu0 %v10088
  %11177 = vmatpush.bf16.msra.mxu0 %v10081
  %11178 = vmatpush.bf16.msra.mxu0 %v10074
  %11179 = vmatpush.bf16.msra.mxu0 %v10067
  %11180 = vmatpush.bf16.msra.mxu0 %v10060
  %11181 = vmatmul.bf16.gmra.mxu0 %v6540
  %v11182 = vpop.f32.mrf.mxu0
  %v11183 = vadd.f32 %v11170, %v11182
  %v11184 = vpop.f32.mrf.mxu0
  %11185 = vdwg.mxu0
  %11186 = vmatpush.bf16.msra.mxu0 %v10165
  %11187 = vmatpush.bf16.msra.mxu0 %v10158
  %11188 = vmatpush.bf16.msra.mxu0 %v10151
  %11189 = vmatpush.bf16.msra.mxu0 %v10144
  %11190 = vmatpush.bf16.msra.mxu0 %v10137
  %11191 = vmatpush.bf16.msra.mxu0 %v10130
  %11192 = vmatpush.bf16.msra.mxu0 %v10123
  %11193 = vmatpush.bf16.msra.mxu0 %v10116
  %11194 = vmatmul.bf16.gmra.mxu0 %v6541
  %v11195 = vpop.f32.mrf.mxu0
  %v11196 = vadd.f32 %v11183, %v11195
  %v11197 = vpop.f32.mrf.mxu0
  %11198 = vdwg.mxu0
  %11199 = vmatpush.bf16.msra.mxu0 0
  %11200 = vmatpush.bf16.msra.mxu0 0
  %11201 = vmatpush.bf16.msra.mxu0 0
  %11202 = vmatpush.bf16.msra.mxu0 0
  %11203 = vmatpush.bf16.msra.mxu0 0
  %11204 = vmatpush.bf16.msra.mxu0 0
  %11205 = vmatpush.bf16.msra.mxu0 %v10179
  %11206 = vmatpush.bf16.msra.mxu0 %v10172
  %11207 = vmatmul.bf16.gmra.mxu0 %v10872
  %v11208 = vpop.f32.mrf.mxu0
  %v11209 = vadd.f32 %v11196, %v11208
  %v11210 = vpop.f32.mrf.mxu0
  %11211 = vdwg.mxu0
  %11212 = vmatpush.bf16.msra.mxu0 %v9550
  %11213 = vmatpush.bf16.msra.mxu0 %v9543
  %11214 = vmatpush.bf16.msra.mxu0 %v9536
  %11215 = vmatpush.bf16.msra.mxu0 %v9529
  %11216 = vmatpush.bf16.msra.mxu0 %v9522
  %11217 = vmatpush.bf16.msra.mxu0 %v9515
  %11218 = vmatpush.bf16.msra.mxu0 %v9508
  %11219 = vmatpush.bf16.msra.mxu0 %v9501
  %11220 = vmatmul.bf16.gmra.mxu0 %v6530
  %v11221 = vpop.f32.mrf.mxu0
  %v11222 = vadd.f32 %v7331, %v11221
  %v11223 = vpop.f32.mrf.mxu0
  %11224 = vdwg.mxu0
  %11225 = vmatpush.bf16.msra.mxu0 %v9606
  %11226 = vmatpush.bf16.msra.mxu0 %v9599
  %11227 = vmatpush.bf16.msra.mxu0 %v9592
  %11228 = vmatpush.bf16.msra.mxu0 %v9585
  %11229 = vmatpush.bf16.msra.mxu0 %v9578
  %11230 = vmatpush.bf16.msra.mxu0 %v9571
  %11231 = vmatpush.bf16.msra.mxu0 %v9564
  %11232 = vmatpush.bf16.msra.mxu0 %v9557
  %11233 = vmatmul.bf16.gmra.mxu0 %v6531
  %v11234 = vpop.f32.mrf.mxu0
  %v11235 = vadd.f32 %v11222, %v11234
  %v11236 = vpop.f32.mrf.mxu0
  %11237 = vdwg.mxu0
  %11238 = vmatpush.bf16.msra.mxu0 %v9662
  %11239 = vmatpush.bf16.msra.mxu0 %v9655
  %11240 = vmatpush.bf16.msra.mxu0 %v9648
  %11241 = vmatpush.bf16.msra.mxu0 %v9641
  %11242 = vmatpush.bf16.msra.mxu0 %v9634
  %11243 = vmatpush.bf16.msra.mxu0 %v9627
  %11244 = vmatpush.bf16.msra.mxu0 %v9620
  %11245 = vmatpush.bf16.msra.mxu0 %v9613
  %11246 = vmatmul.bf16.gmra.mxu0 %v6532
  %v11247 = vpop.f32.mrf.mxu0
  %v11248 = vadd.f32 %v11235, %v11247
  %v11249 = vpop.f32.mrf.mxu0
  %11250 = vdwg.mxu0
  %11251 = vmatpush.bf16.msra.mxu0 %v9718
  %11252 = vmatpush.bf16.msra.mxu0 %v9711
  %11253 = vmatpush.bf16.msra.mxu0 %v9704
  %11254 = vmatpush.bf16.msra.mxu0 %v9697
  %11255 = vmatpush.bf16.msra.mxu0 %v9690
  %11256 = vmatpush.bf16.msra.mxu0 %v9683
  %11257 = vmatpush.bf16.msra.mxu0 %v9676
  %11258 = vmatpush.bf16.msra.mxu0 %v9669
  %11259 = vmatmul.bf16.gmra.mxu0 %v6533
  %v11260 = vpop.f32.mrf.mxu0
  %v11261 = vadd.f32 %v11248, %v11260
  %v11262 = vpop.f32.mrf.mxu0
  %11263 = vdwg.mxu0
  %11264 = vmatpush.bf16.msra.mxu0 %v9774
  %11265 = vmatpush.bf16.msra.mxu0 %v9767
  %11266 = vmatpush.bf16.msra.mxu0 %v9760
  %11267 = vmatpush.bf16.msra.mxu0 %v9753
  %11268 = vmatpush.bf16.msra.mxu0 %v9746
  %11269 = vmatpush.bf16.msra.mxu0 %v9739
  %11270 = vmatpush.bf16.msra.mxu0 %v9732
  %11271 = vmatpush.bf16.msra.mxu0 %v9725
  %11272 = vmatmul.bf16.gmra.mxu0 %v6534
  %v11273 = vpop.f32.mrf.mxu0
  %v11274 = vadd.f32 %v11261, %v11273
  %v11275 = vpop.f32.mrf.mxu0
  %11276 = vdwg.mxu0
  %11277 = vmatpush.bf16.msra.mxu0 %v9830
  %11278 = vmatpush.bf16.msra.mxu0 %v9823
  %11279 = vmatpush.bf16.msra.mxu0 %v9816
  %11280 = vmatpush.bf16.msra.mxu0 %v9809
  %11281 = vmatpush.bf16.msra.mxu0 %v9802
  %11282 = vmatpush.bf16.msra.mxu0 %v9795
  %11283 = vmatpush.bf16.msra.mxu0 %v9788
  %11284 = vmatpush.bf16.msra.mxu0 %v9781
  %11285 = vmatmul.bf16.gmra.mxu0 %v6535
  %v11286 = vpop.f32.mrf.mxu0
  %v11287 = vadd.f32 %v11274, %v11286
  %v11288 = vpop.f32.mrf.mxu0
  %11289 = vdwg.mxu0
  %11290 = vmatpush.bf16.msra.mxu0 %v9886
  %11291 = vmatpush.bf16.msra.mxu0 %v9879
  %11292 = vmatpush.bf16.msra.mxu0 %v9872
  %11293 = vmatpush.bf16.msra.mxu0 %v9865
  %11294 = vmatpush.bf16.msra.mxu0 %v9858
  %11295 = vmatpush.bf16.msra.mxu0 %v9851
  %11296 = vmatpush.bf16.msra.mxu0 %v9844
  %11297 = vmatpush.bf16.msra.mxu0 %v9837
  %11298 = vmatmul.bf16.gmra.mxu0 %v6536
  %v11299 = vpop.f32.mrf.mxu0
  %v11300 = vadd.f32 %v11287, %v11299
  %v11301 = vpop.f32.mrf.mxu0
  %11302 = vdwg.mxu0
  %11303 = vmatpush.bf16.msra.mxu0 %v9942
  %11304 = vmatpush.bf16.msra.mxu0 %v9935
  %11305 = vmatpush.bf16.msra.mxu0 %v9928
  %11306 = vmatpush.bf16.msra.mxu0 %v9921
  %11307 = vmatpush.bf16.msra.mxu0 %v9914
  %11308 = vmatpush.bf16.msra.mxu0 %v9907
  %11309 = vmatpush.bf16.msra.mxu0 %v9900
  %11310 = vmatpush.bf16.msra.mxu0 %v9893
  %11311 = vmatmul.bf16.gmra.mxu0 %v6537
  %v11312 = vpop.f32.mrf.mxu0
  %v11313 = vadd.f32 %v11300, %v11312
  %v11314 = vpop.f32.mrf.mxu0
  %11315 = vdwg.mxu0
  %11316 = vmatpush.bf16.msra.mxu0 %v9998
  %11317 = vmatpush.bf16.msra.mxu0 %v9991
  %11318 = vmatpush.bf16.msra.mxu0 %v9984
  %11319 = vmatpush.bf16.msra.mxu0 %v9977
  %11320 = vmatpush.bf16.msra.mxu0 %v9970
  %11321 = vmatpush.bf16.msra.mxu0 %v9963
  %11322 = vmatpush.bf16.msra.mxu0 %v9956
  %11323 = vmatpush.bf16.msra.mxu0 %v9949
  %11324 = vmatmul.bf16.gmra.mxu0 %v6538
  %v11325 = vpop.f32.mrf.mxu0
  %v11326 = vadd.f32 %v11313, %v11325
  %v11327 = vpop.f32.mrf.mxu0
  %11328 = vdwg.mxu0
  %11329 = vmatpush.bf16.msra.mxu0 %v10054
  %11330 = vmatpush.bf16.msra.mxu0 %v10047
  %11331 = vmatpush.bf16.msra.mxu0 %v10040
  %11332 = vmatpush.bf16.msra.mxu0 %v10033
  %11333 = vmatpush.bf16.msra.mxu0 %v10026
  %11334 = vmatpush.bf16.msra.mxu0 %v10019
  %11335 = vmatpush.bf16.msra.mxu0 %v10012
  %11336 = vmatpush.bf16.msra.mxu0 %v10005
  %11337 = vmatmul.bf16.gmra.mxu0 %v6539
  %v11338 = vpop.f32.mrf.mxu0
  %v11339 = vadd.f32 %v11326, %v11338
  %v11340 = vpop.f32.mrf.mxu0
  %11341 = vdwg.mxu0
  %11342 = vmatpush.bf16.msra.mxu0 %v10110
  %11343 = vmatpush.bf16.msra.mxu0 %v10103
  %11344 = vmatpush.bf16.msra.mxu0 %v10096
  %11345 = vmatpush.bf16.msra.mxu0 %v10089
  %11346 = vmatpush.bf16.msra.mxu0 %v10082
  %11347 = vmatpush.bf16.msra.mxu0 %v10075
  %11348 = vmatpush.bf16.msra.mxu0 %v10068
  %11349 = vmatpush.bf16.msra.mxu0 %v10061
  %11350 = vmatmul.bf16.gmra.mxu0 %v6540
  %v11351 = vpop.f32.mrf.mxu0
  %v11352 = vadd.f32 %v11339, %v11351
  %v11353 = vpop.f32.mrf.mxu0
  %11354 = vdwg.mxu0
  %11355 = vmatpush.bf16.msra.mxu0 %v10166
  %11356 = vmatpush.bf16.msra.mxu0 %v10159
  %11357 = vmatpush.bf16.msra.mxu0 %v10152
  %11358 = vmatpush.bf16.msra.mxu0 %v10145
  %11359 = vmatpush.bf16.msra.mxu0 %v10138
  %11360 = vmatpush.bf16.msra.mxu0 %v10131
  %11361 = vmatpush.bf16.msra.mxu0 %v10124
  %11362 = vmatpush.bf16.msra.mxu0 %v10117
  %11363 = vmatmul.bf16.gmra.mxu0 %v6541
  %v11364 = vpop.f32.mrf.mxu0
  %v11365 = vadd.f32 %v11352, %v11364
  %v11366 = vpop.f32.mrf.mxu0
  %11367 = vdwg.mxu0
  %11368 = vmatpush.bf16.msra.mxu0 0
  %11369 = vmatpush.bf16.msra.mxu0 0
  %11370 = vmatpush.bf16.msra.mxu0 0
  %11371 = vmatpush.bf16.msra.mxu0 0
  %11372 = vmatpush.bf16.msra.mxu0 0
  %11373 = vmatpush.bf16.msra.mxu0 0
  %11374 = vmatpush.bf16.msra.mxu0 %v10180
  %11375 = vmatpush.bf16.msra.mxu0 %v10173
  %11376 = vmatmul.bf16.gmra.mxu0 %v10872
  %v11377 = vpop.f32.mrf.mxu0
  %v11378 = vadd.f32 %v11365, %v11377
  %v11379 = vpop.f32.mrf.mxu0
  %11380 = vdwg.mxu0
  %11381 = vmatpush.bf16.msra.mxu0 %v9551
  %11382 = vmatpush.bf16.msra.mxu0 %v9544
  %11383 = vmatpush.bf16.msra.mxu0 %v9537
  %11384 = vmatpush.bf16.msra.mxu0 %v9530
  %11385 = vmatpush.bf16.msra.mxu0 %v9523
  %11386 = vmatpush.bf16.msra.mxu0 %v9516
  %11387 = vmatpush.bf16.msra.mxu0 %v9509
  %11388 = vmatpush.bf16.msra.mxu0 %v9502
  %11389 = vmatmul.bf16.gmra.mxu0 %v6530
  %v11390 = vpop.f32.mrf.mxu0
  %v11391 = vadd.f32 %v7332, %v11390
  %v11392 = vpop.f32.mrf.mxu0
  %11393 = vdwg.mxu0
  %11394 = vmatpush.bf16.msra.mxu0 %v9607
  %11395 = vmatpush.bf16.msra.mxu0 %v9600
  %11396 = vmatpush.bf16.msra.mxu0 %v9593
  %11397 = vmatpush.bf16.msra.mxu0 %v9586
  %11398 = vmatpush.bf16.msra.mxu0 %v9579
  %11399 = vmatpush.bf16.msra.mxu0 %v9572
  %11400 = vmatpush.bf16.msra.mxu0 %v9565
  %11401 = vmatpush.bf16.msra.mxu0 %v9558
  %11402 = vmatmul.bf16.gmra.mxu0 %v6531
  %v11403 = vpop.f32.mrf.mxu0
  %v11404 = vadd.f32 %v11391, %v11403
  %v11405 = vpop.f32.mrf.mxu0
  %11406 = vdwg.mxu0
  %11407 = vmatpush.bf16.msra.mxu0 %v9663
  %11408 = vmatpush.bf16.msra.mxu0 %v9656
  %11409 = vmatpush.bf16.msra.mxu0 %v9649
  %11410 = vmatpush.bf16.msra.mxu0 %v9642
  %11411 = vmatpush.bf16.msra.mxu0 %v9635
  %11412 = vmatpush.bf16.msra.mxu0 %v9628
  %11413 = vmatpush.bf16.msra.mxu0 %v9621
  %11414 = vmatpush.bf16.msra.mxu0 %v9614
  %11415 = vmatmul.bf16.gmra.mxu0 %v6532
  %v11416 = vpop.f32.mrf.mxu0
  %v11417 = vadd.f32 %v11404, %v11416
  %v11418 = vpop.f32.mrf.mxu0
  %11419 = vdwg.mxu0
  %11420 = vmatpush.bf16.msra.mxu0 %v9719
  %11421 = vmatpush.bf16.msra.mxu0 %v9712
  %11422 = vmatpush.bf16.msra.mxu0 %v9705
  %11423 = vmatpush.bf16.msra.mxu0 %v9698
  %11424 = vmatpush.bf16.msra.mxu0 %v9691
  %11425 = vmatpush.bf16.msra.mxu0 %v9684
  %11426 = vmatpush.bf16.msra.mxu0 %v9677
  %11427 = vmatpush.bf16.msra.mxu0 %v9670
  %11428 = vmatmul.bf16.gmra.mxu0 %v6533
  %v11429 = vpop.f32.mrf.mxu0
  %v11430 = vadd.f32 %v11417, %v11429
  %v11431 = vpop.f32.mrf.mxu0
  %11432 = vdwg.mxu0
  %11433 = vmatpush.bf16.msra.mxu0 %v9775
  %11434 = vmatpush.bf16.msra.mxu0 %v9768
  %11435 = vmatpush.bf16.msra.mxu0 %v9761
  %11436 = vmatpush.bf16.msra.mxu0 %v9754
  %11437 = vmatpush.bf16.msra.mxu0 %v9747
  %11438 = vmatpush.bf16.msra.mxu0 %v9740
  %11439 = vmatpush.bf16.msra.mxu0 %v9733
  %11440 = vmatpush.bf16.msra.mxu0 %v9726
  %11441 = vmatmul.bf16.gmra.mxu0 %v6534
  %v11442 = vpop.f32.mrf.mxu0
  %v11443 = vadd.f32 %v11430, %v11442
  %v11444 = vpop.f32.mrf.mxu0
  %11445 = vdwg.mxu0
  %11446 = vmatpush.bf16.msra.mxu0 %v9831
  %11447 = vmatpush.bf16.msra.mxu0 %v9824
  %11448 = vmatpush.bf16.msra.mxu0 %v9817
  %11449 = vmatpush.bf16.msra.mxu0 %v9810
  %11450 = vmatpush.bf16.msra.mxu0 %v9803
  %11451 = vmatpush.bf16.msra.mxu0 %v9796
  %11452 = vmatpush.bf16.msra.mxu0 %v9789
  %11453 = vmatpush.bf16.msra.mxu0 %v9782
  %11454 = vmatmul.bf16.gmra.mxu0 %v6535
  %v11455 = vpop.f32.mrf.mxu0
  %v11456 = vadd.f32 %v11443, %v11455
  %v11457 = vpop.f32.mrf.mxu0
  %11458 = vdwg.mxu0
  %11459 = vmatpush.bf16.msra.mxu0 %v9887
  %11460 = vmatpush.bf16.msra.mxu0 %v9880
  %11461 = vmatpush.bf16.msra.mxu0 %v9873
  %11462 = vmatpush.bf16.msra.mxu0 %v9866
  %11463 = vmatpush.bf16.msra.mxu0 %v9859
  %11464 = vmatpush.bf16.msra.mxu0 %v9852
  %11465 = vmatpush.bf16.msra.mxu0 %v9845
  %11466 = vmatpush.bf16.msra.mxu0 %v9838
  %11467 = vmatmul.bf16.gmra.mxu0 %v6536
  %v11468 = vpop.f32.mrf.mxu0
  %v11469 = vadd.f32 %v11456, %v11468
  %v11470 = vpop.f32.mrf.mxu0
  %11471 = vdwg.mxu0
  %11472 = vmatpush.bf16.msra.mxu0 %v9943
  %11473 = vmatpush.bf16.msra.mxu0 %v9936
  %11474 = vmatpush.bf16.msra.mxu0 %v9929
  %11475 = vmatpush.bf16.msra.mxu0 %v9922
  %11476 = vmatpush.bf16.msra.mxu0 %v9915
  %11477 = vmatpush.bf16.msra.mxu0 %v9908
  %11478 = vmatpush.bf16.msra.mxu0 %v9901
  %11479 = vmatpush.bf16.msra.mxu0 %v9894
  %11480 = vmatmul.bf16.gmra.mxu0 %v6537
  %v11481 = vpop.f32.mrf.mxu0
  %v11482 = vadd.f32 %v11469, %v11481
  %v11483 = vpop.f32.mrf.mxu0
  %11484 = vdwg.mxu0
  %11485 = vmatpush.bf16.msra.mxu0 %v9999
  %11486 = vmatpush.bf16.msra.mxu0 %v9992
  %11487 = vmatpush.bf16.msra.mxu0 %v9985
  %11488 = vmatpush.bf16.msra.mxu0 %v9978
  %11489 = vmatpush.bf16.msra.mxu0 %v9971
  %11490 = vmatpush.bf16.msra.mxu0 %v9964
  %11491 = vmatpush.bf16.msra.mxu0 %v9957
  %11492 = vmatpush.bf16.msra.mxu0 %v9950
  %11493 = vmatmul.bf16.gmra.mxu0 %v6538
  %v11494 = vpop.f32.mrf.mxu0
  %v11495 = vadd.f32 %v11482, %v11494
  %v11496 = vpop.f32.mrf.mxu0
  %11497 = vdwg.mxu0
  %11498 = vmatpush.bf16.msra.mxu0 %v10055
  %11499 = vmatpush.bf16.msra.mxu0 %v10048
  %11500 = vmatpush.bf16.msra.mxu0 %v10041
  %11501 = vmatpush.bf16.msra.mxu0 %v10034
  %11502 = vmatpush.bf16.msra.mxu0 %v10027
  %11503 = vmatpush.bf16.msra.mxu0 %v10020
  %11504 = vmatpush.bf16.msra.mxu0 %v10013
  %11505 = vmatpush.bf16.msra.mxu0 %v10006
  %11506 = vmatmul.bf16.gmra.mxu0 %v6539
  %v11507 = vpop.f32.mrf.mxu0
  %v11508 = vadd.f32 %v11495, %v11507
  %v11509 = vpop.f32.mrf.mxu0
  %11510 = vdwg.mxu0
  %11511 = vmatpush.bf16.msra.mxu0 %v10111
  %11512 = vmatpush.bf16.msra.mxu0 %v10104
  %11513 = vmatpush.bf16.msra.mxu0 %v10097
  %11514 = vmatpush.bf16.msra.mxu0 %v10090
  %11515 = vmatpush.bf16.msra.mxu0 %v10083
  %11516 = vmatpush.bf16.msra.mxu0 %v10076
  %11517 = vmatpush.bf16.msra.mxu0 %v10069
  %11518 = vmatpush.bf16.msra.mxu0 %v10062
  %11519 = vmatmul.bf16.gmra.mxu0 %v6540
  %v11520 = vpop.f32.mrf.mxu0
  %v11521 = vadd.f32 %v11508, %v11520
  %v11522 = vpop.f32.mrf.mxu0
  %11523 = vdwg.mxu0
  %11524 = vmatpush.bf16.msra.mxu0 %v10167
  %11525 = vmatpush.bf16.msra.mxu0 %v10160
  %11526 = vmatpush.bf16.msra.mxu0 %v10153
  %11527 = vmatpush.bf16.msra.mxu0 %v10146
  %11528 = vmatpush.bf16.msra.mxu0 %v10139
  %11529 = vmatpush.bf16.msra.mxu0 %v10132
  %11530 = vmatpush.bf16.msra.mxu0 %v10125
  %11531 = vmatpush.bf16.msra.mxu0 %v10118
  %11532 = vmatmul.bf16.gmra.mxu0 %v6541
  %v11533 = vpop.f32.mrf.mxu0
  %v11534 = vadd.f32 %v11521, %v11533
  %v11535 = vpop.f32.mrf.mxu0
  %11536 = vdwg.mxu0
  %11537 = vmatpush.bf16.msra.mxu0 0
  %11538 = vmatpush.bf16.msra.mxu0 0
  %11539 = vmatpush.bf16.msra.mxu0 0
  %11540 = vmatpush.bf16.msra.mxu0 0
  %11541 = vmatpush.bf16.msra.mxu0 0
  %11542 = vmatpush.bf16.msra.mxu0 0
  %11543 = vmatpush.bf16.msra.mxu0 %v10181
  %11544 = vmatpush.bf16.msra.mxu0 %v10174
  %11545 = vmatmul.bf16.gmra.mxu0 %v10872
  %v11546 = vpop.f32.mrf.mxu0
  %v11547 = vadd.f32 %v11534, %v11546
  %v11548 = vpop.f32.mrf.mxu0
  %11549 = vdwg.mxu0
  %11550 = vmatpush.bf16.msra.mxu0 %v9552
  %11551 = vmatpush.bf16.msra.mxu0 %v9545
  %11552 = vmatpush.bf16.msra.mxu0 %v9538
  %11553 = vmatpush.bf16.msra.mxu0 %v9531
  %11554 = vmatpush.bf16.msra.mxu0 %v9524
  %11555 = vmatpush.bf16.msra.mxu0 %v9517
  %11556 = vmatpush.bf16.msra.mxu0 %v9510
  %11557 = vmatpush.bf16.msra.mxu0 %v9503
  %11558 = vmatmul.bf16.gmra.mxu0 %v6530
  %v11559 = vpop.f32.mrf.mxu0
  %v11560 = vadd.f32 %v7333, %v11559
  %v11561 = vpop.f32.mrf.mxu0
  %11562 = vdwg.mxu0
  %11563 = vmatpush.bf16.msra.mxu0 %v9608
  %11564 = vmatpush.bf16.msra.mxu0 %v9601
  %11565 = vmatpush.bf16.msra.mxu0 %v9594
  %11566 = vmatpush.bf16.msra.mxu0 %v9587
  %11567 = vmatpush.bf16.msra.mxu0 %v9580
  %11568 = vmatpush.bf16.msra.mxu0 %v9573
  %11569 = vmatpush.bf16.msra.mxu0 %v9566
  %11570 = vmatpush.bf16.msra.mxu0 %v9559
  %11571 = vmatmul.bf16.gmra.mxu0 %v6531
  %v11572 = vpop.f32.mrf.mxu0
  %v11573 = vadd.f32 %v11560, %v11572
  %v11574 = vpop.f32.mrf.mxu0
  %11575 = vdwg.mxu0
  %11576 = vmatpush.bf16.msra.mxu0 %v9664
  %11577 = vmatpush.bf16.msra.mxu0 %v9657
  %11578 = vmatpush.bf16.msra.mxu0 %v9650
  %11579 = vmatpush.bf16.msra.mxu0 %v9643
  %11580 = vmatpush.bf16.msra.mxu0 %v9636
  %11581 = vmatpush.bf16.msra.mxu0 %v9629
  %11582 = vmatpush.bf16.msra.mxu0 %v9622
  %11583 = vmatpush.bf16.msra.mxu0 %v9615
  %11584 = vmatmul.bf16.gmra.mxu0 %v6532
  %v11585 = vpop.f32.mrf.mxu0
  %v11586 = vadd.f32 %v11573, %v11585
  %v11587 = vpop.f32.mrf.mxu0
  %11588 = vdwg.mxu0
  %11589 = vmatpush.bf16.msra.mxu0 %v9720
  %11590 = vmatpush.bf16.msra.mxu0 %v9713
  %11591 = vmatpush.bf16.msra.mxu0 %v9706
  %11592 = vmatpush.bf16.msra.mxu0 %v9699
  %11593 = vmatpush.bf16.msra.mxu0 %v9692
  %11594 = vmatpush.bf16.msra.mxu0 %v9685
  %11595 = vmatpush.bf16.msra.mxu0 %v9678
  %11596 = vmatpush.bf16.msra.mxu0 %v9671
  %11597 = vmatmul.bf16.gmra.mxu0 %v6533
  %v11598 = vpop.f32.mrf.mxu0
  %v11599 = vadd.f32 %v11586, %v11598
  %v11600 = vpop.f32.mrf.mxu0
  %11601 = vdwg.mxu0
  %11602 = vmatpush.bf16.msra.mxu0 %v9776
  %11603 = vmatpush.bf16.msra.mxu0 %v9769
  %11604 = vmatpush.bf16.msra.mxu0 %v9762
  %11605 = vmatpush.bf16.msra.mxu0 %v9755
  %11606 = vmatpush.bf16.msra.mxu0 %v9748
  %11607 = vmatpush.bf16.msra.mxu0 %v9741
  %11608 = vmatpush.bf16.msra.mxu0 %v9734
  %11609 = vmatpush.bf16.msra.mxu0 %v9727
  %11610 = vmatmul.bf16.gmra.mxu0 %v6534
  %v11611 = vpop.f32.mrf.mxu0
  %v11612 = vadd.f32 %v11599, %v11611
  %v11613 = vpop.f32.mrf.mxu0
  %11614 = vdwg.mxu0
  %11615 = vmatpush.bf16.msra.mxu0 %v9832
  %11616 = vmatpush.bf16.msra.mxu0 %v9825
  %11617 = vmatpush.bf16.msra.mxu0 %v9818
  %11618 = vmatpush.bf16.msra.mxu0 %v9811
  %11619 = vmatpush.bf16.msra.mxu0 %v9804
  %11620 = vmatpush.bf16.msra.mxu0 %v9797
  %11621 = vmatpush.bf16.msra.mxu0 %v9790
  %11622 = vmatpush.bf16.msra.mxu0 %v9783
  %11623 = vmatmul.bf16.gmra.mxu0 %v6535
  %v11624 = vpop.f32.mrf.mxu0
  %v11625 = vadd.f32 %v11612, %v11624
  %v11626 = vpop.f32.mrf.mxu0
  %11627 = vdwg.mxu0
  %11628 = vmatpush.bf16.msra.mxu0 %v9888
  %11629 = vmatpush.bf16.msra.mxu0 %v9881
  %11630 = vmatpush.bf16.msra.mxu0 %v9874
  %11631 = vmatpush.bf16.msra.mxu0 %v9867
  %11632 = vmatpush.bf16.msra.mxu0 %v9860
  %11633 = vmatpush.bf16.msra.mxu0 %v9853
  %11634 = vmatpush.bf16.msra.mxu0 %v9846
  %11635 = vmatpush.bf16.msra.mxu0 %v9839
  %11636 = vmatmul.bf16.gmra.mxu0 %v6536
  %v11637 = vpop.f32.mrf.mxu0
  %v11638 = vadd.f32 %v11625, %v11637
  %v11639 = vpop.f32.mrf.mxu0
  %11640 = vdwg.mxu0
  %11641 = vmatpush.bf16.msra.mxu0 %v9944
  %11642 = vmatpush.bf16.msra.mxu0 %v9937
  %11643 = vmatpush.bf16.msra.mxu0 %v9930
  %11644 = vmatpush.bf16.msra.mxu0 %v9923
  %11645 = vmatpush.bf16.msra.mxu0 %v9916
  %11646 = vmatpush.bf16.msra.mxu0 %v9909
  %11647 = vmatpush.bf16.msra.mxu0 %v9902
  %11648 = vmatpush.bf16.msra.mxu0 %v9895
  %11649 = vmatmul.bf16.gmra.mxu0 %v6537
  %v11650 = vpop.f32.mrf.mxu0
  %v11651 = vadd.f32 %v11638, %v11650
  %v11652 = vpop.f32.mrf.mxu0
  %11653 = vdwg.mxu0
  %11654 = vmatpush.bf16.msra.mxu0 %v10000
  %11655 = vmatpush.bf16.msra.mxu0 %v9993
  %11656 = vmatpush.bf16.msra.mxu0 %v9986
  %11657 = vmatpush.bf16.msra.mxu0 %v9979
  %11658 = vmatpush.bf16.msra.mxu0 %v9972
  %11659 = vmatpush.bf16.msra.mxu0 %v9965
  %11660 = vmatpush.bf16.msra.mxu0 %v9958
  %11661 = vmatpush.bf16.msra.mxu0 %v9951
  %11662 = vmatmul.bf16.gmra.mxu0 %v6538
  %v11663 = vpop.f32.mrf.mxu0
  %v11664 = vadd.f32 %v11651, %v11663
  %v11665 = vpop.f32.mrf.mxu0
  %11666 = vdwg.mxu0
  %11667 = vmatpush.bf16.msra.mxu0 %v10056
  %11668 = vmatpush.bf16.msra.mxu0 %v10049
  %11669 = vmatpush.bf16.msra.mxu0 %v10042
  %11670 = vmatpush.bf16.msra.mxu0 %v10035
  %11671 = vmatpush.bf16.msra.mxu0 %v10028
  %11672 = vmatpush.bf16.msra.mxu0 %v10021
  %11673 = vmatpush.bf16.msra.mxu0 %v10014
  %11674 = vmatpush.bf16.msra.mxu0 %v10007
  %11675 = vmatmul.bf16.gmra.mxu0 %v6539
  %v11676 = vpop.f32.mrf.mxu0
  %v11677 = vadd.f32 %v11664, %v11676
  %v11678 = vpop.f32.mrf.mxu0
  %11679 = vdwg.mxu0
  %11680 = vmatpush.bf16.msra.mxu0 %v10112
  %11681 = vmatpush.bf16.msra.mxu0 %v10105
  %11682 = vmatpush.bf16.msra.mxu0 %v10098
  %11683 = vmatpush.bf16.msra.mxu0 %v10091
  %11684 = vmatpush.bf16.msra.mxu0 %v10084
  %11685 = vmatpush.bf16.msra.mxu0 %v10077
  %11686 = vmatpush.bf16.msra.mxu0 %v10070
  %11687 = vmatpush.bf16.msra.mxu0 %v10063
  %11688 = vmatmul.bf16.gmra.mxu0 %v6540
  %v11689 = vpop.f32.mrf.mxu0
  %v11690 = vadd.f32 %v11677, %v11689
  %v11691 = vpop.f32.mrf.mxu0
  %11692 = vdwg.mxu0
  %11693 = vmatpush.bf16.msra.mxu0 %v10168
  %11694 = vmatpush.bf16.msra.mxu0 %v10161
  %11695 = vmatpush.bf16.msra.mxu0 %v10154
  %11696 = vmatpush.bf16.msra.mxu0 %v10147
  %11697 = vmatpush.bf16.msra.mxu0 %v10140
  %11698 = vmatpush.bf16.msra.mxu0 %v10133
  %11699 = vmatpush.bf16.msra.mxu0 %v10126
  %11700 = vmatpush.bf16.msra.mxu0 %v10119
  %11701 = vmatmul.bf16.gmra.mxu0 %v6541
  %v11702 = vpop.f32.mrf.mxu0
  %v11703 = vadd.f32 %v11690, %v11702
  %v11704 = vpop.f32.mrf.mxu0
  %11705 = vdwg.mxu0
  %11706 = vmatpush.bf16.msra.mxu0 0
  %11707 = vmatpush.bf16.msra.mxu0 0
  %11708 = vmatpush.bf16.msra.mxu0 0
  %11709 = vmatpush.bf16.msra.mxu0 0
  %11710 = vmatpush.bf16.msra.mxu0 0
  %11711 = vmatpush.bf16.msra.mxu0 0
  %11712 = vmatpush.bf16.msra.mxu0 %v10182
  %11713 = vmatpush.bf16.msra.mxu0 %v10175
  %11714 = vmatmul.bf16.gmra.mxu0 %v10872
  %v11715 = vpop.f32.mrf.mxu0
  %v11716 = vadd.f32 %v11703, %v11715
  %v11717 = vpop.f32.mrf.mxu0
  %11718 = vdwg.mxu0
  %11719 = vmatpush.bf16.msra.mxu0 %v9553
  %11720 = vmatpush.bf16.msra.mxu0 %v9546
  %11721 = vmatpush.bf16.msra.mxu0 %v9539
  %11722 = vmatpush.bf16.msra.mxu0 %v9532
  %11723 = vmatpush.bf16.msra.mxu0 %v9525
  %11724 = vmatpush.bf16.msra.mxu0 %v9518
  %11725 = vmatpush.bf16.msra.mxu0 %v9511
  %11726 = vmatpush.bf16.msra.mxu0 %v9504
  %11727 = vmatmul.bf16.gmra.mxu0 %v6530
  %v11728 = vpop.f32.mrf.mxu0
  %v11729 = vadd.f32 %v7334, %v11728
  %v11730 = vpop.f32.mrf.mxu0
  %11731 = vdwg.mxu0
  %11732 = vmatpush.bf16.msra.mxu0 %v9609
  %11733 = vmatpush.bf16.msra.mxu0 %v9602
  %11734 = vmatpush.bf16.msra.mxu0 %v9595
  %11735 = vmatpush.bf16.msra.mxu0 %v9588
  %11736 = vmatpush.bf16.msra.mxu0 %v9581
  %11737 = vmatpush.bf16.msra.mxu0 %v9574
  %11738 = vmatpush.bf16.msra.mxu0 %v9567
  %11739 = vmatpush.bf16.msra.mxu0 %v9560
  %11740 = vmatmul.bf16.gmra.mxu0 %v6531
  %v11741 = vpop.f32.mrf.mxu0
  %v11742 = vadd.f32 %v11729, %v11741
  %v11743 = vpop.f32.mrf.mxu0
  %11744 = vdwg.mxu0
  %11745 = vmatpush.bf16.msra.mxu0 %v9665
  %11746 = vmatpush.bf16.msra.mxu0 %v9658
  %11747 = vmatpush.bf16.msra.mxu0 %v9651
  %11748 = vmatpush.bf16.msra.mxu0 %v9644
  %11749 = vmatpush.bf16.msra.mxu0 %v9637
  %11750 = vmatpush.bf16.msra.mxu0 %v9630
  %11751 = vmatpush.bf16.msra.mxu0 %v9623
  %11752 = vmatpush.bf16.msra.mxu0 %v9616
  %11753 = vmatmul.bf16.gmra.mxu0 %v6532
  %v11754 = vpop.f32.mrf.mxu0
  %v11755 = vadd.f32 %v11742, %v11754
  %v11756 = vpop.f32.mrf.mxu0
  %11757 = vdwg.mxu0
  %11758 = vmatpush.bf16.msra.mxu0 %v9721
  %11759 = vmatpush.bf16.msra.mxu0 %v9714
  %11760 = vmatpush.bf16.msra.mxu0 %v9707
  %11761 = vmatpush.bf16.msra.mxu0 %v9700
  %11762 = vmatpush.bf16.msra.mxu0 %v9693
  %11763 = vmatpush.bf16.msra.mxu0 %v9686
  %11764 = vmatpush.bf16.msra.mxu0 %v9679
  %11765 = vmatpush.bf16.msra.mxu0 %v9672
  %11766 = vmatmul.bf16.gmra.mxu0 %v6533
  %v11767 = vpop.f32.mrf.mxu0
  %v11768 = vadd.f32 %v11755, %v11767
  %v11769 = vpop.f32.mrf.mxu0
  %11770 = vdwg.mxu0
  %11771 = vmatpush.bf16.msra.mxu0 %v9777
  %11772 = vmatpush.bf16.msra.mxu0 %v9770
  %11773 = vmatpush.bf16.msra.mxu0 %v9763
  %11774 = vmatpush.bf16.msra.mxu0 %v9756
  %11775 = vmatpush.bf16.msra.mxu0 %v9749
  %11776 = vmatpush.bf16.msra.mxu0 %v9742
  %11777 = vmatpush.bf16.msra.mxu0 %v9735
  %11778 = vmatpush.bf16.msra.mxu0 %v9728
  %11779 = vmatmul.bf16.gmra.mxu0 %v6534
  %v11780 = vpop.f32.mrf.mxu0
  %v11781 = vadd.f32 %v11768, %v11780
  %v11782 = vpop.f32.mrf.mxu0
  %11783 = vdwg.mxu0
  %11784 = vmatpush.bf16.msra.mxu0 %v9833
  %11785 = vmatpush.bf16.msra.mxu0 %v9826
  %11786 = vmatpush.bf16.msra.mxu0 %v9819
  %11787 = vmatpush.bf16.msra.mxu0 %v9812
  %11788 = vmatpush.bf16.msra.mxu0 %v9805
  %11789 = vmatpush.bf16.msra.mxu0 %v9798
  %11790 = vmatpush.bf16.msra.mxu0 %v9791
  %11791 = vmatpush.bf16.msra.mxu0 %v9784
  %11792 = vmatmul.bf16.gmra.mxu0 %v6535
  %v11793 = vpop.f32.mrf.mxu0
  %v11794 = vadd.f32 %v11781, %v11793
  %v11795 = vpop.f32.mrf.mxu0
  %11796 = vdwg.mxu0
  %11797 = vmatpush.bf16.msra.mxu0 %v9889
  %11798 = vmatpush.bf16.msra.mxu0 %v9882
  %11799 = vmatpush.bf16.msra.mxu0 %v9875
  %11800 = vmatpush.bf16.msra.mxu0 %v9868
  %11801 = vmatpush.bf16.msra.mxu0 %v9861
  %11802 = vmatpush.bf16.msra.mxu0 %v9854
  %11803 = vmatpush.bf16.msra.mxu0 %v9847
  %11804 = vmatpush.bf16.msra.mxu0 %v9840
  %11805 = vmatmul.bf16.gmra.mxu0 %v6536
  %v11806 = vpop.f32.mrf.mxu0
  %v11807 = vadd.f32 %v11794, %v11806
  %v11808 = vpop.f32.mrf.mxu0
  %11809 = vdwg.mxu0
  %11810 = vmatpush.bf16.msra.mxu0 %v9945
  %11811 = vmatpush.bf16.msra.mxu0 %v9938
  %11812 = vmatpush.bf16.msra.mxu0 %v9931
  %11813 = vmatpush.bf16.msra.mxu0 %v9924
  %11814 = vmatpush.bf16.msra.mxu0 %v9917
  %11815 = vmatpush.bf16.msra.mxu0 %v9910
  %11816 = vmatpush.bf16.msra.mxu0 %v9903
  %11817 = vmatpush.bf16.msra.mxu0 %v9896
  %11818 = vmatmul.bf16.gmra.mxu0 %v6537
  %v11819 = vpop.f32.mrf.mxu0
  %v11820 = vadd.f32 %v11807, %v11819
  %v11821 = vpop.f32.mrf.mxu0
  %11822 = vdwg.mxu0
  %11823 = vmatpush.bf16.msra.mxu0 %v10001
  %11824 = vmatpush.bf16.msra.mxu0 %v9994
  %11825 = vmatpush.bf16.msra.mxu0 %v9987
  %11826 = vmatpush.bf16.msra.mxu0 %v9980
  %11827 = vmatpush.bf16.msra.mxu0 %v9973
  %11828 = vmatpush.bf16.msra.mxu0 %v9966
  %11829 = vmatpush.bf16.msra.mxu0 %v9959
  %11830 = vmatpush.bf16.msra.mxu0 %v9952
  %11831 = vmatmul.bf16.gmra.mxu0 %v6538
  %v11832 = vpop.f32.mrf.mxu0
  %v11833 = vadd.f32 %v11820, %v11832
  %v11834 = vpop.f32.mrf.mxu0
  %11835 = vdwg.mxu0
  %11836 = vmatpush.bf16.msra.mxu0 %v10057
  %11837 = vmatpush.bf16.msra.mxu0 %v10050
  %11838 = vmatpush.bf16.msra.mxu0 %v10043
  %11839 = vmatpush.bf16.msra.mxu0 %v10036
  %11840 = vmatpush.bf16.msra.mxu0 %v10029
  %11841 = vmatpush.bf16.msra.mxu0 %v10022
  %11842 = vmatpush.bf16.msra.mxu0 %v10015
  %11843 = vmatpush.bf16.msra.mxu0 %v10008
  %11844 = vmatmul.bf16.gmra.mxu0 %v6539
  %v11845 = vpop.f32.mrf.mxu0
  %v11846 = vadd.f32 %v11833, %v11845
  %v11847 = vpop.f32.mrf.mxu0
  %11848 = vdwg.mxu0
  %11849 = vmatpush.bf16.msra.mxu0 %v10113
  %11850 = vmatpush.bf16.msra.mxu0 %v10106
  %11851 = vmatpush.bf16.msra.mxu0 %v10099
  %11852 = vmatpush.bf16.msra.mxu0 %v10092
  %11853 = vmatpush.bf16.msra.mxu0 %v10085
  %11854 = vmatpush.bf16.msra.mxu0 %v10078
  %11855 = vmatpush.bf16.msra.mxu0 %v10071
  %11856 = vmatpush.bf16.msra.mxu0 %v10064
  %11857 = vmatmul.bf16.gmra.mxu0 %v6540
  %v11858 = vpop.f32.mrf.mxu0
  %v11859 = vadd.f32 %v11846, %v11858
  %v11860 = vpop.f32.mrf.mxu0
  %11861 = vdwg.mxu0
  %11862 = vmatpush.bf16.msra.mxu0 %v10169
  %11863 = vmatpush.bf16.msra.mxu0 %v10162
  %11864 = vmatpush.bf16.msra.mxu0 %v10155
  %11865 = vmatpush.bf16.msra.mxu0 %v10148
  %11866 = vmatpush.bf16.msra.mxu0 %v10141
  %11867 = vmatpush.bf16.msra.mxu0 %v10134
  %11868 = vmatpush.bf16.msra.mxu0 %v10127
  %11869 = vmatpush.bf16.msra.mxu0 %v10120
  %11870 = vmatmul.bf16.gmra.mxu0 %v6541
  %v11871 = vpop.f32.mrf.mxu0
  %v11872 = vadd.f32 %v11859, %v11871
  %v11873 = vpop.f32.mrf.mxu0
  %11874 = vdwg.mxu0
  %11875 = vmatpush.bf16.msra.mxu0 0
  %11876 = vmatpush.bf16.msra.mxu0 0
  %11877 = vmatpush.bf16.msra.mxu0 0
  %11878 = vmatpush.bf16.msra.mxu0 0
  %11879 = vmatpush.bf16.msra.mxu0 0
  %11880 = vmatpush.bf16.msra.mxu0 0
  %11881 = vmatpush.bf16.msra.mxu0 %v10183
  %11882 = vmatpush.bf16.msra.mxu0 %v10176
  %11883 = vmatmul.bf16.gmra.mxu0 %v10872
  %v11884 = vpop.f32.mrf.mxu0
  %v11885 = vadd.f32 %v11872, %v11884
  %v11886 = vpop.f32.mrf.mxu0
  %11887 = vdwg.mxu0
  %11888 = vmatpush.bf16.msra.mxu0 %v9554
  %11889 = vmatpush.bf16.msra.mxu0 %v9547
  %11890 = vmatpush.bf16.msra.mxu0 %v9540
  %11891 = vmatpush.bf16.msra.mxu0 %v9533
  %11892 = vmatpush.bf16.msra.mxu0 %v9526
  %11893 = vmatpush.bf16.msra.mxu0 %v9519
  %11894 = vmatpush.bf16.msra.mxu0 %v9512
  %11895 = vmatpush.bf16.msra.mxu0 %v9505
  %11896 = vmatmul.bf16.gmra.mxu0 %v6530
  %v11897 = vpop.f32.mrf.mxu0
  %v11898 = vadd.f32 %v7335, %v11897
  %v11899 = vpop.f32.mrf.mxu0
  %11900 = vdwg.mxu0
  %11901 = vmatpush.bf16.msra.mxu0 %v9610
  %11902 = vmatpush.bf16.msra.mxu0 %v9603
  %11903 = vmatpush.bf16.msra.mxu0 %v9596
  %11904 = vmatpush.bf16.msra.mxu0 %v9589
  %11905 = vmatpush.bf16.msra.mxu0 %v9582
  %11906 = vmatpush.bf16.msra.mxu0 %v9575
  %11907 = vmatpush.bf16.msra.mxu0 %v9568
  %11908 = vmatpush.bf16.msra.mxu0 %v9561
  %11909 = vmatmul.bf16.gmra.mxu0 %v6531
  %v11910 = vpop.f32.mrf.mxu0
  %v11911 = vadd.f32 %v11898, %v11910
  %v11912 = vpop.f32.mrf.mxu0
  %11913 = vdwg.mxu0
  %11914 = vmatpush.bf16.msra.mxu0 %v9666
  %11915 = vmatpush.bf16.msra.mxu0 %v9659
  %11916 = vmatpush.bf16.msra.mxu0 %v9652
  %11917 = vmatpush.bf16.msra.mxu0 %v9645
  %11918 = vmatpush.bf16.msra.mxu0 %v9638
  %11919 = vmatpush.bf16.msra.mxu0 %v9631
  %11920 = vmatpush.bf16.msra.mxu0 %v9624
  %11921 = vmatpush.bf16.msra.mxu0 %v9617
  %11922 = vmatmul.bf16.gmra.mxu0 %v6532
  %v11923 = vpop.f32.mrf.mxu0
  %v11924 = vadd.f32 %v11911, %v11923
  %v11925 = vpop.f32.mrf.mxu0
  %11926 = vdwg.mxu0
  %11927 = vmatpush.bf16.msra.mxu0 %v9722
  %11928 = vmatpush.bf16.msra.mxu0 %v9715
  %11929 = vmatpush.bf16.msra.mxu0 %v9708
  %11930 = vmatpush.bf16.msra.mxu0 %v9701
  %11931 = vmatpush.bf16.msra.mxu0 %v9694
  %11932 = vmatpush.bf16.msra.mxu0 %v9687
  %11933 = vmatpush.bf16.msra.mxu0 %v9680
  %11934 = vmatpush.bf16.msra.mxu0 %v9673
  %11935 = vmatmul.bf16.gmra.mxu0 %v6533
  %v11936 = vpop.f32.mrf.mxu0
  %v11937 = vadd.f32 %v11924, %v11936
  %v11938 = vpop.f32.mrf.mxu0
  %11939 = vdwg.mxu0
  %11940 = vmatpush.bf16.msra.mxu0 %v9778
  %11941 = vmatpush.bf16.msra.mxu0 %v9771
  %11942 = vmatpush.bf16.msra.mxu0 %v9764
  %11943 = vmatpush.bf16.msra.mxu0 %v9757
  %11944 = vmatpush.bf16.msra.mxu0 %v9750
  %11945 = vmatpush.bf16.msra.mxu0 %v9743
  %11946 = vmatpush.bf16.msra.mxu0 %v9736
  %11947 = vmatpush.bf16.msra.mxu0 %v9729
  %11948 = vmatmul.bf16.gmra.mxu0 %v6534
  %v11949 = vpop.f32.mrf.mxu0
  %v11950 = vadd.f32 %v11937, %v11949
  %v11951 = vpop.f32.mrf.mxu0
  %11952 = vdwg.mxu0
  %11953 = vmatpush.bf16.msra.mxu0 %v9834
  %11954 = vmatpush.bf16.msra.mxu0 %v9827
  %11955 = vmatpush.bf16.msra.mxu0 %v9820
  %11956 = vmatpush.bf16.msra.mxu0 %v9813
  %11957 = vmatpush.bf16.msra.mxu0 %v9806
  %11958 = vmatpush.bf16.msra.mxu0 %v9799
  %11959 = vmatpush.bf16.msra.mxu0 %v9792
  %11960 = vmatpush.bf16.msra.mxu0 %v9785
  %11961 = vmatmul.bf16.gmra.mxu0 %v6535
  %v11962 = vpop.f32.mrf.mxu0
  %v11963 = vadd.f32 %v11950, %v11962
  %v11964 = vpop.f32.mrf.mxu0
  %11965 = vdwg.mxu0
  %11966 = vmatpush.bf16.msra.mxu0 %v9890
  %11967 = vmatpush.bf16.msra.mxu0 %v9883
  %11968 = vmatpush.bf16.msra.mxu0 %v9876
  %11969 = vmatpush.bf16.msra.mxu0 %v9869
  %11970 = vmatpush.bf16.msra.mxu0 %v9862
  %11971 = vmatpush.bf16.msra.mxu0 %v9855
  %11972 = vmatpush.bf16.msra.mxu0 %v9848
  %11973 = vmatpush.bf16.msra.mxu0 %v9841
  %11974 = vmatmul.bf16.gmra.mxu0 %v6536
  %v11975 = vpop.f32.mrf.mxu0
  %v11976 = vadd.f32 %v11963, %v11975
  %v11977 = vpop.f32.mrf.mxu0
  %11978 = vdwg.mxu0
  %11979 = vmatpush.bf16.msra.mxu0 %v9946
  %11980 = vmatpush.bf16.msra.mxu0 %v9939
  %11981 = vmatpush.bf16.msra.mxu0 %v9932
  %11982 = vmatpush.bf16.msra.mxu0 %v9925
  %11983 = vmatpush.bf16.msra.mxu0 %v9918
  %11984 = vmatpush.bf16.msra.mxu0 %v9911
  %11985 = vmatpush.bf16.msra.mxu0 %v9904
  %11986 = vmatpush.bf16.msra.mxu0 %v9897
  %11987 = vmatmul.bf16.gmra.mxu0 %v6537
  %v11988 = vpop.f32.mrf.mxu0
  %v11989 = vadd.f32 %v11976, %v11988
  %v11990 = vpop.f32.mrf.mxu0
  %11991 = vdwg.mxu0
  %11992 = vmatpush.bf16.msra.mxu0 %v10002
  %11993 = vmatpush.bf16.msra.mxu0 %v9995
  %11994 = vmatpush.bf16.msra.mxu0 %v9988
  %11995 = vmatpush.bf16.msra.mxu0 %v9981
  %11996 = vmatpush.bf16.msra.mxu0 %v9974
  %11997 = vmatpush.bf16.msra.mxu0 %v9967
  %11998 = vmatpush.bf16.msra.mxu0 %v9960
  %11999 = vmatpush.bf16.msra.mxu0 %v9953
  %12000 = vmatmul.bf16.gmra.mxu0 %v6538
  %v12001 = vpop.f32.mrf.mxu0
  %v12002 = vadd.f32 %v11989, %v12001
  %v12003 = vpop.f32.mrf.mxu0
  %12004 = vdwg.mxu0
  %12005 = vmatpush.bf16.msra.mxu0 %v10058
  %12006 = vmatpush.bf16.msra.mxu0 %v10051
  %12007 = vmatpush.bf16.msra.mxu0 %v10044
  %12008 = vmatpush.bf16.msra.mxu0 %v10037
  %12009 = vmatpush.bf16.msra.mxu0 %v10030
  %12010 = vmatpush.bf16.msra.mxu0 %v10023
  %12011 = vmatpush.bf16.msra.mxu0 %v10016
  %12012 = vmatpush.bf16.msra.mxu0 %v10009
  %12013 = vmatmul.bf16.gmra.mxu0 %v6539
  %v12014 = vpop.f32.mrf.mxu0
  %v12015 = vadd.f32 %v12002, %v12014
  %v12016 = vpop.f32.mrf.mxu0
  %12017 = vdwg.mxu0
  %12018 = vmatpush.bf16.msra.mxu0 %v10114
  %12019 = vmatpush.bf16.msra.mxu0 %v10107
  %12020 = vmatpush.bf16.msra.mxu0 %v10100
  %12021 = vmatpush.bf16.msra.mxu0 %v10093
  %12022 = vmatpush.bf16.msra.mxu0 %v10086
  %12023 = vmatpush.bf16.msra.mxu0 %v10079
  %12024 = vmatpush.bf16.msra.mxu0 %v10072
  %12025 = vmatpush.bf16.msra.mxu0 %v10065
  %12026 = vmatmul.bf16.gmra.mxu0 %v6540
  %v12027 = vpop.f32.mrf.mxu0
  %v12028 = vadd.f32 %v12015, %v12027
  %v12029 = vpop.f32.mrf.mxu0
  %12030 = vdwg.mxu0
  %12031 = vmatpush.bf16.msra.mxu0 %v10170
  %12032 = vmatpush.bf16.msra.mxu0 %v10163
  %12033 = vmatpush.bf16.msra.mxu0 %v10156
  %12034 = vmatpush.bf16.msra.mxu0 %v10149
  %12035 = vmatpush.bf16.msra.mxu0 %v10142
  %12036 = vmatpush.bf16.msra.mxu0 %v10135
  %12037 = vmatpush.bf16.msra.mxu0 %v10128
  %12038 = vmatpush.bf16.msra.mxu0 %v10121
  %12039 = vmatmul.bf16.gmra.mxu0 %v6541
  %v12040 = vpop.f32.mrf.mxu0
  %v12041 = vadd.f32 %v12028, %v12040
  %v12042 = vpop.f32.mrf.mxu0
  %12043 = vdwg.mxu0
  %12044 = vmatpush.bf16.msra.mxu0 0
  %12045 = vmatpush.bf16.msra.mxu0 0
  %12046 = vmatpush.bf16.msra.mxu0 0
  %12047 = vmatpush.bf16.msra.mxu0 0
  %12048 = vmatpush.bf16.msra.mxu0 0
  %12049 = vmatpush.bf16.msra.mxu0 0
  %12050 = vmatpush.bf16.msra.mxu0 %v10184
  %12051 = vmatpush.bf16.msra.mxu0 %v10177
  %12052 = vmatmul.bf16.gmra.mxu0 %v10872
  %v12053 = vpop.f32.mrf.mxu0
  %v12054 = vadd.f32 %v12041, %v12053
  %v12055 = vpop.f32.mrf.mxu0
  %12056 = vdwg.mxu0
  %v12057 = vxor.u32 %v11040, 2147483648
  %v12058 = vxor.u32 %v11209, 2147483648
  %v12059 = vxor.u32 %v11378, 2147483648
  %v12060 = vxor.u32 %v11547, 2147483648
  %v12061 = vxor.u32 %v11716, 2147483648
  %v12062 = vxor.u32 %v11885, 2147483648
  %v12063 = vxor.u32 %v12054, 2147483648
  %v12064 = vmul.f32 %v12057, 1.442695
  %v12065 = vpow.pop %v12064
  %v12066 = vmul.f32 %v12058, 1.442695
  %v12067 = vpow.pop %v12066
  %v12068 = vmul.f32 %v12059, 1.442695
  %v12069 = vpow.pop %v12068
  %v12070 = vmul.f32 %v12060, 1.442695
  %v12071 = vpow.pop %v12070
  %v12072 = vmul.f32 %v12061, 1.442695
  %v12073 = vpow.pop %v12072
  %v12074 = vmul.f32 %v12062, 1.442695
  %v12075 = vpow.pop %v12074
  %v12076 = vmul.f32 %v12063, 1.442695
  %v12077 = vpow.pop %v12076
  %v12078 = vadd.f32 %v12065, 1.0
  %v12079 = vadd.f32 %v12067, 1.0
  %v12080 = vadd.f32 %v12069, 1.0
  %v12081 = vadd.f32 %v12071, 1.0
  %v12082 = vadd.f32 %v12073, 1.0
  %v12083 = vadd.f32 %v12075, 1.0
  %v12084 = vadd.f32 %v12077, 1.0
  %v12085 = vrcp.pop %v12078
  %v12086 = vmul.f32 %v12078, %v12085
  %v12087 = vsub.f32 1.0, %v12086
  %v12088 = vmul.f32 %v12085, %v12087
  %v12089 = vadd.f32 %v12085, %v12088
  %vm12090 = vweird.f32 %v12078
  %vm12091 = vweird.f32 %v12085
  %vm12092 = vmor %vm12090, %vm12091
  %v12093 = vsel %vm12092, %v12085, %v12089
  %v12094 = vand.u32 2147483647, %v12078
  %vm12095 = vcmp.eq.f32.partialorder %v12094, 8.507059e+37
  %v12096 = vand.u32 %v12078, 2147483648
  %v12097 = vor.u32 1.1754944e-38, %v12096
  %v12098 = vsel %vm12095, %v12097, %v12093
  %v12099 = vmul.f32 1.0, %v12098
  %v12100 = vrcp.pop %v12079
  %v12101 = vmul.f32 %v12079, %v12100
  %v12102 = vsub.f32 1.0, %v12101
  %v12103 = vmul.f32 %v12100, %v12102
  %v12104 = vadd.f32 %v12100, %v12103
  %vm12105 = vweird.f32 %v12079
  %vm12106 = vweird.f32 %v12100
  %vm12107 = vmor %vm12105, %vm12106
  %v12108 = vsel %vm12107, %v12100, %v12104
  %v12109 = vand.u32 2147483647, %v12079
  %vm12110 = vcmp.eq.f32.partialorder %v12109, 8.507059e+37
  %v12111 = vand.u32 %v12079, 2147483648
  %v12112 = vor.u32 1.1754944e-38, %v12111
  %v12113 = vsel %vm12110, %v12112, %v12108
  %v12114 = vmul.f32 1.0, %v12113
  %v12115 = vrcp.pop %v12080
  %v12116 = vmul.f32 %v12080, %v12115
  %v12117 = vsub.f32 1.0, %v12116
  %v12118 = vmul.f32 %v12115, %v12117
  %v12119 = vadd.f32 %v12115, %v12118
  %vm12120 = vweird.f32 %v12080
  %vm12121 = vweird.f32 %v12115
  %vm12122 = vmor %vm12120, %vm12121
  %v12123 = vsel %vm12122, %v12115, %v12119
  %v12124 = vand.u32 2147483647, %v12080
  %vm12125 = vcmp.eq.f32.partialorder %v12124, 8.507059e+37
  %v12126 = vand.u32 %v12080, 2147483648
  %v12127 = vor.u32 1.1754944e-38, %v12126
  %v12128 = vsel %vm12125, %v12127, %v12123
  %v12129 = vmul.f32 1.0, %v12128
  %v12130 = vrcp.pop %v12081
  %v12131 = vmul.f32 %v12081, %v12130
  %v12132 = vsub.f32 1.0, %v12131
  %v12133 = vmul.f32 %v12130, %v12132
  %v12134 = vadd.f32 %v12130, %v12133
  %vm12135 = vweird.f32 %v12081
  %vm12136 = vweird.f32 %v12130
  %vm12137 = vmor %vm12135, %vm12136
  %v12138 = vsel %vm12137, %v12130, %v12134
  %v12139 = vand.u32 2147483647, %v12081
  %vm12140 = vcmp.eq.f32.partialorder %v12139, 8.507059e+37
  %v12141 = vand.u32 %v12081, 2147483648
  %v12142 = vor.u32 1.1754944e-38, %v12141
  %v12143 = vsel %vm12140, %v12142, %v12138
  %v12144 = vmul.f32 1.0, %v12143
  %v12145 = vrcp.pop %v12082
  %v12146 = vmul.f32 %v12082, %v12145
  %v12147 = vsub.f32 1.0, %v12146
  %v12148 = vmul.f32 %v12145, %v12147
  %v12149 = vadd.f32 %v12145, %v12148
  %vm12150 = vweird.f32 %v12082
  %vm12151 = vweird.f32 %v12145
  %vm12152 = vmor %vm12150, %vm12151
  %v12153 = vsel %vm12152, %v12145, %v12149
  %v12154 = vand.u32 2147483647, %v12082
  %vm12155 = vcmp.eq.f32.partialorder %v12154, 8.507059e+37
  %v12156 = vand.u32 %v12082, 2147483648
  %v12157 = vor.u32 1.1754944e-38, %v12156
  %v12158 = vsel %vm12155, %v12157, %v12153
  %v12159 = vmul.f32 1.0, %v12158
  %v12160 = vrcp.pop %v12083
  %v12161 = vmul.f32 %v12083, %v12160
  %v12162 = vsub.f32 1.0, %v12161
  %v12163 = vmul.f32 %v12160, %v12162
  %v12164 = vadd.f32 %v12160, %v12163
  %vm12165 = vweird.f32 %v12083
  %vm12166 = vweird.f32 %v12160
  %vm12167 = vmor %vm12165, %vm12166
  %v12168 = vsel %vm12167, %v12160, %v12164
  %v12169 = vand.u32 2147483647, %v12083
  %vm12170 = vcmp.eq.f32.partialorder %v12169, 8.507059e+37
  %v12171 = vand.u32 %v12083, 2147483648
  %v12172 = vor.u32 1.1754944e-38, %v12171
  %v12173 = vsel %vm12170, %v12172, %v12168
  %v12174 = vmul.f32 1.0, %v12173
  %v12175 = vrcp.pop %v12084
  %v12176 = vmul.f32 %v12084, %v12175
  %v12177 = vsub.f32 1.0, %v12176
  %v12178 = vmul.f32 %v12175, %v12177
  %v12179 = vadd.f32 %v12175, %v12178
  %vm12180 = vweird.f32 %v12084
  %vm12181 = vweird.f32 %v12175
  %vm12182 = vmor %vm12180, %vm12181
  %v12183 = vsel %vm12182, %v12175, %v12179
  %v12184 = vand.u32 2147483647, %v12084
  %vm12185 = vcmp.eq.f32.partialorder %v12184, 8.507059e+37
  %v12186 = vand.u32 %v12084, 2147483648
  %v12187 = vor.u32 1.1754944e-38, %v12186
  %v12188 = vsel %vm12185, %v12187, %v12183
  %v12189 = vmul.f32 1.0, %v12188
  %v12197 = vrot.slane %v12114, 6
  %v12198 = vrot.slane %v12129, 4
  %v12199 = vrot.slane %v12144, 2
  %v12200 = vrot.slane %v12174, 6
  %v12201 = vrot.slane %v12189, 4
  %vm12202 = vcmask 1041408
  %v12203 = vsel %vm12202, %v12099, %v12197
  %vm12204 = vcmask 1045508
  %v12205 = vsel %vm12204, %v12198, %v12199
  %v12206 = vsel %vm49, %v12203, %v12205
  %v12207 = vsel %vm12202, %v12159, %v12200
  %v12208 = vsel %vm49, %v12207, %v12201
  %12211 = vst [vmem:[%s11] sm:$0xff] %v12206
  %vm12212 = vcmask 1043458
  %vm12213 = vmor %vm12212, %vm12202
  %vm12214 = vcmask 128004
  %vm12215 = vmor %vm12214, %vm12213
  %12216 = vst.msk [vmem:[%s11 + $0x8] sm:$0x3f] %vm12215, %v12208
  // Predicated region
  $region46: #{decoder_forward.1} parent=0 // pred_check
    _
  $region47: #{decoder_forward.1} parent=0 // pred_check_branch
    %12218 = sbr.rel (0) target = $region49
  $region48: #{decoder_forward.1} parent=0 // pred_region
    _
  $region49: #{decoder_forward.1} parent=0 // pred_fallthru
    _
  // Predicated region
  $region50: #{decoder_forward.1} parent=0 // pred_check
    _
  $region51: #{decoder_forward.1} parent=0 // pred_check_branch
    %12220 = sbr.rel (0) target = $region53
  $region52: #{decoder_forward.1} parent=0 // pred_region
    _
  $region53: #{decoder_forward.1} parent=0 // pred_fallthru
    _

</llo_original>
